<compile_context>
chip_gen: v7x
topology: tpu7x:2x2x1
jax: 0.10.0
libtpu: 0.0.40
codegen_flags: <defaults>
</compile_context>

<pallas_src>
import functools
import math

import jax
import jax.numpy as jnp
from jax.experimental import pallas as pl
from jax.experimental.pallas import tpu as pltpu


def _pos_sin_kernel(*refs, F, normalize, scale, eps):
    if normalize:
        nm_ref, mx_ref, my_ref, cx_ref, cy_ref, inv_ref, ph_ref, out_ref = refs
    else:
        nm_ref, mx_ref, my_ref, inv_ref, ph_ref, out_ref = refs

    nm = nm_ref[...]                       # (Bt, HW) bf16 (1.0 = valid, 0.0 = pad)
    Bt, HW = nm.shape

    # Cumulative sums as lane-dense MXU matmuls over the whole batch block
    # (exact: 0/1 bf16 inputs, f32 accumulation).
    x_e = jnp.dot(nm, mx_ref[...], preferred_element_type=jnp.float32)   # (Bt, HW)
    y_e = jnp.dot(nm, my_ref[...], preferred_element_type=jnp.float32)   # (Bt, HW)

    if normalize:
        # Denominators (row / column totals broadcast to every position), also
        # on the MXU; one divide over the tiny (Bt, HW) block, then multiply.
        x_den = jnp.dot(nm, cx_ref[...], preferred_element_type=jnp.float32)
        y_den = jnp.dot(nm, cy_ref[...], preferred_element_type=jnp.float32)
        x_e = x_e * (scale / (x_den + eps))
        y_e = y_e * (scale / (y_den + eps))

    inv_dim = inv_ref[...].reshape(1, F, 1)   # 1 / dim_t (precomputed reciprocal)
    phase = ph_ref[...].reshape(1, F, 1)      # 0 (even channel) / pi/2 (odd channel)

    # PyTorch's stack/flatten interleave == sin on even channels, cos on odd
    # (dim_t[2j] == dim_t[2j+1]); cos(t) = sin(t + pi/2), so a single EUP sin
    # over (Bt, F, HW) per embedding suffices.  Write the halves directly.
    y_e = y_e.reshape(Bt, 1, HW)
    x_e = x_e.reshape(Bt, 1, HW)
    out_ref[:, 0:F, :] = jnp.sin(y_e * inv_dim + phase)        # (Bt, F, HW)
    out_ref[:, F:2 * F, :] = jnp.sin(x_e * inv_dim + phase)    # (Bt, F, HW)


def position_by_sin_pallas(mask_bool, num_pos_feats=64, temperature=10000,
                           normalize=False, scale=None, batch_block=None):
    """mask_bool: (B, H, W) bool, True == padding. Returns (B, 2F, H, W) f32."""
    if scale is True and normalize is False:
        raise ValueError("normalize should be True if scale is True")
    scale_val = 2.0 * math.pi if scale is None else float(scale)

    B, H, W = mask_bool.shape
    F = num_pos_feats
    HW = H * W

    if batch_block is None:
        # Prefer >=2 grid steps (so the "parallel" batch axis can shard across
        # v7x's two TensorCores) with a sublane-aligned block (multiple of 8,
        # which also fills the MXU M-dim); otherwise take the whole batch in a
        # single step (block == full array keeps the BlockSpec legal for any B).
        cand = [d for d in range(8, B, 8) if B % d == 0]
        batch_block = max(cand) if cand else B
    Bt = batch_block
    assert B % Bt == 0 and (Bt == B or Bt % 8 == 0), \
        "batch_block must divide B and be a multiple of 8 (or equal to B)"
    grid = (B // Bt,)

    # ---- grid-invariant constants, built once on the host ---------------------
    q = jnp.arange(HW, dtype=jnp.int32)
    row = q // W
    col = q % W
    # x cumsum (along W):  x_flat = nm_flat @ Mx
    Mx = ((row[:, None] == row[None, :]) &
          (col[:, None] <= col[None, :])).astype(jnp.bfloat16)
    # y cumsum (along H):  y_flat = nm_flat @ My
    My = ((col[:, None] == col[None, :]) &
          (row[:, None] <= row[None, :])).astype(jnp.bfloat16)

    k = jnp.arange(F, dtype=jnp.float32)
    dim_t = jnp.float32(temperature) ** (2.0 * jnp.floor(k / 2.0) / F)
    inv_dim = (1.0 / dim_t).reshape(F, 1).astype(jnp.float32)
    phase = jnp.where((jnp.arange(F) % 2) == 1,
                      jnp.float32(0.5 * math.pi), jnp.float32(0.0))
    phase = phase.reshape(F, 1).astype(jnp.float32)

    # flattened, lane-dense not-mask (1.0 = valid); reshape in HBM is free.
    nm_flat = (~mask_bool).astype(jnp.bfloat16).reshape(B, HW)

    inputs = [nm_flat, Mx, My]
    in_specs = [
        pl.BlockSpec((Bt, HW), lambda g: (g, 0)),
        pl.BlockSpec((HW, HW), lambda g: (0, 0)),   # constant: fetched once
        pl.BlockSpec((HW, HW), lambda g: (0, 0)),   # constant: fetched once
    ]
    if normalize:
        Cx = (row[:, None] == row[None, :]).astype(jnp.bfloat16)  # row totals
        Cy = (col[:, None] == col[None, :]).astype(jnp.bfloat16)  # column totals
        inputs += [Cx, Cy]
        in_specs += [pl.BlockSpec((HW, HW), lambda g: (0, 0)),
                     pl.BlockSpec((HW, HW), lambda g: (0, 0))]
    inputs += [inv_dim, phase]
    in_specs += [pl.BlockSpec((F, 1), lambda g: (0, 0)),
                 pl.BlockSpec((F, 1), lambda g: (0, 0))]

    kernel = functools.partial(
        _pos_sin_kernel, F=F, normalize=normalize, scale=scale_val, eps=1e-6)

    out = pl.pallas_call(
        kernel,
        out_shape=jax.ShapeDtypeStruct((B, 2 * F, HW), jnp.float32),
        grid_spec=pltpu.PrefetchScalarGridSpec(
            num_scalar_prefetch=0,
            grid=grid,
            in_specs=in_specs,
            out_specs=pl.BlockSpec((Bt, 2 * F, HW), lambda g: (g, 0, 0)),
        ),
        compiler_params=pltpu.CompilerParams(
            dimension_semantics=("parallel",),          # shards batch on v7x 2xTC
            vmem_limit_bytes=32 * 1024 * 1024),         # explicit, safe on v5e/v6e/v7x
    )(*inputs)

    # (B, 2F, H*W) -> (B, 2F, H, W): free reshape (contiguous trailing dims).
    return out.reshape(B, 2 * F, H, W)


def position_by_sin_ref(mask_bool, num_pos_feats=64, temperature=10000,
                        normalize=False, scale=None):
    """Pure-JAX reference mirroring the PyTorch forward exactly."""
    scale_val = 2.0 * math.pi if scale is None else float(scale)
    not_mask = (~mask_bool).astype(jnp.float32)
    y_embed = jnp.cumsum(not_mask, axis=1)
    x_embed = jnp.cumsum(not_mask, axis=2)
    if normalize:
        eps = 1e-6
        y_embed = y_embed / (y_embed[:, -1:, :] + eps) * scale_val
        x_embed = x_embed / (x_embed[:, :, -1:] + eps) * scale_val
    dim_t = jnp.arange(num_pos_feats, dtype=jnp.float32)
    dim_t = temperature ** (2 * jnp.floor(dim_t / 2) / num_pos_feats)
    pos_x = x_embed[:, :, :, None] / dim_t
    pos_y = y_embed[:, :, :, None] / dim_t
    B, H, W, _ = pos_x.shape
    pos_x = jnp.stack(
        (jnp.sin(pos_x[:, :, :, 0::2]), jnp.cos(pos_x[:, :, :, 1::2])),
        axis=4).reshape(B, H, W, -1)
    pos_y = jnp.stack(
        (jnp.sin(pos_y[:, :, :, 0::2]), jnp.cos(pos_y[:, :, :, 1::2])),
        axis=4).reshape(B, H, W, -1)
    pos = jnp.concatenate((pos_y, pos_x), axis=3).transpose(0, 3, 1, 2)
    return pos


if __name__ == "__main__":
    key = jax.random.PRNGKey(0)
    B, C, H, W = 2, 4, 16, 16
    num_pos_feats = 64

    kx, km = jax.random.split(key)
    # x (the NestedTensor.tensors) is only used for device placement in the
    # PyTorch forward; the positional encoding depends only on the mask.
    x = jax.random.normal(kx, (B, C, H, W), dtype=jnp.float32)
    mask = jax.random.bernoulli(km, 0.25, (B, H, W))  # True == padding

    pos = jax.block_until_ready(
        position_by_sin_pallas(mask, num_pos_feats=num_pos_feats))
    ref = position_by_sin_ref(mask, num_pos_feats=num_pos_feats)
    assert pos.shape == (B, 2 * num_pos_feats, H, W), pos.shape
    assert jnp.allclose(pos, ref, atol=1e-4, rtol=1e-4), float(
        jnp.max(jnp.abs(pos - ref)))

    # normalized variant (the common DETR configuration)
    pos_n = jax.block_until_ready(
        position_by_sin_pallas(mask, num_pos_feats=num_pos_feats, normalize=True))
    ref_n = position_by_sin_ref(mask, num_pos_feats=num_pos_feats, normalize=True)
    assert jnp.allclose(pos_n, ref_n, atol=1e-4, rtol=1e-4), float(
        jnp.max(jnp.abs(pos_n - ref_n)))

    print("KERNEL_OK")
</pallas_src>

<mosaic_0001>
module attributes {stable_mosaic.version = 11 : i64} {
  func.func @_pos_sin_kernel(%arg0: i32, %arg1: memref<2x256xbf16, #tpu.memory_space<vmem>>, %arg2: memref<256x256xbf16, #tpu.memory_space<vmem>>, %arg3: memref<256x256xbf16, #tpu.memory_space<vmem>>, %arg4: memref<64x1xf32, #tpu.memory_space<vmem>>, %arg5: memref<64x1xf32, #tpu.memory_space<vmem>>, %arg6: memref<2x128x256xf32, #tpu.memory_space<vmem>>) attributes {dimension_semantics = [#tpu.dimension_semantics<parallel>], iteration_bounds = array<i64: 1>, scalar_prefetch = 0 : i64, scratch_operands = 0 : i64, tpu.core_type = #tpu.core_type<tc>, window_params = [{transform_indices = @transform_0, window_bounds = array<i64: 2, 256>}, {pipeline_mode = #tpu.pipeline_mode<synchronous>, transform_indices = @transform_1, window_bounds = array<i64: 256, 256>}, {pipeline_mode = #tpu.pipeline_mode<synchronous>, transform_indices = @transform_2, window_bounds = array<i64: 256, 256>}, {pipeline_mode = #tpu.pipeline_mode<synchronous>, transform_indices = @transform_3, window_bounds = array<i64: 64, 1>}, {pipeline_mode = #tpu.pipeline_mode<synchronous>, transform_indices = @transform_4, window_bounds = array<i64: 64, 1>}, {transform_indices = @transform_5, window_bounds = array<i64: 2, 128, 256>}]} {
    %c0 = arith.constant 0 : index
    %c0_0 = arith.constant 0 : index
    %0 = vector.load %arg1[%c0, %c0_0] : memref<2x256xbf16, #tpu.memory_space<vmem>>, vector<2x256xbf16>
    %c0_1 = arith.constant 0 : index
    %c0_2 = arith.constant 0 : index
    %1 = vector.load %arg2[%c0_1, %c0_2] : memref<256x256xbf16, #tpu.memory_space<vmem>>, vector<256x256xbf16>
    %cst = arith.constant dense<0.000000e+00> : vector<2x256xf32>
    %2 = tpu.matmul %0, %1, %cst {dimension_numbers = #tpu.dot_dimension_numbers<[1], [0], [0], [1], [0, 0, 1, 1], [], []>} : vector<2x256xbf16>, vector<256x256xbf16>, vector<2x256xf32> -> vector<2x256xf32>
    %c0_3 = arith.constant 0 : index
    %c0_4 = arith.constant 0 : index
    %3 = vector.load %arg3[%c0_3, %c0_4] : memref<256x256xbf16, #tpu.memory_space<vmem>>, vector<256x256xbf16>
    %cst_5 = arith.constant dense<0.000000e+00> : vector<2x256xf32>
    %4 = tpu.matmul %0, %3, %cst_5 {dimension_numbers = #tpu.dot_dimension_numbers<[1], [0], [0], [1], [0, 0, 1, 1], [], []>} : vector<2x256xbf16>, vector<256x256xbf16>, vector<2x256xf32> -> vector<2x256xf32>
    %c0_6 = arith.constant 0 : index
    %c0_7 = arith.constant 0 : index
    %5 = vector.load %arg4[%c0_6, %c0_7] : memref<64x1xf32, #tpu.memory_space<vmem>>, vector<64x1xf32>
    %6 = vector.shape_cast %5 : vector<64x1xf32> to vector<1x64x1xf32>
    %c0_8 = arith.constant 0 : index
    %c0_9 = arith.constant 0 : index
    %7 = vector.load %arg5[%c0_8, %c0_9] : memref<64x1xf32, #tpu.memory_space<vmem>>, vector<64x1xf32>
    %8 = vector.shape_cast %7 : vector<64x1xf32> to vector<1x64x1xf32>
    %9 = vector.shape_cast %4 : vector<2x256xf32> to vector<2x1x256xf32>
    %10 = vector.shape_cast %2 : vector<2x256xf32> to vector<2x1x256xf32>
    %11 = vector.broadcast %9 : vector<2x1x256xf32> to vector<2x64x256xf32>
    %12 = vector.broadcast %6 : vector<1x64x1xf32> to vector<2x64x256xf32>
    %13 = arith.mulf %11, %12 : vector<2x64x256xf32>
    %14 = vector.broadcast %8 : vector<1x64x1xf32> to vector<2x64x256xf32>
    %15 = arith.addf %13, %14 : vector<2x64x256xf32>
    %16 = math.sin %15 : vector<2x64x256xf32>
    %c0_10 = arith.constant 0 : index
    %c0_11 = arith.constant 0 : index
    %c0_12 = arith.constant 0 : index
    %17 = vector.load %arg6[%c0_10, %c0_11, %c0_12] : memref<2x128x256xf32, #tpu.memory_space<vmem>>, vector<2x64x256xf32>
    tpu.vector_store %arg6[%c0_10, %c0_11, %c0_12], %16 {strides = array<i32>} : memref<2x128x256xf32, #tpu.memory_space<vmem>>, vector<2x64x256xf32>,
    %18 = vector.broadcast %10 : vector<2x1x256xf32> to vector<2x64x256xf32>
    %19 = vector.broadcast %6 : vector<1x64x1xf32> to vector<2x64x256xf32>
    %20 = arith.mulf %18, %19 : vector<2x64x256xf32>
    %21 = vector.broadcast %8 : vector<1x64x1xf32> to vector<2x64x256xf32>
    %22 = arith.addf %20, %21 : vector<2x64x256xf32>
    %23 = math.sin %22 : vector<2x64x256xf32>
    %c0_13 = arith.constant 0 : index
    %c64 = arith.constant 64 : index
    %c0_14 = arith.constant 0 : index
    %24 = vector.load %arg6[%c0_13, %c64, %c0_14] : memref<2x128x256xf32, #tpu.memory_space<vmem>>, vector<2x64x256xf32>
    tpu.vector_store %arg6[%c0_13, %c64, %c0_14], %23 {strides = array<i32>} : memref<2x128x256xf32, #tpu.memory_space<vmem>>, vector<2x64x256xf32>,
    return
  }
  func.func @transform_0(%arg0: i32) -> (i32, i32) {
    %c0_i32 = arith.constant 0 : i32
    %c0_i32_0 = arith.constant 0 : i32
    return %arg0, %c0_i32 : i32, i32
  }
  func.func @transform_1(%arg0: i32) -> (i32, i32) {
    %c0_i32 = arith.constant 0 : i32
    %c0_i32_0 = arith.constant 0 : i32
    %c0_i32_1 = arith.constant 0 : i32
    return %c0_i32, %c0_i32_0 : i32, i32
  }
  func.func @transform_2(%arg0: i32) -> (i32, i32) {
    %c0_i32 = arith.constant 0 : i32
    %c0_i32_0 = arith.constant 0 : i32
    %c0_i32_1 = arith.constant 0 : i32
    return %c0_i32, %c0_i32_0 : i32, i32
  }
  func.func @transform_3(%arg0: i32) -> (i32, i32) {
    %c0_i32 = arith.constant 0 : i32
    %c0_i32_0 = arith.constant 0 : i32
    %c0_i32_1 = arith.constant 0 : i32
    return %c0_i32, %c0_i32_0 : i32, i32
  }
  func.func @transform_4(%arg0: i32) -> (i32, i32) {
    %c0_i32 = arith.constant 0 : i32
    %c0_i32_0 = arith.constant 0 : i32
    %c0_i32_1 = arith.constant 0 : i32
    return %c0_i32, %c0_i32_0 : i32, i32
  }
  func.func @transform_5(%arg0: i32) -> (i32, i32, i32) {
    %c0_i32 = arith.constant 0 : i32
    %c0_i32_0 = arith.constant 0 : i32
    %c0_i32_1 = arith.constant 0 : i32
    return %arg0, %c0_i32, %c0_i32_0 : i32, i32, i32
  }
}

</mosaic_0001>

<llo_original>
// kernel: tpu_custom_call.1
$region0: #{tpu_custom_call.1}
  #allocation0 [shape = 'u32[]', space=smem, size = 0x4, offset = 0x4, fixed_abs, tag = 'smem constant byte address 0x4 - core index']
  #allocation1 [shape = 'u32[144,128]{1,0:T(1,128)}', space=vmem, size = 0x12000, scoped, tag = 'internal scratch']
  %s0 = inlined_call_operand.vmem [shape: bf16[2,256], index: 0, kind: input, shape index: {}]
  %s1 = inlined_call_operand.hbm [shape: bf16[256,256], index: 1, kind: input, shape index: {}]
  %s2 = inlined_call_operand.hbm [shape: bf16[256,256], index: 2, kind: input, shape index: {}]
  %s3 = inlined_call_operand.vmem [shape: f32[64,1], index: 3, kind: input, shape index: {}]
  %s4 = inlined_call_operand.vmem [shape: f32[64,1], index: 4, kind: input, shape index: {}]
  %s5 = inlined_call_operand.hbm [shape: f32[2,128,256], index: 5, kind: output, shape index: {}]
  %s6 = sld [smem:[#allocation0]]
  $region38: #{tpu_custom_call.1} parent=0
    _
  %s8 = ssub.s32 1, %s6
  %s9 = scalar_select 0, %s8, %s6
  $region1: #{tpu_custom_call.1} parent=0
    #allocation2 [shape = 'u8[131072]{0}', space=vmem, size = 0x20000, scoped, tag = 'input window, operand 1, single buffered']
    #allocation3 [shape = 's32[1]{0}', space=sflag, size = 0x4, scoped, tag = 'scoped memory for tpu_custom_call.1']
    #allocation4 [shape = 's32[1]{0}', space=sflag, size = 0x4, scoped, tag = 'scoped memory for tpu_custom_call.1']
    #allocation5 [shape = 'u8[131072]{0}', space=vmem, size = 0x20000, scoped, tag = 'input window, operand 2, single buffered']
    #allocation6 [shape = 's32[1]{0}', space=sflag, size = 0x4, scoped, tag = 'scoped memory for tpu_custom_call.1']
    #allocation7 [shape = 'u8[262144]{0}', space=vmem, size = 0x40000, scoped, tag = 'output window, operand 0, single buffered']
    %10 = vsyncpa [#allocation3], 0
    %11 = vsyncpa [#allocation6], 0
    %12 = vsyncpa [#allocation4], 0
    // Predicated region
    $region2: #{tpu_custom_call.1} parent=1 // pred_check
      _
    $region3: #{tpu_custom_call.1} parent=1 // pred_check_branch
      %14 = sbr.rel (0) target = $region5
    $region4: #{tpu_custom_call.1} parent=1 // pred_region
      _
    $region5: #{tpu_custom_call.1} parent=1 // pred_fallthru
      _
    // Predicated region
    $region6: #{tpu_custom_call.1} parent=1 // pred_check
      _
    $region7: #{tpu_custom_call.1} parent=1 // pred_check_branch
      %16 = sbr.rel (0) target = $region9
    $region8: #{tpu_custom_call.1} parent=1 // pred_region
      %s18 = ssub.s32 4096, 4096
      %19 = vsyncadd [#allocation3], %s18
      %s20 = sshll.u32 [#allocation2], 4
      %s21 = int_to_ptr.vmem [resolvable:$true] %s20
      %26 = dma.hbm_to_vmem [thread:$0]  %s1, 4096, %s21, [#allocation3], 128, 128, 8
    $region9: #{tpu_custom_call.1} parent=1 // pred_fallthru
      _
    // Predicated region
    $region10: #{tpu_custom_call.1} parent=1 // pred_check
      _
    $region11: #{tpu_custom_call.1} parent=1 // pred_check_branch
      %28 = sbr.rel (0) target = $region13
    $region12: #{tpu_custom_call.1} parent=1 // pred_region
      %s30 = ssub.s32 4096, 4096
      %31 = vsyncadd [#allocation6], %s30
      %s32 = sshll.u32 [#allocation5], 4
      %s33 = int_to_ptr.vmem [resolvable:$true] %s32
      %38 = dma.hbm_to_vmem [thread:$0]  %s2, 4096, %s33, [#allocation6], 128, 128, 8
    $region13: #{tpu_custom_call.1} parent=1 // pred_fallthru
      _
    // Predicated region
    $region14: #{tpu_custom_call.1} parent=1 // pred_check
      _
    $region15: #{tpu_custom_call.1} parent=1 // pred_check_branch
      %40 = sbr.rel (0) target = $region17
    $region16: #{tpu_custom_call.1} parent=1 // pred_region
      _
    $region17: #{tpu_custom_call.1} parent=1 // pred_fallthru
      _
    // Predicated region
    $region18: #{tpu_custom_call.1} parent=1 // pred_check
      _
    $region19: #{tpu_custom_call.1} parent=1 // pred_check_branch
      %42 = sbr.rel (0) target = $region21
    $region20: #{tpu_custom_call.1} parent=1 // pred_region
      _
    $region21: #{tpu_custom_call.1} parent=1 // pred_fallthru
      _
    // Predicated region
    $region22: #{tpu_custom_call.1} parent=1 // pred_check
      _
    $region23: #{tpu_custom_call.1} parent=1 // pred_check_branch
      %44 = sbr.rel (0) target = $region25
    $region24: #{tpu_custom_call.1} parent=1 // pred_region
      %45 = dma.done [#allocation3], 4096
    $region25: #{tpu_custom_call.1} parent=1 // pred_fallthru
      _
    // Predicated region
    $region26: #{tpu_custom_call.1} parent=1 // pred_check
      _
    $region27: #{tpu_custom_call.1} parent=1 // pred_check_branch
      %47 = sbr.rel (0) target = $region29
    $region28: #{tpu_custom_call.1} parent=1 // pred_region
      %48 = dma.done [#allocation6], 4096
    $region29: #{tpu_custom_call.1} parent=1 // pred_fallthru
      _
    %v49 = vld [vmem:[%s0] sm:$0x3]
    %v50 = vld [vmem:[#allocation2] sm:$0xff]
    %v51 = vld [vmem:[#allocation2 + $0x8] sm:$0xff]
    %v52 = vld [vmem:[#allocation2 + $0x10] sm:$0xff]
    %v53 = vld [vmem:[#allocation2 + $0x18] sm:$0xff]
    %v54 = vld [vmem:[#allocation2 + $0x20] sm:$0xff]
    %v55 = vld [vmem:[#allocation2 + $0x28] sm:$0xff]
    %v56 = vld [vmem:[#allocation2 + $0x30] sm:$0xff]
    %v57 = vld [vmem:[#allocation2 + $0x38] sm:$0xff]
    %v58 = vld [vmem:[#allocation2 + $0x40] sm:$0xff]
    %v59 = vld [vmem:[#allocation2 + $0x48] sm:$0xff]
    %v60 = vld [vmem:[#allocation2 + $0x50] sm:$0xff]
    %v61 = vld [vmem:[#allocation2 + $0x58] sm:$0xff]
    %v62 = vld [vmem:[#allocation2 + $0x60] sm:$0xff]
    %v63 = vld [vmem:[#allocation2 + $0x68] sm:$0xff]
    %v64 = vld [vmem:[#allocation2 + $0x70] sm:$0xff]
    %v65 = vld [vmem:[#allocation2 + $0x78] sm:$0xff]
    %v66 = vld [vmem:[#allocation2 + $0x80] sm:$0xff]
    %v67 = vld [vmem:[#allocation2 + $0x88] sm:$0xff]
    %v68 = vld [vmem:[#allocation2 + $0x90] sm:$0xff]
    %v69 = vld [vmem:[#allocation2 + $0x98] sm:$0xff]
    %v70 = vld [vmem:[#allocation2 + $0xa0] sm:$0xff]
    %v71 = vld [vmem:[#allocation2 + $0xa8] sm:$0xff]
    %v72 = vld [vmem:[#allocation2 + $0xb0] sm:$0xff]
    %v73 = vld [vmem:[#allocation2 + $0xb8] sm:$0xff]
    %v74 = vld [vmem:[#allocation2 + $0xc0] sm:$0xff]
    %v75 = vld [vmem:[#allocation2 + $0xc8] sm:$0xff]
    %v76 = vld [vmem:[#allocation2 + $0xd0] sm:$0xff]
    %v77 = vld [vmem:[#allocation2 + $0xd8] sm:$0xff]
    %v78 = vld [vmem:[#allocation2 + $0xe0] sm:$0xff]
    %v79 = vld [vmem:[#allocation2 + $0xe8] sm:$0xff]
    %v80 = vld [vmem:[#allocation2 + $0xf0] sm:$0xff]
    %v81 = vld [vmem:[#allocation2 + $0xf8] sm:$0xff]
    %v84 = vunpack.c.l.s4 1966171168
    %v85 = vunpack.c.0.s8 %v84
    %v86 = vlaneseq
    %v87 = vshrl.u32 %v86, 7
    %v88 = vsub.s32 %v85, %v87
    %v89 = vrot.slane %v49, %v88
    %v90 = vcombine.high %v89, %v89
    %v92 = vunpack.c.l.s4 1966171168
    %v93 = vunpack.c.0.s8 %v92
    %v94 = vlaneseq
    %v95 = vshrl.u32 %v94, 7
    %v96 = vsub.s32 %v93, %v95
    %v97 = vrot.slane %v89, %v96
    %v99 = vunpack.c.l.s4 1966171168
    %v100 = vunpack.c.0.s8 %v99
    %v101 = vlaneseq
    %v102 = vshrl.u32 %v101, 7
    %v103 = vsub.s32 %v100, %v102
    %v104 = vrot.slane %v90, %v103
    %v139 = vunpack.c.l.b16 %v50
    %v140 = vunpack.c.h.b16 %v50
    %v141 = vunpack.c.l.b16 %v51
    %v142 = vunpack.c.h.b16 %v51
    %v143 = vunpack.c.l.b16 %v52
    %v144 = vunpack.c.h.b16 %v52
    %v145 = vunpack.c.l.b16 %v53
    %v146 = vunpack.c.h.b16 %v53
    %v147 = vunpack.c.l.b16 %v54
    %v148 = vunpack.c.h.b16 %v54
    %v149 = vunpack.c.l.b16 %v55
    %v150 = vunpack.c.h.b16 %v55
    %v151 = vunpack.c.l.b16 %v56
    %v152 = vunpack.c.h.b16 %v56
    %v153 = vunpack.c.l.b16 %v57
    %v154 = vunpack.c.h.b16 %v57
    %v155 = vunpack.c.l.b16 %v58
    %v156 = vunpack.c.h.b16 %v58
    %v157 = vunpack.c.l.b16 %v59
    %v158 = vunpack.c.h.b16 %v59
    %v159 = vunpack.c.l.b16 %v60
    %v160 = vunpack.c.h.b16 %v60
    %v161 = vunpack.c.l.b16 %v61
    %v162 = vunpack.c.h.b16 %v61
    %v163 = vunpack.c.l.b16 %v62
    %v164 = vunpack.c.h.b16 %v62
    %v165 = vunpack.c.l.b16 %v63
    %v166 = vunpack.c.h.b16 %v63
    %v167 = vunpack.c.l.b16 %v64
    %v168 = vunpack.c.h.b16 %v64
    %v169 = vunpack.c.l.b16 %v65
    %v170 = vunpack.c.h.b16 %v65
    %v171 = vunpack.c.l.b16 %v66
    %v172 = vunpack.c.h.b16 %v66
    %v173 = vunpack.c.l.b16 %v67
    %v174 = vunpack.c.h.b16 %v67
    %v175 = vunpack.c.l.b16 %v68
    %v176 = vunpack.c.h.b16 %v68
    %v177 = vunpack.c.l.b16 %v69
    %v178 = vunpack.c.h.b16 %v69
    %v179 = vunpack.c.l.b16 %v70
    %v180 = vunpack.c.h.b16 %v70
    %v181 = vunpack.c.l.b16 %v71
    %v182 = vunpack.c.h.b16 %v71
    %v183 = vunpack.c.l.b16 %v72
    %v184 = vunpack.c.h.b16 %v72
    %v185 = vunpack.c.l.b16 %v73
    %v186 = vunpack.c.h.b16 %v73
    %v187 = vunpack.c.l.b16 %v74
    %v188 = vunpack.c.h.b16 %v74
    %v189 = vunpack.c.l.b16 %v75
    %v190 = vunpack.c.h.b16 %v75
    %v191 = vunpack.c.l.b16 %v76
    %v192 = vunpack.c.h.b16 %v76
    %v193 = vunpack.c.l.b16 %v77
    %v194 = vunpack.c.h.b16 %v77
    %v195 = vunpack.c.l.b16 %v78
    %v196 = vunpack.c.h.b16 %v78
    %v197 = vunpack.c.l.b16 %v79
    %v198 = vunpack.c.h.b16 %v79
    %v199 = vunpack.c.l.b16 %v80
    %v200 = vunpack.c.h.b16 %v80
    %v201 = vunpack.c.l.b16 %v81
    %v202 = vunpack.c.h.b16 %v81
    %v203 = vpack.c.b16 %v141, %v139
    %v204 = vpack.c.b16 %v142, %v140
    %v205 = vpack.c.b16 %v145, %v143
    %v206 = vpack.c.b16 %v146, %v144
    %v207 = vpack.c.b16 %v149, %v147
    %v208 = vpack.c.b16 %v150, %v148
    %v209 = vpack.c.b16 %v153, %v151
    %v210 = vpack.c.b16 %v154, %v152
    %v211 = vpack.c.b16 %v157, %v155
    %v212 = vpack.c.b16 %v158, %v156
    %v213 = vpack.c.b16 %v161, %v159
    %v214 = vpack.c.b16 %v162, %v160
    %v215 = vpack.c.b16 %v165, %v163
    %v216 = vpack.c.b16 %v166, %v164
    %v217 = vpack.c.b16 %v169, %v167
    %v218 = vpack.c.b16 %v170, %v168
    %v219 = vpack.c.b16 %v173, %v171
    %v220 = vpack.c.b16 %v174, %v172
    %v221 = vpack.c.b16 %v177, %v175
    %v222 = vpack.c.b16 %v178, %v176
    %v223 = vpack.c.b16 %v181, %v179
    %v224 = vpack.c.b16 %v182, %v180
    %v225 = vpack.c.b16 %v185, %v183
    %v226 = vpack.c.b16 %v186, %v184
    %v227 = vpack.c.b16 %v189, %v187
    %v228 = vpack.c.b16 %v190, %v188
    %v229 = vpack.c.b16 %v193, %v191
    %v230 = vpack.c.b16 %v194, %v192
    %v231 = vpack.c.b16 %v197, %v195
    %v232 = vpack.c.b16 %v198, %v196
    %v233 = vpack.c.b16 %v201, %v199
    %v234 = vpack.c.b16 %v202, %v200
    %267 = vmatprep.subr.bf16.mxu0 %v204
    %268 = vmatpush1.bf16.msra.mxu0 %v203
    %269 = vmatprep.subr.bf16.mxu0 %v206
    %270 = vmatpush1.bf16.msra.mxu0 %v205
    %271 = vmatprep.subr.bf16.mxu0 %v208
    %272 = vmatpush1.bf16.msra.mxu0 %v207
    %273 = vmatprep.subr.bf16.mxu0 %v210
    %274 = vmatpush1.bf16.msra.mxu0 %v209
    %275 = vmatprep.subr.bf16.mxu0 %v212
    %276 = vmatpush1.bf16.msra.mxu0 %v211
    %277 = vmatprep.subr.bf16.mxu0 %v214
    %278 = vmatpush1.bf16.msra.mxu0 %v213
    %279 = vmatprep.subr.bf16.mxu0 %v216
    %280 = vmatpush1.bf16.msra.mxu0 %v215
    %281 = vmatprep.subr.bf16.mxu0 %v218
    %282 = vmatpush1.bf16.msra.mxu0 %v217
    %283 = vmatprep.subr.bf16.mxu0 %v220
    %284 = vmatpush1.bf16.msra.mxu0 %v219
    %285 = vmatprep.subr.bf16.mxu0 %v222
    %286 = vmatpush1.bf16.msra.mxu0 %v221
    %287 = vmatprep.subr.bf16.mxu0 %v224
    %288 = vmatpush1.bf16.msra.mxu0 %v223
    %289 = vmatprep.subr.bf16.mxu0 %v226
    %290 = vmatpush1.bf16.msra.mxu0 %v225
    %291 = vmatprep.subr.bf16.mxu0 %v228
    %292 = vmatpush1.bf16.msra.mxu0 %v227
    %293 = vmatprep.subr.bf16.mxu0 %v230
    %294 = vmatpush1.bf16.msra.mxu0 %v229
    %295 = vmatprep.subr.bf16.mxu0 %v232
    %296 = vmatpush1.bf16.msra.mxu0 %v231
    %297 = vmatprep.subr.bf16.mxu0 %v234
    %298 = vmatpush1.bf16.msra.mxu0 %v233
    %299 = vmatprep.mubr.bf16.mxu0 %v104
    %300 = vmatmul.mubr.bf16.gmra.mrb[0].mxu0 %v97
    %v301 = vpop.f32.mrb[0].mxu0
    %v302 = vadd.f32 0.0, %v301
    %v303 = vpop.f32.mrb[0].mxu0
    %v304 = vadd.f32 0.0, %v303
    %v305 = vpop.f32.mrb[0].mxu0
    %v306 = vpop.f32.mrb[0].mxu0
    %307 = vdwg.mxu0
    %v308 = vld [vmem:[#allocation5] sm:$0xff]
    %v309 = vld [vmem:[#allocation5 + $0x8] sm:$0xff]
    %v310 = vld [vmem:[#allocation5 + $0x10] sm:$0xff]
    %v311 = vld [vmem:[#allocation5 + $0x18] sm:$0xff]
    %v312 = vld [vmem:[#allocation5 + $0x20] sm:$0xff]
    %v313 = vld [vmem:[#allocation5 + $0x28] sm:$0xff]
    %v314 = vld [vmem:[#allocation5 + $0x30] sm:$0xff]
    %v315 = vld [vmem:[#allocation5 + $0x38] sm:$0xff]
    %v316 = vld [vmem:[#allocation5 + $0x40] sm:$0xff]
    %v317 = vld [vmem:[#allocation5 + $0x48] sm:$0xff]
    %v318 = vld [vmem:[#allocation5 + $0x50] sm:$0xff]
    %v319 = vld [vmem:[#allocation5 + $0x58] sm:$0xff]
    %v320 = vld [vmem:[#allocation5 + $0x60] sm:$0xff]
    %v321 = vld [vmem:[#allocation5 + $0x68] sm:$0xff]
    %v322 = vld [vmem:[#allocation5 + $0x70] sm:$0xff]
    %v323 = vld [vmem:[#allocation5 + $0x78] sm:$0xff]
    %v324 = vld [vmem:[#allocation5 + $0x80] sm:$0xff]
    %v325 = vld [vmem:[#allocation5 + $0x88] sm:$0xff]
    %v326 = vld [vmem:[#allocation5 + $0x90] sm:$0xff]
    %v327 = vld [vmem:[#allocation5 + $0x98] sm:$0xff]
    %v328 = vld [vmem:[#allocation5 + $0xa0] sm:$0xff]
    %v329 = vld [vmem:[#allocation5 + $0xa8] sm:$0xff]
    %v330 = vld [vmem:[#allocation5 + $0xb0] sm:$0xff]
    %v331 = vld [vmem:[#allocation5 + $0xb8] sm:$0xff]
    %v332 = vld [vmem:[#allocation5 + $0xc0] sm:$0xff]
    %v333 = vld [vmem:[#allocation5 + $0xc8] sm:$0xff]
    %v334 = vld [vmem:[#allocation5 + $0xd0] sm:$0xff]
    %v335 = vld [vmem:[#allocation5 + $0xd8] sm:$0xff]
    %v336 = vld [vmem:[#allocation5 + $0xe0] sm:$0xff]
    %v337 = vld [vmem:[#allocation5 + $0xe8] sm:$0xff]
    %v338 = vld [vmem:[#allocation5 + $0xf0] sm:$0xff]
    %v339 = vld [vmem:[#allocation5 + $0xf8] sm:$0xff]
    %v372 = vunpack.c.l.b16 %v308
    %v373 = vunpack.c.h.b16 %v308
    %v374 = vunpack.c.l.b16 %v309
    %v375 = vunpack.c.h.b16 %v309
    %v376 = vunpack.c.l.b16 %v310
    %v377 = vunpack.c.h.b16 %v310
    %v378 = vunpack.c.l.b16 %v311
    %v379 = vunpack.c.h.b16 %v311
    %v380 = vunpack.c.l.b16 %v312
    %v381 = vunpack.c.h.b16 %v312
    %v382 = vunpack.c.l.b16 %v313
    %v383 = vunpack.c.h.b16 %v313
    %v384 = vunpack.c.l.b16 %v314
    %v385 = vunpack.c.h.b16 %v314
    %v386 = vunpack.c.l.b16 %v315
    %v387 = vunpack.c.h.b16 %v315
    %v388 = vunpack.c.l.b16 %v316
    %v389 = vunpack.c.h.b16 %v316
    %v390 = vunpack.c.l.b16 %v317
    %v391 = vunpack.c.h.b16 %v317
    %v392 = vunpack.c.l.b16 %v318
    %v393 = vunpack.c.h.b16 %v318
    %v394 = vunpack.c.l.b16 %v319
    %v395 = vunpack.c.h.b16 %v319
    %v396 = vunpack.c.l.b16 %v320
    %v397 = vunpack.c.h.b16 %v320
    %v398 = vunpack.c.l.b16 %v321
    %v399 = vunpack.c.h.b16 %v321
    %v400 = vunpack.c.l.b16 %v322
    %v401 = vunpack.c.h.b16 %v322
    %v402 = vunpack.c.l.b16 %v323
    %v403 = vunpack.c.h.b16 %v323
    %v404 = vunpack.c.l.b16 %v324
    %v405 = vunpack.c.h.b16 %v324
    %v406 = vunpack.c.l.b16 %v325
    %v407 = vunpack.c.h.b16 %v325
    %v408 = vunpack.c.l.b16 %v326
    %v409 = vunpack.c.h.b16 %v326
    %v410 = vunpack.c.l.b16 %v327
    %v411 = vunpack.c.h.b16 %v327
    %v412 = vunpack.c.l.b16 %v328
    %v413 = vunpack.c.h.b16 %v328
    %v414 = vunpack.c.l.b16 %v329
    %v415 = vunpack.c.h.b16 %v329
    %v416 = vunpack.c.l.b16 %v330
    %v417 = vunpack.c.h.b16 %v330
    %v418 = vunpack.c.l.b16 %v331
    %v419 = vunpack.c.h.b16 %v331
    %v420 = vunpack.c.l.b16 %v332
    %v421 = vunpack.c.h.b16 %v332
    %v422 = vunpack.c.l.b16 %v333
    %v423 = vunpack.c.h.b16 %v333
    %v424 = vunpack.c.l.b16 %v334
    %v425 = vunpack.c.h.b16 %v334
    %v426 = vunpack.c.l.b16 %v335
    %v427 = vunpack.c.h.b16 %v335
    %v428 = vunpack.c.l.b16 %v336
    %v429 = vunpack.c.h.b16 %v336
    %v430 = vunpack.c.l.b16 %v337
    %v431 = vunpack.c.h.b16 %v337
    %v432 = vunpack.c.l.b16 %v338
    %v433 = vunpack.c.h.b16 %v338
    %v434 = vunpack.c.l.b16 %v339
    %v435 = vunpack.c.h.b16 %v339
    %v436 = vpack.c.b16 %v374, %v372
    %v437 = vpack.c.b16 %v375, %v373
    %v438 = vpack.c.b16 %v378, %v376
    %v439 = vpack.c.b16 %v379, %v377
    %v440 = vpack.c.b16 %v382, %v380
    %v441 = vpack.c.b16 %v383, %v381
    %v442 = vpack.c.b16 %v386, %v384
    %v443 = vpack.c.b16 %v387, %v385
    %v444 = vpack.c.b16 %v390, %v388
    %v445 = vpack.c.b16 %v391, %v389
    %v446 = vpack.c.b16 %v394, %v392
    %v447 = vpack.c.b16 %v395, %v393
    %v448 = vpack.c.b16 %v398, %v396
    %v449 = vpack.c.b16 %v399, %v397
    %v450 = vpack.c.b16 %v402, %v400
    %v451 = vpack.c.b16 %v403, %v401
    %v452 = vpack.c.b16 %v406, %v404
    %v453 = vpack.c.b16 %v407, %v405
    %v454 = vpack.c.b16 %v410, %v408
    %v455 = vpack.c.b16 %v411, %v409
    %v456 = vpack.c.b16 %v414, %v412
    %v457 = vpack.c.b16 %v415, %v413
    %v458 = vpack.c.b16 %v418, %v416
    %v459 = vpack.c.b16 %v419, %v417
    %v460 = vpack.c.b16 %v422, %v420
    %v461 = vpack.c.b16 %v423, %v421
    %v462 = vpack.c.b16 %v426, %v424
    %v463 = vpack.c.b16 %v427, %v425
    %v464 = vpack.c.b16 %v430, %v428
    %v465 = vpack.c.b16 %v431, %v429
    %v466 = vpack.c.b16 %v434, %v432
    %v467 = vpack.c.b16 %v435, %v433
    %500 = vmatprep.subr.bf16.mxu0 %v437
    %501 = vmatpush1.bf16.msra.mxu0 %v436
    %502 = vmatprep.subr.bf16.mxu0 %v439
    %503 = vmatpush1.bf16.msra.mxu0 %v438
    %504 = vmatprep.subr.bf16.mxu0 %v441
    %505 = vmatpush1.bf16.msra.mxu0 %v440
    %506 = vmatprep.subr.bf16.mxu0 %v443
    %507 = vmatpush1.bf16.msra.mxu0 %v442
    %508 = vmatprep.subr.bf16.mxu0 %v445
    %509 = vmatpush1.bf16.msra.mxu0 %v444
    %510 = vmatprep.subr.bf16.mxu0 %v447
    %511 = vmatpush1.bf16.msra.mxu0 %v446
    %512 = vmatprep.subr.bf16.mxu0 %v449
    %513 = vmatpush1.bf16.msra.mxu0 %v448
    %514 = vmatprep.subr.bf16.mxu0 %v451
    %515 = vmatpush1.bf16.msra.mxu0 %v450
    %516 = vmatprep.subr.bf16.mxu0 %v453
    %517 = vmatpush1.bf16.msra.mxu0 %v452
    %518 = vmatprep.subr.bf16.mxu0 %v455
    %519 = vmatpush1.bf16.msra.mxu0 %v454
    %520 = vmatprep.subr.bf16.mxu0 %v457
    %521 = vmatpush1.bf16.msra.mxu0 %v456
    %522 = vmatprep.subr.bf16.mxu0 %v459
    %523 = vmatpush1.bf16.msra.mxu0 %v458
    %524 = vmatprep.subr.bf16.mxu0 %v461
    %525 = vmatpush1.bf16.msra.mxu0 %v460
    %526 = vmatprep.subr.bf16.mxu0 %v463
    %527 = vmatpush1.bf16.msra.mxu0 %v462
    %528 = vmatprep.subr.bf16.mxu0 %v465
    %529 = vmatpush1.bf16.msra.mxu0 %v464
    %530 = vmatprep.subr.bf16.mxu0 %v467
    %531 = vmatpush1.bf16.msra.mxu0 %v466
    %532 = vmatprep.mubr.bf16.mxu0 %v104
    %533 = vmatmul.mubr.bf16.gmra.mrb[0].mxu0 %v97
    %v534 = vpop.f32.mrb[0].mxu0
    %v535 = vadd.f32 0.0, %v534
    %v536 = vpop.f32.mrb[0].mxu0
    %v537 = vadd.f32 0.0, %v536
    %v538 = vpop.f32.mrb[0].mxu0
    %v539 = vpop.f32.mrb[0].mxu0
    %540 = vdwg.mxu0
    %v541 = vld [vmem:[%s3] sm:$0xff]
    %v542 = vld [vmem:[%s3 + $0x8] sm:$0xff]
    %v543 = vld [vmem:[%s3 + $0x10] sm:$0xff]
    %v544 = vld [vmem:[%s3 + $0x18] sm:$0xff]
    %v545 = vld [vmem:[%s3 + $0x20] sm:$0xff]
    %v546 = vld [vmem:[%s3 + $0x28] sm:$0xff]
    %v547 = vld [vmem:[%s3 + $0x30] sm:$0xff]
    %v548 = vld [vmem:[%s3 + $0x38] sm:$0xff]
    %v549 = vld [vmem:[%s4] sm:$0xff]
    %v550 = vld [vmem:[%s4 + $0x8] sm:$0xff]
    %v551 = vld [vmem:[%s4 + $0x10] sm:$0xff]
    %v552 = vld [vmem:[%s4 + $0x18] sm:$0xff]
    %v553 = vld [vmem:[%s4 + $0x20] sm:$0xff]
    %v554 = vld [vmem:[%s4 + $0x28] sm:$0xff]
    %v555 = vld [vmem:[%s4 + $0x30] sm:$0xff]
    %v556 = vld [vmem:[%s4 + $0x38] sm:$0xff]
    %v559 = vcombine.low %v535, %v537
    %v561 = vunpack.c.l.s4 1966171168
    %v562 = vunpack.c.0.s8 %v561
    %v563 = vlaneseq
    %v564 = vshrl.u32 %v563, 7
    %v565 = vsub.s32 %v562, %v564
    %v566 = vrot.slane %v559, %v565
    %v567 = vcombine.high %v566, %v566
    %v569 = vunpack.c.l.s4 1966171168
    %v570 = vunpack.c.0.s8 %v569
    %v571 = vlaneseq
    %v572 = vshrl.u32 %v571, 7
    %v573 = vsub.s32 %v570, %v572
    %v574 = vrot.slane %v566, %v573
    %v576 = vunpack.c.l.s4 1966171168
    %v577 = vunpack.c.0.s8 %v576
    %v578 = vlaneseq
    %v579 = vshrl.u32 %v578, 7
    %v580 = vsub.s32 %v577, %v579
    %v581 = vrot.slane %v567, %v580
    %v584 = vcombine.low %v302, %v304
    %v586 = vunpack.c.l.s4 1966171168
    %v587 = vunpack.c.0.s8 %v586
    %v588 = vlaneseq
    %v589 = vshrl.u32 %v588, 7
    %v590 = vsub.s32 %v587, %v589
    %v591 = vrot.slane %v584, %v590
    %v592 = vcombine.high %v591, %v591
    %v594 = vunpack.c.l.s4 1966171168
    %v595 = vunpack.c.0.s8 %v594
    %v596 = vlaneseq
    %v597 = vshrl.u32 %v596, 7
    %v598 = vsub.s32 %v595, %v597
    %v599 = vrot.slane %v591, %v598
    %v601 = vunpack.c.l.s4 1966171168
    %v602 = vunpack.c.0.s8 %v601
    %v603 = vlaneseq
    %v604 = vshrl.u32 %v603, 7
    %v605 = vsub.s32 %v602, %v604
    %v606 = vrot.slane %v592, %v605
    %v607 = vlaneseq
    %v608 = vshrl.u32 %v607, 7
    %v609 = vsub.s32 0, %v608
    %v610 = vrot.slane %v574, %v609
    %v611 = vlaneseq
    %v612 = vshrl.u32 %v611, 7
    %v613 = vsub.s32 1, %v612
    %v614 = vrot.slane %v574, %v613
    %v615 = vlaneseq
    %v616 = vshrl.u32 %v615, 7
    %v617 = vsub.s32 0, %v616
    %v618 = vrot.slane %v581, %v617
    %v619 = vlaneseq
    %v620 = vshrl.u32 %v619, 7
    %v621 = vsub.s32 1, %v620
    %v622 = vrot.slane %v581, %v621
    %628 = vset.pattern.permute.xlu0 0
    %629 = vperm.xlu0 %628, %v541
    %v630 = vpop.permute.xlu0 %629
    %633 = vset.pattern.permute.xlu0 0
    %634 = vperm.xlu0 %633, %v542
    %v635 = vpop.permute.xlu0 %634
    %638 = vset.pattern.permute.xlu0 0
    %639 = vperm.xlu0 %638, %v543
    %v640 = vpop.permute.xlu0 %639
    %643 = vset.pattern.permute.xlu0 0
    %644 = vperm.xlu0 %643, %v544
    %v645 = vpop.permute.xlu0 %644
    %648 = vset.pattern.permute.xlu0 0
    %649 = vperm.xlu0 %648, %v545
    %v650 = vpop.permute.xlu0 %649
    %653 = vset.pattern.permute.xlu0 0
    %654 = vperm.xlu0 %653, %v546
    %v655 = vpop.permute.xlu0 %654
    %658 = vset.pattern.permute.xlu0 0
    %659 = vperm.xlu0 %658, %v547
    %v660 = vpop.permute.xlu0 %659
    %663 = vset.pattern.permute.xlu0 0
    %664 = vperm.xlu0 %663, %v548
    %v665 = vpop.permute.xlu0 %664
    %v667 = vmul.f32 %v610, %v630
    %v668 = vmul.f32 %v614, %v630
    %v669 = vmul.f32 %v610, %v635
    %v670 = vmul.f32 %v614, %v635
    %v671 = vmul.f32 %v610, %v640
    %v672 = vmul.f32 %v614, %v640
    %v673 = vmul.f32 %v610, %v645
    %v674 = vmul.f32 %v614, %v645
    %v675 = vmul.f32 %v610, %v650
    %v676 = vmul.f32 %v614, %v650
    %v677 = vmul.f32 %v610, %v655
    %v678 = vmul.f32 %v614, %v655
    %v679 = vmul.f32 %v610, %v660
    %v680 = vmul.f32 %v614, %v660
    %v681 = vmul.f32 %v610, %v665
    %v682 = vmul.f32 %v614, %v665
    %v683 = vmul.f32 %v618, %v630
    %v684 = vmul.f32 %v622, %v630
    %v685 = vmul.f32 %v618, %v635
    %v686 = vmul.f32 %v622, %v635
    %v687 = vmul.f32 %v618, %v640
    %v688 = vmul.f32 %v622, %v640
    %v689 = vmul.f32 %v618, %v645
    %v690 = vmul.f32 %v622, %v645
    %v691 = vmul.f32 %v618, %v650
    %v692 = vmul.f32 %v622, %v650
    %v693 = vmul.f32 %v618, %v655
    %v694 = vmul.f32 %v622, %v655
    %v695 = vmul.f32 %v618, %v660
    %v696 = vmul.f32 %v622, %v660
    %v697 = vmul.f32 %v618, %v665
    %v698 = vmul.f32 %v622, %v665
    %700 = vset.pattern.permute.xlu0 0
    %701 = vperm.xlu0 %700, %v549
    %v702 = vpop.permute.xlu0 %701
    %705 = vset.pattern.permute.xlu0 0
    %706 = vperm.xlu0 %705, %v550
    %v707 = vpop.permute.xlu0 %706
    %710 = vset.pattern.permute.xlu0 0
    %711 = vperm.xlu0 %710, %v551
    %v712 = vpop.permute.xlu0 %711
    %715 = vset.pattern.permute.xlu0 0
    %716 = vperm.xlu0 %715, %v552
    %v717 = vpop.permute.xlu0 %716
    %720 = vset.pattern.permute.xlu0 0
    %721 = vperm.xlu0 %720, %v553
    %v722 = vpop.permute.xlu0 %721
    %725 = vset.pattern.permute.xlu0 0
    %726 = vperm.xlu0 %725, %v554
    %v727 = vpop.permute.xlu0 %726
    %730 = vset.pattern.permute.xlu0 0
    %731 = vperm.xlu0 %730, %v555
    %v732 = vpop.permute.xlu0 %731
    %735 = vset.pattern.permute.xlu0 0
    %736 = vperm.xlu0 %735, %v556
    %v737 = vpop.permute.xlu0 %736
    %v739 = vadd.f32 %v667, %v702
    %v740 = vadd.f32 %v668, %v702
    %v741 = vadd.f32 %v669, %v707
    %v742 = vadd.f32 %v670, %v707
    %v743 = vadd.f32 %v671, %v712
    %v744 = vadd.f32 %v672, %v712
    %v745 = vadd.f32 %v673, %v717
    %v746 = vadd.f32 %v674, %v717
    %v747 = vadd.f32 %v675, %v722
    %v748 = vadd.f32 %v676, %v722
    %v749 = vadd.f32 %v677, %v727
    %v750 = vadd.f32 %v678, %v727
    %v751 = vadd.f32 %v679, %v732
    %v752 = vadd.f32 %v680, %v732
    %v753 = vadd.f32 %v681, %v737
    %v754 = vadd.f32 %v682, %v737
    %v755 = vadd.f32 %v683, %v702
    %v756 = vadd.f32 %v684, %v702
    %v757 = vadd.f32 %v685, %v707
    %v758 = vadd.f32 %v686, %v707
    %v759 = vadd.f32 %v687, %v712
    %v760 = vadd.f32 %v688, %v712
    %v761 = vadd.f32 %v689, %v717
    %v762 = vadd.f32 %v690, %v717
    %v763 = vadd.f32 %v691, %v722
    %v764 = vadd.f32 %v692, %v722
    %v765 = vadd.f32 %v693, %v727
    %v766 = vadd.f32 %v694, %v727
    %v767 = vadd.f32 %v695, %v732
    %v768 = vadd.f32 %v696, %v732
    %v769 = vadd.f32 %v697, %v737
    %v770 = vadd.f32 %v698, %v737
    %v771 = vand.u32 2147483647, %v739
    %vm772 = vcmp.le.f32.partialorder %v771, 0.7853982
    %vm773 = vcmp.lt.s32.totalorder %v739, 0
    %v774 = vand.u32 %v739, 2139095040
    %v775 = vshrl.u32 %v774, 23
    %v776 = vsub.s32 %v775, 127
    %v777 = vand.u32 2147483647, %v739
    %v778 = vand.u32 %v777, 8388607
    %v779 = vor.u32 %v778, 8388608
    %v780 = vsub.s32 0, %v779
    %v781 = vadd.s32 %v776, 1
    %vm782 = vcmp.gt.s32.totalorder %v781, 0
    %v783 = vsel %vm782, %v781, 0
    %v784 = vshrl.u32 %v783, 5
    %v785 = vand.u32 %v783, 31
    %v786 = vsub.s32 32, %v785
    %v787 = vshrl.u32 683565275, %v786
    %v788 = vshll.u32 683565275, %v785
    %v789 = vshrl.u32 2475754826, %v786
    %v790 = vor.u32 %v788, %v789
    %v791 = vshll.u32 2475754826, %v785
    %v792 = vshrl.u32 2131351028, %v786
    %v793 = vor.u32 %v791, %v792
    %v794 = vshll.u32 2131351028, %v785
    %v795 = vshrl.u32 2102212464, %v786
    %v796 = vor.u32 %v794, %v795
    %v797 = vshll.u32 2102212464, %v785
    %v798 = vshrl.u32 920167782, %v786
    %v799 = vor.u32 %v797, %v798
    %v800 = vshll.u32 920167782, %v785
    %v801 = vshrl.u32 1326507024, %v786
    %v802 = vor.u32 %v800, %v801
    %vm803 = vcmp.lt.s32.totalorder %v784, 1
    %vm804 = vcmp.lt.s32.totalorder %v784, 2
    %vm805 = vcmp.lt.s32.totalorder %v784, 3
    %vm806 = vcmp.lt.s32.totalorder %v784, 4
    %v807 = vsel %vm803, %v787, %v790
    %v808 = vsel %vm806, %v796, 2102212464
    %v809 = vsel %vm805, %v793, %v808
    %v810 = vsel %vm804, %v807, %v809
    %v811 = vsel %vm803, %v790, %v793
    %v812 = vsel %vm806, %v799, 920167782
    %v813 = vsel %vm805, %v796, %v812
    %v814 = vsel %vm804, %v811, %v813
    %v815 = vsel %vm803, %v793, %v796
    %v816 = vsel %vm806, %v802, 1326507024
    %v817 = vsel %vm805, %v799, %v816
    %v818 = vsel %vm804, %v815, %v817
    %v819 = vshll.u32 %v779, 8
    %v820 = vmul.u32.u64.compose %v819, %v818
    %v821 = vextract.low.u32 %v820
    %v822 = vextract.high.u32 %v820
    %v823 = vmul.u32.u64.compose %v819, %v814
    %v824 = vextract.low.u32 %v823
    %v825 = vextract.high.u32 %v823
    %v826 = vmul.u32 %v819, %v810
    %v827 = vadd.s32 %v822, %v824
    %vm828 = vc.u32 %v822, %v824
    %v829 = vadd.s32 %v825, 1
    %v830 = vsel %vm828, %v829, %v825
    %v831 = vadd.s32 %v826, %v830
    %v832 = vadd.s32 %v831, 536870912
    %v833 = vshrl.u32 %v832, 30
    %v834 = vshll.u32 %v833, 30
    %v835 = vsub.s32 %v831, %v834
    %vm836 = vcmp.lt.s32.totalorder %v835, 0
    %v837 = vsub.s32 0, %v835
    %v838 = vsel %vm836, %v837, %v835
    %v839 = vclz %v838
    %v840 = vsub.s32 %v839, 2
    %vm841 = vcmp.gt.s32.totalorder 0, %v840
    %v842 = vsel %vm841, 0, %v840
    %v843 = vsub.s32 32, %v842
    %v844 = vshll.u32 %v835, %v842
    %v845 = vshrl.u32 %v827, %v843
    %v846 = vor.u32 %v844, %v845
    %v847 = vsub.s32 4294967266, %v842
    %v848 = vadd.s32 %v847, 127
    %v849 = vshll.u32 %v848, 23
    %v850 = vor.u32 4788187, %v849
    %v851 = vand.u32 2147483647, %v850
    %v853 = vcvt.s32.f32 %v846
    %v854 = vmul.f32 %v853, %v851
    %v855 = vxor.u32 %v854, 2147483648
    %v856 = vsel %vm773, %v855, %v854
    %v857 = vsub.s32 4, %v833
    %v858 = vsel %vm773, %v857, %v833
    %v859 = vsel %vm772, %v739, %v856
    %v860 = vsel %vm772, 0, %v858
    %v861 = vcosq.f32.pop %v859
    %v862 = vsinq.f32.pop %v859
    %vm863 = vweird.f32 %v739
    %v864 = vadd.s32 %v860, 3
    %v865 = vand.u32 %v864, 3
    %vm866 = vcmp.lt.s32.totalorder %v865, 2
    %vm867 = vcmp.eq.s32.totalorder %v865, 0
    %v868 = vxor.u32 %v862, 2147483648
    %v869 = vsel %vm867, %v861, %v868
    %vm870 = vcmp.eq.s32.totalorder %v865, 2
    %v871 = vxor.u32 %v861, 2147483648
    %v872 = vsel %vm870, %v871, %v862
    %v873 = vsel %vm866, %v869, %v872
    %v874 = vsel %vm863, nan, %v873
    %v875 = vand.u32 2147483647, %v740
    %vm876 = vcmp.le.f32.partialorder %v875, 0.7853982
    %vm877 = vcmp.lt.s32.totalorder %v740, 0
    %v878 = vand.u32 %v740, 2139095040
    %v879 = vshrl.u32 %v878, 23
    %v880 = vsub.s32 %v879, 127
    %v881 = vand.u32 2147483647, %v740
    %v882 = vand.u32 %v881, 8388607
    %v883 = vor.u32 %v882, 8388608
    %v884 = vsub.s32 0, %v883
    %v885 = vadd.s32 %v880, 1
    %vm886 = vcmp.gt.s32.totalorder %v885, 0
    %v887 = vsel %vm886, %v885, 0
    %v888 = vshrl.u32 %v887, 5
    %v889 = vand.u32 %v887, 31
    %v890 = vsub.s32 32, %v889
    %v891 = vshrl.u32 683565275, %v890
    %v892 = vshll.u32 683565275, %v889
    %v893 = vshrl.u32 2475754826, %v890
    %v894 = vor.u32 %v892, %v893
    %v895 = vshll.u32 2475754826, %v889
    %v896 = vshrl.u32 2131351028, %v890
    %v897 = vor.u32 %v895, %v896
    %v898 = vshll.u32 2131351028, %v889
    %v899 = vshrl.u32 2102212464, %v890
    %v900 = vor.u32 %v898, %v899
    %v901 = vshll.u32 2102212464, %v889
    %v902 = vshrl.u32 920167782, %v890
    %v903 = vor.u32 %v901, %v902
    %v904 = vshll.u32 920167782, %v889
    %v905 = vshrl.u32 1326507024, %v890
    %v906 = vor.u32 %v904, %v905
    %vm907 = vcmp.lt.s32.totalorder %v888, 1
    %vm908 = vcmp.lt.s32.totalorder %v888, 2
    %vm909 = vcmp.lt.s32.totalorder %v888, 3
    %vm910 = vcmp.lt.s32.totalorder %v888, 4
    %v911 = vsel %vm907, %v891, %v894
    %v912 = vsel %vm910, %v900, 2102212464
    %v913 = vsel %vm909, %v897, %v912
    %v914 = vsel %vm908, %v911, %v913
    %v915 = vsel %vm907, %v894, %v897
    %v916 = vsel %vm910, %v903, 920167782
    %v917 = vsel %vm909, %v900, %v916
    %v918 = vsel %vm908, %v915, %v917
    %v919 = vsel %vm907, %v897, %v900
    %v920 = vsel %vm910, %v906, 1326507024
    %v921 = vsel %vm909, %v903, %v920
    %v922 = vsel %vm908, %v919, %v921
    %v923 = vshll.u32 %v883, 8
    %v924 = vmul.u32.u64.compose %v923, %v922
    %v925 = vextract.low.u32 %v924
    %v926 = vextract.high.u32 %v924
    %v927 = vmul.u32.u64.compose %v923, %v918
    %v928 = vextract.low.u32 %v927
    %v929 = vextract.high.u32 %v927
    %v930 = vmul.u32 %v923, %v914
    %v931 = vadd.s32 %v926, %v928
    %vm932 = vc.u32 %v926, %v928
    %v933 = vadd.s32 %v929, 1
    %v934 = vsel %vm932, %v933, %v929
    %v935 = vadd.s32 %v930, %v934
    %v936 = vadd.s32 %v935, 536870912
    %v937 = vshrl.u32 %v936, 30
    %v938 = vshll.u32 %v937, 30
    %v939 = vsub.s32 %v935, %v938
    %vm940 = vcmp.lt.s32.totalorder %v939, 0
    %v941 = vsub.s32 0, %v939
    %v942 = vsel %vm940, %v941, %v939
    %v943 = vclz %v942
    %v944 = vsub.s32 %v943, 2
    %vm945 = vcmp.gt.s32.totalorder 0, %v944
    %v946 = vsel %vm945, 0, %v944
    %v947 = vsub.s32 32, %v946
    %v948 = vshll.u32 %v939, %v946
    %v949 = vshrl.u32 %v931, %v947
    %v950 = vor.u32 %v948, %v949
    %v951 = vsub.s32 4294967266, %v946
    %v952 = vadd.s32 %v951, 127
    %v953 = vshll.u32 %v952, 23
    %v954 = vor.u32 4788187, %v953
    %v955 = vand.u32 2147483647, %v954
    %v957 = vcvt.s32.f32 %v950
    %v958 = vmul.f32 %v957, %v955
    %v959 = vxor.u32 %v958, 2147483648
    %v960 = vsel %vm877, %v959, %v958
    %v961 = vsub.s32 4, %v937
    %v962 = vsel %vm877, %v961, %v937
    %v963 = vsel %vm876, %v740, %v960
    %v964 = vsel %vm876, 0, %v962
    %v965 = vcosq.f32.pop %v963
    %v966 = vsinq.f32.pop %v963
    %vm967 = vweird.f32 %v740
    %v968 = vadd.s32 %v964, 3
    %v969 = vand.u32 %v968, 3
    %vm970 = vcmp.lt.s32.totalorder %v969, 2
    %vm971 = vcmp.eq.s32.totalorder %v969, 0
    %v972 = vxor.u32 %v966, 2147483648
    %v973 = vsel %vm971, %v965, %v972
    %vm974 = vcmp.eq.s32.totalorder %v969, 2
    %v975 = vxor.u32 %v965, 2147483648
    %v976 = vsel %vm974, %v975, %v966
    %v977 = vsel %vm970, %v973, %v976
    %v978 = vsel %vm967, nan, %v977
    %v979 = vand.u32 2147483647, %v741
    %vm980 = vcmp.le.f32.partialorder %v979, 0.7853982
    %vm981 = vcmp.lt.s32.totalorder %v741, 0
    %v982 = vand.u32 %v741, 2139095040
    %v983 = vshrl.u32 %v982, 23
    %v984 = vsub.s32 %v983, 127
    %v985 = vand.u32 2147483647, %v741
    %v986 = vand.u32 %v985, 8388607
    %v987 = vor.u32 %v986, 8388608
    %v988 = vsub.s32 0, %v987
    %v989 = vadd.s32 %v984, 1
    %vm990 = vcmp.gt.s32.totalorder %v989, 0
    %v991 = vsel %vm990, %v989, 0
    %v992 = vshrl.u32 %v991, 5
    %v993 = vand.u32 %v991, 31
    %v994 = vsub.s32 32, %v993
    %v995 = vshrl.u32 683565275, %v994
    %v996 = vshll.u32 683565275, %v993
    %v997 = vshrl.u32 2475754826, %v994
    %v998 = vor.u32 %v996, %v997
    %v999 = vshll.u32 2475754826, %v993
    %v1000 = vshrl.u32 2131351028, %v994
    %v1001 = vor.u32 %v999, %v1000
    %v1002 = vshll.u32 2131351028, %v993
    %v1003 = vshrl.u32 2102212464, %v994
    %v1004 = vor.u32 %v1002, %v1003
    %v1005 = vshll.u32 2102212464, %v993
    %v1006 = vshrl.u32 920167782, %v994
    %v1007 = vor.u32 %v1005, %v1006
    %v1008 = vshll.u32 920167782, %v993
    %v1009 = vshrl.u32 1326507024, %v994
    %v1010 = vor.u32 %v1008, %v1009
    %vm1011 = vcmp.lt.s32.totalorder %v992, 1
    %vm1012 = vcmp.lt.s32.totalorder %v992, 2
    %vm1013 = vcmp.lt.s32.totalorder %v992, 3
    %vm1014 = vcmp.lt.s32.totalorder %v992, 4
    %v1015 = vsel %vm1011, %v995, %v998
    %v1016 = vsel %vm1014, %v1004, 2102212464
    %v1017 = vsel %vm1013, %v1001, %v1016
    %v1018 = vsel %vm1012, %v1015, %v1017
    %v1019 = vsel %vm1011, %v998, %v1001
    %v1020 = vsel %vm1014, %v1007, 920167782
    %v1021 = vsel %vm1013, %v1004, %v1020
    %v1022 = vsel %vm1012, %v1019, %v1021
    %v1023 = vsel %vm1011, %v1001, %v1004
    %v1024 = vsel %vm1014, %v1010, 1326507024
    %v1025 = vsel %vm1013, %v1007, %v1024
    %v1026 = vsel %vm1012, %v1023, %v1025
    %v1027 = vshll.u32 %v987, 8
    %v1028 = vmul.u32.u64.compose %v1027, %v1026
    %v1029 = vextract.low.u32 %v1028
    %v1030 = vextract.high.u32 %v1028
    %v1031 = vmul.u32.u64.compose %v1027, %v1022
    %v1032 = vextract.low.u32 %v1031
    %v1033 = vextract.high.u32 %v1031
    %v1034 = vmul.u32 %v1027, %v1018
    %v1035 = vadd.s32 %v1030, %v1032
    %vm1036 = vc.u32 %v1030, %v1032
    %v1037 = vadd.s32 %v1033, 1
    %v1038 = vsel %vm1036, %v1037, %v1033
    %v1039 = vadd.s32 %v1034, %v1038
    %v1040 = vadd.s32 %v1039, 536870912
    %v1041 = vshrl.u32 %v1040, 30
    %v1042 = vshll.u32 %v1041, 30
    %v1043 = vsub.s32 %v1039, %v1042
    %vm1044 = vcmp.lt.s32.totalorder %v1043, 0
    %v1045 = vsub.s32 0, %v1043
    %v1046 = vsel %vm1044, %v1045, %v1043
    %v1047 = vclz %v1046
    %v1048 = vsub.s32 %v1047, 2
    %vm1049 = vcmp.gt.s32.totalorder 0, %v1048
    %v1050 = vsel %vm1049, 0, %v1048
    %v1051 = vsub.s32 32, %v1050
    %v1052 = vshll.u32 %v1043, %v1050
    %v1053 = vshrl.u32 %v1035, %v1051
    %v1054 = vor.u32 %v1052, %v1053
    %v1055 = vsub.s32 4294967266, %v1050
    %v1056 = vadd.s32 %v1055, 127
    %v1057 = vshll.u32 %v1056, 23
    %v1058 = vor.u32 4788187, %v1057
    %v1059 = vand.u32 2147483647, %v1058
    %v1061 = vcvt.s32.f32 %v1054
    %v1062 = vmul.f32 %v1061, %v1059
    %v1063 = vxor.u32 %v1062, 2147483648
    %v1064 = vsel %vm981, %v1063, %v1062
    %v1065 = vsub.s32 4, %v1041
    %v1066 = vsel %vm981, %v1065, %v1041
    %v1067 = vsel %vm980, %v741, %v1064
    %v1068 = vsel %vm980, 0, %v1066
    %v1069 = vcosq.f32.pop %v1067
    %v1070 = vsinq.f32.pop %v1067
    %vm1071 = vweird.f32 %v741
    %v1072 = vadd.s32 %v1068, 3
    %v1073 = vand.u32 %v1072, 3
    %vm1074 = vcmp.lt.s32.totalorder %v1073, 2
    %vm1075 = vcmp.eq.s32.totalorder %v1073, 0
    %v1076 = vxor.u32 %v1070, 2147483648
    %v1077 = vsel %vm1075, %v1069, %v1076
    %vm1078 = vcmp.eq.s32.totalorder %v1073, 2
    %v1079 = vxor.u32 %v1069, 2147483648
    %v1080 = vsel %vm1078, %v1079, %v1070
    %v1081 = vsel %vm1074, %v1077, %v1080
    %v1082 = vsel %vm1071, nan, %v1081
    %v1083 = vand.u32 2147483647, %v742
    %vm1084 = vcmp.le.f32.partialorder %v1083, 0.7853982
    %vm1085 = vcmp.lt.s32.totalorder %v742, 0
    %v1086 = vand.u32 %v742, 2139095040
    %v1087 = vshrl.u32 %v1086, 23
    %v1088 = vsub.s32 %v1087, 127
    %v1089 = vand.u32 2147483647, %v742
    %v1090 = vand.u32 %v1089, 8388607
    %v1091 = vor.u32 %v1090, 8388608
    %v1092 = vsub.s32 0, %v1091
    %v1093 = vadd.s32 %v1088, 1
    %vm1094 = vcmp.gt.s32.totalorder %v1093, 0
    %v1095 = vsel %vm1094, %v1093, 0
    %v1096 = vshrl.u32 %v1095, 5
    %v1097 = vand.u32 %v1095, 31
    %v1098 = vsub.s32 32, %v1097
    %v1099 = vshrl.u32 683565275, %v1098
    %v1100 = vshll.u32 683565275, %v1097
    %v1101 = vshrl.u32 2475754826, %v1098
    %v1102 = vor.u32 %v1100, %v1101
    %v1103 = vshll.u32 2475754826, %v1097
    %v1104 = vshrl.u32 2131351028, %v1098
    %v1105 = vor.u32 %v1103, %v1104
    %v1106 = vshll.u32 2131351028, %v1097
    %v1107 = vshrl.u32 2102212464, %v1098
    %v1108 = vor.u32 %v1106, %v1107
    %v1109 = vshll.u32 2102212464, %v1097
    %v1110 = vshrl.u32 920167782, %v1098
    %v1111 = vor.u32 %v1109, %v1110
    %v1112 = vshll.u32 920167782, %v1097
    %v1113 = vshrl.u32 1326507024, %v1098
    %v1114 = vor.u32 %v1112, %v1113
    %vm1115 = vcmp.lt.s32.totalorder %v1096, 1
    %vm1116 = vcmp.lt.s32.totalorder %v1096, 2
    %vm1117 = vcmp.lt.s32.totalorder %v1096, 3
    %vm1118 = vcmp.lt.s32.totalorder %v1096, 4
    %v1119 = vsel %vm1115, %v1099, %v1102
    %v1120 = vsel %vm1118, %v1108, 2102212464
    %v1121 = vsel %vm1117, %v1105, %v1120
    %v1122 = vsel %vm1116, %v1119, %v1121
    %v1123 = vsel %vm1115, %v1102, %v1105
    %v1124 = vsel %vm1118, %v1111, 920167782
    %v1125 = vsel %vm1117, %v1108, %v1124
    %v1126 = vsel %vm1116, %v1123, %v1125
    %v1127 = vsel %vm1115, %v1105, %v1108
    %v1128 = vsel %vm1118, %v1114, 1326507024
    %v1129 = vsel %vm1117, %v1111, %v1128
    %v1130 = vsel %vm1116, %v1127, %v1129
    %v1131 = vshll.u32 %v1091, 8
    %v1132 = vmul.u32.u64.compose %v1131, %v1130
    %v1133 = vextract.low.u32 %v1132
    %v1134 = vextract.high.u32 %v1132
    %v1135 = vmul.u32.u64.compose %v1131, %v1126
    %v1136 = vextract.low.u32 %v1135
    %v1137 = vextract.high.u32 %v1135
    %v1138 = vmul.u32 %v1131, %v1122
    %v1139 = vadd.s32 %v1134, %v1136
    %vm1140 = vc.u32 %v1134, %v1136
    %v1141 = vadd.s32 %v1137, 1
    %v1142 = vsel %vm1140, %v1141, %v1137
    %v1143 = vadd.s32 %v1138, %v1142
    %v1144 = vadd.s32 %v1143, 536870912
    %v1145 = vshrl.u32 %v1144, 30
    %v1146 = vshll.u32 %v1145, 30
    %v1147 = vsub.s32 %v1143, %v1146
    %vm1148 = vcmp.lt.s32.totalorder %v1147, 0
    %v1149 = vsub.s32 0, %v1147
    %v1150 = vsel %vm1148, %v1149, %v1147
    %v1151 = vclz %v1150
    %v1152 = vsub.s32 %v1151, 2
    %vm1153 = vcmp.gt.s32.totalorder 0, %v1152
    %v1154 = vsel %vm1153, 0, %v1152
    %v1155 = vsub.s32 32, %v1154
    %v1156 = vshll.u32 %v1147, %v1154
    %v1157 = vshrl.u32 %v1139, %v1155
    %v1158 = vor.u32 %v1156, %v1157
    %v1159 = vsub.s32 4294967266, %v1154
    %v1160 = vadd.s32 %v1159, 127
    %v1161 = vshll.u32 %v1160, 23
    %v1162 = vor.u32 4788187, %v1161
    %v1163 = vand.u32 2147483647, %v1162
    %v1165 = vcvt.s32.f32 %v1158
    %v1166 = vmul.f32 %v1165, %v1163
    %v1167 = vxor.u32 %v1166, 2147483648
    %v1168 = vsel %vm1085, %v1167, %v1166
    %v1169 = vsub.s32 4, %v1145
    %v1170 = vsel %vm1085, %v1169, %v1145
    %v1171 = vsel %vm1084, %v742, %v1168
    %v1172 = vsel %vm1084, 0, %v1170
    %v1173 = vcosq.f32.pop %v1171
    %v1174 = vsinq.f32.pop %v1171
    %vm1175 = vweird.f32 %v742
    %v1176 = vadd.s32 %v1172, 3
    %v1177 = vand.u32 %v1176, 3
    %vm1178 = vcmp.lt.s32.totalorder %v1177, 2
    %vm1179 = vcmp.eq.s32.totalorder %v1177, 0
    %v1180 = vxor.u32 %v1174, 2147483648
    %v1181 = vsel %vm1179, %v1173, %v1180
    %vm1182 = vcmp.eq.s32.totalorder %v1177, 2
    %v1183 = vxor.u32 %v1173, 2147483648
    %v1184 = vsel %vm1182, %v1183, %v1174
    %v1185 = vsel %vm1178, %v1181, %v1184
    %v1186 = vsel %vm1175, nan, %v1185
    %v1187 = vand.u32 2147483647, %v743
    %vm1188 = vcmp.le.f32.partialorder %v1187, 0.7853982
    %vm1189 = vcmp.lt.s32.totalorder %v743, 0
    %v1190 = vand.u32 %v743, 2139095040
    %v1191 = vshrl.u32 %v1190, 23
    %v1192 = vsub.s32 %v1191, 127
    %v1193 = vand.u32 2147483647, %v743
    %v1194 = vand.u32 %v1193, 8388607
    %v1195 = vor.u32 %v1194, 8388608
    %v1196 = vsub.s32 0, %v1195
    %v1197 = vadd.s32 %v1192, 1
    %vm1198 = vcmp.gt.s32.totalorder %v1197, 0
    %v1199 = vsel %vm1198, %v1197, 0
    %v1200 = vshrl.u32 %v1199, 5
    %v1201 = vand.u32 %v1199, 31
    %v1202 = vsub.s32 32, %v1201
    %v1203 = vshrl.u32 683565275, %v1202
    %v1204 = vshll.u32 683565275, %v1201
    %v1205 = vshrl.u32 2475754826, %v1202
    %v1206 = vor.u32 %v1204, %v1205
    %v1207 = vshll.u32 2475754826, %v1201
    %v1208 = vshrl.u32 2131351028, %v1202
    %v1209 = vor.u32 %v1207, %v1208
    %v1210 = vshll.u32 2131351028, %v1201
    %v1211 = vshrl.u32 2102212464, %v1202
    %v1212 = vor.u32 %v1210, %v1211
    %v1213 = vshll.u32 2102212464, %v1201
    %v1214 = vshrl.u32 920167782, %v1202
    %v1215 = vor.u32 %v1213, %v1214
    %v1216 = vshll.u32 920167782, %v1201
    %v1217 = vshrl.u32 1326507024, %v1202
    %v1218 = vor.u32 %v1216, %v1217
    %vm1219 = vcmp.lt.s32.totalorder %v1200, 1
    %vm1220 = vcmp.lt.s32.totalorder %v1200, 2
    %vm1221 = vcmp.lt.s32.totalorder %v1200, 3
    %vm1222 = vcmp.lt.s32.totalorder %v1200, 4
    %v1223 = vsel %vm1219, %v1203, %v1206
    %v1224 = vsel %vm1222, %v1212, 2102212464
    %v1225 = vsel %vm1221, %v1209, %v1224
    %v1226 = vsel %vm1220, %v1223, %v1225
    %v1227 = vsel %vm1219, %v1206, %v1209
    %v1228 = vsel %vm1222, %v1215, 920167782
    %v1229 = vsel %vm1221, %v1212, %v1228
    %v1230 = vsel %vm1220, %v1227, %v1229
    %v1231 = vsel %vm1219, %v1209, %v1212
    %v1232 = vsel %vm1222, %v1218, 1326507024
    %v1233 = vsel %vm1221, %v1215, %v1232
    %v1234 = vsel %vm1220, %v1231, %v1233
    %v1235 = vshll.u32 %v1195, 8
    %v1236 = vmul.u32.u64.compose %v1235, %v1234
    %v1237 = vextract.low.u32 %v1236
    %v1238 = vextract.high.u32 %v1236
    %v1239 = vmul.u32.u64.compose %v1235, %v1230
    %v1240 = vextract.low.u32 %v1239
    %v1241 = vextract.high.u32 %v1239
    %v1242 = vmul.u32 %v1235, %v1226
    %v1243 = vadd.s32 %v1238, %v1240
    %vm1244 = vc.u32 %v1238, %v1240
    %v1245 = vadd.s32 %v1241, 1
    %v1246 = vsel %vm1244, %v1245, %v1241
    %v1247 = vadd.s32 %v1242, %v1246
    %v1248 = vadd.s32 %v1247, 536870912
    %v1249 = vshrl.u32 %v1248, 30
    %v1250 = vshll.u32 %v1249, 30
    %v1251 = vsub.s32 %v1247, %v1250
    %vm1252 = vcmp.lt.s32.totalorder %v1251, 0
    %v1253 = vsub.s32 0, %v1251
    %v1254 = vsel %vm1252, %v1253, %v1251
    %v1255 = vclz %v1254
    %v1256 = vsub.s32 %v1255, 2
    %vm1257 = vcmp.gt.s32.totalorder 0, %v1256
    %v1258 = vsel %vm1257, 0, %v1256
    %v1259 = vsub.s32 32, %v1258
    %v1260 = vshll.u32 %v1251, %v1258
    %v1261 = vshrl.u32 %v1243, %v1259
    %v1262 = vor.u32 %v1260, %v1261
    %v1263 = vsub.s32 4294967266, %v1258
    %v1264 = vadd.s32 %v1263, 127
    %v1265 = vshll.u32 %v1264, 23
    %v1266 = vor.u32 4788187, %v1265
    %v1267 = vand.u32 2147483647, %v1266
    %v1269 = vcvt.s32.f32 %v1262
    %v1270 = vmul.f32 %v1269, %v1267
    %v1271 = vxor.u32 %v1270, 2147483648
    %v1272 = vsel %vm1189, %v1271, %v1270
    %v1273 = vsub.s32 4, %v1249
    %v1274 = vsel %vm1189, %v1273, %v1249
    %v1275 = vsel %vm1188, %v743, %v1272
    %v1276 = vsel %vm1188, 0, %v1274
    %v1277 = vcosq.f32.pop %v1275
    %v1278 = vsinq.f32.pop %v1275
    %vm1279 = vweird.f32 %v743
    %v1280 = vadd.s32 %v1276, 3
    %v1281 = vand.u32 %v1280, 3
    %vm1282 = vcmp.lt.s32.totalorder %v1281, 2
    %vm1283 = vcmp.eq.s32.totalorder %v1281, 0
    %v1284 = vxor.u32 %v1278, 2147483648
    %v1285 = vsel %vm1283, %v1277, %v1284
    %vm1286 = vcmp.eq.s32.totalorder %v1281, 2
    %v1287 = vxor.u32 %v1277, 2147483648
    %v1288 = vsel %vm1286, %v1287, %v1278
    %v1289 = vsel %vm1282, %v1285, %v1288
    %v1290 = vsel %vm1279, nan, %v1289
    %v1291 = vand.u32 2147483647, %v744
    %vm1292 = vcmp.le.f32.partialorder %v1291, 0.7853982
    %vm1293 = vcmp.lt.s32.totalorder %v744, 0
    %v1294 = vand.u32 %v744, 2139095040
    %v1295 = vshrl.u32 %v1294, 23
    %v1296 = vsub.s32 %v1295, 127
    %v1297 = vand.u32 2147483647, %v744
    %v1298 = vand.u32 %v1297, 8388607
    %v1299 = vor.u32 %v1298, 8388608
    %v1300 = vsub.s32 0, %v1299
    %v1301 = vadd.s32 %v1296, 1
    %vm1302 = vcmp.gt.s32.totalorder %v1301, 0
    %v1303 = vsel %vm1302, %v1301, 0
    %v1304 = vshrl.u32 %v1303, 5
    %v1305 = vand.u32 %v1303, 31
    %v1306 = vsub.s32 32, %v1305
    %v1307 = vshrl.u32 683565275, %v1306
    %v1308 = vshll.u32 683565275, %v1305
    %v1309 = vshrl.u32 2475754826, %v1306
    %v1310 = vor.u32 %v1308, %v1309
    %v1311 = vshll.u32 2475754826, %v1305
    %v1312 = vshrl.u32 2131351028, %v1306
    %v1313 = vor.u32 %v1311, %v1312
    %v1314 = vshll.u32 2131351028, %v1305
    %v1315 = vshrl.u32 2102212464, %v1306
    %v1316 = vor.u32 %v1314, %v1315
    %v1317 = vshll.u32 2102212464, %v1305
    %v1318 = vshrl.u32 920167782, %v1306
    %v1319 = vor.u32 %v1317, %v1318
    %v1320 = vshll.u32 920167782, %v1305
    %v1321 = vshrl.u32 1326507024, %v1306
    %v1322 = vor.u32 %v1320, %v1321
    %vm1323 = vcmp.lt.s32.totalorder %v1304, 1
    %vm1324 = vcmp.lt.s32.totalorder %v1304, 2
    %vm1325 = vcmp.lt.s32.totalorder %v1304, 3
    %vm1326 = vcmp.lt.s32.totalorder %v1304, 4
    %v1327 = vsel %vm1323, %v1307, %v1310
    %v1328 = vsel %vm1326, %v1316, 2102212464
    %v1329 = vsel %vm1325, %v1313, %v1328
    %v1330 = vsel %vm1324, %v1327, %v1329
    %v1331 = vsel %vm1323, %v1310, %v1313
    %v1332 = vsel %vm1326, %v1319, 920167782
    %v1333 = vsel %vm1325, %v1316, %v1332
    %v1334 = vsel %vm1324, %v1331, %v1333
    %v1335 = vsel %vm1323, %v1313, %v1316
    %v1336 = vsel %vm1326, %v1322, 1326507024
    %v1337 = vsel %vm1325, %v1319, %v1336
    %v1338 = vsel %vm1324, %v1335, %v1337
    %v1339 = vshll.u32 %v1299, 8
    %v1340 = vmul.u32.u64.compose %v1339, %v1338
    %v1341 = vextract.low.u32 %v1340
    %v1342 = vextract.high.u32 %v1340
    %v1343 = vmul.u32.u64.compose %v1339, %v1334
    %v1344 = vextract.low.u32 %v1343
    %v1345 = vextract.high.u32 %v1343
    %v1346 = vmul.u32 %v1339, %v1330
    %v1347 = vadd.s32 %v1342, %v1344
    %vm1348 = vc.u32 %v1342, %v1344
    %v1349 = vadd.s32 %v1345, 1
    %v1350 = vsel %vm1348, %v1349, %v1345
    %v1351 = vadd.s32 %v1346, %v1350
    %v1352 = vadd.s32 %v1351, 536870912
    %v1353 = vshrl.u32 %v1352, 30
    %v1354 = vshll.u32 %v1353, 30
    %v1355 = vsub.s32 %v1351, %v1354
    %vm1356 = vcmp.lt.s32.totalorder %v1355, 0
    %v1357 = vsub.s32 0, %v1355
    %v1358 = vsel %vm1356, %v1357, %v1355
    %v1359 = vclz %v1358
    %v1360 = vsub.s32 %v1359, 2
    %vm1361 = vcmp.gt.s32.totalorder 0, %v1360
    %v1362 = vsel %vm1361, 0, %v1360
    %v1363 = vsub.s32 32, %v1362
    %v1364 = vshll.u32 %v1355, %v1362
    %v1365 = vshrl.u32 %v1347, %v1363
    %v1366 = vor.u32 %v1364, %v1365
    %v1367 = vsub.s32 4294967266, %v1362
    %v1368 = vadd.s32 %v1367, 127
    %v1369 = vshll.u32 %v1368, 23
    %v1370 = vor.u32 4788187, %v1369
    %v1371 = vand.u32 2147483647, %v1370
    %v1373 = vcvt.s32.f32 %v1366
    %v1374 = vmul.f32 %v1373, %v1371
    %v1375 = vxor.u32 %v1374, 2147483648
    %v1376 = vsel %vm1293, %v1375, %v1374
    %v1377 = vsub.s32 4, %v1353
    %v1378 = vsel %vm1293, %v1377, %v1353
    %v1379 = vsel %vm1292, %v744, %v1376
    %v1380 = vsel %vm1292, 0, %v1378
    %v1381 = vcosq.f32.pop %v1379
    %v1382 = vsinq.f32.pop %v1379
    %vm1383 = vweird.f32 %v744
    %v1384 = vadd.s32 %v1380, 3
    %v1385 = vand.u32 %v1384, 3
    %vm1386 = vcmp.lt.s32.totalorder %v1385, 2
    %vm1387 = vcmp.eq.s32.totalorder %v1385, 0
    %v1388 = vxor.u32 %v1382, 2147483648
    %v1389 = vsel %vm1387, %v1381, %v1388
    %vm1390 = vcmp.eq.s32.totalorder %v1385, 2
    %v1391 = vxor.u32 %v1381, 2147483648
    %v1392 = vsel %vm1390, %v1391, %v1382
    %v1393 = vsel %vm1386, %v1389, %v1392
    %v1394 = vsel %vm1383, nan, %v1393
    %v1395 = vand.u32 2147483647, %v745
    %vm1396 = vcmp.le.f32.partialorder %v1395, 0.7853982
    %vm1397 = vcmp.lt.s32.totalorder %v745, 0
    %v1398 = vand.u32 %v745, 2139095040
    %v1399 = vshrl.u32 %v1398, 23
    %v1400 = vsub.s32 %v1399, 127
    %v1401 = vand.u32 2147483647, %v745
    %v1402 = vand.u32 %v1401, 8388607
    %v1403 = vor.u32 %v1402, 8388608
    %v1404 = vsub.s32 0, %v1403
    %v1405 = vadd.s32 %v1400, 1
    %vm1406 = vcmp.gt.s32.totalorder %v1405, 0
    %v1407 = vsel %vm1406, %v1405, 0
    %v1408 = vshrl.u32 %v1407, 5
    %v1409 = vand.u32 %v1407, 31
    %v1410 = vsub.s32 32, %v1409
    %v1411 = vshrl.u32 683565275, %v1410
    %v1412 = vshll.u32 683565275, %v1409
    %v1413 = vshrl.u32 2475754826, %v1410
    %v1414 = vor.u32 %v1412, %v1413
    %v1415 = vshll.u32 2475754826, %v1409
    %v1416 = vshrl.u32 2131351028, %v1410
    %v1417 = vor.u32 %v1415, %v1416
    %v1418 = vshll.u32 2131351028, %v1409
    %v1419 = vshrl.u32 2102212464, %v1410
    %v1420 = vor.u32 %v1418, %v1419
    %v1421 = vshll.u32 2102212464, %v1409
    %v1422 = vshrl.u32 920167782, %v1410
    %v1423 = vor.u32 %v1421, %v1422
    %v1424 = vshll.u32 920167782, %v1409
    %v1425 = vshrl.u32 1326507024, %v1410
    %v1426 = vor.u32 %v1424, %v1425
    %vm1427 = vcmp.lt.s32.totalorder %v1408, 1
    %vm1428 = vcmp.lt.s32.totalorder %v1408, 2
    %vm1429 = vcmp.lt.s32.totalorder %v1408, 3
    %vm1430 = vcmp.lt.s32.totalorder %v1408, 4
    %v1431 = vsel %vm1427, %v1411, %v1414
    %v1432 = vsel %vm1430, %v1420, 2102212464
    %v1433 = vsel %vm1429, %v1417, %v1432
    %v1434 = vsel %vm1428, %v1431, %v1433
    %v1435 = vsel %vm1427, %v1414, %v1417
    %v1436 = vsel %vm1430, %v1423, 920167782
    %v1437 = vsel %vm1429, %v1420, %v1436
    %v1438 = vsel %vm1428, %v1435, %v1437
    %v1439 = vsel %vm1427, %v1417, %v1420
    %v1440 = vsel %vm1430, %v1426, 1326507024
    %v1441 = vsel %vm1429, %v1423, %v1440
    %v1442 = vsel %vm1428, %v1439, %v1441
    %v1443 = vshll.u32 %v1403, 8
    %v1444 = vmul.u32.u64.compose %v1443, %v1442
    %v1445 = vextract.low.u32 %v1444
    %v1446 = vextract.high.u32 %v1444
    %v1447 = vmul.u32.u64.compose %v1443, %v1438
    %v1448 = vextract.low.u32 %v1447
    %v1449 = vextract.high.u32 %v1447
    %v1450 = vmul.u32 %v1443, %v1434
    %v1451 = vadd.s32 %v1446, %v1448
    %vm1452 = vc.u32 %v1446, %v1448
    %v1453 = vadd.s32 %v1449, 1
    %v1454 = vsel %vm1452, %v1453, %v1449
    %v1455 = vadd.s32 %v1450, %v1454
    %v1456 = vadd.s32 %v1455, 536870912
    %v1457 = vshrl.u32 %v1456, 30
    %v1458 = vshll.u32 %v1457, 30
    %v1459 = vsub.s32 %v1455, %v1458
    %vm1460 = vcmp.lt.s32.totalorder %v1459, 0
    %v1461 = vsub.s32 0, %v1459
    %v1462 = vsel %vm1460, %v1461, %v1459
    %v1463 = vclz %v1462
    %v1464 = vsub.s32 %v1463, 2
    %vm1465 = vcmp.gt.s32.totalorder 0, %v1464
    %v1466 = vsel %vm1465, 0, %v1464
    %v1467 = vsub.s32 32, %v1466
    %v1468 = vshll.u32 %v1459, %v1466
    %v1469 = vshrl.u32 %v1451, %v1467
    %v1470 = vor.u32 %v1468, %v1469
    %v1471 = vsub.s32 4294967266, %v1466
    %v1472 = vadd.s32 %v1471, 127
    %v1473 = vshll.u32 %v1472, 23
    %v1474 = vor.u32 4788187, %v1473
    %v1475 = vand.u32 2147483647, %v1474
    %v1477 = vcvt.s32.f32 %v1470
    %v1478 = vmul.f32 %v1477, %v1475
    %v1479 = vxor.u32 %v1478, 2147483648
    %v1480 = vsel %vm1397, %v1479, %v1478
    %v1481 = vsub.s32 4, %v1457
    %v1482 = vsel %vm1397, %v1481, %v1457
    %v1483 = vsel %vm1396, %v745, %v1480
    %v1484 = vsel %vm1396, 0, %v1482
    %v1485 = vcosq.f32.pop %v1483
    %v1486 = vsinq.f32.pop %v1483
    %vm1487 = vweird.f32 %v745
    %v1488 = vadd.s32 %v1484, 3
    %v1489 = vand.u32 %v1488, 3
    %vm1490 = vcmp.lt.s32.totalorder %v1489, 2
    %vm1491 = vcmp.eq.s32.totalorder %v1489, 0
    %v1492 = vxor.u32 %v1486, 2147483648
    %v1493 = vsel %vm1491, %v1485, %v1492
    %vm1494 = vcmp.eq.s32.totalorder %v1489, 2
    %v1495 = vxor.u32 %v1485, 2147483648
    %v1496 = vsel %vm1494, %v1495, %v1486
    %v1497 = vsel %vm1490, %v1493, %v1496
    %v1498 = vsel %vm1487, nan, %v1497
    %v1499 = vand.u32 2147483647, %v746
    %vm1500 = vcmp.le.f32.partialorder %v1499, 0.7853982
    %vm1501 = vcmp.lt.s32.totalorder %v746, 0
    %v1502 = vand.u32 %v746, 2139095040
    %v1503 = vshrl.u32 %v1502, 23
    %v1504 = vsub.s32 %v1503, 127
    %v1505 = vand.u32 2147483647, %v746
    %v1506 = vand.u32 %v1505, 8388607
    %v1507 = vor.u32 %v1506, 8388608
    %v1508 = vsub.s32 0, %v1507
    %v1509 = vadd.s32 %v1504, 1
    %vm1510 = vcmp.gt.s32.totalorder %v1509, 0
    %v1511 = vsel %vm1510, %v1509, 0
    %v1512 = vshrl.u32 %v1511, 5
    %v1513 = vand.u32 %v1511, 31
    %v1514 = vsub.s32 32, %v1513
    %v1515 = vshrl.u32 683565275, %v1514
    %v1516 = vshll.u32 683565275, %v1513
    %v1517 = vshrl.u32 2475754826, %v1514
    %v1518 = vor.u32 %v1516, %v1517
    %v1519 = vshll.u32 2475754826, %v1513
    %v1520 = vshrl.u32 2131351028, %v1514
    %v1521 = vor.u32 %v1519, %v1520
    %v1522 = vshll.u32 2131351028, %v1513
    %v1523 = vshrl.u32 2102212464, %v1514
    %v1524 = vor.u32 %v1522, %v1523
    %v1525 = vshll.u32 2102212464, %v1513
    %v1526 = vshrl.u32 920167782, %v1514
    %v1527 = vor.u32 %v1525, %v1526
    %v1528 = vshll.u32 920167782, %v1513
    %v1529 = vshrl.u32 1326507024, %v1514
    %v1530 = vor.u32 %v1528, %v1529
    %vm1531 = vcmp.lt.s32.totalorder %v1512, 1
    %vm1532 = vcmp.lt.s32.totalorder %v1512, 2
    %vm1533 = vcmp.lt.s32.totalorder %v1512, 3
    %vm1534 = vcmp.lt.s32.totalorder %v1512, 4
    %v1535 = vsel %vm1531, %v1515, %v1518
    %v1536 = vsel %vm1534, %v1524, 2102212464
    %v1537 = vsel %vm1533, %v1521, %v1536
    %v1538 = vsel %vm1532, %v1535, %v1537
    %v1539 = vsel %vm1531, %v1518, %v1521
    %v1540 = vsel %vm1534, %v1527, 920167782
    %v1541 = vsel %vm1533, %v1524, %v1540
    %v1542 = vsel %vm1532, %v1539, %v1541
    %v1543 = vsel %vm1531, %v1521, %v1524
    %v1544 = vsel %vm1534, %v1530, 1326507024
    %v1545 = vsel %vm1533, %v1527, %v1544
    %v1546 = vsel %vm1532, %v1543, %v1545
    %v1547 = vshll.u32 %v1507, 8
    %v1548 = vmul.u32.u64.compose %v1547, %v1546
    %v1549 = vextract.low.u32 %v1548
    %v1550 = vextract.high.u32 %v1548
    %v1551 = vmul.u32.u64.compose %v1547, %v1542
    %v1552 = vextract.low.u32 %v1551
    %v1553 = vextract.high.u32 %v1551
    %v1554 = vmul.u32 %v1547, %v1538
    %v1555 = vadd.s32 %v1550, %v1552
    %vm1556 = vc.u32 %v1550, %v1552
    %v1557 = vadd.s32 %v1553, 1
    %v1558 = vsel %vm1556, %v1557, %v1553
    %v1559 = vadd.s32 %v1554, %v1558
    %v1560 = vadd.s32 %v1559, 536870912
    %v1561 = vshrl.u32 %v1560, 30
    %v1562 = vshll.u32 %v1561, 30
    %v1563 = vsub.s32 %v1559, %v1562
    %vm1564 = vcmp.lt.s32.totalorder %v1563, 0
    %v1565 = vsub.s32 0, %v1563
    %v1566 = vsel %vm1564, %v1565, %v1563
    %v1567 = vclz %v1566
    %v1568 = vsub.s32 %v1567, 2
    %vm1569 = vcmp.gt.s32.totalorder 0, %v1568
    %v1570 = vsel %vm1569, 0, %v1568
    %v1571 = vsub.s32 32, %v1570
    %v1572 = vshll.u32 %v1563, %v1570
    %v1573 = vshrl.u32 %v1555, %v1571
    %v1574 = vor.u32 %v1572, %v1573
    %v1575 = vsub.s32 4294967266, %v1570
    %v1576 = vadd.s32 %v1575, 127
    %v1577 = vshll.u32 %v1576, 23
    %v1578 = vor.u32 4788187, %v1577
    %v1579 = vand.u32 2147483647, %v1578
    %v1581 = vcvt.s32.f32 %v1574
    %v1582 = vmul.f32 %v1581, %v1579
    %v1583 = vxor.u32 %v1582, 2147483648
    %v1584 = vsel %vm1501, %v1583, %v1582
    %v1585 = vsub.s32 4, %v1561
    %v1586 = vsel %vm1501, %v1585, %v1561
    %v1587 = vsel %vm1500, %v746, %v1584
    %v1588 = vsel %vm1500, 0, %v1586
    %v1589 = vcosq.f32.pop %v1587
    %v1590 = vsinq.f32.pop %v1587
    %vm1591 = vweird.f32 %v746
    %v1592 = vadd.s32 %v1588, 3
    %v1593 = vand.u32 %v1592, 3
    %vm1594 = vcmp.lt.s32.totalorder %v1593, 2
    %vm1595 = vcmp.eq.s32.totalorder %v1593, 0
    %v1596 = vxor.u32 %v1590, 2147483648
    %v1597 = vsel %vm1595, %v1589, %v1596
    %vm1598 = vcmp.eq.s32.totalorder %v1593, 2
    %v1599 = vxor.u32 %v1589, 2147483648
    %v1600 = vsel %vm1598, %v1599, %v1590
    %v1601 = vsel %vm1594, %v1597, %v1600
    %v1602 = vsel %vm1591, nan, %v1601
    %v1603 = vand.u32 2147483647, %v747
    %vm1604 = vcmp.le.f32.partialorder %v1603, 0.7853982
    %vm1605 = vcmp.lt.s32.totalorder %v747, 0
    %v1606 = vand.u32 %v747, 2139095040
    %v1607 = vshrl.u32 %v1606, 23
    %v1608 = vsub.s32 %v1607, 127
    %v1609 = vand.u32 2147483647, %v747
    %v1610 = vand.u32 %v1609, 8388607
    %v1611 = vor.u32 %v1610, 8388608
    %v1612 = vsub.s32 0, %v1611
    %v1613 = vadd.s32 %v1608, 1
    %vm1614 = vcmp.gt.s32.totalorder %v1613, 0
    %v1615 = vsel %vm1614, %v1613, 0
    %v1616 = vshrl.u32 %v1615, 5
    %v1617 = vand.u32 %v1615, 31
    %v1618 = vsub.s32 32, %v1617
    %v1619 = vshrl.u32 683565275, %v1618
    %v1620 = vshll.u32 683565275, %v1617
    %v1621 = vshrl.u32 2475754826, %v1618
    %v1622 = vor.u32 %v1620, %v1621
    %v1623 = vshll.u32 2475754826, %v1617
    %v1624 = vshrl.u32 2131351028, %v1618
    %v1625 = vor.u32 %v1623, %v1624
    %v1626 = vshll.u32 2131351028, %v1617
    %v1627 = vshrl.u32 2102212464, %v1618
    %v1628 = vor.u32 %v1626, %v1627
    %v1629 = vshll.u32 2102212464, %v1617
    %v1630 = vshrl.u32 920167782, %v1618
    %v1631 = vor.u32 %v1629, %v1630
    %v1632 = vshll.u32 920167782, %v1617
    %v1633 = vshrl.u32 1326507024, %v1618
    %v1634 = vor.u32 %v1632, %v1633
    %vm1635 = vcmp.lt.s32.totalorder %v1616, 1
    %vm1636 = vcmp.lt.s32.totalorder %v1616, 2
    %vm1637 = vcmp.lt.s32.totalorder %v1616, 3
    %vm1638 = vcmp.lt.s32.totalorder %v1616, 4
    %v1639 = vsel %vm1635, %v1619, %v1622
    %v1640 = vsel %vm1638, %v1628, 2102212464
    %v1641 = vsel %vm1637, %v1625, %v1640
    %v1642 = vsel %vm1636, %v1639, %v1641
    %v1643 = vsel %vm1635, %v1622, %v1625
    %v1644 = vsel %vm1638, %v1631, 920167782
    %v1645 = vsel %vm1637, %v1628, %v1644
    %v1646 = vsel %vm1636, %v1643, %v1645
    %v1647 = vsel %vm1635, %v1625, %v1628
    %v1648 = vsel %vm1638, %v1634, 1326507024
    %v1649 = vsel %vm1637, %v1631, %v1648
    %v1650 = vsel %vm1636, %v1647, %v1649
    %v1651 = vshll.u32 %v1611, 8
    %v1652 = vmul.u32.u64.compose %v1651, %v1650
    %v1653 = vextract.low.u32 %v1652
    %v1654 = vextract.high.u32 %v1652
    %v1655 = vmul.u32.u64.compose %v1651, %v1646
    %v1656 = vextract.low.u32 %v1655
    %v1657 = vextract.high.u32 %v1655
    %v1658 = vmul.u32 %v1651, %v1642
    %v1659 = vadd.s32 %v1654, %v1656
    %vm1660 = vc.u32 %v1654, %v1656
    %v1661 = vadd.s32 %v1657, 1
    %v1662 = vsel %vm1660, %v1661, %v1657
    %v1663 = vadd.s32 %v1658, %v1662
    %v1664 = vadd.s32 %v1663, 536870912
    %v1665 = vshrl.u32 %v1664, 30
    %v1666 = vshll.u32 %v1665, 30
    %v1667 = vsub.s32 %v1663, %v1666
    %vm1668 = vcmp.lt.s32.totalorder %v1667, 0
    %v1669 = vsub.s32 0, %v1667
    %v1670 = vsel %vm1668, %v1669, %v1667
    %v1671 = vclz %v1670
    %v1672 = vsub.s32 %v1671, 2
    %vm1673 = vcmp.gt.s32.totalorder 0, %v1672
    %v1674 = vsel %vm1673, 0, %v1672
    %v1675 = vsub.s32 32, %v1674
    %v1676 = vshll.u32 %v1667, %v1674
    %v1677 = vshrl.u32 %v1659, %v1675
    %v1678 = vor.u32 %v1676, %v1677
    %v1679 = vsub.s32 4294967266, %v1674
    %v1680 = vadd.s32 %v1679, 127
    %v1681 = vshll.u32 %v1680, 23
    %v1682 = vor.u32 4788187, %v1681
    %v1683 = vand.u32 2147483647, %v1682
    %v1685 = vcvt.s32.f32 %v1678
    %v1686 = vmul.f32 %v1685, %v1683
    %v1687 = vxor.u32 %v1686, 2147483648
    %v1688 = vsel %vm1605, %v1687, %v1686
    %v1689 = vsub.s32 4, %v1665
    %v1690 = vsel %vm1605, %v1689, %v1665
    %v1691 = vsel %vm1604, %v747, %v1688
    %v1692 = vsel %vm1604, 0, %v1690
    %v1693 = vcosq.f32.pop %v1691
    %v1694 = vsinq.f32.pop %v1691
    %vm1695 = vweird.f32 %v747
    %v1696 = vadd.s32 %v1692, 3
    %v1697 = vand.u32 %v1696, 3
    %vm1698 = vcmp.lt.s32.totalorder %v1697, 2
    %vm1699 = vcmp.eq.s32.totalorder %v1697, 0
    %v1700 = vxor.u32 %v1694, 2147483648
    %v1701 = vsel %vm1699, %v1693, %v1700
    %vm1702 = vcmp.eq.s32.totalorder %v1697, 2
    %v1703 = vxor.u32 %v1693, 2147483648
    %v1704 = vsel %vm1702, %v1703, %v1694
    %v1705 = vsel %vm1698, %v1701, %v1704
    %v1706 = vsel %vm1695, nan, %v1705
    %v1707 = vand.u32 2147483647, %v748
    %vm1708 = vcmp.le.f32.partialorder %v1707, 0.7853982
    %vm1709 = vcmp.lt.s32.totalorder %v748, 0
    %v1710 = vand.u32 %v748, 2139095040
    %v1711 = vshrl.u32 %v1710, 23
    %v1712 = vsub.s32 %v1711, 127
    %v1713 = vand.u32 2147483647, %v748
    %v1714 = vand.u32 %v1713, 8388607
    %v1715 = vor.u32 %v1714, 8388608
    %v1716 = vsub.s32 0, %v1715
    %v1717 = vadd.s32 %v1712, 1
    %vm1718 = vcmp.gt.s32.totalorder %v1717, 0
    %v1719 = vsel %vm1718, %v1717, 0
    %v1720 = vshrl.u32 %v1719, 5
    %v1721 = vand.u32 %v1719, 31
    %v1722 = vsub.s32 32, %v1721
    %v1723 = vshrl.u32 683565275, %v1722
    %v1724 = vshll.u32 683565275, %v1721
    %v1725 = vshrl.u32 2475754826, %v1722
    %v1726 = vor.u32 %v1724, %v1725
    %v1727 = vshll.u32 2475754826, %v1721
    %v1728 = vshrl.u32 2131351028, %v1722
    %v1729 = vor.u32 %v1727, %v1728
    %v1730 = vshll.u32 2131351028, %v1721
    %v1731 = vshrl.u32 2102212464, %v1722
    %v1732 = vor.u32 %v1730, %v1731
    %v1733 = vshll.u32 2102212464, %v1721
    %v1734 = vshrl.u32 920167782, %v1722
    %v1735 = vor.u32 %v1733, %v1734
    %v1736 = vshll.u32 920167782, %v1721
    %v1737 = vshrl.u32 1326507024, %v1722
    %v1738 = vor.u32 %v1736, %v1737
    %vm1739 = vcmp.lt.s32.totalorder %v1720, 1
    %vm1740 = vcmp.lt.s32.totalorder %v1720, 2
    %vm1741 = vcmp.lt.s32.totalorder %v1720, 3
    %vm1742 = vcmp.lt.s32.totalorder %v1720, 4
    %v1743 = vsel %vm1739, %v1723, %v1726
    %v1744 = vsel %vm1742, %v1732, 2102212464
    %v1745 = vsel %vm1741, %v1729, %v1744
    %v1746 = vsel %vm1740, %v1743, %v1745
    %v1747 = vsel %vm1739, %v1726, %v1729
    %v1748 = vsel %vm1742, %v1735, 920167782
    %v1749 = vsel %vm1741, %v1732, %v1748
    %v1750 = vsel %vm1740, %v1747, %v1749
    %v1751 = vsel %vm1739, %v1729, %v1732
    %v1752 = vsel %vm1742, %v1738, 1326507024
    %v1753 = vsel %vm1741, %v1735, %v1752
    %v1754 = vsel %vm1740, %v1751, %v1753
    %v1755 = vshll.u32 %v1715, 8
    %v1756 = vmul.u32.u64.compose %v1755, %v1754
    %v1757 = vextract.low.u32 %v1756
    %v1758 = vextract.high.u32 %v1756
    %v1759 = vmul.u32.u64.compose %v1755, %v1750
    %v1760 = vextract.low.u32 %v1759
    %v1761 = vextract.high.u32 %v1759
    %v1762 = vmul.u32 %v1755, %v1746
    %v1763 = vadd.s32 %v1758, %v1760
    %vm1764 = vc.u32 %v1758, %v1760
    %v1765 = vadd.s32 %v1761, 1
    %v1766 = vsel %vm1764, %v1765, %v1761
    %v1767 = vadd.s32 %v1762, %v1766
    %v1768 = vadd.s32 %v1767, 536870912
    %v1769 = vshrl.u32 %v1768, 30
    %v1770 = vshll.u32 %v1769, 30
    %v1771 = vsub.s32 %v1767, %v1770
    %vm1772 = vcmp.lt.s32.totalorder %v1771, 0
    %v1773 = vsub.s32 0, %v1771
    %v1774 = vsel %vm1772, %v1773, %v1771
    %v1775 = vclz %v1774
    %v1776 = vsub.s32 %v1775, 2
    %vm1777 = vcmp.gt.s32.totalorder 0, %v1776
    %v1778 = vsel %vm1777, 0, %v1776
    %v1779 = vsub.s32 32, %v1778
    %v1780 = vshll.u32 %v1771, %v1778
    %v1781 = vshrl.u32 %v1763, %v1779
    %v1782 = vor.u32 %v1780, %v1781
    %v1783 = vsub.s32 4294967266, %v1778
    %v1784 = vadd.s32 %v1783, 127
    %v1785 = vshll.u32 %v1784, 23
    %v1786 = vor.u32 4788187, %v1785
    %v1787 = vand.u32 2147483647, %v1786
    %v1789 = vcvt.s32.f32 %v1782
    %v1790 = vmul.f32 %v1789, %v1787
    %v1791 = vxor.u32 %v1790, 2147483648
    %v1792 = vsel %vm1709, %v1791, %v1790
    %v1793 = vsub.s32 4, %v1769
    %v1794 = vsel %vm1709, %v1793, %v1769
    %v1795 = vsel %vm1708, %v748, %v1792
    %v1796 = vsel %vm1708, 0, %v1794
    %v1797 = vcosq.f32.pop %v1795
    %v1798 = vsinq.f32.pop %v1795
    %vm1799 = vweird.f32 %v748
    %v1800 = vadd.s32 %v1796, 3
    %v1801 = vand.u32 %v1800, 3
    %vm1802 = vcmp.lt.s32.totalorder %v1801, 2
    %vm1803 = vcmp.eq.s32.totalorder %v1801, 0
    %v1804 = vxor.u32 %v1798, 2147483648
    %v1805 = vsel %vm1803, %v1797, %v1804
    %vm1806 = vcmp.eq.s32.totalorder %v1801, 2
    %v1807 = vxor.u32 %v1797, 2147483648
    %v1808 = vsel %vm1806, %v1807, %v1798
    %v1809 = vsel %vm1802, %v1805, %v1808
    %v1810 = vsel %vm1799, nan, %v1809
    %v1811 = vand.u32 2147483647, %v749
    %vm1812 = vcmp.le.f32.partialorder %v1811, 0.7853982
    %vm1813 = vcmp.lt.s32.totalorder %v749, 0
    %v1814 = vand.u32 %v749, 2139095040
    %v1815 = vshrl.u32 %v1814, 23
    %v1816 = vsub.s32 %v1815, 127
    %v1817 = vand.u32 2147483647, %v749
    %v1818 = vand.u32 %v1817, 8388607
    %v1819 = vor.u32 %v1818, 8388608
    %v1820 = vsub.s32 0, %v1819
    %v1821 = vadd.s32 %v1816, 1
    %vm1822 = vcmp.gt.s32.totalorder %v1821, 0
    %v1823 = vsel %vm1822, %v1821, 0
    %v1824 = vshrl.u32 %v1823, 5
    %v1825 = vand.u32 %v1823, 31
    %v1826 = vsub.s32 32, %v1825
    %v1827 = vshrl.u32 683565275, %v1826
    %v1828 = vshll.u32 683565275, %v1825
    %v1829 = vshrl.u32 2475754826, %v1826
    %v1830 = vor.u32 %v1828, %v1829
    %v1831 = vshll.u32 2475754826, %v1825
    %v1832 = vshrl.u32 2131351028, %v1826
    %v1833 = vor.u32 %v1831, %v1832
    %v1834 = vshll.u32 2131351028, %v1825
    %v1835 = vshrl.u32 2102212464, %v1826
    %v1836 = vor.u32 %v1834, %v1835
    %v1837 = vshll.u32 2102212464, %v1825
    %v1838 = vshrl.u32 920167782, %v1826
    %v1839 = vor.u32 %v1837, %v1838
    %v1840 = vshll.u32 920167782, %v1825
    %v1841 = vshrl.u32 1326507024, %v1826
    %v1842 = vor.u32 %v1840, %v1841
    %vm1843 = vcmp.lt.s32.totalorder %v1824, 1
    %vm1844 = vcmp.lt.s32.totalorder %v1824, 2
    %vm1845 = vcmp.lt.s32.totalorder %v1824, 3
    %vm1846 = vcmp.lt.s32.totalorder %v1824, 4
    %v1847 = vsel %vm1843, %v1827, %v1830
    %v1848 = vsel %vm1846, %v1836, 2102212464
    %v1849 = vsel %vm1845, %v1833, %v1848
    %v1850 = vsel %vm1844, %v1847, %v1849
    %v1851 = vsel %vm1843, %v1830, %v1833
    %v1852 = vsel %vm1846, %v1839, 920167782
    %v1853 = vsel %vm1845, %v1836, %v1852
    %v1854 = vsel %vm1844, %v1851, %v1853
    %v1855 = vsel %vm1843, %v1833, %v1836
    %v1856 = vsel %vm1846, %v1842, 1326507024
    %v1857 = vsel %vm1845, %v1839, %v1856
    %v1858 = vsel %vm1844, %v1855, %v1857
    %v1859 = vshll.u32 %v1819, 8
    %v1860 = vmul.u32.u64.compose %v1859, %v1858
    %v1861 = vextract.low.u32 %v1860
    %v1862 = vextract.high.u32 %v1860
    %v1863 = vmul.u32.u64.compose %v1859, %v1854
    %v1864 = vextract.low.u32 %v1863
    %v1865 = vextract.high.u32 %v1863
    %v1866 = vmul.u32 %v1859, %v1850
    %v1867 = vadd.s32 %v1862, %v1864
    %vm1868 = vc.u32 %v1862, %v1864
    %v1869 = vadd.s32 %v1865, 1
    %v1870 = vsel %vm1868, %v1869, %v1865
    %v1871 = vadd.s32 %v1866, %v1870
    %v1872 = vadd.s32 %v1871, 536870912
    %v1873 = vshrl.u32 %v1872, 30
    %v1874 = vshll.u32 %v1873, 30
    %v1875 = vsub.s32 %v1871, %v1874
    %vm1876 = vcmp.lt.s32.totalorder %v1875, 0
    %v1877 = vsub.s32 0, %v1875
    %v1878 = vsel %vm1876, %v1877, %v1875
    %v1879 = vclz %v1878
    %v1880 = vsub.s32 %v1879, 2
    %vm1881 = vcmp.gt.s32.totalorder 0, %v1880
    %v1882 = vsel %vm1881, 0, %v1880
    %v1883 = vsub.s32 32, %v1882
    %v1884 = vshll.u32 %v1875, %v1882
    %v1885 = vshrl.u32 %v1867, %v1883
    %v1886 = vor.u32 %v1884, %v1885
    %v1887 = vsub.s32 4294967266, %v1882
    %v1888 = vadd.s32 %v1887, 127
    %v1889 = vshll.u32 %v1888, 23
    %v1890 = vor.u32 4788187, %v1889
    %v1891 = vand.u32 2147483647, %v1890
    %v1893 = vcvt.s32.f32 %v1886
    %v1894 = vmul.f32 %v1893, %v1891
    %v1895 = vxor.u32 %v1894, 2147483648
    %v1896 = vsel %vm1813, %v1895, %v1894
    %v1897 = vsub.s32 4, %v1873
    %v1898 = vsel %vm1813, %v1897, %v1873
    %v1899 = vsel %vm1812, %v749, %v1896
    %v1900 = vsel %vm1812, 0, %v1898
    %v1901 = vcosq.f32.pop %v1899
    %v1902 = vsinq.f32.pop %v1899
    %vm1903 = vweird.f32 %v749
    %v1904 = vadd.s32 %v1900, 3
    %v1905 = vand.u32 %v1904, 3
    %vm1906 = vcmp.lt.s32.totalorder %v1905, 2
    %vm1907 = vcmp.eq.s32.totalorder %v1905, 0
    %v1908 = vxor.u32 %v1902, 2147483648
    %v1909 = vsel %vm1907, %v1901, %v1908
    %vm1910 = vcmp.eq.s32.totalorder %v1905, 2
    %v1911 = vxor.u32 %v1901, 2147483648
    %v1912 = vsel %vm1910, %v1911, %v1902
    %v1913 = vsel %vm1906, %v1909, %v1912
    %v1914 = vsel %vm1903, nan, %v1913
    %v1915 = vand.u32 2147483647, %v750
    %vm1916 = vcmp.le.f32.partialorder %v1915, 0.7853982
    %vm1917 = vcmp.lt.s32.totalorder %v750, 0
    %v1918 = vand.u32 %v750, 2139095040
    %v1919 = vshrl.u32 %v1918, 23
    %v1920 = vsub.s32 %v1919, 127
    %v1921 = vand.u32 2147483647, %v750
    %v1922 = vand.u32 %v1921, 8388607
    %v1923 = vor.u32 %v1922, 8388608
    %v1924 = vsub.s32 0, %v1923
    %v1925 = vadd.s32 %v1920, 1
    %vm1926 = vcmp.gt.s32.totalorder %v1925, 0
    %v1927 = vsel %vm1926, %v1925, 0
    %v1928 = vshrl.u32 %v1927, 5
    %v1929 = vand.u32 %v1927, 31
    %v1930 = vsub.s32 32, %v1929
    %v1931 = vshrl.u32 683565275, %v1930
    %v1932 = vshll.u32 683565275, %v1929
    %v1933 = vshrl.u32 2475754826, %v1930
    %v1934 = vor.u32 %v1932, %v1933
    %v1935 = vshll.u32 2475754826, %v1929
    %v1936 = vshrl.u32 2131351028, %v1930
    %v1937 = vor.u32 %v1935, %v1936
    %v1938 = vshll.u32 2131351028, %v1929
    %v1939 = vshrl.u32 2102212464, %v1930
    %v1940 = vor.u32 %v1938, %v1939
    %v1941 = vshll.u32 2102212464, %v1929
    %v1942 = vshrl.u32 920167782, %v1930
    %v1943 = vor.u32 %v1941, %v1942
    %v1944 = vshll.u32 920167782, %v1929
    %v1945 = vshrl.u32 1326507024, %v1930
    %v1946 = vor.u32 %v1944, %v1945
    %vm1947 = vcmp.lt.s32.totalorder %v1928, 1
    %vm1948 = vcmp.lt.s32.totalorder %v1928, 2
    %vm1949 = vcmp.lt.s32.totalorder %v1928, 3
    %vm1950 = vcmp.lt.s32.totalorder %v1928, 4
    %v1951 = vsel %vm1947, %v1931, %v1934
    %v1952 = vsel %vm1950, %v1940, 2102212464
    %v1953 = vsel %vm1949, %v1937, %v1952
    %v1954 = vsel %vm1948, %v1951, %v1953
    %v1955 = vsel %vm1947, %v1934, %v1937
    %v1956 = vsel %vm1950, %v1943, 920167782
    %v1957 = vsel %vm1949, %v1940, %v1956
    %v1958 = vsel %vm1948, %v1955, %v1957
    %v1959 = vsel %vm1947, %v1937, %v1940
    %v1960 = vsel %vm1950, %v1946, 1326507024
    %v1961 = vsel %vm1949, %v1943, %v1960
    %v1962 = vsel %vm1948, %v1959, %v1961
    %v1963 = vshll.u32 %v1923, 8
    %v1964 = vmul.u32.u64.compose %v1963, %v1962
    %v1965 = vextract.low.u32 %v1964
    %v1966 = vextract.high.u32 %v1964
    %v1967 = vmul.u32.u64.compose %v1963, %v1958
    %v1968 = vextract.low.u32 %v1967
    %v1969 = vextract.high.u32 %v1967
    %v1970 = vmul.u32 %v1963, %v1954
    %v1971 = vadd.s32 %v1966, %v1968
    %vm1972 = vc.u32 %v1966, %v1968
    %v1973 = vadd.s32 %v1969, 1
    %v1974 = vsel %vm1972, %v1973, %v1969
    %v1975 = vadd.s32 %v1970, %v1974
    %v1976 = vadd.s32 %v1975, 536870912
    %v1977 = vshrl.u32 %v1976, 30
    %v1978 = vshll.u32 %v1977, 30
    %v1979 = vsub.s32 %v1975, %v1978
    %vm1980 = vcmp.lt.s32.totalorder %v1979, 0
    %v1981 = vsub.s32 0, %v1979
    %v1982 = vsel %vm1980, %v1981, %v1979
    %v1983 = vclz %v1982
    %v1984 = vsub.s32 %v1983, 2
    %vm1985 = vcmp.gt.s32.totalorder 0, %v1984
    %v1986 = vsel %vm1985, 0, %v1984
    %v1987 = vsub.s32 32, %v1986
    %v1988 = vshll.u32 %v1979, %v1986
    %v1989 = vshrl.u32 %v1971, %v1987
    %v1990 = vor.u32 %v1988, %v1989
    %v1991 = vsub.s32 4294967266, %v1986
    %v1992 = vadd.s32 %v1991, 127
    %v1993 = vshll.u32 %v1992, 23
    %v1994 = vor.u32 4788187, %v1993
    %v1995 = vand.u32 2147483647, %v1994
    %v1997 = vcvt.s32.f32 %v1990
    %v1998 = vmul.f32 %v1997, %v1995
    %v1999 = vxor.u32 %v1998, 2147483648
    %v2000 = vsel %vm1917, %v1999, %v1998
    %v2001 = vsub.s32 4, %v1977
    %v2002 = vsel %vm1917, %v2001, %v1977
    %v2003 = vsel %vm1916, %v750, %v2000
    %v2004 = vsel %vm1916, 0, %v2002
    %v2005 = vcosq.f32.pop %v2003
    %v2006 = vsinq.f32.pop %v2003
    %vm2007 = vweird.f32 %v750
    %v2008 = vadd.s32 %v2004, 3
    %v2009 = vand.u32 %v2008, 3
    %vm2010 = vcmp.lt.s32.totalorder %v2009, 2
    %vm2011 = vcmp.eq.s32.totalorder %v2009, 0
    %v2012 = vxor.u32 %v2006, 2147483648
    %v2013 = vsel %vm2011, %v2005, %v2012
    %vm2014 = vcmp.eq.s32.totalorder %v2009, 2
    %v2015 = vxor.u32 %v2005, 2147483648
    %v2016 = vsel %vm2014, %v2015, %v2006
    %v2017 = vsel %vm2010, %v2013, %v2016
    %v2018 = vsel %vm2007, nan, %v2017
    %v2019 = vand.u32 2147483647, %v751
    %vm2020 = vcmp.le.f32.partialorder %v2019, 0.7853982
    %vm2021 = vcmp.lt.s32.totalorder %v751, 0
    %v2022 = vand.u32 %v751, 2139095040
    %v2023 = vshrl.u32 %v2022, 23
    %v2024 = vsub.s32 %v2023, 127
    %v2025 = vand.u32 2147483647, %v751
    %v2026 = vand.u32 %v2025, 8388607
    %v2027 = vor.u32 %v2026, 8388608
    %v2028 = vsub.s32 0, %v2027
    %v2029 = vadd.s32 %v2024, 1
    %vm2030 = vcmp.gt.s32.totalorder %v2029, 0
    %v2031 = vsel %vm2030, %v2029, 0
    %v2032 = vshrl.u32 %v2031, 5
    %v2033 = vand.u32 %v2031, 31
    %v2034 = vsub.s32 32, %v2033
    %v2035 = vshrl.u32 683565275, %v2034
    %v2036 = vshll.u32 683565275, %v2033
    %v2037 = vshrl.u32 2475754826, %v2034
    %v2038 = vor.u32 %v2036, %v2037
    %v2039 = vshll.u32 2475754826, %v2033
    %v2040 = vshrl.u32 2131351028, %v2034
    %v2041 = vor.u32 %v2039, %v2040
    %v2042 = vshll.u32 2131351028, %v2033
    %v2043 = vshrl.u32 2102212464, %v2034
    %v2044 = vor.u32 %v2042, %v2043
    %v2045 = vshll.u32 2102212464, %v2033
    %v2046 = vshrl.u32 920167782, %v2034
    %v2047 = vor.u32 %v2045, %v2046
    %v2048 = vshll.u32 920167782, %v2033
    %v2049 = vshrl.u32 1326507024, %v2034
    %v2050 = vor.u32 %v2048, %v2049
    %vm2051 = vcmp.lt.s32.totalorder %v2032, 1
    %vm2052 = vcmp.lt.s32.totalorder %v2032, 2
    %vm2053 = vcmp.lt.s32.totalorder %v2032, 3
    %vm2054 = vcmp.lt.s32.totalorder %v2032, 4
    %v2055 = vsel %vm2051, %v2035, %v2038
    %v2056 = vsel %vm2054, %v2044, 2102212464
    %v2057 = vsel %vm2053, %v2041, %v2056
    %v2058 = vsel %vm2052, %v2055, %v2057
    %v2059 = vsel %vm2051, %v2038, %v2041
    %v2060 = vsel %vm2054, %v2047, 920167782
    %v2061 = vsel %vm2053, %v2044, %v2060
    %v2062 = vsel %vm2052, %v2059, %v2061
    %v2063 = vsel %vm2051, %v2041, %v2044
    %v2064 = vsel %vm2054, %v2050, 1326507024
    %v2065 = vsel %vm2053, %v2047, %v2064
    %v2066 = vsel %vm2052, %v2063, %v2065
    %v2067 = vshll.u32 %v2027, 8
    %v2068 = vmul.u32.u64.compose %v2067, %v2066
    %v2069 = vextract.low.u32 %v2068
    %v2070 = vextract.high.u32 %v2068
    %v2071 = vmul.u32.u64.compose %v2067, %v2062
    %v2072 = vextract.low.u32 %v2071
    %v2073 = vextract.high.u32 %v2071
    %v2074 = vmul.u32 %v2067, %v2058
    %v2075 = vadd.s32 %v2070, %v2072
    %vm2076 = vc.u32 %v2070, %v2072
    %v2077 = vadd.s32 %v2073, 1
    %v2078 = vsel %vm2076, %v2077, %v2073
    %v2079 = vadd.s32 %v2074, %v2078
    %v2080 = vadd.s32 %v2079, 536870912
    %v2081 = vshrl.u32 %v2080, 30
    %v2082 = vshll.u32 %v2081, 30
    %v2083 = vsub.s32 %v2079, %v2082
    %vm2084 = vcmp.lt.s32.totalorder %v2083, 0
    %v2085 = vsub.s32 0, %v2083
    %v2086 = vsel %vm2084, %v2085, %v2083
    %v2087 = vclz %v2086
    %v2088 = vsub.s32 %v2087, 2
    %vm2089 = vcmp.gt.s32.totalorder 0, %v2088
    %v2090 = vsel %vm2089, 0, %v2088
    %v2091 = vsub.s32 32, %v2090
    %v2092 = vshll.u32 %v2083, %v2090
    %v2093 = vshrl.u32 %v2075, %v2091
    %v2094 = vor.u32 %v2092, %v2093
    %v2095 = vsub.s32 4294967266, %v2090
    %v2096 = vadd.s32 %v2095, 127
    %v2097 = vshll.u32 %v2096, 23
    %v2098 = vor.u32 4788187, %v2097
    %v2099 = vand.u32 2147483647, %v2098
    %v2101 = vcvt.s32.f32 %v2094
    %v2102 = vmul.f32 %v2101, %v2099
    %v2103 = vxor.u32 %v2102, 2147483648
    %v2104 = vsel %vm2021, %v2103, %v2102
    %v2105 = vsub.s32 4, %v2081
    %v2106 = vsel %vm2021, %v2105, %v2081
    %v2107 = vsel %vm2020, %v751, %v2104
    %v2108 = vsel %vm2020, 0, %v2106
    %v2109 = vcosq.f32.pop %v2107
    %v2110 = vsinq.f32.pop %v2107
    %vm2111 = vweird.f32 %v751
    %v2112 = vadd.s32 %v2108, 3
    %v2113 = vand.u32 %v2112, 3
    %vm2114 = vcmp.lt.s32.totalorder %v2113, 2
    %vm2115 = vcmp.eq.s32.totalorder %v2113, 0
    %v2116 = vxor.u32 %v2110, 2147483648
    %v2117 = vsel %vm2115, %v2109, %v2116
    %vm2118 = vcmp.eq.s32.totalorder %v2113, 2
    %v2119 = vxor.u32 %v2109, 2147483648
    %v2120 = vsel %vm2118, %v2119, %v2110
    %v2121 = vsel %vm2114, %v2117, %v2120
    %v2122 = vsel %vm2111, nan, %v2121
    %v2123 = vand.u32 2147483647, %v752
    %vm2124 = vcmp.le.f32.partialorder %v2123, 0.7853982
    %vm2125 = vcmp.lt.s32.totalorder %v752, 0
    %v2126 = vand.u32 %v752, 2139095040
    %v2127 = vshrl.u32 %v2126, 23
    %v2128 = vsub.s32 %v2127, 127
    %v2129 = vand.u32 2147483647, %v752
    %v2130 = vand.u32 %v2129, 8388607
    %v2131 = vor.u32 %v2130, 8388608
    %v2132 = vsub.s32 0, %v2131
    %v2133 = vadd.s32 %v2128, 1
    %vm2134 = vcmp.gt.s32.totalorder %v2133, 0
    %v2135 = vsel %vm2134, %v2133, 0
    %v2136 = vshrl.u32 %v2135, 5
    %v2137 = vand.u32 %v2135, 31
    %v2138 = vsub.s32 32, %v2137
    %v2139 = vshrl.u32 683565275, %v2138
    %v2140 = vshll.u32 683565275, %v2137
    %v2141 = vshrl.u32 2475754826, %v2138
    %v2142 = vor.u32 %v2140, %v2141
    %v2143 = vshll.u32 2475754826, %v2137
    %v2144 = vshrl.u32 2131351028, %v2138
    %v2145 = vor.u32 %v2143, %v2144
    %v2146 = vshll.u32 2131351028, %v2137
    %v2147 = vshrl.u32 2102212464, %v2138
    %v2148 = vor.u32 %v2146, %v2147
    %v2149 = vshll.u32 2102212464, %v2137
    %v2150 = vshrl.u32 920167782, %v2138
    %v2151 = vor.u32 %v2149, %v2150
    %v2152 = vshll.u32 920167782, %v2137
    %v2153 = vshrl.u32 1326507024, %v2138
    %v2154 = vor.u32 %v2152, %v2153
    %vm2155 = vcmp.lt.s32.totalorder %v2136, 1
    %vm2156 = vcmp.lt.s32.totalorder %v2136, 2
    %vm2157 = vcmp.lt.s32.totalorder %v2136, 3
    %vm2158 = vcmp.lt.s32.totalorder %v2136, 4
    %v2159 = vsel %vm2155, %v2139, %v2142
    %v2160 = vsel %vm2158, %v2148, 2102212464
    %v2161 = vsel %vm2157, %v2145, %v2160
    %v2162 = vsel %vm2156, %v2159, %v2161
    %v2163 = vsel %vm2155, %v2142, %v2145
    %v2164 = vsel %vm2158, %v2151, 920167782
    %v2165 = vsel %vm2157, %v2148, %v2164
    %v2166 = vsel %vm2156, %v2163, %v2165
    %v2167 = vsel %vm2155, %v2145, %v2148
    %v2168 = vsel %vm2158, %v2154, 1326507024
    %v2169 = vsel %vm2157, %v2151, %v2168
    %v2170 = vsel %vm2156, %v2167, %v2169
    %v2171 = vshll.u32 %v2131, 8
    %v2172 = vmul.u32.u64.compose %v2171, %v2170
    %v2173 = vextract.low.u32 %v2172
    %v2174 = vextract.high.u32 %v2172
    %v2175 = vmul.u32.u64.compose %v2171, %v2166
    %v2176 = vextract.low.u32 %v2175
    %v2177 = vextract.high.u32 %v2175
    %v2178 = vmul.u32 %v2171, %v2162
    %v2179 = vadd.s32 %v2174, %v2176
    %vm2180 = vc.u32 %v2174, %v2176
    %v2181 = vadd.s32 %v2177, 1
    %v2182 = vsel %vm2180, %v2181, %v2177
    %v2183 = vadd.s32 %v2178, %v2182
    %v2184 = vadd.s32 %v2183, 536870912
    %v2185 = vshrl.u32 %v2184, 30
    %v2186 = vshll.u32 %v2185, 30
    %v2187 = vsub.s32 %v2183, %v2186
    %vm2188 = vcmp.lt.s32.totalorder %v2187, 0
    %v2189 = vsub.s32 0, %v2187
    %v2190 = vsel %vm2188, %v2189, %v2187
    %v2191 = vclz %v2190
    %v2192 = vsub.s32 %v2191, 2
    %vm2193 = vcmp.gt.s32.totalorder 0, %v2192
    %v2194 = vsel %vm2193, 0, %v2192
    %v2195 = vsub.s32 32, %v2194
    %v2196 = vshll.u32 %v2187, %v2194
    %v2197 = vshrl.u32 %v2179, %v2195
    %v2198 = vor.u32 %v2196, %v2197
    %v2199 = vsub.s32 4294967266, %v2194
    %v2200 = vadd.s32 %v2199, 127
    %v2201 = vshll.u32 %v2200, 23
    %v2202 = vor.u32 4788187, %v2201
    %v2203 = vand.u32 2147483647, %v2202
    %v2205 = vcvt.s32.f32 %v2198
    %v2206 = vmul.f32 %v2205, %v2203
    %v2207 = vxor.u32 %v2206, 2147483648
    %v2208 = vsel %vm2125, %v2207, %v2206
    %v2209 = vsub.s32 4, %v2185
    %v2210 = vsel %vm2125, %v2209, %v2185
    %v2211 = vsel %vm2124, %v752, %v2208
    %v2212 = vsel %vm2124, 0, %v2210
    %v2213 = vcosq.f32.pop %v2211
    %v2214 = vsinq.f32.pop %v2211
    %vm2215 = vweird.f32 %v752
    %v2216 = vadd.s32 %v2212, 3
    %v2217 = vand.u32 %v2216, 3
    %vm2218 = vcmp.lt.s32.totalorder %v2217, 2
    %vm2219 = vcmp.eq.s32.totalorder %v2217, 0
    %v2220 = vxor.u32 %v2214, 2147483648
    %v2221 = vsel %vm2219, %v2213, %v2220
    %vm2222 = vcmp.eq.s32.totalorder %v2217, 2
    %v2223 = vxor.u32 %v2213, 2147483648
    %v2224 = vsel %vm2222, %v2223, %v2214
    %v2225 = vsel %vm2218, %v2221, %v2224
    %v2226 = vsel %vm2215, nan, %v2225
    %v2227 = vand.u32 2147483647, %v753
    %vm2228 = vcmp.le.f32.partialorder %v2227, 0.7853982
    %vm2229 = vcmp.lt.s32.totalorder %v753, 0
    %v2230 = vand.u32 %v753, 2139095040
    %v2231 = vshrl.u32 %v2230, 23
    %v2232 = vsub.s32 %v2231, 127
    %v2233 = vand.u32 2147483647, %v753
    %v2234 = vand.u32 %v2233, 8388607
    %v2235 = vor.u32 %v2234, 8388608
    %v2236 = vsub.s32 0, %v2235
    %v2237 = vadd.s32 %v2232, 1
    %vm2238 = vcmp.gt.s32.totalorder %v2237, 0
    %v2239 = vsel %vm2238, %v2237, 0
    %v2240 = vshrl.u32 %v2239, 5
    %v2241 = vand.u32 %v2239, 31
    %v2242 = vsub.s32 32, %v2241
    %v2243 = vshrl.u32 683565275, %v2242
    %v2244 = vshll.u32 683565275, %v2241
    %v2245 = vshrl.u32 2475754826, %v2242
    %v2246 = vor.u32 %v2244, %v2245
    %v2247 = vshll.u32 2475754826, %v2241
    %v2248 = vshrl.u32 2131351028, %v2242
    %v2249 = vor.u32 %v2247, %v2248
    %v2250 = vshll.u32 2131351028, %v2241
    %v2251 = vshrl.u32 2102212464, %v2242
    %v2252 = vor.u32 %v2250, %v2251
    %v2253 = vshll.u32 2102212464, %v2241
    %v2254 = vshrl.u32 920167782, %v2242
    %v2255 = vor.u32 %v2253, %v2254
    %v2256 = vshll.u32 920167782, %v2241
    %v2257 = vshrl.u32 1326507024, %v2242
    %v2258 = vor.u32 %v2256, %v2257
    %vm2259 = vcmp.lt.s32.totalorder %v2240, 1
    %vm2260 = vcmp.lt.s32.totalorder %v2240, 2
    %vm2261 = vcmp.lt.s32.totalorder %v2240, 3
    %vm2262 = vcmp.lt.s32.totalorder %v2240, 4
    %v2263 = vsel %vm2259, %v2243, %v2246
    %v2264 = vsel %vm2262, %v2252, 2102212464
    %v2265 = vsel %vm2261, %v2249, %v2264
    %v2266 = vsel %vm2260, %v2263, %v2265
    %v2267 = vsel %vm2259, %v2246, %v2249
    %v2268 = vsel %vm2262, %v2255, 920167782
    %v2269 = vsel %vm2261, %v2252, %v2268
    %v2270 = vsel %vm2260, %v2267, %v2269
    %v2271 = vsel %vm2259, %v2249, %v2252
    %v2272 = vsel %vm2262, %v2258, 1326507024
    %v2273 = vsel %vm2261, %v2255, %v2272
    %v2274 = vsel %vm2260, %v2271, %v2273
    %v2275 = vshll.u32 %v2235, 8
    %v2276 = vmul.u32.u64.compose %v2275, %v2274
    %v2277 = vextract.low.u32 %v2276
    %v2278 = vextract.high.u32 %v2276
    %v2279 = vmul.u32.u64.compose %v2275, %v2270
    %v2280 = vextract.low.u32 %v2279
    %v2281 = vextract.high.u32 %v2279
    %v2282 = vmul.u32 %v2275, %v2266
    %v2283 = vadd.s32 %v2278, %v2280
    %vm2284 = vc.u32 %v2278, %v2280
    %v2285 = vadd.s32 %v2281, 1
    %v2286 = vsel %vm2284, %v2285, %v2281
    %v2287 = vadd.s32 %v2282, %v2286
    %v2288 = vadd.s32 %v2287, 536870912
    %v2289 = vshrl.u32 %v2288, 30
    %v2290 = vshll.u32 %v2289, 30
    %v2291 = vsub.s32 %v2287, %v2290
    %vm2292 = vcmp.lt.s32.totalorder %v2291, 0
    %v2293 = vsub.s32 0, %v2291
    %v2294 = vsel %vm2292, %v2293, %v2291
    %v2295 = vclz %v2294
    %v2296 = vsub.s32 %v2295, 2
    %vm2297 = vcmp.gt.s32.totalorder 0, %v2296
    %v2298 = vsel %vm2297, 0, %v2296
    %v2299 = vsub.s32 32, %v2298
    %v2300 = vshll.u32 %v2291, %v2298
    %v2301 = vshrl.u32 %v2283, %v2299
    %v2302 = vor.u32 %v2300, %v2301
    %v2303 = vsub.s32 4294967266, %v2298
    %v2304 = vadd.s32 %v2303, 127
    %v2305 = vshll.u32 %v2304, 23
    %v2306 = vor.u32 4788187, %v2305
    %v2307 = vand.u32 2147483647, %v2306
    %v2309 = vcvt.s32.f32 %v2302
    %v2310 = vmul.f32 %v2309, %v2307
    %v2311 = vxor.u32 %v2310, 2147483648
    %v2312 = vsel %vm2229, %v2311, %v2310
    %v2313 = vsub.s32 4, %v2289
    %v2314 = vsel %vm2229, %v2313, %v2289
    %v2315 = vsel %vm2228, %v753, %v2312
    %v2316 = vsel %vm2228, 0, %v2314
    %v2317 = vcosq.f32.pop %v2315
    %v2318 = vsinq.f32.pop %v2315
    %vm2319 = vweird.f32 %v753
    %v2320 = vadd.s32 %v2316, 3
    %v2321 = vand.u32 %v2320, 3
    %vm2322 = vcmp.lt.s32.totalorder %v2321, 2
    %vm2323 = vcmp.eq.s32.totalorder %v2321, 0
    %v2324 = vxor.u32 %v2318, 2147483648
    %v2325 = vsel %vm2323, %v2317, %v2324
    %vm2326 = vcmp.eq.s32.totalorder %v2321, 2
    %v2327 = vxor.u32 %v2317, 2147483648
    %v2328 = vsel %vm2326, %v2327, %v2318
    %v2329 = vsel %vm2322, %v2325, %v2328
    %v2330 = vsel %vm2319, nan, %v2329
    %v2331 = vand.u32 2147483647, %v754
    %vm2332 = vcmp.le.f32.partialorder %v2331, 0.7853982
    %vm2333 = vcmp.lt.s32.totalorder %v754, 0
    %v2334 = vand.u32 %v754, 2139095040
    %v2335 = vshrl.u32 %v2334, 23
    %v2336 = vsub.s32 %v2335, 127
    %v2337 = vand.u32 2147483647, %v754
    %v2338 = vand.u32 %v2337, 8388607
    %v2339 = vor.u32 %v2338, 8388608
    %v2340 = vsub.s32 0, %v2339
    %v2341 = vadd.s32 %v2336, 1
    %vm2342 = vcmp.gt.s32.totalorder %v2341, 0
    %v2343 = vsel %vm2342, %v2341, 0
    %v2344 = vshrl.u32 %v2343, 5
    %v2345 = vand.u32 %v2343, 31
    %v2346 = vsub.s32 32, %v2345
    %v2347 = vshrl.u32 683565275, %v2346
    %v2348 = vshll.u32 683565275, %v2345
    %v2349 = vshrl.u32 2475754826, %v2346
    %v2350 = vor.u32 %v2348, %v2349
    %v2351 = vshll.u32 2475754826, %v2345
    %v2352 = vshrl.u32 2131351028, %v2346
    %v2353 = vor.u32 %v2351, %v2352
    %v2354 = vshll.u32 2131351028, %v2345
    %v2355 = vshrl.u32 2102212464, %v2346
    %v2356 = vor.u32 %v2354, %v2355
    %v2357 = vshll.u32 2102212464, %v2345
    %v2358 = vshrl.u32 920167782, %v2346
    %v2359 = vor.u32 %v2357, %v2358
    %v2360 = vshll.u32 920167782, %v2345
    %v2361 = vshrl.u32 1326507024, %v2346
    %v2362 = vor.u32 %v2360, %v2361
    %vm2363 = vcmp.lt.s32.totalorder %v2344, 1
    %vm2364 = vcmp.lt.s32.totalorder %v2344, 2
    %vm2365 = vcmp.lt.s32.totalorder %v2344, 3
    %vm2366 = vcmp.lt.s32.totalorder %v2344, 4
    %v2367 = vsel %vm2363, %v2347, %v2350
    %v2368 = vsel %vm2366, %v2356, 2102212464
    %v2369 = vsel %vm2365, %v2353, %v2368
    %v2370 = vsel %vm2364, %v2367, %v2369
    %v2371 = vsel %vm2363, %v2350, %v2353
    %v2372 = vsel %vm2366, %v2359, 920167782
    %v2373 = vsel %vm2365, %v2356, %v2372
    %v2374 = vsel %vm2364, %v2371, %v2373
    %v2375 = vsel %vm2363, %v2353, %v2356
    %v2376 = vsel %vm2366, %v2362, 1326507024
    %v2377 = vsel %vm2365, %v2359, %v2376
    %v2378 = vsel %vm2364, %v2375, %v2377
    %v2379 = vshll.u32 %v2339, 8
    %v2380 = vmul.u32.u64.compose %v2379, %v2378
    %v2381 = vextract.low.u32 %v2380
    %v2382 = vextract.high.u32 %v2380
    %v2383 = vmul.u32.u64.compose %v2379, %v2374
    %v2384 = vextract.low.u32 %v2383
    %v2385 = vextract.high.u32 %v2383
    %v2386 = vmul.u32 %v2379, %v2370
    %v2387 = vadd.s32 %v2382, %v2384
    %vm2388 = vc.u32 %v2382, %v2384
    %v2389 = vadd.s32 %v2385, 1
    %v2390 = vsel %vm2388, %v2389, %v2385
    %v2391 = vadd.s32 %v2386, %v2390
    %v2392 = vadd.s32 %v2391, 536870912
    %v2393 = vshrl.u32 %v2392, 30
    %v2394 = vshll.u32 %v2393, 30
    %v2395 = vsub.s32 %v2391, %v2394
    %vm2396 = vcmp.lt.s32.totalorder %v2395, 0
    %v2397 = vsub.s32 0, %v2395
    %v2398 = vsel %vm2396, %v2397, %v2395
    %v2399 = vclz %v2398
    %v2400 = vsub.s32 %v2399, 2
    %vm2401 = vcmp.gt.s32.totalorder 0, %v2400
    %v2402 = vsel %vm2401, 0, %v2400
    %v2403 = vsub.s32 32, %v2402
    %v2404 = vshll.u32 %v2395, %v2402
    %v2405 = vshrl.u32 %v2387, %v2403
    %v2406 = vor.u32 %v2404, %v2405
    %v2407 = vsub.s32 4294967266, %v2402
    %v2408 = vadd.s32 %v2407, 127
    %v2409 = vshll.u32 %v2408, 23
    %v2410 = vor.u32 4788187, %v2409
    %v2411 = vand.u32 2147483647, %v2410
    %v2413 = vcvt.s32.f32 %v2406
    %v2414 = vmul.f32 %v2413, %v2411
    %v2415 = vxor.u32 %v2414, 2147483648
    %v2416 = vsel %vm2333, %v2415, %v2414
    %v2417 = vsub.s32 4, %v2393
    %v2418 = vsel %vm2333, %v2417, %v2393
    %v2419 = vsel %vm2332, %v754, %v2416
    %v2420 = vsel %vm2332, 0, %v2418
    %v2421 = vcosq.f32.pop %v2419
    %v2422 = vsinq.f32.pop %v2419
    %vm2423 = vweird.f32 %v754
    %v2424 = vadd.s32 %v2420, 3
    %v2425 = vand.u32 %v2424, 3
    %vm2426 = vcmp.lt.s32.totalorder %v2425, 2
    %vm2427 = vcmp.eq.s32.totalorder %v2425, 0
    %v2428 = vxor.u32 %v2422, 2147483648
    %v2429 = vsel %vm2427, %v2421, %v2428
    %vm2430 = vcmp.eq.s32.totalorder %v2425, 2
    %v2431 = vxor.u32 %v2421, 2147483648
    %v2432 = vsel %vm2430, %v2431, %v2422
    %v2433 = vsel %vm2426, %v2429, %v2432
    %v2434 = vsel %vm2423, nan, %v2433
    %v2435 = vand.u32 2147483647, %v755
    %vm2436 = vcmp.le.f32.partialorder %v2435, 0.7853982
    %vm2437 = vcmp.lt.s32.totalorder %v755, 0
    %v2438 = vand.u32 %v755, 2139095040
    %v2439 = vshrl.u32 %v2438, 23
    %v2440 = vsub.s32 %v2439, 127
    %v2441 = vand.u32 2147483647, %v755
    %v2442 = vand.u32 %v2441, 8388607
    %v2443 = vor.u32 %v2442, 8388608
    %v2444 = vsub.s32 0, %v2443
    %v2445 = vadd.s32 %v2440, 1
    %vm2446 = vcmp.gt.s32.totalorder %v2445, 0
    %v2447 = vsel %vm2446, %v2445, 0
    %v2448 = vshrl.u32 %v2447, 5
    %v2449 = vand.u32 %v2447, 31
    %v2450 = vsub.s32 32, %v2449
    %v2451 = vshrl.u32 683565275, %v2450
    %v2452 = vshll.u32 683565275, %v2449
    %v2453 = vshrl.u32 2475754826, %v2450
    %v2454 = vor.u32 %v2452, %v2453
    %v2455 = vshll.u32 2475754826, %v2449
    %v2456 = vshrl.u32 2131351028, %v2450
    %v2457 = vor.u32 %v2455, %v2456
    %v2458 = vshll.u32 2131351028, %v2449
    %v2459 = vshrl.u32 2102212464, %v2450
    %v2460 = vor.u32 %v2458, %v2459
    %v2461 = vshll.u32 2102212464, %v2449
    %v2462 = vshrl.u32 920167782, %v2450
    %v2463 = vor.u32 %v2461, %v2462
    %v2464 = vshll.u32 920167782, %v2449
    %v2465 = vshrl.u32 1326507024, %v2450
    %v2466 = vor.u32 %v2464, %v2465
    %vm2467 = vcmp.lt.s32.totalorder %v2448, 1
    %vm2468 = vcmp.lt.s32.totalorder %v2448, 2
    %vm2469 = vcmp.lt.s32.totalorder %v2448, 3
    %vm2470 = vcmp.lt.s32.totalorder %v2448, 4
    %v2471 = vsel %vm2467, %v2451, %v2454
    %v2472 = vsel %vm2470, %v2460, 2102212464
    %v2473 = vsel %vm2469, %v2457, %v2472
    %v2474 = vsel %vm2468, %v2471, %v2473
    %v2475 = vsel %vm2467, %v2454, %v2457
    %v2476 = vsel %vm2470, %v2463, 920167782
    %v2477 = vsel %vm2469, %v2460, %v2476
    %v2478 = vsel %vm2468, %v2475, %v2477
    %v2479 = vsel %vm2467, %v2457, %v2460
    %v2480 = vsel %vm2470, %v2466, 1326507024
    %v2481 = vsel %vm2469, %v2463, %v2480
    %v2482 = vsel %vm2468, %v2479, %v2481
    %v2483 = vshll.u32 %v2443, 8
    %v2484 = vmul.u32.u64.compose %v2483, %v2482
    %v2485 = vextract.low.u32 %v2484
    %v2486 = vextract.high.u32 %v2484
    %v2487 = vmul.u32.u64.compose %v2483, %v2478
    %v2488 = vextract.low.u32 %v2487
    %v2489 = vextract.high.u32 %v2487
    %v2490 = vmul.u32 %v2483, %v2474
    %v2491 = vadd.s32 %v2486, %v2488
    %vm2492 = vc.u32 %v2486, %v2488
    %v2493 = vadd.s32 %v2489, 1
    %v2494 = vsel %vm2492, %v2493, %v2489
    %v2495 = vadd.s32 %v2490, %v2494
    %v2496 = vadd.s32 %v2495, 536870912
    %v2497 = vshrl.u32 %v2496, 30
    %v2498 = vshll.u32 %v2497, 30
    %v2499 = vsub.s32 %v2495, %v2498
    %vm2500 = vcmp.lt.s32.totalorder %v2499, 0
    %v2501 = vsub.s32 0, %v2499
    %v2502 = vsel %vm2500, %v2501, %v2499
    %v2503 = vclz %v2502
    %v2504 = vsub.s32 %v2503, 2
    %vm2505 = vcmp.gt.s32.totalorder 0, %v2504
    %v2506 = vsel %vm2505, 0, %v2504
    %v2507 = vsub.s32 32, %v2506
    %v2508 = vshll.u32 %v2499, %v2506
    %v2509 = vshrl.u32 %v2491, %v2507
    %v2510 = vor.u32 %v2508, %v2509
    %v2511 = vsub.s32 4294967266, %v2506
    %v2512 = vadd.s32 %v2511, 127
    %v2513 = vshll.u32 %v2512, 23
    %v2514 = vor.u32 4788187, %v2513
    %v2515 = vand.u32 2147483647, %v2514
    %v2517 = vcvt.s32.f32 %v2510
    %v2518 = vmul.f32 %v2517, %v2515
    %v2519 = vxor.u32 %v2518, 2147483648
    %v2520 = vsel %vm2437, %v2519, %v2518
    %v2521 = vsub.s32 4, %v2497
    %v2522 = vsel %vm2437, %v2521, %v2497
    %v2523 = vsel %vm2436, %v755, %v2520
    %v2524 = vsel %vm2436, 0, %v2522
    %v2525 = vcosq.f32.pop %v2523
    %v2526 = vsinq.f32.pop %v2523
    %vm2527 = vweird.f32 %v755
    %v2528 = vadd.s32 %v2524, 3
    %v2529 = vand.u32 %v2528, 3
    %vm2530 = vcmp.lt.s32.totalorder %v2529, 2
    %vm2531 = vcmp.eq.s32.totalorder %v2529, 0
    %v2532 = vxor.u32 %v2526, 2147483648
    %v2533 = vsel %vm2531, %v2525, %v2532
    %vm2534 = vcmp.eq.s32.totalorder %v2529, 2
    %v2535 = vxor.u32 %v2525, 2147483648
    %v2536 = vsel %vm2534, %v2535, %v2526
    %v2537 = vsel %vm2530, %v2533, %v2536
    %v2538 = vsel %vm2527, nan, %v2537
    %v2539 = vand.u32 2147483647, %v756
    %vm2540 = vcmp.le.f32.partialorder %v2539, 0.7853982
    %vm2541 = vcmp.lt.s32.totalorder %v756, 0
    %v2542 = vand.u32 %v756, 2139095040
    %v2543 = vshrl.u32 %v2542, 23
    %v2544 = vsub.s32 %v2543, 127
    %v2545 = vand.u32 2147483647, %v756
    %v2546 = vand.u32 %v2545, 8388607
    %v2547 = vor.u32 %v2546, 8388608
    %v2548 = vsub.s32 0, %v2547
    %v2549 = vadd.s32 %v2544, 1
    %vm2550 = vcmp.gt.s32.totalorder %v2549, 0
    %v2551 = vsel %vm2550, %v2549, 0
    %v2552 = vshrl.u32 %v2551, 5
    %v2553 = vand.u32 %v2551, 31
    %v2554 = vsub.s32 32, %v2553
    %v2555 = vshrl.u32 683565275, %v2554
    %v2556 = vshll.u32 683565275, %v2553
    %v2557 = vshrl.u32 2475754826, %v2554
    %v2558 = vor.u32 %v2556, %v2557
    %v2559 = vshll.u32 2475754826, %v2553
    %v2560 = vshrl.u32 2131351028, %v2554
    %v2561 = vor.u32 %v2559, %v2560
    %v2562 = vshll.u32 2131351028, %v2553
    %v2563 = vshrl.u32 2102212464, %v2554
    %v2564 = vor.u32 %v2562, %v2563
    %v2565 = vshll.u32 2102212464, %v2553
    %v2566 = vshrl.u32 920167782, %v2554
    %v2567 = vor.u32 %v2565, %v2566
    %v2568 = vshll.u32 920167782, %v2553
    %v2569 = vshrl.u32 1326507024, %v2554
    %v2570 = vor.u32 %v2568, %v2569
    %vm2571 = vcmp.lt.s32.totalorder %v2552, 1
    %vm2572 = vcmp.lt.s32.totalorder %v2552, 2
    %vm2573 = vcmp.lt.s32.totalorder %v2552, 3
    %vm2574 = vcmp.lt.s32.totalorder %v2552, 4
    %v2575 = vsel %vm2571, %v2555, %v2558
    %v2576 = vsel %vm2574, %v2564, 2102212464
    %v2577 = vsel %vm2573, %v2561, %v2576
    %v2578 = vsel %vm2572, %v2575, %v2577
    %v2579 = vsel %vm2571, %v2558, %v2561
    %v2580 = vsel %vm2574, %v2567, 920167782
    %v2581 = vsel %vm2573, %v2564, %v2580
    %v2582 = vsel %vm2572, %v2579, %v2581
    %v2583 = vsel %vm2571, %v2561, %v2564
    %v2584 = vsel %vm2574, %v2570, 1326507024
    %v2585 = vsel %vm2573, %v2567, %v2584
    %v2586 = vsel %vm2572, %v2583, %v2585
    %v2587 = vshll.u32 %v2547, 8
    %v2588 = vmul.u32.u64.compose %v2587, %v2586
    %v2589 = vextract.low.u32 %v2588
    %v2590 = vextract.high.u32 %v2588
    %v2591 = vmul.u32.u64.compose %v2587, %v2582
    %v2592 = vextract.low.u32 %v2591
    %v2593 = vextract.high.u32 %v2591
    %v2594 = vmul.u32 %v2587, %v2578
    %v2595 = vadd.s32 %v2590, %v2592
    %vm2596 = vc.u32 %v2590, %v2592
    %v2597 = vadd.s32 %v2593, 1
    %v2598 = vsel %vm2596, %v2597, %v2593
    %v2599 = vadd.s32 %v2594, %v2598
    %v2600 = vadd.s32 %v2599, 536870912
    %v2601 = vshrl.u32 %v2600, 30
    %v2602 = vshll.u32 %v2601, 30
    %v2603 = vsub.s32 %v2599, %v2602
    %vm2604 = vcmp.lt.s32.totalorder %v2603, 0
    %v2605 = vsub.s32 0, %v2603
    %v2606 = vsel %vm2604, %v2605, %v2603
    %v2607 = vclz %v2606
    %v2608 = vsub.s32 %v2607, 2
    %vm2609 = vcmp.gt.s32.totalorder 0, %v2608
    %v2610 = vsel %vm2609, 0, %v2608
    %v2611 = vsub.s32 32, %v2610
    %v2612 = vshll.u32 %v2603, %v2610
    %v2613 = vshrl.u32 %v2595, %v2611
    %v2614 = vor.u32 %v2612, %v2613
    %v2615 = vsub.s32 4294967266, %v2610
    %v2616 = vadd.s32 %v2615, 127
    %v2617 = vshll.u32 %v2616, 23
    %v2618 = vor.u32 4788187, %v2617
    %v2619 = vand.u32 2147483647, %v2618
    %v2621 = vcvt.s32.f32 %v2614
    %v2622 = vmul.f32 %v2621, %v2619
    %v2623 = vxor.u32 %v2622, 2147483648
    %v2624 = vsel %vm2541, %v2623, %v2622
    %v2625 = vsub.s32 4, %v2601
    %v2626 = vsel %vm2541, %v2625, %v2601
    %v2627 = vsel %vm2540, %v756, %v2624
    %v2628 = vsel %vm2540, 0, %v2626
    %v2629 = vcosq.f32.pop %v2627
    %v2630 = vsinq.f32.pop %v2627
    %vm2631 = vweird.f32 %v756
    %v2632 = vadd.s32 %v2628, 3
    %v2633 = vand.u32 %v2632, 3
    %vm2634 = vcmp.lt.s32.totalorder %v2633, 2
    %vm2635 = vcmp.eq.s32.totalorder %v2633, 0
    %v2636 = vxor.u32 %v2630, 2147483648
    %v2637 = vsel %vm2635, %v2629, %v2636
    %vm2638 = vcmp.eq.s32.totalorder %v2633, 2
    %v2639 = vxor.u32 %v2629, 2147483648
    %v2640 = vsel %vm2638, %v2639, %v2630
    %v2641 = vsel %vm2634, %v2637, %v2640
    %v2642 = vsel %vm2631, nan, %v2641
    %v2643 = vand.u32 2147483647, %v757
    %vm2644 = vcmp.le.f32.partialorder %v2643, 0.7853982
    %vm2645 = vcmp.lt.s32.totalorder %v757, 0
    %v2646 = vand.u32 %v757, 2139095040
    %v2647 = vshrl.u32 %v2646, 23
    %v2648 = vsub.s32 %v2647, 127
    %v2649 = vand.u32 2147483647, %v757
    %v2650 = vand.u32 %v2649, 8388607
    %v2651 = vor.u32 %v2650, 8388608
    %v2652 = vsub.s32 0, %v2651
    %v2653 = vadd.s32 %v2648, 1
    %vm2654 = vcmp.gt.s32.totalorder %v2653, 0
    %v2655 = vsel %vm2654, %v2653, 0
    %v2656 = vshrl.u32 %v2655, 5
    %v2657 = vand.u32 %v2655, 31
    %v2658 = vsub.s32 32, %v2657
    %v2659 = vshrl.u32 683565275, %v2658
    %v2660 = vshll.u32 683565275, %v2657
    %v2661 = vshrl.u32 2475754826, %v2658
    %v2662 = vor.u32 %v2660, %v2661
    %v2663 = vshll.u32 2475754826, %v2657
    %v2664 = vshrl.u32 2131351028, %v2658
    %v2665 = vor.u32 %v2663, %v2664
    %v2666 = vshll.u32 2131351028, %v2657
    %v2667 = vshrl.u32 2102212464, %v2658
    %v2668 = vor.u32 %v2666, %v2667
    %v2669 = vshll.u32 2102212464, %v2657
    %v2670 = vshrl.u32 920167782, %v2658
    %v2671 = vor.u32 %v2669, %v2670
    %v2672 = vshll.u32 920167782, %v2657
    %v2673 = vshrl.u32 1326507024, %v2658
    %v2674 = vor.u32 %v2672, %v2673
    %vm2675 = vcmp.lt.s32.totalorder %v2656, 1
    %vm2676 = vcmp.lt.s32.totalorder %v2656, 2
    %vm2677 = vcmp.lt.s32.totalorder %v2656, 3
    %vm2678 = vcmp.lt.s32.totalorder %v2656, 4
    %v2679 = vsel %vm2675, %v2659, %v2662
    %v2680 = vsel %vm2678, %v2668, 2102212464
    %v2681 = vsel %vm2677, %v2665, %v2680
    %v2682 = vsel %vm2676, %v2679, %v2681
    %v2683 = vsel %vm2675, %v2662, %v2665
    %v2684 = vsel %vm2678, %v2671, 920167782
    %v2685 = vsel %vm2677, %v2668, %v2684
    %v2686 = vsel %vm2676, %v2683, %v2685
    %v2687 = vsel %vm2675, %v2665, %v2668
    %v2688 = vsel %vm2678, %v2674, 1326507024
    %v2689 = vsel %vm2677, %v2671, %v2688
    %v2690 = vsel %vm2676, %v2687, %v2689
    %v2691 = vshll.u32 %v2651, 8
    %v2692 = vmul.u32.u64.compose %v2691, %v2690
    %v2693 = vextract.low.u32 %v2692
    %v2694 = vextract.high.u32 %v2692
    %v2695 = vmul.u32.u64.compose %v2691, %v2686
    %v2696 = vextract.low.u32 %v2695
    %v2697 = vextract.high.u32 %v2695
    %v2698 = vmul.u32 %v2691, %v2682
    %v2699 = vadd.s32 %v2694, %v2696
    %vm2700 = vc.u32 %v2694, %v2696
    %v2701 = vadd.s32 %v2697, 1
    %v2702 = vsel %vm2700, %v2701, %v2697
    %v2703 = vadd.s32 %v2698, %v2702
    %v2704 = vadd.s32 %v2703, 536870912
    %v2705 = vshrl.u32 %v2704, 30
    %v2706 = vshll.u32 %v2705, 30
    %v2707 = vsub.s32 %v2703, %v2706
    %vm2708 = vcmp.lt.s32.totalorder %v2707, 0
    %v2709 = vsub.s32 0, %v2707
    %v2710 = vsel %vm2708, %v2709, %v2707
    %v2711 = vclz %v2710
    %v2712 = vsub.s32 %v2711, 2
    %vm2713 = vcmp.gt.s32.totalorder 0, %v2712
    %v2714 = vsel %vm2713, 0, %v2712
    %v2715 = vsub.s32 32, %v2714
    %v2716 = vshll.u32 %v2707, %v2714
    %v2717 = vshrl.u32 %v2699, %v2715
    %v2718 = vor.u32 %v2716, %v2717
    %v2719 = vsub.s32 4294967266, %v2714
    %v2720 = vadd.s32 %v2719, 127
    %v2721 = vshll.u32 %v2720, 23
    %v2722 = vor.u32 4788187, %v2721
    %v2723 = vand.u32 2147483647, %v2722
    %v2725 = vcvt.s32.f32 %v2718
    %v2726 = vmul.f32 %v2725, %v2723
    %v2727 = vxor.u32 %v2726, 2147483648
    %v2728 = vsel %vm2645, %v2727, %v2726
    %v2729 = vsub.s32 4, %v2705
    %v2730 = vsel %vm2645, %v2729, %v2705
    %v2731 = vsel %vm2644, %v757, %v2728
    %v2732 = vsel %vm2644, 0, %v2730
    %v2733 = vcosq.f32.pop %v2731
    %v2734 = vsinq.f32.pop %v2731
    %vm2735 = vweird.f32 %v757
    %v2736 = vadd.s32 %v2732, 3
    %v2737 = vand.u32 %v2736, 3
    %vm2738 = vcmp.lt.s32.totalorder %v2737, 2
    %vm2739 = vcmp.eq.s32.totalorder %v2737, 0
    %v2740 = vxor.u32 %v2734, 2147483648
    %v2741 = vsel %vm2739, %v2733, %v2740
    %vm2742 = vcmp.eq.s32.totalorder %v2737, 2
    %v2743 = vxor.u32 %v2733, 2147483648
    %v2744 = vsel %vm2742, %v2743, %v2734
    %v2745 = vsel %vm2738, %v2741, %v2744
    %v2746 = vsel %vm2735, nan, %v2745
    %v2747 = vand.u32 2147483647, %v758
    %vm2748 = vcmp.le.f32.partialorder %v2747, 0.7853982
    %vm2749 = vcmp.lt.s32.totalorder %v758, 0
    %v2750 = vand.u32 %v758, 2139095040
    %v2751 = vshrl.u32 %v2750, 23
    %v2752 = vsub.s32 %v2751, 127
    %v2753 = vand.u32 2147483647, %v758
    %v2754 = vand.u32 %v2753, 8388607
    %v2755 = vor.u32 %v2754, 8388608
    %v2756 = vsub.s32 0, %v2755
    %v2757 = vadd.s32 %v2752, 1
    %vm2758 = vcmp.gt.s32.totalorder %v2757, 0
    %v2759 = vsel %vm2758, %v2757, 0
    %v2760 = vshrl.u32 %v2759, 5
    %v2761 = vand.u32 %v2759, 31
    %v2762 = vsub.s32 32, %v2761
    %v2763 = vshrl.u32 683565275, %v2762
    %v2764 = vshll.u32 683565275, %v2761
    %v2765 = vshrl.u32 2475754826, %v2762
    %v2766 = vor.u32 %v2764, %v2765
    %v2767 = vshll.u32 2475754826, %v2761
    %v2768 = vshrl.u32 2131351028, %v2762
    %v2769 = vor.u32 %v2767, %v2768
    %v2770 = vshll.u32 2131351028, %v2761
    %v2771 = vshrl.u32 2102212464, %v2762
    %v2772 = vor.u32 %v2770, %v2771
    %v2773 = vshll.u32 2102212464, %v2761
    %v2774 = vshrl.u32 920167782, %v2762
    %v2775 = vor.u32 %v2773, %v2774
    %v2776 = vshll.u32 920167782, %v2761
    %v2777 = vshrl.u32 1326507024, %v2762
    %v2778 = vor.u32 %v2776, %v2777
    %vm2779 = vcmp.lt.s32.totalorder %v2760, 1
    %vm2780 = vcmp.lt.s32.totalorder %v2760, 2
    %vm2781 = vcmp.lt.s32.totalorder %v2760, 3
    %vm2782 = vcmp.lt.s32.totalorder %v2760, 4
    %v2783 = vsel %vm2779, %v2763, %v2766
    %v2784 = vsel %vm2782, %v2772, 2102212464
    %v2785 = vsel %vm2781, %v2769, %v2784
    %v2786 = vsel %vm2780, %v2783, %v2785
    %v2787 = vsel %vm2779, %v2766, %v2769
    %v2788 = vsel %vm2782, %v2775, 920167782
    %v2789 = vsel %vm2781, %v2772, %v2788
    %v2790 = vsel %vm2780, %v2787, %v2789
    %v2791 = vsel %vm2779, %v2769, %v2772
    %v2792 = vsel %vm2782, %v2778, 1326507024
    %v2793 = vsel %vm2781, %v2775, %v2792
    %v2794 = vsel %vm2780, %v2791, %v2793
    %v2795 = vshll.u32 %v2755, 8
    %v2796 = vmul.u32.u64.compose %v2795, %v2794
    %v2797 = vextract.low.u32 %v2796
    %v2798 = vextract.high.u32 %v2796
    %v2799 = vmul.u32.u64.compose %v2795, %v2790
    %v2800 = vextract.low.u32 %v2799
    %v2801 = vextract.high.u32 %v2799
    %v2802 = vmul.u32 %v2795, %v2786
    %v2803 = vadd.s32 %v2798, %v2800
    %vm2804 = vc.u32 %v2798, %v2800
    %v2805 = vadd.s32 %v2801, 1
    %v2806 = vsel %vm2804, %v2805, %v2801
    %v2807 = vadd.s32 %v2802, %v2806
    %v2808 = vadd.s32 %v2807, 536870912
    %v2809 = vshrl.u32 %v2808, 30
    %v2810 = vshll.u32 %v2809, 30
    %v2811 = vsub.s32 %v2807, %v2810
    %vm2812 = vcmp.lt.s32.totalorder %v2811, 0
    %v2813 = vsub.s32 0, %v2811
    %v2814 = vsel %vm2812, %v2813, %v2811
    %v2815 = vclz %v2814
    %v2816 = vsub.s32 %v2815, 2
    %vm2817 = vcmp.gt.s32.totalorder 0, %v2816
    %v2818 = vsel %vm2817, 0, %v2816
    %v2819 = vsub.s32 32, %v2818
    %v2820 = vshll.u32 %v2811, %v2818
    %v2821 = vshrl.u32 %v2803, %v2819
    %v2822 = vor.u32 %v2820, %v2821
    %v2823 = vsub.s32 4294967266, %v2818
    %v2824 = vadd.s32 %v2823, 127
    %v2825 = vshll.u32 %v2824, 23
    %v2826 = vor.u32 4788187, %v2825
    %v2827 = vand.u32 2147483647, %v2826
    %v2829 = vcvt.s32.f32 %v2822
    %v2830 = vmul.f32 %v2829, %v2827
    %v2831 = vxor.u32 %v2830, 2147483648
    %v2832 = vsel %vm2749, %v2831, %v2830
    %v2833 = vsub.s32 4, %v2809
    %v2834 = vsel %vm2749, %v2833, %v2809
    %v2835 = vsel %vm2748, %v758, %v2832
    %v2836 = vsel %vm2748, 0, %v2834
    %v2837 = vcosq.f32.pop %v2835
    %v2838 = vsinq.f32.pop %v2835
    %vm2839 = vweird.f32 %v758
    %v2840 = vadd.s32 %v2836, 3
    %v2841 = vand.u32 %v2840, 3
    %vm2842 = vcmp.lt.s32.totalorder %v2841, 2
    %vm2843 = vcmp.eq.s32.totalorder %v2841, 0
    %v2844 = vxor.u32 %v2838, 2147483648
    %v2845 = vsel %vm2843, %v2837, %v2844
    %vm2846 = vcmp.eq.s32.totalorder %v2841, 2
    %v2847 = vxor.u32 %v2837, 2147483648
    %v2848 = vsel %vm2846, %v2847, %v2838
    %v2849 = vsel %vm2842, %v2845, %v2848
    %v2850 = vsel %vm2839, nan, %v2849
    %v2851 = vand.u32 2147483647, %v759
    %vm2852 = vcmp.le.f32.partialorder %v2851, 0.7853982
    %vm2853 = vcmp.lt.s32.totalorder %v759, 0
    %v2854 = vand.u32 %v759, 2139095040
    %v2855 = vshrl.u32 %v2854, 23
    %v2856 = vsub.s32 %v2855, 127
    %v2857 = vand.u32 2147483647, %v759
    %v2858 = vand.u32 %v2857, 8388607
    %v2859 = vor.u32 %v2858, 8388608
    %v2860 = vsub.s32 0, %v2859
    %v2861 = vadd.s32 %v2856, 1
    %vm2862 = vcmp.gt.s32.totalorder %v2861, 0
    %v2863 = vsel %vm2862, %v2861, 0
    %v2864 = vshrl.u32 %v2863, 5
    %v2865 = vand.u32 %v2863, 31
    %v2866 = vsub.s32 32, %v2865
    %v2867 = vshrl.u32 683565275, %v2866
    %v2868 = vshll.u32 683565275, %v2865
    %v2869 = vshrl.u32 2475754826, %v2866
    %v2870 = vor.u32 %v2868, %v2869
    %v2871 = vshll.u32 2475754826, %v2865
    %v2872 = vshrl.u32 2131351028, %v2866
    %v2873 = vor.u32 %v2871, %v2872
    %v2874 = vshll.u32 2131351028, %v2865
    %v2875 = vshrl.u32 2102212464, %v2866
    %v2876 = vor.u32 %v2874, %v2875
    %v2877 = vshll.u32 2102212464, %v2865
    %v2878 = vshrl.u32 920167782, %v2866
    %v2879 = vor.u32 %v2877, %v2878
    %v2880 = vshll.u32 920167782, %v2865
    %v2881 = vshrl.u32 1326507024, %v2866
    %v2882 = vor.u32 %v2880, %v2881
    %vm2883 = vcmp.lt.s32.totalorder %v2864, 1
    %vm2884 = vcmp.lt.s32.totalorder %v2864, 2
    %vm2885 = vcmp.lt.s32.totalorder %v2864, 3
    %vm2886 = vcmp.lt.s32.totalorder %v2864, 4
    %v2887 = vsel %vm2883, %v2867, %v2870
    %v2888 = vsel %vm2886, %v2876, 2102212464
    %v2889 = vsel %vm2885, %v2873, %v2888
    %v2890 = vsel %vm2884, %v2887, %v2889
    %v2891 = vsel %vm2883, %v2870, %v2873
    %v2892 = vsel %vm2886, %v2879, 920167782
    %v2893 = vsel %vm2885, %v2876, %v2892
    %v2894 = vsel %vm2884, %v2891, %v2893
    %v2895 = vsel %vm2883, %v2873, %v2876
    %v2896 = vsel %vm2886, %v2882, 1326507024
    %v2897 = vsel %vm2885, %v2879, %v2896
    %v2898 = vsel %vm2884, %v2895, %v2897
    %v2899 = vshll.u32 %v2859, 8
    %v2900 = vmul.u32.u64.compose %v2899, %v2898
    %v2901 = vextract.low.u32 %v2900
    %v2902 = vextract.high.u32 %v2900
    %v2903 = vmul.u32.u64.compose %v2899, %v2894
    %v2904 = vextract.low.u32 %v2903
    %v2905 = vextract.high.u32 %v2903
    %v2906 = vmul.u32 %v2899, %v2890
    %v2907 = vadd.s32 %v2902, %v2904
    %vm2908 = vc.u32 %v2902, %v2904
    %v2909 = vadd.s32 %v2905, 1
    %v2910 = vsel %vm2908, %v2909, %v2905
    %v2911 = vadd.s32 %v2906, %v2910
    %v2912 = vadd.s32 %v2911, 536870912
    %v2913 = vshrl.u32 %v2912, 30
    %v2914 = vshll.u32 %v2913, 30
    %v2915 = vsub.s32 %v2911, %v2914
    %vm2916 = vcmp.lt.s32.totalorder %v2915, 0
    %v2917 = vsub.s32 0, %v2915
    %v2918 = vsel %vm2916, %v2917, %v2915
    %v2919 = vclz %v2918
    %v2920 = vsub.s32 %v2919, 2
    %vm2921 = vcmp.gt.s32.totalorder 0, %v2920
    %v2922 = vsel %vm2921, 0, %v2920
    %v2923 = vsub.s32 32, %v2922
    %v2924 = vshll.u32 %v2915, %v2922
    %v2925 = vshrl.u32 %v2907, %v2923
    %v2926 = vor.u32 %v2924, %v2925
    %v2927 = vsub.s32 4294967266, %v2922
    %v2928 = vadd.s32 %v2927, 127
    %v2929 = vshll.u32 %v2928, 23
    %v2930 = vor.u32 4788187, %v2929
    %v2931 = vand.u32 2147483647, %v2930
    %v2933 = vcvt.s32.f32 %v2926
    %v2934 = vmul.f32 %v2933, %v2931
    %v2935 = vxor.u32 %v2934, 2147483648
    %v2936 = vsel %vm2853, %v2935, %v2934
    %v2937 = vsub.s32 4, %v2913
    %v2938 = vsel %vm2853, %v2937, %v2913
    %v2939 = vsel %vm2852, %v759, %v2936
    %v2940 = vsel %vm2852, 0, %v2938
    %v2941 = vcosq.f32.pop %v2939
    %v2942 = vsinq.f32.pop %v2939
    %vm2943 = vweird.f32 %v759
    %v2944 = vadd.s32 %v2940, 3
    %v2945 = vand.u32 %v2944, 3
    %vm2946 = vcmp.lt.s32.totalorder %v2945, 2
    %vm2947 = vcmp.eq.s32.totalorder %v2945, 0
    %v2948 = vxor.u32 %v2942, 2147483648
    %v2949 = vsel %vm2947, %v2941, %v2948
    %vm2950 = vcmp.eq.s32.totalorder %v2945, 2
    %v2951 = vxor.u32 %v2941, 2147483648
    %v2952 = vsel %vm2950, %v2951, %v2942
    %v2953 = vsel %vm2946, %v2949, %v2952
    %v2954 = vsel %vm2943, nan, %v2953
    %v2955 = vand.u32 2147483647, %v760
    %vm2956 = vcmp.le.f32.partialorder %v2955, 0.7853982
    %vm2957 = vcmp.lt.s32.totalorder %v760, 0
    %v2958 = vand.u32 %v760, 2139095040
    %v2959 = vshrl.u32 %v2958, 23
    %v2960 = vsub.s32 %v2959, 127
    %v2961 = vand.u32 2147483647, %v760
    %v2962 = vand.u32 %v2961, 8388607
    %v2963 = vor.u32 %v2962, 8388608
    %v2964 = vsub.s32 0, %v2963
    %v2965 = vadd.s32 %v2960, 1
    %vm2966 = vcmp.gt.s32.totalorder %v2965, 0
    %v2967 = vsel %vm2966, %v2965, 0
    %v2968 = vshrl.u32 %v2967, 5
    %v2969 = vand.u32 %v2967, 31
    %v2970 = vsub.s32 32, %v2969
    %v2971 = vshrl.u32 683565275, %v2970
    %v2972 = vshll.u32 683565275, %v2969
    %v2973 = vshrl.u32 2475754826, %v2970
    %v2974 = vor.u32 %v2972, %v2973
    %v2975 = vshll.u32 2475754826, %v2969
    %v2976 = vshrl.u32 2131351028, %v2970
    %v2977 = vor.u32 %v2975, %v2976
    %v2978 = vshll.u32 2131351028, %v2969
    %v2979 = vshrl.u32 2102212464, %v2970
    %v2980 = vor.u32 %v2978, %v2979
    %v2981 = vshll.u32 2102212464, %v2969
    %v2982 = vshrl.u32 920167782, %v2970
    %v2983 = vor.u32 %v2981, %v2982
    %v2984 = vshll.u32 920167782, %v2969
    %v2985 = vshrl.u32 1326507024, %v2970
    %v2986 = vor.u32 %v2984, %v2985
    %vm2987 = vcmp.lt.s32.totalorder %v2968, 1
    %vm2988 = vcmp.lt.s32.totalorder %v2968, 2
    %vm2989 = vcmp.lt.s32.totalorder %v2968, 3
    %vm2990 = vcmp.lt.s32.totalorder %v2968, 4
    %v2991 = vsel %vm2987, %v2971, %v2974
    %v2992 = vsel %vm2990, %v2980, 2102212464
    %v2993 = vsel %vm2989, %v2977, %v2992
    %v2994 = vsel %vm2988, %v2991, %v2993
    %v2995 = vsel %vm2987, %v2974, %v2977
    %v2996 = vsel %vm2990, %v2983, 920167782
    %v2997 = vsel %vm2989, %v2980, %v2996
    %v2998 = vsel %vm2988, %v2995, %v2997
    %v2999 = vsel %vm2987, %v2977, %v2980
    %v3000 = vsel %vm2990, %v2986, 1326507024
    %v3001 = vsel %vm2989, %v2983, %v3000
    %v3002 = vsel %vm2988, %v2999, %v3001
    %v3003 = vshll.u32 %v2963, 8
    %v3004 = vmul.u32.u64.compose %v3003, %v3002
    %v3005 = vextract.low.u32 %v3004
    %v3006 = vextract.high.u32 %v3004
    %v3007 = vmul.u32.u64.compose %v3003, %v2998
    %v3008 = vextract.low.u32 %v3007
    %v3009 = vextract.high.u32 %v3007
    %v3010 = vmul.u32 %v3003, %v2994
    %v3011 = vadd.s32 %v3006, %v3008
    %vm3012 = vc.u32 %v3006, %v3008
    %v3013 = vadd.s32 %v3009, 1
    %v3014 = vsel %vm3012, %v3013, %v3009
    %v3015 = vadd.s32 %v3010, %v3014
    %v3016 = vadd.s32 %v3015, 536870912
    %v3017 = vshrl.u32 %v3016, 30
    %v3018 = vshll.u32 %v3017, 30
    %v3019 = vsub.s32 %v3015, %v3018
    %vm3020 = vcmp.lt.s32.totalorder %v3019, 0
    %v3021 = vsub.s32 0, %v3019
    %v3022 = vsel %vm3020, %v3021, %v3019
    %v3023 = vclz %v3022
    %v3024 = vsub.s32 %v3023, 2
    %vm3025 = vcmp.gt.s32.totalorder 0, %v3024
    %v3026 = vsel %vm3025, 0, %v3024
    %v3027 = vsub.s32 32, %v3026
    %v3028 = vshll.u32 %v3019, %v3026
    %v3029 = vshrl.u32 %v3011, %v3027
    %v3030 = vor.u32 %v3028, %v3029
    %v3031 = vsub.s32 4294967266, %v3026
    %v3032 = vadd.s32 %v3031, 127
    %v3033 = vshll.u32 %v3032, 23
    %v3034 = vor.u32 4788187, %v3033
    %v3035 = vand.u32 2147483647, %v3034
    %v3037 = vcvt.s32.f32 %v3030
    %v3038 = vmul.f32 %v3037, %v3035
    %v3039 = vxor.u32 %v3038, 2147483648
    %v3040 = vsel %vm2957, %v3039, %v3038
    %v3041 = vsub.s32 4, %v3017
    %v3042 = vsel %vm2957, %v3041, %v3017
    %v3043 = vsel %vm2956, %v760, %v3040
    %v3044 = vsel %vm2956, 0, %v3042
    %v3045 = vcosq.f32.pop %v3043
    %v3046 = vsinq.f32.pop %v3043
    %vm3047 = vweird.f32 %v760
    %v3048 = vadd.s32 %v3044, 3
    %v3049 = vand.u32 %v3048, 3
    %vm3050 = vcmp.lt.s32.totalorder %v3049, 2
    %vm3051 = vcmp.eq.s32.totalorder %v3049, 0
    %v3052 = vxor.u32 %v3046, 2147483648
    %v3053 = vsel %vm3051, %v3045, %v3052
    %vm3054 = vcmp.eq.s32.totalorder %v3049, 2
    %v3055 = vxor.u32 %v3045, 2147483648
    %v3056 = vsel %vm3054, %v3055, %v3046
    %v3057 = vsel %vm3050, %v3053, %v3056
    %v3058 = vsel %vm3047, nan, %v3057
    %v3059 = vand.u32 2147483647, %v761
    %vm3060 = vcmp.le.f32.partialorder %v3059, 0.7853982
    %vm3061 = vcmp.lt.s32.totalorder %v761, 0
    %v3062 = vand.u32 %v761, 2139095040
    %v3063 = vshrl.u32 %v3062, 23
    %v3064 = vsub.s32 %v3063, 127
    %v3065 = vand.u32 2147483647, %v761
    %v3066 = vand.u32 %v3065, 8388607
    %v3067 = vor.u32 %v3066, 8388608
    %v3068 = vsub.s32 0, %v3067
    %v3069 = vadd.s32 %v3064, 1
    %vm3070 = vcmp.gt.s32.totalorder %v3069, 0
    %v3071 = vsel %vm3070, %v3069, 0
    %v3072 = vshrl.u32 %v3071, 5
    %v3073 = vand.u32 %v3071, 31
    %v3074 = vsub.s32 32, %v3073
    %v3075 = vshrl.u32 683565275, %v3074
    %v3076 = vshll.u32 683565275, %v3073
    %v3077 = vshrl.u32 2475754826, %v3074
    %v3078 = vor.u32 %v3076, %v3077
    %v3079 = vshll.u32 2475754826, %v3073
    %v3080 = vshrl.u32 2131351028, %v3074
    %v3081 = vor.u32 %v3079, %v3080
    %v3082 = vshll.u32 2131351028, %v3073
    %v3083 = vshrl.u32 2102212464, %v3074
    %v3084 = vor.u32 %v3082, %v3083
    %v3085 = vshll.u32 2102212464, %v3073
    %v3086 = vshrl.u32 920167782, %v3074
    %v3087 = vor.u32 %v3085, %v3086
    %v3088 = vshll.u32 920167782, %v3073
    %v3089 = vshrl.u32 1326507024, %v3074
    %v3090 = vor.u32 %v3088, %v3089
    %vm3091 = vcmp.lt.s32.totalorder %v3072, 1
    %vm3092 = vcmp.lt.s32.totalorder %v3072, 2
    %vm3093 = vcmp.lt.s32.totalorder %v3072, 3
    %vm3094 = vcmp.lt.s32.totalorder %v3072, 4
    %v3095 = vsel %vm3091, %v3075, %v3078
    %v3096 = vsel %vm3094, %v3084, 2102212464
    %v3097 = vsel %vm3093, %v3081, %v3096
    %v3098 = vsel %vm3092, %v3095, %v3097
    %v3099 = vsel %vm3091, %v3078, %v3081
    %v3100 = vsel %vm3094, %v3087, 920167782
    %v3101 = vsel %vm3093, %v3084, %v3100
    %v3102 = vsel %vm3092, %v3099, %v3101
    %v3103 = vsel %vm3091, %v3081, %v3084
    %v3104 = vsel %vm3094, %v3090, 1326507024
    %v3105 = vsel %vm3093, %v3087, %v3104
    %v3106 = vsel %vm3092, %v3103, %v3105
    %v3107 = vshll.u32 %v3067, 8
    %v3108 = vmul.u32.u64.compose %v3107, %v3106
    %v3109 = vextract.low.u32 %v3108
    %v3110 = vextract.high.u32 %v3108
    %v3111 = vmul.u32.u64.compose %v3107, %v3102
    %v3112 = vextract.low.u32 %v3111
    %v3113 = vextract.high.u32 %v3111
    %v3114 = vmul.u32 %v3107, %v3098
    %v3115 = vadd.s32 %v3110, %v3112
    %vm3116 = vc.u32 %v3110, %v3112
    %v3117 = vadd.s32 %v3113, 1
    %v3118 = vsel %vm3116, %v3117, %v3113
    %v3119 = vadd.s32 %v3114, %v3118
    %v3120 = vadd.s32 %v3119, 536870912
    %v3121 = vshrl.u32 %v3120, 30
    %v3122 = vshll.u32 %v3121, 30
    %v3123 = vsub.s32 %v3119, %v3122
    %vm3124 = vcmp.lt.s32.totalorder %v3123, 0
    %v3125 = vsub.s32 0, %v3123
    %v3126 = vsel %vm3124, %v3125, %v3123
    %v3127 = vclz %v3126
    %v3128 = vsub.s32 %v3127, 2
    %vm3129 = vcmp.gt.s32.totalorder 0, %v3128
    %v3130 = vsel %vm3129, 0, %v3128
    %v3131 = vsub.s32 32, %v3130
    %v3132 = vshll.u32 %v3123, %v3130
    %v3133 = vshrl.u32 %v3115, %v3131
    %v3134 = vor.u32 %v3132, %v3133
    %v3135 = vsub.s32 4294967266, %v3130
    %v3136 = vadd.s32 %v3135, 127
    %v3137 = vshll.u32 %v3136, 23
    %v3138 = vor.u32 4788187, %v3137
    %v3139 = vand.u32 2147483647, %v3138
    %v3141 = vcvt.s32.f32 %v3134
    %v3142 = vmul.f32 %v3141, %v3139
    %v3143 = vxor.u32 %v3142, 2147483648
    %v3144 = vsel %vm3061, %v3143, %v3142
    %v3145 = vsub.s32 4, %v3121
    %v3146 = vsel %vm3061, %v3145, %v3121
    %v3147 = vsel %vm3060, %v761, %v3144
    %v3148 = vsel %vm3060, 0, %v3146
    %v3149 = vcosq.f32.pop %v3147
    %v3150 = vsinq.f32.pop %v3147
    %vm3151 = vweird.f32 %v761
    %v3152 = vadd.s32 %v3148, 3
    %v3153 = vand.u32 %v3152, 3
    %vm3154 = vcmp.lt.s32.totalorder %v3153, 2
    %vm3155 = vcmp.eq.s32.totalorder %v3153, 0
    %v3156 = vxor.u32 %v3150, 2147483648
    %v3157 = vsel %vm3155, %v3149, %v3156
    %vm3158 = vcmp.eq.s32.totalorder %v3153, 2
    %v3159 = vxor.u32 %v3149, 2147483648
    %v3160 = vsel %vm3158, %v3159, %v3150
    %v3161 = vsel %vm3154, %v3157, %v3160
    %v3162 = vsel %vm3151, nan, %v3161
    %v3163 = vand.u32 2147483647, %v762
    %vm3164 = vcmp.le.f32.partialorder %v3163, 0.7853982
    %vm3165 = vcmp.lt.s32.totalorder %v762, 0
    %v3166 = vand.u32 %v762, 2139095040
    %v3167 = vshrl.u32 %v3166, 23
    %v3168 = vsub.s32 %v3167, 127
    %v3169 = vand.u32 2147483647, %v762
    %v3170 = vand.u32 %v3169, 8388607
    %v3171 = vor.u32 %v3170, 8388608
    %v3172 = vsub.s32 0, %v3171
    %v3173 = vadd.s32 %v3168, 1
    %vm3174 = vcmp.gt.s32.totalorder %v3173, 0
    %v3175 = vsel %vm3174, %v3173, 0
    %v3176 = vshrl.u32 %v3175, 5
    %v3177 = vand.u32 %v3175, 31
    %v3178 = vsub.s32 32, %v3177
    %v3179 = vshrl.u32 683565275, %v3178
    %v3180 = vshll.u32 683565275, %v3177
    %v3181 = vshrl.u32 2475754826, %v3178
    %v3182 = vor.u32 %v3180, %v3181
    %v3183 = vshll.u32 2475754826, %v3177
    %v3184 = vshrl.u32 2131351028, %v3178
    %v3185 = vor.u32 %v3183, %v3184
    %v3186 = vshll.u32 2131351028, %v3177
    %v3187 = vshrl.u32 2102212464, %v3178
    %v3188 = vor.u32 %v3186, %v3187
    %v3189 = vshll.u32 2102212464, %v3177
    %v3190 = vshrl.u32 920167782, %v3178
    %v3191 = vor.u32 %v3189, %v3190
    %v3192 = vshll.u32 920167782, %v3177
    %v3193 = vshrl.u32 1326507024, %v3178
    %v3194 = vor.u32 %v3192, %v3193
    %vm3195 = vcmp.lt.s32.totalorder %v3176, 1
    %vm3196 = vcmp.lt.s32.totalorder %v3176, 2
    %vm3197 = vcmp.lt.s32.totalorder %v3176, 3
    %vm3198 = vcmp.lt.s32.totalorder %v3176, 4
    %v3199 = vsel %vm3195, %v3179, %v3182
    %v3200 = vsel %vm3198, %v3188, 2102212464
    %v3201 = vsel %vm3197, %v3185, %v3200
    %v3202 = vsel %vm3196, %v3199, %v3201
    %v3203 = vsel %vm3195, %v3182, %v3185
    %v3204 = vsel %vm3198, %v3191, 920167782
    %v3205 = vsel %vm3197, %v3188, %v3204
    %v3206 = vsel %vm3196, %v3203, %v3205
    %v3207 = vsel %vm3195, %v3185, %v3188
    %v3208 = vsel %vm3198, %v3194, 1326507024
    %v3209 = vsel %vm3197, %v3191, %v3208
    %v3210 = vsel %vm3196, %v3207, %v3209
    %v3211 = vshll.u32 %v3171, 8
    %v3212 = vmul.u32.u64.compose %v3211, %v3210
    %v3213 = vextract.low.u32 %v3212
    %v3214 = vextract.high.u32 %v3212
    %v3215 = vmul.u32.u64.compose %v3211, %v3206
    %v3216 = vextract.low.u32 %v3215
    %v3217 = vextract.high.u32 %v3215
    %v3218 = vmul.u32 %v3211, %v3202
    %v3219 = vadd.s32 %v3214, %v3216
    %vm3220 = vc.u32 %v3214, %v3216
    %v3221 = vadd.s32 %v3217, 1
    %v3222 = vsel %vm3220, %v3221, %v3217
    %v3223 = vadd.s32 %v3218, %v3222
    %v3224 = vadd.s32 %v3223, 536870912
    %v3225 = vshrl.u32 %v3224, 30
    %v3226 = vshll.u32 %v3225, 30
    %v3227 = vsub.s32 %v3223, %v3226
    %vm3228 = vcmp.lt.s32.totalorder %v3227, 0
    %v3229 = vsub.s32 0, %v3227
    %v3230 = vsel %vm3228, %v3229, %v3227
    %v3231 = vclz %v3230
    %v3232 = vsub.s32 %v3231, 2
    %vm3233 = vcmp.gt.s32.totalorder 0, %v3232
    %v3234 = vsel %vm3233, 0, %v3232
    %v3235 = vsub.s32 32, %v3234
    %v3236 = vshll.u32 %v3227, %v3234
    %v3237 = vshrl.u32 %v3219, %v3235
    %v3238 = vor.u32 %v3236, %v3237
    %v3239 = vsub.s32 4294967266, %v3234
    %v3240 = vadd.s32 %v3239, 127
    %v3241 = vshll.u32 %v3240, 23
    %v3242 = vor.u32 4788187, %v3241
    %v3243 = vand.u32 2147483647, %v3242
    %v3245 = vcvt.s32.f32 %v3238
    %v3246 = vmul.f32 %v3245, %v3243
    %v3247 = vxor.u32 %v3246, 2147483648
    %v3248 = vsel %vm3165, %v3247, %v3246
    %v3249 = vsub.s32 4, %v3225
    %v3250 = vsel %vm3165, %v3249, %v3225
    %v3251 = vsel %vm3164, %v762, %v3248
    %v3252 = vsel %vm3164, 0, %v3250
    %v3253 = vcosq.f32.pop %v3251
    %v3254 = vsinq.f32.pop %v3251
    %vm3255 = vweird.f32 %v762
    %v3256 = vadd.s32 %v3252, 3
    %v3257 = vand.u32 %v3256, 3
    %vm3258 = vcmp.lt.s32.totalorder %v3257, 2
    %vm3259 = vcmp.eq.s32.totalorder %v3257, 0
    %v3260 = vxor.u32 %v3254, 2147483648
    %v3261 = vsel %vm3259, %v3253, %v3260
    %vm3262 = vcmp.eq.s32.totalorder %v3257, 2
    %v3263 = vxor.u32 %v3253, 2147483648
    %v3264 = vsel %vm3262, %v3263, %v3254
    %v3265 = vsel %vm3258, %v3261, %v3264
    %v3266 = vsel %vm3255, nan, %v3265
    %v3267 = vand.u32 2147483647, %v763
    %vm3268 = vcmp.le.f32.partialorder %v3267, 0.7853982
    %vm3269 = vcmp.lt.s32.totalorder %v763, 0
    %v3270 = vand.u32 %v763, 2139095040
    %v3271 = vshrl.u32 %v3270, 23
    %v3272 = vsub.s32 %v3271, 127
    %v3273 = vand.u32 2147483647, %v763
    %v3274 = vand.u32 %v3273, 8388607
    %v3275 = vor.u32 %v3274, 8388608
    %v3276 = vsub.s32 0, %v3275
    %v3277 = vadd.s32 %v3272, 1
    %vm3278 = vcmp.gt.s32.totalorder %v3277, 0
    %v3279 = vsel %vm3278, %v3277, 0
    %v3280 = vshrl.u32 %v3279, 5
    %v3281 = vand.u32 %v3279, 31
    %v3282 = vsub.s32 32, %v3281
    %v3283 = vshrl.u32 683565275, %v3282
    %v3284 = vshll.u32 683565275, %v3281
    %v3285 = vshrl.u32 2475754826, %v3282
    %v3286 = vor.u32 %v3284, %v3285
    %v3287 = vshll.u32 2475754826, %v3281
    %v3288 = vshrl.u32 2131351028, %v3282
    %v3289 = vor.u32 %v3287, %v3288
    %v3290 = vshll.u32 2131351028, %v3281
    %v3291 = vshrl.u32 2102212464, %v3282
    %v3292 = vor.u32 %v3290, %v3291
    %v3293 = vshll.u32 2102212464, %v3281
    %v3294 = vshrl.u32 920167782, %v3282
    %v3295 = vor.u32 %v3293, %v3294
    %v3296 = vshll.u32 920167782, %v3281
    %v3297 = vshrl.u32 1326507024, %v3282
    %v3298 = vor.u32 %v3296, %v3297
    %vm3299 = vcmp.lt.s32.totalorder %v3280, 1
    %vm3300 = vcmp.lt.s32.totalorder %v3280, 2
    %vm3301 = vcmp.lt.s32.totalorder %v3280, 3
    %vm3302 = vcmp.lt.s32.totalorder %v3280, 4
    %v3303 = vsel %vm3299, %v3283, %v3286
    %v3304 = vsel %vm3302, %v3292, 2102212464
    %v3305 = vsel %vm3301, %v3289, %v3304
    %v3306 = vsel %vm3300, %v3303, %v3305
    %v3307 = vsel %vm3299, %v3286, %v3289
    %v3308 = vsel %vm3302, %v3295, 920167782
    %v3309 = vsel %vm3301, %v3292, %v3308
    %v3310 = vsel %vm3300, %v3307, %v3309
    %v3311 = vsel %vm3299, %v3289, %v3292
    %v3312 = vsel %vm3302, %v3298, 1326507024
    %v3313 = vsel %vm3301, %v3295, %v3312
    %v3314 = vsel %vm3300, %v3311, %v3313
    %v3315 = vshll.u32 %v3275, 8
    %v3316 = vmul.u32.u64.compose %v3315, %v3314
    %v3317 = vextract.low.u32 %v3316
    %v3318 = vextract.high.u32 %v3316
    %v3319 = vmul.u32.u64.compose %v3315, %v3310
    %v3320 = vextract.low.u32 %v3319
    %v3321 = vextract.high.u32 %v3319
    %v3322 = vmul.u32 %v3315, %v3306
    %v3323 = vadd.s32 %v3318, %v3320
    %vm3324 = vc.u32 %v3318, %v3320
    %v3325 = vadd.s32 %v3321, 1
    %v3326 = vsel %vm3324, %v3325, %v3321
    %v3327 = vadd.s32 %v3322, %v3326
    %v3328 = vadd.s32 %v3327, 536870912
    %v3329 = vshrl.u32 %v3328, 30
    %v3330 = vshll.u32 %v3329, 30
    %v3331 = vsub.s32 %v3327, %v3330
    %vm3332 = vcmp.lt.s32.totalorder %v3331, 0
    %v3333 = vsub.s32 0, %v3331
    %v3334 = vsel %vm3332, %v3333, %v3331
    %v3335 = vclz %v3334
    %v3336 = vsub.s32 %v3335, 2
    %vm3337 = vcmp.gt.s32.totalorder 0, %v3336
    %v3338 = vsel %vm3337, 0, %v3336
    %v3339 = vsub.s32 32, %v3338
    %v3340 = vshll.u32 %v3331, %v3338
    %v3341 = vshrl.u32 %v3323, %v3339
    %v3342 = vor.u32 %v3340, %v3341
    %v3343 = vsub.s32 4294967266, %v3338
    %v3344 = vadd.s32 %v3343, 127
    %v3345 = vshll.u32 %v3344, 23
    %v3346 = vor.u32 4788187, %v3345
    %v3347 = vand.u32 2147483647, %v3346
    %v3349 = vcvt.s32.f32 %v3342
    %v3350 = vmul.f32 %v3349, %v3347
    %v3351 = vxor.u32 %v3350, 2147483648
    %v3352 = vsel %vm3269, %v3351, %v3350
    %v3353 = vsub.s32 4, %v3329
    %v3354 = vsel %vm3269, %v3353, %v3329
    %v3355 = vsel %vm3268, %v763, %v3352
    %v3356 = vsel %vm3268, 0, %v3354
    %v3357 = vcosq.f32.pop %v3355
    %v3358 = vsinq.f32.pop %v3355
    %vm3359 = vweird.f32 %v763
    %v3360 = vadd.s32 %v3356, 3
    %v3361 = vand.u32 %v3360, 3
    %vm3362 = vcmp.lt.s32.totalorder %v3361, 2
    %vm3363 = vcmp.eq.s32.totalorder %v3361, 0
    %v3364 = vxor.u32 %v3358, 2147483648
    %v3365 = vsel %vm3363, %v3357, %v3364
    %vm3366 = vcmp.eq.s32.totalorder %v3361, 2
    %v3367 = vxor.u32 %v3357, 2147483648
    %v3368 = vsel %vm3366, %v3367, %v3358
    %v3369 = vsel %vm3362, %v3365, %v3368
    %v3370 = vsel %vm3359, nan, %v3369
    %v3371 = vand.u32 2147483647, %v764
    %vm3372 = vcmp.le.f32.partialorder %v3371, 0.7853982
    %vm3373 = vcmp.lt.s32.totalorder %v764, 0
    %v3374 = vand.u32 %v764, 2139095040
    %v3375 = vshrl.u32 %v3374, 23
    %v3376 = vsub.s32 %v3375, 127
    %v3377 = vand.u32 2147483647, %v764
    %v3378 = vand.u32 %v3377, 8388607
    %v3379 = vor.u32 %v3378, 8388608
    %v3380 = vsub.s32 0, %v3379
    %v3381 = vadd.s32 %v3376, 1
    %vm3382 = vcmp.gt.s32.totalorder %v3381, 0
    %v3383 = vsel %vm3382, %v3381, 0
    %v3384 = vshrl.u32 %v3383, 5
    %v3385 = vand.u32 %v3383, 31
    %v3386 = vsub.s32 32, %v3385
    %v3387 = vshrl.u32 683565275, %v3386
    %v3388 = vshll.u32 683565275, %v3385
    %v3389 = vshrl.u32 2475754826, %v3386
    %v3390 = vor.u32 %v3388, %v3389
    %v3391 = vshll.u32 2475754826, %v3385
    %v3392 = vshrl.u32 2131351028, %v3386
    %v3393 = vor.u32 %v3391, %v3392
    %v3394 = vshll.u32 2131351028, %v3385
    %v3395 = vshrl.u32 2102212464, %v3386
    %v3396 = vor.u32 %v3394, %v3395
    %v3397 = vshll.u32 2102212464, %v3385
    %v3398 = vshrl.u32 920167782, %v3386
    %v3399 = vor.u32 %v3397, %v3398
    %v3400 = vshll.u32 920167782, %v3385
    %v3401 = vshrl.u32 1326507024, %v3386
    %v3402 = vor.u32 %v3400, %v3401
    %vm3403 = vcmp.lt.s32.totalorder %v3384, 1
    %vm3404 = vcmp.lt.s32.totalorder %v3384, 2
    %vm3405 = vcmp.lt.s32.totalorder %v3384, 3
    %vm3406 = vcmp.lt.s32.totalorder %v3384, 4
    %v3407 = vsel %vm3403, %v3387, %v3390
    %v3408 = vsel %vm3406, %v3396, 2102212464
    %v3409 = vsel %vm3405, %v3393, %v3408
    %v3410 = vsel %vm3404, %v3407, %v3409
    %v3411 = vsel %vm3403, %v3390, %v3393
    %v3412 = vsel %vm3406, %v3399, 920167782
    %v3413 = vsel %vm3405, %v3396, %v3412
    %v3414 = vsel %vm3404, %v3411, %v3413
    %v3415 = vsel %vm3403, %v3393, %v3396
    %v3416 = vsel %vm3406, %v3402, 1326507024
    %v3417 = vsel %vm3405, %v3399, %v3416
    %v3418 = vsel %vm3404, %v3415, %v3417
    %v3419 = vshll.u32 %v3379, 8
    %v3420 = vmul.u32.u64.compose %v3419, %v3418
    %v3421 = vextract.low.u32 %v3420
    %v3422 = vextract.high.u32 %v3420
    %v3423 = vmul.u32.u64.compose %v3419, %v3414
    %v3424 = vextract.low.u32 %v3423
    %v3425 = vextract.high.u32 %v3423
    %v3426 = vmul.u32 %v3419, %v3410
    %v3427 = vadd.s32 %v3422, %v3424
    %vm3428 = vc.u32 %v3422, %v3424
    %v3429 = vadd.s32 %v3425, 1
    %v3430 = vsel %vm3428, %v3429, %v3425
    %v3431 = vadd.s32 %v3426, %v3430
    %v3432 = vadd.s32 %v3431, 536870912
    %v3433 = vshrl.u32 %v3432, 30
    %v3434 = vshll.u32 %v3433, 30
    %v3435 = vsub.s32 %v3431, %v3434
    %vm3436 = vcmp.lt.s32.totalorder %v3435, 0
    %v3437 = vsub.s32 0, %v3435
    %v3438 = vsel %vm3436, %v3437, %v3435
    %v3439 = vclz %v3438
    %v3440 = vsub.s32 %v3439, 2
    %vm3441 = vcmp.gt.s32.totalorder 0, %v3440
    %v3442 = vsel %vm3441, 0, %v3440
    %v3443 = vsub.s32 32, %v3442
    %v3444 = vshll.u32 %v3435, %v3442
    %v3445 = vshrl.u32 %v3427, %v3443
    %v3446 = vor.u32 %v3444, %v3445
    %v3447 = vsub.s32 4294967266, %v3442
    %v3448 = vadd.s32 %v3447, 127
    %v3449 = vshll.u32 %v3448, 23
    %v3450 = vor.u32 4788187, %v3449
    %v3451 = vand.u32 2147483647, %v3450
    %v3453 = vcvt.s32.f32 %v3446
    %v3454 = vmul.f32 %v3453, %v3451
    %v3455 = vxor.u32 %v3454, 2147483648
    %v3456 = vsel %vm3373, %v3455, %v3454
    %v3457 = vsub.s32 4, %v3433
    %v3458 = vsel %vm3373, %v3457, %v3433
    %v3459 = vsel %vm3372, %v764, %v3456
    %v3460 = vsel %vm3372, 0, %v3458
    %v3461 = vcosq.f32.pop %v3459
    %v3462 = vsinq.f32.pop %v3459
    %vm3463 = vweird.f32 %v764
    %v3464 = vadd.s32 %v3460, 3
    %v3465 = vand.u32 %v3464, 3
    %vm3466 = vcmp.lt.s32.totalorder %v3465, 2
    %vm3467 = vcmp.eq.s32.totalorder %v3465, 0
    %v3468 = vxor.u32 %v3462, 2147483648
    %v3469 = vsel %vm3467, %v3461, %v3468
    %vm3470 = vcmp.eq.s32.totalorder %v3465, 2
    %v3471 = vxor.u32 %v3461, 2147483648
    %v3472 = vsel %vm3470, %v3471, %v3462
    %v3473 = vsel %vm3466, %v3469, %v3472
    %v3474 = vsel %vm3463, nan, %v3473
    %v3475 = vand.u32 2147483647, %v765
    %vm3476 = vcmp.le.f32.partialorder %v3475, 0.7853982
    %vm3477 = vcmp.lt.s32.totalorder %v765, 0
    %v3478 = vand.u32 %v765, 2139095040
    %v3479 = vshrl.u32 %v3478, 23
    %v3480 = vsub.s32 %v3479, 127
    %v3481 = vand.u32 2147483647, %v765
    %v3482 = vand.u32 %v3481, 8388607
    %v3483 = vor.u32 %v3482, 8388608
    %v3484 = vsub.s32 0, %v3483
    %v3485 = vadd.s32 %v3480, 1
    %vm3486 = vcmp.gt.s32.totalorder %v3485, 0
    %v3487 = vsel %vm3486, %v3485, 0
    %v3488 = vshrl.u32 %v3487, 5
    %v3489 = vand.u32 %v3487, 31
    %v3490 = vsub.s32 32, %v3489
    %v3491 = vshrl.u32 683565275, %v3490
    %v3492 = vshll.u32 683565275, %v3489
    %v3493 = vshrl.u32 2475754826, %v3490
    %v3494 = vor.u32 %v3492, %v3493
    %v3495 = vshll.u32 2475754826, %v3489
    %v3496 = vshrl.u32 2131351028, %v3490
    %v3497 = vor.u32 %v3495, %v3496
    %v3498 = vshll.u32 2131351028, %v3489
    %v3499 = vshrl.u32 2102212464, %v3490
    %v3500 = vor.u32 %v3498, %v3499
    %v3501 = vshll.u32 2102212464, %v3489
    %v3502 = vshrl.u32 920167782, %v3490
    %v3503 = vor.u32 %v3501, %v3502
    %v3504 = vshll.u32 920167782, %v3489
    %v3505 = vshrl.u32 1326507024, %v3490
    %v3506 = vor.u32 %v3504, %v3505
    %vm3507 = vcmp.lt.s32.totalorder %v3488, 1
    %vm3508 = vcmp.lt.s32.totalorder %v3488, 2
    %vm3509 = vcmp.lt.s32.totalorder %v3488, 3
    %vm3510 = vcmp.lt.s32.totalorder %v3488, 4
    %v3511 = vsel %vm3507, %v3491, %v3494
    %v3512 = vsel %vm3510, %v3500, 2102212464
    %v3513 = vsel %vm3509, %v3497, %v3512
    %v3514 = vsel %vm3508, %v3511, %v3513
    %v3515 = vsel %vm3507, %v3494, %v3497
    %v3516 = vsel %vm3510, %v3503, 920167782
    %v3517 = vsel %vm3509, %v3500, %v3516
    %v3518 = vsel %vm3508, %v3515, %v3517
    %v3519 = vsel %vm3507, %v3497, %v3500
    %v3520 = vsel %vm3510, %v3506, 1326507024
    %v3521 = vsel %vm3509, %v3503, %v3520
    %v3522 = vsel %vm3508, %v3519, %v3521
    %v3523 = vshll.u32 %v3483, 8
    %v3524 = vmul.u32.u64.compose %v3523, %v3522
    %v3525 = vextract.low.u32 %v3524
    %v3526 = vextract.high.u32 %v3524
    %v3527 = vmul.u32.u64.compose %v3523, %v3518
    %v3528 = vextract.low.u32 %v3527
    %v3529 = vextract.high.u32 %v3527
    %v3530 = vmul.u32 %v3523, %v3514
    %v3531 = vadd.s32 %v3526, %v3528
    %vm3532 = vc.u32 %v3526, %v3528
    %v3533 = vadd.s32 %v3529, 1
    %v3534 = vsel %vm3532, %v3533, %v3529
    %v3535 = vadd.s32 %v3530, %v3534
    %v3536 = vadd.s32 %v3535, 536870912
    %v3537 = vshrl.u32 %v3536, 30
    %v3538 = vshll.u32 %v3537, 30
    %v3539 = vsub.s32 %v3535, %v3538
    %vm3540 = vcmp.lt.s32.totalorder %v3539, 0
    %v3541 = vsub.s32 0, %v3539
    %v3542 = vsel %vm3540, %v3541, %v3539
    %v3543 = vclz %v3542
    %v3544 = vsub.s32 %v3543, 2
    %vm3545 = vcmp.gt.s32.totalorder 0, %v3544
    %v3546 = vsel %vm3545, 0, %v3544
    %v3547 = vsub.s32 32, %v3546
    %v3548 = vshll.u32 %v3539, %v3546
    %v3549 = vshrl.u32 %v3531, %v3547
    %v3550 = vor.u32 %v3548, %v3549
    %v3551 = vsub.s32 4294967266, %v3546
    %v3552 = vadd.s32 %v3551, 127
    %v3553 = vshll.u32 %v3552, 23
    %v3554 = vor.u32 4788187, %v3553
    %v3555 = vand.u32 2147483647, %v3554
    %v3557 = vcvt.s32.f32 %v3550
    %v3558 = vmul.f32 %v3557, %v3555
    %v3559 = vxor.u32 %v3558, 2147483648
    %v3560 = vsel %vm3477, %v3559, %v3558
    %v3561 = vsub.s32 4, %v3537
    %v3562 = vsel %vm3477, %v3561, %v3537
    %v3563 = vsel %vm3476, %v765, %v3560
    %v3564 = vsel %vm3476, 0, %v3562
    %v3565 = vcosq.f32.pop %v3563
    %v3566 = vsinq.f32.pop %v3563
    %vm3567 = vweird.f32 %v765
    %v3568 = vadd.s32 %v3564, 3
    %v3569 = vand.u32 %v3568, 3
    %vm3570 = vcmp.lt.s32.totalorder %v3569, 2
    %vm3571 = vcmp.eq.s32.totalorder %v3569, 0
    %v3572 = vxor.u32 %v3566, 2147483648
    %v3573 = vsel %vm3571, %v3565, %v3572
    %vm3574 = vcmp.eq.s32.totalorder %v3569, 2
    %v3575 = vxor.u32 %v3565, 2147483648
    %v3576 = vsel %vm3574, %v3575, %v3566
    %v3577 = vsel %vm3570, %v3573, %v3576
    %v3578 = vsel %vm3567, nan, %v3577
    %v3579 = vand.u32 2147483647, %v766
    %vm3580 = vcmp.le.f32.partialorder %v3579, 0.7853982
    %vm3581 = vcmp.lt.s32.totalorder %v766, 0
    %v3582 = vand.u32 %v766, 2139095040
    %v3583 = vshrl.u32 %v3582, 23
    %v3584 = vsub.s32 %v3583, 127
    %v3585 = vand.u32 2147483647, %v766
    %v3586 = vand.u32 %v3585, 8388607
    %v3587 = vor.u32 %v3586, 8388608
    %v3588 = vsub.s32 0, %v3587
    %v3589 = vadd.s32 %v3584, 1
    %vm3590 = vcmp.gt.s32.totalorder %v3589, 0
    %v3591 = vsel %vm3590, %v3589, 0
    %v3592 = vshrl.u32 %v3591, 5
    %v3593 = vand.u32 %v3591, 31
    %v3594 = vsub.s32 32, %v3593
    %v3595 = vshrl.u32 683565275, %v3594
    %v3596 = vshll.u32 683565275, %v3593
    %v3597 = vshrl.u32 2475754826, %v3594
    %v3598 = vor.u32 %v3596, %v3597
    %v3599 = vshll.u32 2475754826, %v3593
    %v3600 = vshrl.u32 2131351028, %v3594
    %v3601 = vor.u32 %v3599, %v3600
    %v3602 = vshll.u32 2131351028, %v3593
    %v3603 = vshrl.u32 2102212464, %v3594
    %v3604 = vor.u32 %v3602, %v3603
    %v3605 = vshll.u32 2102212464, %v3593
    %v3606 = vshrl.u32 920167782, %v3594
    %v3607 = vor.u32 %v3605, %v3606
    %v3608 = vshll.u32 920167782, %v3593
    %v3609 = vshrl.u32 1326507024, %v3594
    %v3610 = vor.u32 %v3608, %v3609
    %vm3611 = vcmp.lt.s32.totalorder %v3592, 1
    %vm3612 = vcmp.lt.s32.totalorder %v3592, 2
    %vm3613 = vcmp.lt.s32.totalorder %v3592, 3
    %vm3614 = vcmp.lt.s32.totalorder %v3592, 4
    %v3615 = vsel %vm3611, %v3595, %v3598
    %v3616 = vsel %vm3614, %v3604, 2102212464
    %v3617 = vsel %vm3613, %v3601, %v3616
    %v3618 = vsel %vm3612, %v3615, %v3617
    %v3619 = vsel %vm3611, %v3598, %v3601
    %v3620 = vsel %vm3614, %v3607, 920167782
    %v3621 = vsel %vm3613, %v3604, %v3620
    %v3622 = vsel %vm3612, %v3619, %v3621
    %v3623 = vsel %vm3611, %v3601, %v3604
    %v3624 = vsel %vm3614, %v3610, 1326507024
    %v3625 = vsel %vm3613, %v3607, %v3624
    %v3626 = vsel %vm3612, %v3623, %v3625
    %v3627 = vshll.u32 %v3587, 8
    %v3628 = vmul.u32.u64.compose %v3627, %v3626
    %v3629 = vextract.low.u32 %v3628
    %v3630 = vextract.high.u32 %v3628
    %v3631 = vmul.u32.u64.compose %v3627, %v3622
    %v3632 = vextract.low.u32 %v3631
    %v3633 = vextract.high.u32 %v3631
    %v3634 = vmul.u32 %v3627, %v3618
    %v3635 = vadd.s32 %v3630, %v3632
    %vm3636 = vc.u32 %v3630, %v3632
    %v3637 = vadd.s32 %v3633, 1
    %v3638 = vsel %vm3636, %v3637, %v3633
    %v3639 = vadd.s32 %v3634, %v3638
    %v3640 = vadd.s32 %v3639, 536870912
    %v3641 = vshrl.u32 %v3640, 30
    %v3642 = vshll.u32 %v3641, 30
    %v3643 = vsub.s32 %v3639, %v3642
    %vm3644 = vcmp.lt.s32.totalorder %v3643, 0
    %v3645 = vsub.s32 0, %v3643
    %v3646 = vsel %vm3644, %v3645, %v3643
    %v3647 = vclz %v3646
    %v3648 = vsub.s32 %v3647, 2
    %vm3649 = vcmp.gt.s32.totalorder 0, %v3648
    %v3650 = vsel %vm3649, 0, %v3648
    %v3651 = vsub.s32 32, %v3650
    %v3652 = vshll.u32 %v3643, %v3650
    %v3653 = vshrl.u32 %v3635, %v3651
    %v3654 = vor.u32 %v3652, %v3653
    %v3655 = vsub.s32 4294967266, %v3650
    %v3656 = vadd.s32 %v3655, 127
    %v3657 = vshll.u32 %v3656, 23
    %v3658 = vor.u32 4788187, %v3657
    %v3659 = vand.u32 2147483647, %v3658
    %v3661 = vcvt.s32.f32 %v3654
    %v3662 = vmul.f32 %v3661, %v3659
    %v3663 = vxor.u32 %v3662, 2147483648
    %v3664 = vsel %vm3581, %v3663, %v3662
    %v3665 = vsub.s32 4, %v3641
    %v3666 = vsel %vm3581, %v3665, %v3641
    %v3667 = vsel %vm3580, %v766, %v3664
    %v3668 = vsel %vm3580, 0, %v3666
    %v3669 = vcosq.f32.pop %v3667
    %v3670 = vsinq.f32.pop %v3667
    %vm3671 = vweird.f32 %v766
    %v3672 = vadd.s32 %v3668, 3
    %v3673 = vand.u32 %v3672, 3
    %vm3674 = vcmp.lt.s32.totalorder %v3673, 2
    %vm3675 = vcmp.eq.s32.totalorder %v3673, 0
    %v3676 = vxor.u32 %v3670, 2147483648
    %v3677 = vsel %vm3675, %v3669, %v3676
    %vm3678 = vcmp.eq.s32.totalorder %v3673, 2
    %v3679 = vxor.u32 %v3669, 2147483648
    %v3680 = vsel %vm3678, %v3679, %v3670
    %v3681 = vsel %vm3674, %v3677, %v3680
    %v3682 = vsel %vm3671, nan, %v3681
    %v3683 = vand.u32 2147483647, %v767
    %vm3684 = vcmp.le.f32.partialorder %v3683, 0.7853982
    %vm3685 = vcmp.lt.s32.totalorder %v767, 0
    %v3686 = vand.u32 %v767, 2139095040
    %v3687 = vshrl.u32 %v3686, 23
    %v3688 = vsub.s32 %v3687, 127
    %v3689 = vand.u32 2147483647, %v767
    %v3690 = vand.u32 %v3689, 8388607
    %v3691 = vor.u32 %v3690, 8388608
    %v3692 = vsub.s32 0, %v3691
    %v3693 = vadd.s32 %v3688, 1
    %vm3694 = vcmp.gt.s32.totalorder %v3693, 0
    %v3695 = vsel %vm3694, %v3693, 0
    %v3696 = vshrl.u32 %v3695, 5
    %v3697 = vand.u32 %v3695, 31
    %v3698 = vsub.s32 32, %v3697
    %v3699 = vshrl.u32 683565275, %v3698
    %v3700 = vshll.u32 683565275, %v3697
    %v3701 = vshrl.u32 2475754826, %v3698
    %v3702 = vor.u32 %v3700, %v3701
    %v3703 = vshll.u32 2475754826, %v3697
    %v3704 = vshrl.u32 2131351028, %v3698
    %v3705 = vor.u32 %v3703, %v3704
    %v3706 = vshll.u32 2131351028, %v3697
    %v3707 = vshrl.u32 2102212464, %v3698
    %v3708 = vor.u32 %v3706, %v3707
    %v3709 = vshll.u32 2102212464, %v3697
    %v3710 = vshrl.u32 920167782, %v3698
    %v3711 = vor.u32 %v3709, %v3710
    %v3712 = vshll.u32 920167782, %v3697
    %v3713 = vshrl.u32 1326507024, %v3698
    %v3714 = vor.u32 %v3712, %v3713
    %vm3715 = vcmp.lt.s32.totalorder %v3696, 1
    %vm3716 = vcmp.lt.s32.totalorder %v3696, 2
    %vm3717 = vcmp.lt.s32.totalorder %v3696, 3
    %vm3718 = vcmp.lt.s32.totalorder %v3696, 4
    %v3719 = vsel %vm3715, %v3699, %v3702
    %v3720 = vsel %vm3718, %v3708, 2102212464
    %v3721 = vsel %vm3717, %v3705, %v3720
    %v3722 = vsel %vm3716, %v3719, %v3721
    %v3723 = vsel %vm3715, %v3702, %v3705
    %v3724 = vsel %vm3718, %v3711, 920167782
    %v3725 = vsel %vm3717, %v3708, %v3724
    %v3726 = vsel %vm3716, %v3723, %v3725
    %v3727 = vsel %vm3715, %v3705, %v3708
    %v3728 = vsel %vm3718, %v3714, 1326507024
    %v3729 = vsel %vm3717, %v3711, %v3728
    %v3730 = vsel %vm3716, %v3727, %v3729
    %v3731 = vshll.u32 %v3691, 8
    %v3732 = vmul.u32.u64.compose %v3731, %v3730
    %v3733 = vextract.low.u32 %v3732
    %v3734 = vextract.high.u32 %v3732
    %v3735 = vmul.u32.u64.compose %v3731, %v3726
    %v3736 = vextract.low.u32 %v3735
    %v3737 = vextract.high.u32 %v3735
    %v3738 = vmul.u32 %v3731, %v3722
    %v3739 = vadd.s32 %v3734, %v3736
    %vm3740 = vc.u32 %v3734, %v3736
    %v3741 = vadd.s32 %v3737, 1
    %v3742 = vsel %vm3740, %v3741, %v3737
    %v3743 = vadd.s32 %v3738, %v3742
    %v3744 = vadd.s32 %v3743, 536870912
    %v3745 = vshrl.u32 %v3744, 30
    %v3746 = vshll.u32 %v3745, 30
    %v3747 = vsub.s32 %v3743, %v3746
    %vm3748 = vcmp.lt.s32.totalorder %v3747, 0
    %v3749 = vsub.s32 0, %v3747
    %v3750 = vsel %vm3748, %v3749, %v3747
    %v3751 = vclz %v3750
    %v3752 = vsub.s32 %v3751, 2
    %vm3753 = vcmp.gt.s32.totalorder 0, %v3752
    %v3754 = vsel %vm3753, 0, %v3752
    %v3755 = vsub.s32 32, %v3754
    %v3756 = vshll.u32 %v3747, %v3754
    %v3757 = vshrl.u32 %v3739, %v3755
    %v3758 = vor.u32 %v3756, %v3757
    %v3759 = vsub.s32 4294967266, %v3754
    %v3760 = vadd.s32 %v3759, 127
    %v3761 = vshll.u32 %v3760, 23
    %v3762 = vor.u32 4788187, %v3761
    %v3763 = vand.u32 2147483647, %v3762
    %v3765 = vcvt.s32.f32 %v3758
    %v3766 = vmul.f32 %v3765, %v3763
    %v3767 = vxor.u32 %v3766, 2147483648
    %v3768 = vsel %vm3685, %v3767, %v3766
    %v3769 = vsub.s32 4, %v3745
    %v3770 = vsel %vm3685, %v3769, %v3745
    %v3771 = vsel %vm3684, %v767, %v3768
    %v3772 = vsel %vm3684, 0, %v3770
    %v3773 = vcosq.f32.pop %v3771
    %v3774 = vsinq.f32.pop %v3771
    %vm3775 = vweird.f32 %v767
    %v3776 = vadd.s32 %v3772, 3
    %v3777 = vand.u32 %v3776, 3
    %vm3778 = vcmp.lt.s32.totalorder %v3777, 2
    %vm3779 = vcmp.eq.s32.totalorder %v3777, 0
    %v3780 = vxor.u32 %v3774, 2147483648
    %v3781 = vsel %vm3779, %v3773, %v3780
    %vm3782 = vcmp.eq.s32.totalorder %v3777, 2
    %v3783 = vxor.u32 %v3773, 2147483648
    %v3784 = vsel %vm3782, %v3783, %v3774
    %v3785 = vsel %vm3778, %v3781, %v3784
    %v3786 = vsel %vm3775, nan, %v3785
    %v3787 = vand.u32 2147483647, %v768
    %vm3788 = vcmp.le.f32.partialorder %v3787, 0.7853982
    %vm3789 = vcmp.lt.s32.totalorder %v768, 0
    %v3790 = vand.u32 %v768, 2139095040
    %v3791 = vshrl.u32 %v3790, 23
    %v3792 = vsub.s32 %v3791, 127
    %v3793 = vand.u32 2147483647, %v768
    %v3794 = vand.u32 %v3793, 8388607
    %v3795 = vor.u32 %v3794, 8388608
    %v3796 = vsub.s32 0, %v3795
    %v3797 = vadd.s32 %v3792, 1
    %vm3798 = vcmp.gt.s32.totalorder %v3797, 0
    %v3799 = vsel %vm3798, %v3797, 0
    %v3800 = vshrl.u32 %v3799, 5
    %v3801 = vand.u32 %v3799, 31
    %v3802 = vsub.s32 32, %v3801
    %v3803 = vshrl.u32 683565275, %v3802
    %v3804 = vshll.u32 683565275, %v3801
    %v3805 = vshrl.u32 2475754826, %v3802
    %v3806 = vor.u32 %v3804, %v3805
    %v3807 = vshll.u32 2475754826, %v3801
    %v3808 = vshrl.u32 2131351028, %v3802
    %v3809 = vor.u32 %v3807, %v3808
    %v3810 = vshll.u32 2131351028, %v3801
    %v3811 = vshrl.u32 2102212464, %v3802
    %v3812 = vor.u32 %v3810, %v3811
    %v3813 = vshll.u32 2102212464, %v3801
    %v3814 = vshrl.u32 920167782, %v3802
    %v3815 = vor.u32 %v3813, %v3814
    %v3816 = vshll.u32 920167782, %v3801
    %v3817 = vshrl.u32 1326507024, %v3802
    %v3818 = vor.u32 %v3816, %v3817
    %vm3819 = vcmp.lt.s32.totalorder %v3800, 1
    %vm3820 = vcmp.lt.s32.totalorder %v3800, 2
    %vm3821 = vcmp.lt.s32.totalorder %v3800, 3
    %vm3822 = vcmp.lt.s32.totalorder %v3800, 4
    %v3823 = vsel %vm3819, %v3803, %v3806
    %v3824 = vsel %vm3822, %v3812, 2102212464
    %v3825 = vsel %vm3821, %v3809, %v3824
    %v3826 = vsel %vm3820, %v3823, %v3825
    %v3827 = vsel %vm3819, %v3806, %v3809
    %v3828 = vsel %vm3822, %v3815, 920167782
    %v3829 = vsel %vm3821, %v3812, %v3828
    %v3830 = vsel %vm3820, %v3827, %v3829
    %v3831 = vsel %vm3819, %v3809, %v3812
    %v3832 = vsel %vm3822, %v3818, 1326507024
    %v3833 = vsel %vm3821, %v3815, %v3832
    %v3834 = vsel %vm3820, %v3831, %v3833
    %v3835 = vshll.u32 %v3795, 8
    %v3836 = vmul.u32.u64.compose %v3835, %v3834
    %v3837 = vextract.low.u32 %v3836
    %v3838 = vextract.high.u32 %v3836
    %v3839 = vmul.u32.u64.compose %v3835, %v3830
    %v3840 = vextract.low.u32 %v3839
    %v3841 = vextract.high.u32 %v3839
    %v3842 = vmul.u32 %v3835, %v3826
    %v3843 = vadd.s32 %v3838, %v3840
    %vm3844 = vc.u32 %v3838, %v3840
    %v3845 = vadd.s32 %v3841, 1
    %v3846 = vsel %vm3844, %v3845, %v3841
    %v3847 = vadd.s32 %v3842, %v3846
    %v3848 = vadd.s32 %v3847, 536870912
    %v3849 = vshrl.u32 %v3848, 30
    %v3850 = vshll.u32 %v3849, 30
    %v3851 = vsub.s32 %v3847, %v3850
    %vm3852 = vcmp.lt.s32.totalorder %v3851, 0
    %v3853 = vsub.s32 0, %v3851
    %v3854 = vsel %vm3852, %v3853, %v3851
    %v3855 = vclz %v3854
    %v3856 = vsub.s32 %v3855, 2
    %vm3857 = vcmp.gt.s32.totalorder 0, %v3856
    %v3858 = vsel %vm3857, 0, %v3856
    %v3859 = vsub.s32 32, %v3858
    %v3860 = vshll.u32 %v3851, %v3858
    %v3861 = vshrl.u32 %v3843, %v3859
    %v3862 = vor.u32 %v3860, %v3861
    %v3863 = vsub.s32 4294967266, %v3858
    %v3864 = vadd.s32 %v3863, 127
    %v3865 = vshll.u32 %v3864, 23
    %v3866 = vor.u32 4788187, %v3865
    %v3867 = vand.u32 2147483647, %v3866
    %v3869 = vcvt.s32.f32 %v3862
    %v3870 = vmul.f32 %v3869, %v3867
    %v3871 = vxor.u32 %v3870, 2147483648
    %v3872 = vsel %vm3789, %v3871, %v3870
    %v3873 = vsub.s32 4, %v3849
    %v3874 = vsel %vm3789, %v3873, %v3849
    %v3875 = vsel %vm3788, %v768, %v3872
    %v3876 = vsel %vm3788, 0, %v3874
    %v3877 = vcosq.f32.pop %v3875
    %v3878 = vsinq.f32.pop %v3875
    %vm3879 = vweird.f32 %v768
    %v3880 = vadd.s32 %v3876, 3
    %v3881 = vand.u32 %v3880, 3
    %vm3882 = vcmp.lt.s32.totalorder %v3881, 2
    %vm3883 = vcmp.eq.s32.totalorder %v3881, 0
    %v3884 = vxor.u32 %v3878, 2147483648
    %v3885 = vsel %vm3883, %v3877, %v3884
    %vm3886 = vcmp.eq.s32.totalorder %v3881, 2
    %v3887 = vxor.u32 %v3877, 2147483648
    %v3888 = vsel %vm3886, %v3887, %v3878
    %v3889 = vsel %vm3882, %v3885, %v3888
    %v3890 = vsel %vm3879, nan, %v3889
    %v3891 = vand.u32 2147483647, %v769
    %vm3892 = vcmp.le.f32.partialorder %v3891, 0.7853982
    %vm3893 = vcmp.lt.s32.totalorder %v769, 0
    %v3894 = vand.u32 %v769, 2139095040
    %v3895 = vshrl.u32 %v3894, 23
    %v3896 = vsub.s32 %v3895, 127
    %v3897 = vand.u32 2147483647, %v769
    %v3898 = vand.u32 %v3897, 8388607
    %v3899 = vor.u32 %v3898, 8388608
    %v3900 = vsub.s32 0, %v3899
    %v3901 = vadd.s32 %v3896, 1
    %vm3902 = vcmp.gt.s32.totalorder %v3901, 0
    %v3903 = vsel %vm3902, %v3901, 0
    %v3904 = vshrl.u32 %v3903, 5
    %v3905 = vand.u32 %v3903, 31
    %v3906 = vsub.s32 32, %v3905
    %v3907 = vshrl.u32 683565275, %v3906
    %v3908 = vshll.u32 683565275, %v3905
    %v3909 = vshrl.u32 2475754826, %v3906
    %v3910 = vor.u32 %v3908, %v3909
    %v3911 = vshll.u32 2475754826, %v3905
    %v3912 = vshrl.u32 2131351028, %v3906
    %v3913 = vor.u32 %v3911, %v3912
    %v3914 = vshll.u32 2131351028, %v3905
    %v3915 = vshrl.u32 2102212464, %v3906
    %v3916 = vor.u32 %v3914, %v3915
    %v3917 = vshll.u32 2102212464, %v3905
    %v3918 = vshrl.u32 920167782, %v3906
    %v3919 = vor.u32 %v3917, %v3918
    %v3920 = vshll.u32 920167782, %v3905
    %v3921 = vshrl.u32 1326507024, %v3906
    %v3922 = vor.u32 %v3920, %v3921
    %vm3923 = vcmp.lt.s32.totalorder %v3904, 1
    %vm3924 = vcmp.lt.s32.totalorder %v3904, 2
    %vm3925 = vcmp.lt.s32.totalorder %v3904, 3
    %vm3926 = vcmp.lt.s32.totalorder %v3904, 4
    %v3927 = vsel %vm3923, %v3907, %v3910
    %v3928 = vsel %vm3926, %v3916, 2102212464
    %v3929 = vsel %vm3925, %v3913, %v3928
    %v3930 = vsel %vm3924, %v3927, %v3929
    %v3931 = vsel %vm3923, %v3910, %v3913
    %v3932 = vsel %vm3926, %v3919, 920167782
    %v3933 = vsel %vm3925, %v3916, %v3932
    %v3934 = vsel %vm3924, %v3931, %v3933
    %v3935 = vsel %vm3923, %v3913, %v3916
    %v3936 = vsel %vm3926, %v3922, 1326507024
    %v3937 = vsel %vm3925, %v3919, %v3936
    %v3938 = vsel %vm3924, %v3935, %v3937
    %v3939 = vshll.u32 %v3899, 8
    %v3940 = vmul.u32.u64.compose %v3939, %v3938
    %v3941 = vextract.low.u32 %v3940
    %v3942 = vextract.high.u32 %v3940
    %v3943 = vmul.u32.u64.compose %v3939, %v3934
    %v3944 = vextract.low.u32 %v3943
    %v3945 = vextract.high.u32 %v3943
    %v3946 = vmul.u32 %v3939, %v3930
    %v3947 = vadd.s32 %v3942, %v3944
    %vm3948 = vc.u32 %v3942, %v3944
    %v3949 = vadd.s32 %v3945, 1
    %v3950 = vsel %vm3948, %v3949, %v3945
    %v3951 = vadd.s32 %v3946, %v3950
    %v3952 = vadd.s32 %v3951, 536870912
    %v3953 = vshrl.u32 %v3952, 30
    %v3954 = vshll.u32 %v3953, 30
    %v3955 = vsub.s32 %v3951, %v3954
    %vm3956 = vcmp.lt.s32.totalorder %v3955, 0
    %v3957 = vsub.s32 0, %v3955
    %v3958 = vsel %vm3956, %v3957, %v3955
    %v3959 = vclz %v3958
    %v3960 = vsub.s32 %v3959, 2
    %vm3961 = vcmp.gt.s32.totalorder 0, %v3960
    %v3962 = vsel %vm3961, 0, %v3960
    %v3963 = vsub.s32 32, %v3962
    %v3964 = vshll.u32 %v3955, %v3962
    %v3965 = vshrl.u32 %v3947, %v3963
    %v3966 = vor.u32 %v3964, %v3965
    %v3967 = vsub.s32 4294967266, %v3962
    %v3968 = vadd.s32 %v3967, 127
    %v3969 = vshll.u32 %v3968, 23
    %v3970 = vor.u32 4788187, %v3969
    %v3971 = vand.u32 2147483647, %v3970
    %v3973 = vcvt.s32.f32 %v3966
    %v3974 = vmul.f32 %v3973, %v3971
    %v3975 = vxor.u32 %v3974, 2147483648
    %v3976 = vsel %vm3893, %v3975, %v3974
    %v3977 = vsub.s32 4, %v3953
    %v3978 = vsel %vm3893, %v3977, %v3953
    %v3979 = vsel %vm3892, %v769, %v3976
    %v3980 = vsel %vm3892, 0, %v3978
    %v3981 = vcosq.f32.pop %v3979
    %v3982 = vsinq.f32.pop %v3979
    %vm3983 = vweird.f32 %v769
    %v3984 = vadd.s32 %v3980, 3
    %v3985 = vand.u32 %v3984, 3
    %vm3986 = vcmp.lt.s32.totalorder %v3985, 2
    %vm3987 = vcmp.eq.s32.totalorder %v3985, 0
    %v3988 = vxor.u32 %v3982, 2147483648
    %v3989 = vsel %vm3987, %v3981, %v3988
    %vm3990 = vcmp.eq.s32.totalorder %v3985, 2
    %v3991 = vxor.u32 %v3981, 2147483648
    %v3992 = vsel %vm3990, %v3991, %v3982
    %v3993 = vsel %vm3986, %v3989, %v3992
    %v3994 = vsel %vm3983, nan, %v3993
    %v3995 = vand.u32 2147483647, %v770
    %vm3996 = vcmp.le.f32.partialorder %v3995, 0.7853982
    %vm3997 = vcmp.lt.s32.totalorder %v770, 0
    %v3998 = vand.u32 %v770, 2139095040
    %v3999 = vshrl.u32 %v3998, 23
    %v4000 = vsub.s32 %v3999, 127
    %v4001 = vand.u32 2147483647, %v770
    %v4002 = vand.u32 %v4001, 8388607
    %v4003 = vor.u32 %v4002, 8388608
    %v4004 = vsub.s32 0, %v4003
    %v4005 = vadd.s32 %v4000, 1
    %vm4006 = vcmp.gt.s32.totalorder %v4005, 0
    %v4007 = vsel %vm4006, %v4005, 0
    %v4008 = vshrl.u32 %v4007, 5
    %v4009 = vand.u32 %v4007, 31
    %v4010 = vsub.s32 32, %v4009
    %v4011 = vshrl.u32 683565275, %v4010
    %v4012 = vshll.u32 683565275, %v4009
    %v4013 = vshrl.u32 2475754826, %v4010
    %v4014 = vor.u32 %v4012, %v4013
    %v4015 = vshll.u32 2475754826, %v4009
    %v4016 = vshrl.u32 2131351028, %v4010
    %v4017 = vor.u32 %v4015, %v4016
    %v4018 = vshll.u32 2131351028, %v4009
    %v4019 = vshrl.u32 2102212464, %v4010
    %v4020 = vor.u32 %v4018, %v4019
    %v4021 = vshll.u32 2102212464, %v4009
    %v4022 = vshrl.u32 920167782, %v4010
    %v4023 = vor.u32 %v4021, %v4022
    %v4024 = vshll.u32 920167782, %v4009
    %v4025 = vshrl.u32 1326507024, %v4010
    %v4026 = vor.u32 %v4024, %v4025
    %vm4027 = vcmp.lt.s32.totalorder %v4008, 1
    %vm4028 = vcmp.lt.s32.totalorder %v4008, 2
    %vm4029 = vcmp.lt.s32.totalorder %v4008, 3
    %vm4030 = vcmp.lt.s32.totalorder %v4008, 4
    %v4031 = vsel %vm4027, %v4011, %v4014
    %v4032 = vsel %vm4030, %v4020, 2102212464
    %v4033 = vsel %vm4029, %v4017, %v4032
    %v4034 = vsel %vm4028, %v4031, %v4033
    %v4035 = vsel %vm4027, %v4014, %v4017
    %v4036 = vsel %vm4030, %v4023, 920167782
    %v4037 = vsel %vm4029, %v4020, %v4036
    %v4038 = vsel %vm4028, %v4035, %v4037
    %v4039 = vsel %vm4027, %v4017, %v4020
    %v4040 = vsel %vm4030, %v4026, 1326507024
    %v4041 = vsel %vm4029, %v4023, %v4040
    %v4042 = vsel %vm4028, %v4039, %v4041
    %v4043 = vshll.u32 %v4003, 8
    %v4044 = vmul.u32.u64.compose %v4043, %v4042
    %v4045 = vextract.low.u32 %v4044
    %v4046 = vextract.high.u32 %v4044
    %v4047 = vmul.u32.u64.compose %v4043, %v4038
    %v4048 = vextract.low.u32 %v4047
    %v4049 = vextract.high.u32 %v4047
    %v4050 = vmul.u32 %v4043, %v4034
    %v4051 = vadd.s32 %v4046, %v4048
    %vm4052 = vc.u32 %v4046, %v4048
    %v4053 = vadd.s32 %v4049, 1
    %v4054 = vsel %vm4052, %v4053, %v4049
    %v4055 = vadd.s32 %v4050, %v4054
    %v4056 = vadd.s32 %v4055, 536870912
    %v4057 = vshrl.u32 %v4056, 30
    %v4058 = vshll.u32 %v4057, 30
    %v4059 = vsub.s32 %v4055, %v4058
    %vm4060 = vcmp.lt.s32.totalorder %v4059, 0
    %v4061 = vsub.s32 0, %v4059
    %v4062 = vsel %vm4060, %v4061, %v4059
    %v4063 = vclz %v4062
    %v4064 = vsub.s32 %v4063, 2
    %vm4065 = vcmp.gt.s32.totalorder 0, %v4064
    %v4066 = vsel %vm4065, 0, %v4064
    %v4067 = vsub.s32 32, %v4066
    %v4068 = vshll.u32 %v4059, %v4066
    %v4069 = vshrl.u32 %v4051, %v4067
    %v4070 = vor.u32 %v4068, %v4069
    %v4071 = vsub.s32 4294967266, %v4066
    %v4072 = vadd.s32 %v4071, 127
    %v4073 = vshll.u32 %v4072, 23
    %v4074 = vor.u32 4788187, %v4073
    %v4075 = vand.u32 2147483647, %v4074
    %v4077 = vcvt.s32.f32 %v4070
    %v4078 = vmul.f32 %v4077, %v4075
    %v4079 = vxor.u32 %v4078, 2147483648
    %v4080 = vsel %vm3997, %v4079, %v4078
    %v4081 = vsub.s32 4, %v4057
    %v4082 = vsel %vm3997, %v4081, %v4057
    %v4083 = vsel %vm3996, %v770, %v4080
    %v4084 = vsel %vm3996, 0, %v4082
    %v4085 = vcosq.f32.pop %v4083
    %v4086 = vsinq.f32.pop %v4083
    %vm4087 = vweird.f32 %v770
    %v4088 = vadd.s32 %v4084, 3
    %v4089 = vand.u32 %v4088, 3
    %vm4090 = vcmp.lt.s32.totalorder %v4089, 2
    %vm4091 = vcmp.eq.s32.totalorder %v4089, 0
    %v4092 = vxor.u32 %v4086, 2147483648
    %v4093 = vsel %vm4091, %v4085, %v4092
    %vm4094 = vcmp.eq.s32.totalorder %v4089, 2
    %v4095 = vxor.u32 %v4085, 2147483648
    %v4096 = vsel %vm4094, %v4095, %v4086
    %v4097 = vsel %vm4090, %v4093, %v4096
    %v4098 = vsel %vm4087, nan, %v4097
    %4099 = vst [vmem:[#allocation7] sm:$0xff] %v874
    %4100 = vst [vmem:[#allocation7 + $0x8] sm:$0xff] %v978
    %4101 = vst [vmem:[#allocation7 + $0x10] sm:$0xff] %v1082
    %4102 = vst [vmem:[#allocation7 + $0x18] sm:$0xff] %v1186
    %4103 = vst [vmem:[#allocation7 + $0x20] sm:$0xff] %v1290
    %4104 = vst [vmem:[#allocation7 + $0x28] sm:$0xff] %v1394
    %4105 = vst [vmem:[#allocation7 + $0x30] sm:$0xff] %v1498
    %4106 = vst [vmem:[#allocation7 + $0x38] sm:$0xff] %v1602
    %4107 = vst [vmem:[#allocation7 + $0x40] sm:$0xff] %v1706
    %4108 = vst [vmem:[#allocation7 + $0x48] sm:$0xff] %v1810
    %4109 = vst [vmem:[#allocation7 + $0x50] sm:$0xff] %v1914
    %4110 = vst [vmem:[#allocation7 + $0x58] sm:$0xff] %v2018
    %4111 = vst [vmem:[#allocation7 + $0x60] sm:$0xff] %v2122
    %4112 = vst [vmem:[#allocation7 + $0x68] sm:$0xff] %v2226
    %4113 = vst [vmem:[#allocation7 + $0x70] sm:$0xff] %v2330
    %4114 = vst [vmem:[#allocation7 + $0x78] sm:$0xff] %v2434
    %4115 = vst [vmem:[#allocation7 + $0x100] sm:$0xff] %v2538
    %4116 = vst [vmem:[#allocation7 + $0x108] sm:$0xff] %v2642
    %4117 = vst [vmem:[#allocation7 + $0x110] sm:$0xff] %v2746
    %4118 = vst [vmem:[#allocation7 + $0x118] sm:$0xff] %v2850
    %4119 = vst [vmem:[#allocation7 + $0x120] sm:$0xff] %v2954
    %4120 = vst [vmem:[#allocation7 + $0x128] sm:$0xff] %v3058
    %4121 = vst [vmem:[#allocation7 + $0x130] sm:$0xff] %v3162
    %4122 = vst [vmem:[#allocation7 + $0x138] sm:$0xff] %v3266
    %4123 = vst [vmem:[#allocation7 + $0x140] sm:$0xff] %v3370
    %4124 = vst [vmem:[#allocation7 + $0x148] sm:$0xff] %v3474
    %4125 = vst [vmem:[#allocation7 + $0x150] sm:$0xff] %v3578
    %4126 = vst [vmem:[#allocation7 + $0x158] sm:$0xff] %v3682
    %4127 = vst [vmem:[#allocation7 + $0x160] sm:$0xff] %v3786
    %4128 = vst [vmem:[#allocation7 + $0x168] sm:$0xff] %v3890
    %4129 = vst [vmem:[#allocation7 + $0x170] sm:$0xff] %v3994
    %4130 = vst [vmem:[#allocation7 + $0x178] sm:$0xff] %v4098
    %v4131 = vlaneseq
    %v4132 = vshrl.u32 %v4131, 7
    %v4133 = vsub.s32 0, %v4132
    %v4134 = vrot.slane %v599, %v4133
    %v4135 = vlaneseq
    %v4136 = vshrl.u32 %v4135, 7
    %v4137 = vsub.s32 1, %v4136
    %v4138 = vrot.slane %v599, %v4137
    %v4139 = vlaneseq
    %v4140 = vshrl.u32 %v4139, 7
    %v4141 = vsub.s32 0, %v4140
    %v4142 = vrot.slane %v606, %v4141
    %v4143 = vlaneseq
    %v4144 = vshrl.u32 %v4143, 7
    %v4145 = vsub.s32 1, %v4144
    %v4146 = vrot.slane %v606, %v4145
    %v4151 = vmul.f32 %v4134, %v630
    %v4152 = vmul.f32 %v4138, %v630
    %v4153 = vmul.f32 %v4134, %v635
    %v4154 = vmul.f32 %v4138, %v635
    %v4155 = vmul.f32 %v4134, %v640
    %v4156 = vmul.f32 %v4138, %v640
    %v4157 = vmul.f32 %v4134, %v645
    %v4158 = vmul.f32 %v4138, %v645
    %v4159 = vmul.f32 %v4134, %v650
    %v4160 = vmul.f32 %v4138, %v650
    %v4161 = vmul.f32 %v4134, %v655
    %v4162 = vmul.f32 %v4138, %v655
    %v4163 = vmul.f32 %v4134, %v660
    %v4164 = vmul.f32 %v4138, %v660
    %v4165 = vmul.f32 %v4134, %v665
    %v4166 = vmul.f32 %v4138, %v665
    %v4167 = vmul.f32 %v4142, %v630
    %v4168 = vmul.f32 %v4146, %v630
    %v4169 = vmul.f32 %v4142, %v635
    %v4170 = vmul.f32 %v4146, %v635
    %v4171 = vmul.f32 %v4142, %v640
    %v4172 = vmul.f32 %v4146, %v640
    %v4173 = vmul.f32 %v4142, %v645
    %v4174 = vmul.f32 %v4146, %v645
    %v4175 = vmul.f32 %v4142, %v650
    %v4176 = vmul.f32 %v4146, %v650
    %v4177 = vmul.f32 %v4142, %v655
    %v4178 = vmul.f32 %v4146, %v655
    %v4179 = vmul.f32 %v4142, %v660
    %v4180 = vmul.f32 %v4146, %v660
    %v4181 = vmul.f32 %v4142, %v665
    %v4182 = vmul.f32 %v4146, %v665
    %v4183 = vadd.f32 %v4151, %v702
    %v4184 = vadd.f32 %v4152, %v702
    %v4185 = vadd.f32 %v4153, %v707
    %v4186 = vadd.f32 %v4154, %v707
    %v4187 = vadd.f32 %v4155, %v712
    %v4188 = vadd.f32 %v4156, %v712
    %v4189 = vadd.f32 %v4157, %v717
    %v4190 = vadd.f32 %v4158, %v717
    %v4191 = vadd.f32 %v4159, %v722
    %v4192 = vadd.f32 %v4160, %v722
    %v4193 = vadd.f32 %v4161, %v727
    %v4194 = vadd.f32 %v4162, %v727
    %v4195 = vadd.f32 %v4163, %v732
    %v4196 = vadd.f32 %v4164, %v732
    %v4197 = vadd.f32 %v4165, %v737
    %v4198 = vadd.f32 %v4166, %v737
    %v4199 = vadd.f32 %v4167, %v702
    %v4200 = vadd.f32 %v4168, %v702
    %v4201 = vadd.f32 %v4169, %v707
    %v4202 = vadd.f32 %v4170, %v707
    %v4203 = vadd.f32 %v4171, %v712
    %v4204 = vadd.f32 %v4172, %v712
    %v4205 = vadd.f32 %v4173, %v717
    %v4206 = vadd.f32 %v4174, %v717
    %v4207 = vadd.f32 %v4175, %v722
    %v4208 = vadd.f32 %v4176, %v722
    %v4209 = vadd.f32 %v4177, %v727
    %v4210 = vadd.f32 %v4178, %v727
    %v4211 = vadd.f32 %v4179, %v732
    %v4212 = vadd.f32 %v4180, %v732
    %v4213 = vadd.f32 %v4181, %v737
    %v4214 = vadd.f32 %v4182, %v737
    %v4215 = vand.u32 2147483647, %v4183
    %vm4216 = vcmp.le.f32.partialorder %v4215, 0.7853982
    %vm4217 = vcmp.lt.s32.totalorder %v4183, 0
    %v4218 = vand.u32 %v4183, 2139095040
    %v4219 = vshrl.u32 %v4218, 23
    %v4220 = vsub.s32 %v4219, 127
    %v4221 = vand.u32 2147483647, %v4183
    %v4222 = vand.u32 %v4221, 8388607
    %v4223 = vor.u32 %v4222, 8388608
    %v4224 = vsub.s32 0, %v4223
    %v4225 = vadd.s32 %v4220, 1
    %vm4226 = vcmp.gt.s32.totalorder %v4225, 0
    %v4227 = vsel %vm4226, %v4225, 0
    %v4228 = vshrl.u32 %v4227, 5
    %v4229 = vand.u32 %v4227, 31
    %v4230 = vsub.s32 32, %v4229
    %v4231 = vshrl.u32 683565275, %v4230
    %v4232 = vshll.u32 683565275, %v4229
    %v4233 = vshrl.u32 2475754826, %v4230
    %v4234 = vor.u32 %v4232, %v4233
    %v4235 = vshll.u32 2475754826, %v4229
    %v4236 = vshrl.u32 2131351028, %v4230
    %v4237 = vor.u32 %v4235, %v4236
    %v4238 = vshll.u32 2131351028, %v4229
    %v4239 = vshrl.u32 2102212464, %v4230
    %v4240 = vor.u32 %v4238, %v4239
    %v4241 = vshll.u32 2102212464, %v4229
    %v4242 = vshrl.u32 920167782, %v4230
    %v4243 = vor.u32 %v4241, %v4242
    %v4244 = vshll.u32 920167782, %v4229
    %v4245 = vshrl.u32 1326507024, %v4230
    %v4246 = vor.u32 %v4244, %v4245
    %vm4247 = vcmp.lt.s32.totalorder %v4228, 1
    %vm4248 = vcmp.lt.s32.totalorder %v4228, 2
    %vm4249 = vcmp.lt.s32.totalorder %v4228, 3
    %vm4250 = vcmp.lt.s32.totalorder %v4228, 4
    %v4251 = vsel %vm4247, %v4231, %v4234
    %v4252 = vsel %vm4250, %v4240, 2102212464
    %v4253 = vsel %vm4249, %v4237, %v4252
    %v4254 = vsel %vm4248, %v4251, %v4253
    %v4255 = vsel %vm4247, %v4234, %v4237
    %v4256 = vsel %vm4250, %v4243, 920167782
    %v4257 = vsel %vm4249, %v4240, %v4256
    %v4258 = vsel %vm4248, %v4255, %v4257
    %v4259 = vsel %vm4247, %v4237, %v4240
    %v4260 = vsel %vm4250, %v4246, 1326507024
    %v4261 = vsel %vm4249, %v4243, %v4260
    %v4262 = vsel %vm4248, %v4259, %v4261
    %v4263 = vshll.u32 %v4223, 8
    %v4264 = vmul.u32.u64.compose %v4263, %v4262
    %v4265 = vextract.low.u32 %v4264
    %v4266 = vextract.high.u32 %v4264
    %v4267 = vmul.u32.u64.compose %v4263, %v4258
    %v4268 = vextract.low.u32 %v4267
    %v4269 = vextract.high.u32 %v4267
    %v4270 = vmul.u32 %v4263, %v4254
    %v4271 = vadd.s32 %v4266, %v4268
    %vm4272 = vc.u32 %v4266, %v4268
    %v4273 = vadd.s32 %v4269, 1
    %v4274 = vsel %vm4272, %v4273, %v4269
    %v4275 = vadd.s32 %v4270, %v4274
    %v4276 = vadd.s32 %v4275, 536870912
    %v4277 = vshrl.u32 %v4276, 30
    %v4278 = vshll.u32 %v4277, 30
    %v4279 = vsub.s32 %v4275, %v4278
    %vm4280 = vcmp.lt.s32.totalorder %v4279, 0
    %v4281 = vsub.s32 0, %v4279
    %v4282 = vsel %vm4280, %v4281, %v4279
    %v4283 = vclz %v4282
    %v4284 = vsub.s32 %v4283, 2
    %vm4285 = vcmp.gt.s32.totalorder 0, %v4284
    %v4286 = vsel %vm4285, 0, %v4284
    %v4287 = vsub.s32 32, %v4286
    %v4288 = vshll.u32 %v4279, %v4286
    %v4289 = vshrl.u32 %v4271, %v4287
    %v4290 = vor.u32 %v4288, %v4289
    %v4291 = vsub.s32 4294967266, %v4286
    %v4292 = vadd.s32 %v4291, 127
    %v4293 = vshll.u32 %v4292, 23
    %v4294 = vor.u32 4788187, %v4293
    %v4295 = vand.u32 2147483647, %v4294
    %v4297 = vcvt.s32.f32 %v4290
    %v4298 = vmul.f32 %v4297, %v4295
    %v4299 = vxor.u32 %v4298, 2147483648
    %v4300 = vsel %vm4217, %v4299, %v4298
    %v4301 = vsub.s32 4, %v4277
    %v4302 = vsel %vm4217, %v4301, %v4277
    %v4303 = vsel %vm4216, %v4183, %v4300
    %v4304 = vsel %vm4216, 0, %v4302
    %v4305 = vcosq.f32.pop %v4303
    %v4306 = vsinq.f32.pop %v4303
    %vm4307 = vweird.f32 %v4183
    %v4308 = vadd.s32 %v4304, 3
    %v4309 = vand.u32 %v4308, 3
    %vm4310 = vcmp.lt.s32.totalorder %v4309, 2
    %vm4311 = vcmp.eq.s32.totalorder %v4309, 0
    %v4312 = vxor.u32 %v4306, 2147483648
    %v4313 = vsel %vm4311, %v4305, %v4312
    %vm4314 = vcmp.eq.s32.totalorder %v4309, 2
    %v4315 = vxor.u32 %v4305, 2147483648
    %v4316 = vsel %vm4314, %v4315, %v4306
    %v4317 = vsel %vm4310, %v4313, %v4316
    %v4318 = vsel %vm4307, nan, %v4317
    %v4319 = vand.u32 2147483647, %v4184
    %vm4320 = vcmp.le.f32.partialorder %v4319, 0.7853982
    %vm4321 = vcmp.lt.s32.totalorder %v4184, 0
    %v4322 = vand.u32 %v4184, 2139095040
    %v4323 = vshrl.u32 %v4322, 23
    %v4324 = vsub.s32 %v4323, 127
    %v4325 = vand.u32 2147483647, %v4184
    %v4326 = vand.u32 %v4325, 8388607
    %v4327 = vor.u32 %v4326, 8388608
    %v4328 = vsub.s32 0, %v4327
    %v4329 = vadd.s32 %v4324, 1
    %vm4330 = vcmp.gt.s32.totalorder %v4329, 0
    %v4331 = vsel %vm4330, %v4329, 0
    %v4332 = vshrl.u32 %v4331, 5
    %v4333 = vand.u32 %v4331, 31
    %v4334 = vsub.s32 32, %v4333
    %v4335 = vshrl.u32 683565275, %v4334
    %v4336 = vshll.u32 683565275, %v4333
    %v4337 = vshrl.u32 2475754826, %v4334
    %v4338 = vor.u32 %v4336, %v4337
    %v4339 = vshll.u32 2475754826, %v4333
    %v4340 = vshrl.u32 2131351028, %v4334
    %v4341 = vor.u32 %v4339, %v4340
    %v4342 = vshll.u32 2131351028, %v4333
    %v4343 = vshrl.u32 2102212464, %v4334
    %v4344 = vor.u32 %v4342, %v4343
    %v4345 = vshll.u32 2102212464, %v4333
    %v4346 = vshrl.u32 920167782, %v4334
    %v4347 = vor.u32 %v4345, %v4346
    %v4348 = vshll.u32 920167782, %v4333
    %v4349 = vshrl.u32 1326507024, %v4334
    %v4350 = vor.u32 %v4348, %v4349
    %vm4351 = vcmp.lt.s32.totalorder %v4332, 1
    %vm4352 = vcmp.lt.s32.totalorder %v4332, 2
    %vm4353 = vcmp.lt.s32.totalorder %v4332, 3
    %vm4354 = vcmp.lt.s32.totalorder %v4332, 4
    %v4355 = vsel %vm4351, %v4335, %v4338
    %v4356 = vsel %vm4354, %v4344, 2102212464
    %v4357 = vsel %vm4353, %v4341, %v4356
    %v4358 = vsel %vm4352, %v4355, %v4357
    %v4359 = vsel %vm4351, %v4338, %v4341
    %v4360 = vsel %vm4354, %v4347, 920167782
    %v4361 = vsel %vm4353, %v4344, %v4360
    %v4362 = vsel %vm4352, %v4359, %v4361
    %v4363 = vsel %vm4351, %v4341, %v4344
    %v4364 = vsel %vm4354, %v4350, 1326507024
    %v4365 = vsel %vm4353, %v4347, %v4364
    %v4366 = vsel %vm4352, %v4363, %v4365
    %v4367 = vshll.u32 %v4327, 8
    %v4368 = vmul.u32.u64.compose %v4367, %v4366
    %v4369 = vextract.low.u32 %v4368
    %v4370 = vextract.high.u32 %v4368
    %v4371 = vmul.u32.u64.compose %v4367, %v4362
    %v4372 = vextract.low.u32 %v4371
    %v4373 = vextract.high.u32 %v4371
    %v4374 = vmul.u32 %v4367, %v4358
    %v4375 = vadd.s32 %v4370, %v4372
    %vm4376 = vc.u32 %v4370, %v4372
    %v4377 = vadd.s32 %v4373, 1
    %v4378 = vsel %vm4376, %v4377, %v4373
    %v4379 = vadd.s32 %v4374, %v4378
    %v4380 = vadd.s32 %v4379, 536870912
    %v4381 = vshrl.u32 %v4380, 30
    %v4382 = vshll.u32 %v4381, 30
    %v4383 = vsub.s32 %v4379, %v4382
    %vm4384 = vcmp.lt.s32.totalorder %v4383, 0
    %v4385 = vsub.s32 0, %v4383
    %v4386 = vsel %vm4384, %v4385, %v4383
    %v4387 = vclz %v4386
    %v4388 = vsub.s32 %v4387, 2
    %vm4389 = vcmp.gt.s32.totalorder 0, %v4388
    %v4390 = vsel %vm4389, 0, %v4388
    %v4391 = vsub.s32 32, %v4390
    %v4392 = vshll.u32 %v4383, %v4390
    %v4393 = vshrl.u32 %v4375, %v4391
    %v4394 = vor.u32 %v4392, %v4393
    %v4395 = vsub.s32 4294967266, %v4390
    %v4396 = vadd.s32 %v4395, 127
    %v4397 = vshll.u32 %v4396, 23
    %v4398 = vor.u32 4788187, %v4397
    %v4399 = vand.u32 2147483647, %v4398
    %v4401 = vcvt.s32.f32 %v4394
    %v4402 = vmul.f32 %v4401, %v4399
    %v4403 = vxor.u32 %v4402, 2147483648
    %v4404 = vsel %vm4321, %v4403, %v4402
    %v4405 = vsub.s32 4, %v4381
    %v4406 = vsel %vm4321, %v4405, %v4381
    %v4407 = vsel %vm4320, %v4184, %v4404
    %v4408 = vsel %vm4320, 0, %v4406
    %v4409 = vcosq.f32.pop %v4407
    %v4410 = vsinq.f32.pop %v4407
    %vm4411 = vweird.f32 %v4184
    %v4412 = vadd.s32 %v4408, 3
    %v4413 = vand.u32 %v4412, 3
    %vm4414 = vcmp.lt.s32.totalorder %v4413, 2
    %vm4415 = vcmp.eq.s32.totalorder %v4413, 0
    %v4416 = vxor.u32 %v4410, 2147483648
    %v4417 = vsel %vm4415, %v4409, %v4416
    %vm4418 = vcmp.eq.s32.totalorder %v4413, 2
    %v4419 = vxor.u32 %v4409, 2147483648
    %v4420 = vsel %vm4418, %v4419, %v4410
    %v4421 = vsel %vm4414, %v4417, %v4420
    %v4422 = vsel %vm4411, nan, %v4421
    %v4423 = vand.u32 2147483647, %v4185
    %vm4424 = vcmp.le.f32.partialorder %v4423, 0.7853982
    %vm4425 = vcmp.lt.s32.totalorder %v4185, 0
    %v4426 = vand.u32 %v4185, 2139095040
    %v4427 = vshrl.u32 %v4426, 23
    %v4428 = vsub.s32 %v4427, 127
    %v4429 = vand.u32 2147483647, %v4185
    %v4430 = vand.u32 %v4429, 8388607
    %v4431 = vor.u32 %v4430, 8388608
    %v4432 = vsub.s32 0, %v4431
    %v4433 = vadd.s32 %v4428, 1
    %vm4434 = vcmp.gt.s32.totalorder %v4433, 0
    %v4435 = vsel %vm4434, %v4433, 0
    %v4436 = vshrl.u32 %v4435, 5
    %v4437 = vand.u32 %v4435, 31
    %v4438 = vsub.s32 32, %v4437
    %v4439 = vshrl.u32 683565275, %v4438
    %v4440 = vshll.u32 683565275, %v4437
    %v4441 = vshrl.u32 2475754826, %v4438
    %v4442 = vor.u32 %v4440, %v4441
    %v4443 = vshll.u32 2475754826, %v4437
    %v4444 = vshrl.u32 2131351028, %v4438
    %v4445 = vor.u32 %v4443, %v4444
    %v4446 = vshll.u32 2131351028, %v4437
    %v4447 = vshrl.u32 2102212464, %v4438
    %v4448 = vor.u32 %v4446, %v4447
    %v4449 = vshll.u32 2102212464, %v4437
    %v4450 = vshrl.u32 920167782, %v4438
    %v4451 = vor.u32 %v4449, %v4450
    %v4452 = vshll.u32 920167782, %v4437
    %v4453 = vshrl.u32 1326507024, %v4438
    %v4454 = vor.u32 %v4452, %v4453
    %vm4455 = vcmp.lt.s32.totalorder %v4436, 1
    %vm4456 = vcmp.lt.s32.totalorder %v4436, 2
    %vm4457 = vcmp.lt.s32.totalorder %v4436, 3
    %vm4458 = vcmp.lt.s32.totalorder %v4436, 4
    %v4459 = vsel %vm4455, %v4439, %v4442
    %v4460 = vsel %vm4458, %v4448, 2102212464
    %v4461 = vsel %vm4457, %v4445, %v4460
    %v4462 = vsel %vm4456, %v4459, %v4461
    %v4463 = vsel %vm4455, %v4442, %v4445
    %v4464 = vsel %vm4458, %v4451, 920167782
    %v4465 = vsel %vm4457, %v4448, %v4464
    %v4466 = vsel %vm4456, %v4463, %v4465
    %v4467 = vsel %vm4455, %v4445, %v4448
    %v4468 = vsel %vm4458, %v4454, 1326507024
    %v4469 = vsel %vm4457, %v4451, %v4468
    %v4470 = vsel %vm4456, %v4467, %v4469
    %v4471 = vshll.u32 %v4431, 8
    %v4472 = vmul.u32.u64.compose %v4471, %v4470
    %v4473 = vextract.low.u32 %v4472
    %v4474 = vextract.high.u32 %v4472
    %v4475 = vmul.u32.u64.compose %v4471, %v4466
    %v4476 = vextract.low.u32 %v4475
    %v4477 = vextract.high.u32 %v4475
    %v4478 = vmul.u32 %v4471, %v4462
    %v4479 = vadd.s32 %v4474, %v4476
    %vm4480 = vc.u32 %v4474, %v4476
    %v4481 = vadd.s32 %v4477, 1
    %v4482 = vsel %vm4480, %v4481, %v4477
    %v4483 = vadd.s32 %v4478, %v4482
    %v4484 = vadd.s32 %v4483, 536870912
    %v4485 = vshrl.u32 %v4484, 30
    %v4486 = vshll.u32 %v4485, 30
    %v4487 = vsub.s32 %v4483, %v4486
    %vm4488 = vcmp.lt.s32.totalorder %v4487, 0
    %v4489 = vsub.s32 0, %v4487
    %v4490 = vsel %vm4488, %v4489, %v4487
    %v4491 = vclz %v4490
    %v4492 = vsub.s32 %v4491, 2
    %vm4493 = vcmp.gt.s32.totalorder 0, %v4492
    %v4494 = vsel %vm4493, 0, %v4492
    %v4495 = vsub.s32 32, %v4494
    %v4496 = vshll.u32 %v4487, %v4494
    %v4497 = vshrl.u32 %v4479, %v4495
    %v4498 = vor.u32 %v4496, %v4497
    %v4499 = vsub.s32 4294967266, %v4494
    %v4500 = vadd.s32 %v4499, 127
    %v4501 = vshll.u32 %v4500, 23
    %v4502 = vor.u32 4788187, %v4501
    %v4503 = vand.u32 2147483647, %v4502
    %v4505 = vcvt.s32.f32 %v4498
    %v4506 = vmul.f32 %v4505, %v4503
    %v4507 = vxor.u32 %v4506, 2147483648
    %v4508 = vsel %vm4425, %v4507, %v4506
    %v4509 = vsub.s32 4, %v4485
    %v4510 = vsel %vm4425, %v4509, %v4485
    %v4511 = vsel %vm4424, %v4185, %v4508
    %v4512 = vsel %vm4424, 0, %v4510
    %v4513 = vcosq.f32.pop %v4511
    %v4514 = vsinq.f32.pop %v4511
    %vm4515 = vweird.f32 %v4185
    %v4516 = vadd.s32 %v4512, 3
    %v4517 = vand.u32 %v4516, 3
    %vm4518 = vcmp.lt.s32.totalorder %v4517, 2
    %vm4519 = vcmp.eq.s32.totalorder %v4517, 0
    %v4520 = vxor.u32 %v4514, 2147483648
    %v4521 = vsel %vm4519, %v4513, %v4520
    %vm4522 = vcmp.eq.s32.totalorder %v4517, 2
    %v4523 = vxor.u32 %v4513, 2147483648
    %v4524 = vsel %vm4522, %v4523, %v4514
    %v4525 = vsel %vm4518, %v4521, %v4524
    %v4526 = vsel %vm4515, nan, %v4525
    %v4527 = vand.u32 2147483647, %v4186
    %vm4528 = vcmp.le.f32.partialorder %v4527, 0.7853982
    %vm4529 = vcmp.lt.s32.totalorder %v4186, 0
    %v4530 = vand.u32 %v4186, 2139095040
    %v4531 = vshrl.u32 %v4530, 23
    %v4532 = vsub.s32 %v4531, 127
    %v4533 = vand.u32 2147483647, %v4186
    %v4534 = vand.u32 %v4533, 8388607
    %v4535 = vor.u32 %v4534, 8388608
    %v4536 = vsub.s32 0, %v4535
    %v4537 = vadd.s32 %v4532, 1
    %vm4538 = vcmp.gt.s32.totalorder %v4537, 0
    %v4539 = vsel %vm4538, %v4537, 0
    %v4540 = vshrl.u32 %v4539, 5
    %v4541 = vand.u32 %v4539, 31
    %v4542 = vsub.s32 32, %v4541
    %v4543 = vshrl.u32 683565275, %v4542
    %v4544 = vshll.u32 683565275, %v4541
    %v4545 = vshrl.u32 2475754826, %v4542
    %v4546 = vor.u32 %v4544, %v4545
    %v4547 = vshll.u32 2475754826, %v4541
    %v4548 = vshrl.u32 2131351028, %v4542
    %v4549 = vor.u32 %v4547, %v4548
    %v4550 = vshll.u32 2131351028, %v4541
    %v4551 = vshrl.u32 2102212464, %v4542
    %v4552 = vor.u32 %v4550, %v4551
    %v4553 = vshll.u32 2102212464, %v4541
    %v4554 = vshrl.u32 920167782, %v4542
    %v4555 = vor.u32 %v4553, %v4554
    %v4556 = vshll.u32 920167782, %v4541
    %v4557 = vshrl.u32 1326507024, %v4542
    %v4558 = vor.u32 %v4556, %v4557
    %vm4559 = vcmp.lt.s32.totalorder %v4540, 1
    %vm4560 = vcmp.lt.s32.totalorder %v4540, 2
    %vm4561 = vcmp.lt.s32.totalorder %v4540, 3
    %vm4562 = vcmp.lt.s32.totalorder %v4540, 4
    %v4563 = vsel %vm4559, %v4543, %v4546
    %v4564 = vsel %vm4562, %v4552, 2102212464
    %v4565 = vsel %vm4561, %v4549, %v4564
    %v4566 = vsel %vm4560, %v4563, %v4565
    %v4567 = vsel %vm4559, %v4546, %v4549
    %v4568 = vsel %vm4562, %v4555, 920167782
    %v4569 = vsel %vm4561, %v4552, %v4568
    %v4570 = vsel %vm4560, %v4567, %v4569
    %v4571 = vsel %vm4559, %v4549, %v4552
    %v4572 = vsel %vm4562, %v4558, 1326507024
    %v4573 = vsel %vm4561, %v4555, %v4572
    %v4574 = vsel %vm4560, %v4571, %v4573
    %v4575 = vshll.u32 %v4535, 8
    %v4576 = vmul.u32.u64.compose %v4575, %v4574
    %v4577 = vextract.low.u32 %v4576
    %v4578 = vextract.high.u32 %v4576
    %v4579 = vmul.u32.u64.compose %v4575, %v4570
    %v4580 = vextract.low.u32 %v4579
    %v4581 = vextract.high.u32 %v4579
    %v4582 = vmul.u32 %v4575, %v4566
    %v4583 = vadd.s32 %v4578, %v4580
    %vm4584 = vc.u32 %v4578, %v4580
    %v4585 = vadd.s32 %v4581, 1
    %v4586 = vsel %vm4584, %v4585, %v4581
    %v4587 = vadd.s32 %v4582, %v4586
    %v4588 = vadd.s32 %v4587, 536870912
    %v4589 = vshrl.u32 %v4588, 30
    %v4590 = vshll.u32 %v4589, 30
    %v4591 = vsub.s32 %v4587, %v4590
    %vm4592 = vcmp.lt.s32.totalorder %v4591, 0
    %v4593 = vsub.s32 0, %v4591
    %v4594 = vsel %vm4592, %v4593, %v4591
    %v4595 = vclz %v4594
    %v4596 = vsub.s32 %v4595, 2
    %vm4597 = vcmp.gt.s32.totalorder 0, %v4596
    %v4598 = vsel %vm4597, 0, %v4596
    %v4599 = vsub.s32 32, %v4598
    %v4600 = vshll.u32 %v4591, %v4598
    %v4601 = vshrl.u32 %v4583, %v4599
    %v4602 = vor.u32 %v4600, %v4601
    %v4603 = vsub.s32 4294967266, %v4598
    %v4604 = vadd.s32 %v4603, 127
    %v4605 = vshll.u32 %v4604, 23
    %v4606 = vor.u32 4788187, %v4605
    %v4607 = vand.u32 2147483647, %v4606
    %v4609 = vcvt.s32.f32 %v4602
    %v4610 = vmul.f32 %v4609, %v4607
    %v4611 = vxor.u32 %v4610, 2147483648
    %v4612 = vsel %vm4529, %v4611, %v4610
    %v4613 = vsub.s32 4, %v4589
    %v4614 = vsel %vm4529, %v4613, %v4589
    %v4615 = vsel %vm4528, %v4186, %v4612
    %v4616 = vsel %vm4528, 0, %v4614
    %v4617 = vcosq.f32.pop %v4615
    %v4618 = vsinq.f32.pop %v4615
    %vm4619 = vweird.f32 %v4186
    %v4620 = vadd.s32 %v4616, 3
    %v4621 = vand.u32 %v4620, 3
    %vm4622 = vcmp.lt.s32.totalorder %v4621, 2
    %vm4623 = vcmp.eq.s32.totalorder %v4621, 0
    %v4624 = vxor.u32 %v4618, 2147483648
    %v4625 = vsel %vm4623, %v4617, %v4624
    %vm4626 = vcmp.eq.s32.totalorder %v4621, 2
    %v4627 = vxor.u32 %v4617, 2147483648
    %v4628 = vsel %vm4626, %v4627, %v4618
    %v4629 = vsel %vm4622, %v4625, %v4628
    %v4630 = vsel %vm4619, nan, %v4629
    %v4631 = vand.u32 2147483647, %v4187
    %vm4632 = vcmp.le.f32.partialorder %v4631, 0.7853982
    %vm4633 = vcmp.lt.s32.totalorder %v4187, 0
    %v4634 = vand.u32 %v4187, 2139095040
    %v4635 = vshrl.u32 %v4634, 23
    %v4636 = vsub.s32 %v4635, 127
    %v4637 = vand.u32 2147483647, %v4187
    %v4638 = vand.u32 %v4637, 8388607
    %v4639 = vor.u32 %v4638, 8388608
    %v4640 = vsub.s32 0, %v4639
    %v4641 = vadd.s32 %v4636, 1
    %vm4642 = vcmp.gt.s32.totalorder %v4641, 0
    %v4643 = vsel %vm4642, %v4641, 0
    %v4644 = vshrl.u32 %v4643, 5
    %v4645 = vand.u32 %v4643, 31
    %v4646 = vsub.s32 32, %v4645
    %v4647 = vshrl.u32 683565275, %v4646
    %v4648 = vshll.u32 683565275, %v4645
    %v4649 = vshrl.u32 2475754826, %v4646
    %v4650 = vor.u32 %v4648, %v4649
    %v4651 = vshll.u32 2475754826, %v4645
    %v4652 = vshrl.u32 2131351028, %v4646
    %v4653 = vor.u32 %v4651, %v4652
    %v4654 = vshll.u32 2131351028, %v4645
    %v4655 = vshrl.u32 2102212464, %v4646
    %v4656 = vor.u32 %v4654, %v4655
    %v4657 = vshll.u32 2102212464, %v4645
    %v4658 = vshrl.u32 920167782, %v4646
    %v4659 = vor.u32 %v4657, %v4658
    %v4660 = vshll.u32 920167782, %v4645
    %v4661 = vshrl.u32 1326507024, %v4646
    %v4662 = vor.u32 %v4660, %v4661
    %vm4663 = vcmp.lt.s32.totalorder %v4644, 1
    %vm4664 = vcmp.lt.s32.totalorder %v4644, 2
    %vm4665 = vcmp.lt.s32.totalorder %v4644, 3
    %vm4666 = vcmp.lt.s32.totalorder %v4644, 4
    %v4667 = vsel %vm4663, %v4647, %v4650
    %v4668 = vsel %vm4666, %v4656, 2102212464
    %v4669 = vsel %vm4665, %v4653, %v4668
    %v4670 = vsel %vm4664, %v4667, %v4669
    %v4671 = vsel %vm4663, %v4650, %v4653
    %v4672 = vsel %vm4666, %v4659, 920167782
    %v4673 = vsel %vm4665, %v4656, %v4672
    %v4674 = vsel %vm4664, %v4671, %v4673
    %v4675 = vsel %vm4663, %v4653, %v4656
    %v4676 = vsel %vm4666, %v4662, 1326507024
    %v4677 = vsel %vm4665, %v4659, %v4676
    %v4678 = vsel %vm4664, %v4675, %v4677
    %v4679 = vshll.u32 %v4639, 8
    %v4680 = vmul.u32.u64.compose %v4679, %v4678
    %v4681 = vextract.low.u32 %v4680
    %v4682 = vextract.high.u32 %v4680
    %v4683 = vmul.u32.u64.compose %v4679, %v4674
    %v4684 = vextract.low.u32 %v4683
    %v4685 = vextract.high.u32 %v4683
    %v4686 = vmul.u32 %v4679, %v4670
    %v4687 = vadd.s32 %v4682, %v4684
    %vm4688 = vc.u32 %v4682, %v4684
    %v4689 = vadd.s32 %v4685, 1
    %v4690 = vsel %vm4688, %v4689, %v4685
    %v4691 = vadd.s32 %v4686, %v4690
    %v4692 = vadd.s32 %v4691, 536870912
    %v4693 = vshrl.u32 %v4692, 30
    %v4694 = vshll.u32 %v4693, 30
    %v4695 = vsub.s32 %v4691, %v4694
    %vm4696 = vcmp.lt.s32.totalorder %v4695, 0
    %v4697 = vsub.s32 0, %v4695
    %v4698 = vsel %vm4696, %v4697, %v4695
    %v4699 = vclz %v4698
    %v4700 = vsub.s32 %v4699, 2
    %vm4701 = vcmp.gt.s32.totalorder 0, %v4700
    %v4702 = vsel %vm4701, 0, %v4700
    %v4703 = vsub.s32 32, %v4702
    %v4704 = vshll.u32 %v4695, %v4702
    %v4705 = vshrl.u32 %v4687, %v4703
    %v4706 = vor.u32 %v4704, %v4705
    %v4707 = vsub.s32 4294967266, %v4702
    %v4708 = vadd.s32 %v4707, 127
    %v4709 = vshll.u32 %v4708, 23
    %v4710 = vor.u32 4788187, %v4709
    %v4711 = vand.u32 2147483647, %v4710
    %v4713 = vcvt.s32.f32 %v4706
    %v4714 = vmul.f32 %v4713, %v4711
    %v4715 = vxor.u32 %v4714, 2147483648
    %v4716 = vsel %vm4633, %v4715, %v4714
    %v4717 = vsub.s32 4, %v4693
    %v4718 = vsel %vm4633, %v4717, %v4693
    %v4719 = vsel %vm4632, %v4187, %v4716
    %v4720 = vsel %vm4632, 0, %v4718
    %v4721 = vcosq.f32.pop %v4719
    %v4722 = vsinq.f32.pop %v4719
    %vm4723 = vweird.f32 %v4187
    %v4724 = vadd.s32 %v4720, 3
    %v4725 = vand.u32 %v4724, 3
    %vm4726 = vcmp.lt.s32.totalorder %v4725, 2
    %vm4727 = vcmp.eq.s32.totalorder %v4725, 0
    %v4728 = vxor.u32 %v4722, 2147483648
    %v4729 = vsel %vm4727, %v4721, %v4728
    %vm4730 = vcmp.eq.s32.totalorder %v4725, 2
    %v4731 = vxor.u32 %v4721, 2147483648
    %v4732 = vsel %vm4730, %v4731, %v4722
    %v4733 = vsel %vm4726, %v4729, %v4732
    %v4734 = vsel %vm4723, nan, %v4733
    %v4735 = vand.u32 2147483647, %v4188
    %vm4736 = vcmp.le.f32.partialorder %v4735, 0.7853982
    %vm4737 = vcmp.lt.s32.totalorder %v4188, 0
    %v4738 = vand.u32 %v4188, 2139095040
    %v4739 = vshrl.u32 %v4738, 23
    %v4740 = vsub.s32 %v4739, 127
    %v4741 = vand.u32 2147483647, %v4188
    %v4742 = vand.u32 %v4741, 8388607
    %v4743 = vor.u32 %v4742, 8388608
    %v4744 = vsub.s32 0, %v4743
    %v4745 = vadd.s32 %v4740, 1
    %vm4746 = vcmp.gt.s32.totalorder %v4745, 0
    %v4747 = vsel %vm4746, %v4745, 0
    %v4748 = vshrl.u32 %v4747, 5
    %v4749 = vand.u32 %v4747, 31
    %v4750 = vsub.s32 32, %v4749
    %v4751 = vshrl.u32 683565275, %v4750
    %v4752 = vshll.u32 683565275, %v4749
    %v4753 = vshrl.u32 2475754826, %v4750
    %v4754 = vor.u32 %v4752, %v4753
    %v4755 = vshll.u32 2475754826, %v4749
    %v4756 = vshrl.u32 2131351028, %v4750
    %v4757 = vor.u32 %v4755, %v4756
    %v4758 = vshll.u32 2131351028, %v4749
    %v4759 = vshrl.u32 2102212464, %v4750
    %v4760 = vor.u32 %v4758, %v4759
    %v4761 = vshll.u32 2102212464, %v4749
    %v4762 = vshrl.u32 920167782, %v4750
    %v4763 = vor.u32 %v4761, %v4762
    %v4764 = vshll.u32 920167782, %v4749
    %v4765 = vshrl.u32 1326507024, %v4750
    %v4766 = vor.u32 %v4764, %v4765
    %vm4767 = vcmp.lt.s32.totalorder %v4748, 1
    %vm4768 = vcmp.lt.s32.totalorder %v4748, 2
    %vm4769 = vcmp.lt.s32.totalorder %v4748, 3
    %vm4770 = vcmp.lt.s32.totalorder %v4748, 4
    %v4771 = vsel %vm4767, %v4751, %v4754
    %v4772 = vsel %vm4770, %v4760, 2102212464
    %v4773 = vsel %vm4769, %v4757, %v4772
    %v4774 = vsel %vm4768, %v4771, %v4773
    %v4775 = vsel %vm4767, %v4754, %v4757
    %v4776 = vsel %vm4770, %v4763, 920167782
    %v4777 = vsel %vm4769, %v4760, %v4776
    %v4778 = vsel %vm4768, %v4775, %v4777
    %v4779 = vsel %vm4767, %v4757, %v4760
    %v4780 = vsel %vm4770, %v4766, 1326507024
    %v4781 = vsel %vm4769, %v4763, %v4780
    %v4782 = vsel %vm4768, %v4779, %v4781
    %v4783 = vshll.u32 %v4743, 8
    %v4784 = vmul.u32.u64.compose %v4783, %v4782
    %v4785 = vextract.low.u32 %v4784
    %v4786 = vextract.high.u32 %v4784
    %v4787 = vmul.u32.u64.compose %v4783, %v4778
    %v4788 = vextract.low.u32 %v4787
    %v4789 = vextract.high.u32 %v4787
    %v4790 = vmul.u32 %v4783, %v4774
    %v4791 = vadd.s32 %v4786, %v4788
    %vm4792 = vc.u32 %v4786, %v4788
    %v4793 = vadd.s32 %v4789, 1
    %v4794 = vsel %vm4792, %v4793, %v4789
    %v4795 = vadd.s32 %v4790, %v4794
    %v4796 = vadd.s32 %v4795, 536870912
    %v4797 = vshrl.u32 %v4796, 30
    %v4798 = vshll.u32 %v4797, 30
    %v4799 = vsub.s32 %v4795, %v4798
    %vm4800 = vcmp.lt.s32.totalorder %v4799, 0
    %v4801 = vsub.s32 0, %v4799
    %v4802 = vsel %vm4800, %v4801, %v4799
    %v4803 = vclz %v4802
    %v4804 = vsub.s32 %v4803, 2
    %vm4805 = vcmp.gt.s32.totalorder 0, %v4804
    %v4806 = vsel %vm4805, 0, %v4804
    %v4807 = vsub.s32 32, %v4806
    %v4808 = vshll.u32 %v4799, %v4806
    %v4809 = vshrl.u32 %v4791, %v4807
    %v4810 = vor.u32 %v4808, %v4809
    %v4811 = vsub.s32 4294967266, %v4806
    %v4812 = vadd.s32 %v4811, 127
    %v4813 = vshll.u32 %v4812, 23
    %v4814 = vor.u32 4788187, %v4813
    %v4815 = vand.u32 2147483647, %v4814
    %v4817 = vcvt.s32.f32 %v4810
    %v4818 = vmul.f32 %v4817, %v4815
    %v4819 = vxor.u32 %v4818, 2147483648
    %v4820 = vsel %vm4737, %v4819, %v4818
    %v4821 = vsub.s32 4, %v4797
    %v4822 = vsel %vm4737, %v4821, %v4797
    %v4823 = vsel %vm4736, %v4188, %v4820
    %v4824 = vsel %vm4736, 0, %v4822
    %v4825 = vcosq.f32.pop %v4823
    %v4826 = vsinq.f32.pop %v4823
    %vm4827 = vweird.f32 %v4188
    %v4828 = vadd.s32 %v4824, 3
    %v4829 = vand.u32 %v4828, 3
    %vm4830 = vcmp.lt.s32.totalorder %v4829, 2
    %vm4831 = vcmp.eq.s32.totalorder %v4829, 0
    %v4832 = vxor.u32 %v4826, 2147483648
    %v4833 = vsel %vm4831, %v4825, %v4832
    %vm4834 = vcmp.eq.s32.totalorder %v4829, 2
    %v4835 = vxor.u32 %v4825, 2147483648
    %v4836 = vsel %vm4834, %v4835, %v4826
    %v4837 = vsel %vm4830, %v4833, %v4836
    %v4838 = vsel %vm4827, nan, %v4837
    %v4839 = vand.u32 2147483647, %v4189
    %vm4840 = vcmp.le.f32.partialorder %v4839, 0.7853982
    %vm4841 = vcmp.lt.s32.totalorder %v4189, 0
    %v4842 = vand.u32 %v4189, 2139095040
    %v4843 = vshrl.u32 %v4842, 23
    %v4844 = vsub.s32 %v4843, 127
    %v4845 = vand.u32 2147483647, %v4189
    %v4846 = vand.u32 %v4845, 8388607
    %v4847 = vor.u32 %v4846, 8388608
    %v4848 = vsub.s32 0, %v4847
    %v4849 = vadd.s32 %v4844, 1
    %vm4850 = vcmp.gt.s32.totalorder %v4849, 0
    %v4851 = vsel %vm4850, %v4849, 0
    %v4852 = vshrl.u32 %v4851, 5
    %v4853 = vand.u32 %v4851, 31
    %v4854 = vsub.s32 32, %v4853
    %v4855 = vshrl.u32 683565275, %v4854
    %v4856 = vshll.u32 683565275, %v4853
    %v4857 = vshrl.u32 2475754826, %v4854
    %v4858 = vor.u32 %v4856, %v4857
    %v4859 = vshll.u32 2475754826, %v4853
    %v4860 = vshrl.u32 2131351028, %v4854
    %v4861 = vor.u32 %v4859, %v4860
    %v4862 = vshll.u32 2131351028, %v4853
    %v4863 = vshrl.u32 2102212464, %v4854
    %v4864 = vor.u32 %v4862, %v4863
    %v4865 = vshll.u32 2102212464, %v4853
    %v4866 = vshrl.u32 920167782, %v4854
    %v4867 = vor.u32 %v4865, %v4866
    %v4868 = vshll.u32 920167782, %v4853
    %v4869 = vshrl.u32 1326507024, %v4854
    %v4870 = vor.u32 %v4868, %v4869
    %vm4871 = vcmp.lt.s32.totalorder %v4852, 1
    %vm4872 = vcmp.lt.s32.totalorder %v4852, 2
    %vm4873 = vcmp.lt.s32.totalorder %v4852, 3
    %vm4874 = vcmp.lt.s32.totalorder %v4852, 4
    %v4875 = vsel %vm4871, %v4855, %v4858
    %v4876 = vsel %vm4874, %v4864, 2102212464
    %v4877 = vsel %vm4873, %v4861, %v4876
    %v4878 = vsel %vm4872, %v4875, %v4877
    %v4879 = vsel %vm4871, %v4858, %v4861
    %v4880 = vsel %vm4874, %v4867, 920167782
    %v4881 = vsel %vm4873, %v4864, %v4880
    %v4882 = vsel %vm4872, %v4879, %v4881
    %v4883 = vsel %vm4871, %v4861, %v4864
    %v4884 = vsel %vm4874, %v4870, 1326507024
    %v4885 = vsel %vm4873, %v4867, %v4884
    %v4886 = vsel %vm4872, %v4883, %v4885
    %v4887 = vshll.u32 %v4847, 8
    %v4888 = vmul.u32.u64.compose %v4887, %v4886
    %v4889 = vextract.low.u32 %v4888
    %v4890 = vextract.high.u32 %v4888
    %v4891 = vmul.u32.u64.compose %v4887, %v4882
    %v4892 = vextract.low.u32 %v4891
    %v4893 = vextract.high.u32 %v4891
    %v4894 = vmul.u32 %v4887, %v4878
    %v4895 = vadd.s32 %v4890, %v4892
    %vm4896 = vc.u32 %v4890, %v4892
    %v4897 = vadd.s32 %v4893, 1
    %v4898 = vsel %vm4896, %v4897, %v4893
    %v4899 = vadd.s32 %v4894, %v4898
    %v4900 = vadd.s32 %v4899, 536870912
    %v4901 = vshrl.u32 %v4900, 30
    %v4902 = vshll.u32 %v4901, 30
    %v4903 = vsub.s32 %v4899, %v4902
    %vm4904 = vcmp.lt.s32.totalorder %v4903, 0
    %v4905 = vsub.s32 0, %v4903
    %v4906 = vsel %vm4904, %v4905, %v4903
    %v4907 = vclz %v4906
    %v4908 = vsub.s32 %v4907, 2
    %vm4909 = vcmp.gt.s32.totalorder 0, %v4908
    %v4910 = vsel %vm4909, 0, %v4908
    %v4911 = vsub.s32 32, %v4910
    %v4912 = vshll.u32 %v4903, %v4910
    %v4913 = vshrl.u32 %v4895, %v4911
    %v4914 = vor.u32 %v4912, %v4913
    %v4915 = vsub.s32 4294967266, %v4910
    %v4916 = vadd.s32 %v4915, 127
    %v4917 = vshll.u32 %v4916, 23
    %v4918 = vor.u32 4788187, %v4917
    %v4919 = vand.u32 2147483647, %v4918
    %v4921 = vcvt.s32.f32 %v4914
    %v4922 = vmul.f32 %v4921, %v4919
    %v4923 = vxor.u32 %v4922, 2147483648
    %v4924 = vsel %vm4841, %v4923, %v4922
    %v4925 = vsub.s32 4, %v4901
    %v4926 = vsel %vm4841, %v4925, %v4901
    %v4927 = vsel %vm4840, %v4189, %v4924
    %v4928 = vsel %vm4840, 0, %v4926
    %v4929 = vcosq.f32.pop %v4927
    %v4930 = vsinq.f32.pop %v4927
    %vm4931 = vweird.f32 %v4189
    %v4932 = vadd.s32 %v4928, 3
    %v4933 = vand.u32 %v4932, 3
    %vm4934 = vcmp.lt.s32.totalorder %v4933, 2
    %vm4935 = vcmp.eq.s32.totalorder %v4933, 0
    %v4936 = vxor.u32 %v4930, 2147483648
    %v4937 = vsel %vm4935, %v4929, %v4936
    %vm4938 = vcmp.eq.s32.totalorder %v4933, 2
    %v4939 = vxor.u32 %v4929, 2147483648
    %v4940 = vsel %vm4938, %v4939, %v4930
    %v4941 = vsel %vm4934, %v4937, %v4940
    %v4942 = vsel %vm4931, nan, %v4941
    %v4943 = vand.u32 2147483647, %v4190
    %vm4944 = vcmp.le.f32.partialorder %v4943, 0.7853982
    %vm4945 = vcmp.lt.s32.totalorder %v4190, 0
    %v4946 = vand.u32 %v4190, 2139095040
    %v4947 = vshrl.u32 %v4946, 23
    %v4948 = vsub.s32 %v4947, 127
    %v4949 = vand.u32 2147483647, %v4190
    %v4950 = vand.u32 %v4949, 8388607
    %v4951 = vor.u32 %v4950, 8388608
    %v4952 = vsub.s32 0, %v4951
    %v4953 = vadd.s32 %v4948, 1
    %vm4954 = vcmp.gt.s32.totalorder %v4953, 0
    %v4955 = vsel %vm4954, %v4953, 0
    %v4956 = vshrl.u32 %v4955, 5
    %v4957 = vand.u32 %v4955, 31
    %v4958 = vsub.s32 32, %v4957
    %v4959 = vshrl.u32 683565275, %v4958
    %v4960 = vshll.u32 683565275, %v4957
    %v4961 = vshrl.u32 2475754826, %v4958
    %v4962 = vor.u32 %v4960, %v4961
    %v4963 = vshll.u32 2475754826, %v4957
    %v4964 = vshrl.u32 2131351028, %v4958
    %v4965 = vor.u32 %v4963, %v4964
    %v4966 = vshll.u32 2131351028, %v4957
    %v4967 = vshrl.u32 2102212464, %v4958
    %v4968 = vor.u32 %v4966, %v4967
    %v4969 = vshll.u32 2102212464, %v4957
    %v4970 = vshrl.u32 920167782, %v4958
    %v4971 = vor.u32 %v4969, %v4970
    %v4972 = vshll.u32 920167782, %v4957
    %v4973 = vshrl.u32 1326507024, %v4958
    %v4974 = vor.u32 %v4972, %v4973
    %vm4975 = vcmp.lt.s32.totalorder %v4956, 1
    %vm4976 = vcmp.lt.s32.totalorder %v4956, 2
    %vm4977 = vcmp.lt.s32.totalorder %v4956, 3
    %vm4978 = vcmp.lt.s32.totalorder %v4956, 4
    %v4979 = vsel %vm4975, %v4959, %v4962
    %v4980 = vsel %vm4978, %v4968, 2102212464
    %v4981 = vsel %vm4977, %v4965, %v4980
    %v4982 = vsel %vm4976, %v4979, %v4981
    %v4983 = vsel %vm4975, %v4962, %v4965
    %v4984 = vsel %vm4978, %v4971, 920167782
    %v4985 = vsel %vm4977, %v4968, %v4984
    %v4986 = vsel %vm4976, %v4983, %v4985
    %v4987 = vsel %vm4975, %v4965, %v4968
    %v4988 = vsel %vm4978, %v4974, 1326507024
    %v4989 = vsel %vm4977, %v4971, %v4988
    %v4990 = vsel %vm4976, %v4987, %v4989
    %v4991 = vshll.u32 %v4951, 8
    %v4992 = vmul.u32.u64.compose %v4991, %v4990
    %v4993 = vextract.low.u32 %v4992
    %v4994 = vextract.high.u32 %v4992
    %v4995 = vmul.u32.u64.compose %v4991, %v4986
    %v4996 = vextract.low.u32 %v4995
    %v4997 = vextract.high.u32 %v4995
    %v4998 = vmul.u32 %v4991, %v4982
    %v4999 = vadd.s32 %v4994, %v4996
    %vm5000 = vc.u32 %v4994, %v4996
    %v5001 = vadd.s32 %v4997, 1
    %v5002 = vsel %vm5000, %v5001, %v4997
    %v5003 = vadd.s32 %v4998, %v5002
    %v5004 = vadd.s32 %v5003, 536870912
    %v5005 = vshrl.u32 %v5004, 30
    %v5006 = vshll.u32 %v5005, 30
    %v5007 = vsub.s32 %v5003, %v5006
    %vm5008 = vcmp.lt.s32.totalorder %v5007, 0
    %v5009 = vsub.s32 0, %v5007
    %v5010 = vsel %vm5008, %v5009, %v5007
    %v5011 = vclz %v5010
    %v5012 = vsub.s32 %v5011, 2
    %vm5013 = vcmp.gt.s32.totalorder 0, %v5012
    %v5014 = vsel %vm5013, 0, %v5012
    %v5015 = vsub.s32 32, %v5014
    %v5016 = vshll.u32 %v5007, %v5014
    %v5017 = vshrl.u32 %v4999, %v5015
    %v5018 = vor.u32 %v5016, %v5017
    %v5019 = vsub.s32 4294967266, %v5014
    %v5020 = vadd.s32 %v5019, 127
    %v5021 = vshll.u32 %v5020, 23
    %v5022 = vor.u32 4788187, %v5021
    %v5023 = vand.u32 2147483647, %v5022
    %v5025 = vcvt.s32.f32 %v5018
    %v5026 = vmul.f32 %v5025, %v5023
    %v5027 = vxor.u32 %v5026, 2147483648
    %v5028 = vsel %vm4945, %v5027, %v5026
    %v5029 = vsub.s32 4, %v5005
    %v5030 = vsel %vm4945, %v5029, %v5005
    %v5031 = vsel %vm4944, %v4190, %v5028
    %v5032 = vsel %vm4944, 0, %v5030
    %v5033 = vcosq.f32.pop %v5031
    %v5034 = vsinq.f32.pop %v5031
    %vm5035 = vweird.f32 %v4190
    %v5036 = vadd.s32 %v5032, 3
    %v5037 = vand.u32 %v5036, 3
    %vm5038 = vcmp.lt.s32.totalorder %v5037, 2
    %vm5039 = vcmp.eq.s32.totalorder %v5037, 0
    %v5040 = vxor.u32 %v5034, 2147483648
    %v5041 = vsel %vm5039, %v5033, %v5040
    %vm5042 = vcmp.eq.s32.totalorder %v5037, 2
    %v5043 = vxor.u32 %v5033, 2147483648
    %v5044 = vsel %vm5042, %v5043, %v5034
    %v5045 = vsel %vm5038, %v5041, %v5044
    %v5046 = vsel %vm5035, nan, %v5045
    %v5047 = vand.u32 2147483647, %v4191
    %vm5048 = vcmp.le.f32.partialorder %v5047, 0.7853982
    %vm5049 = vcmp.lt.s32.totalorder %v4191, 0
    %v5050 = vand.u32 %v4191, 2139095040
    %v5051 = vshrl.u32 %v5050, 23
    %v5052 = vsub.s32 %v5051, 127
    %v5053 = vand.u32 2147483647, %v4191
    %v5054 = vand.u32 %v5053, 8388607
    %v5055 = vor.u32 %v5054, 8388608
    %v5056 = vsub.s32 0, %v5055
    %v5057 = vadd.s32 %v5052, 1
    %vm5058 = vcmp.gt.s32.totalorder %v5057, 0
    %v5059 = vsel %vm5058, %v5057, 0
    %v5060 = vshrl.u32 %v5059, 5
    %v5061 = vand.u32 %v5059, 31
    %v5062 = vsub.s32 32, %v5061
    %v5063 = vshrl.u32 683565275, %v5062
    %v5064 = vshll.u32 683565275, %v5061
    %v5065 = vshrl.u32 2475754826, %v5062
    %v5066 = vor.u32 %v5064, %v5065
    %v5067 = vshll.u32 2475754826, %v5061
    %v5068 = vshrl.u32 2131351028, %v5062
    %v5069 = vor.u32 %v5067, %v5068
    %v5070 = vshll.u32 2131351028, %v5061
    %v5071 = vshrl.u32 2102212464, %v5062
    %v5072 = vor.u32 %v5070, %v5071
    %v5073 = vshll.u32 2102212464, %v5061
    %v5074 = vshrl.u32 920167782, %v5062
    %v5075 = vor.u32 %v5073, %v5074
    %v5076 = vshll.u32 920167782, %v5061
    %v5077 = vshrl.u32 1326507024, %v5062
    %v5078 = vor.u32 %v5076, %v5077
    %vm5079 = vcmp.lt.s32.totalorder %v5060, 1
    %vm5080 = vcmp.lt.s32.totalorder %v5060, 2
    %vm5081 = vcmp.lt.s32.totalorder %v5060, 3
    %vm5082 = vcmp.lt.s32.totalorder %v5060, 4
    %v5083 = vsel %vm5079, %v5063, %v5066
    %v5084 = vsel %vm5082, %v5072, 2102212464
    %v5085 = vsel %vm5081, %v5069, %v5084
    %v5086 = vsel %vm5080, %v5083, %v5085
    %v5087 = vsel %vm5079, %v5066, %v5069
    %v5088 = vsel %vm5082, %v5075, 920167782
    %v5089 = vsel %vm5081, %v5072, %v5088
    %v5090 = vsel %vm5080, %v5087, %v5089
    %v5091 = vsel %vm5079, %v5069, %v5072
    %v5092 = vsel %vm5082, %v5078, 1326507024
    %v5093 = vsel %vm5081, %v5075, %v5092
    %v5094 = vsel %vm5080, %v5091, %v5093
    %v5095 = vshll.u32 %v5055, 8
    %v5096 = vmul.u32.u64.compose %v5095, %v5094
    %v5097 = vextract.low.u32 %v5096
    %v5098 = vextract.high.u32 %v5096
    %v5099 = vmul.u32.u64.compose %v5095, %v5090
    %v5100 = vextract.low.u32 %v5099
    %v5101 = vextract.high.u32 %v5099
    %v5102 = vmul.u32 %v5095, %v5086
    %v5103 = vadd.s32 %v5098, %v5100
    %vm5104 = vc.u32 %v5098, %v5100
    %v5105 = vadd.s32 %v5101, 1
    %v5106 = vsel %vm5104, %v5105, %v5101
    %v5107 = vadd.s32 %v5102, %v5106
    %v5108 = vadd.s32 %v5107, 536870912
    %v5109 = vshrl.u32 %v5108, 30
    %v5110 = vshll.u32 %v5109, 30
    %v5111 = vsub.s32 %v5107, %v5110
    %vm5112 = vcmp.lt.s32.totalorder %v5111, 0
    %v5113 = vsub.s32 0, %v5111
    %v5114 = vsel %vm5112, %v5113, %v5111
    %v5115 = vclz %v5114
    %v5116 = vsub.s32 %v5115, 2
    %vm5117 = vcmp.gt.s32.totalorder 0, %v5116
    %v5118 = vsel %vm5117, 0, %v5116
    %v5119 = vsub.s32 32, %v5118
    %v5120 = vshll.u32 %v5111, %v5118
    %v5121 = vshrl.u32 %v5103, %v5119
    %v5122 = vor.u32 %v5120, %v5121
    %v5123 = vsub.s32 4294967266, %v5118
    %v5124 = vadd.s32 %v5123, 127
    %v5125 = vshll.u32 %v5124, 23
    %v5126 = vor.u32 4788187, %v5125
    %v5127 = vand.u32 2147483647, %v5126
    %v5129 = vcvt.s32.f32 %v5122
    %v5130 = vmul.f32 %v5129, %v5127
    %v5131 = vxor.u32 %v5130, 2147483648
    %v5132 = vsel %vm5049, %v5131, %v5130
    %v5133 = vsub.s32 4, %v5109
    %v5134 = vsel %vm5049, %v5133, %v5109
    %v5135 = vsel %vm5048, %v4191, %v5132
    %v5136 = vsel %vm5048, 0, %v5134
    %v5137 = vcosq.f32.pop %v5135
    %v5138 = vsinq.f32.pop %v5135
    %vm5139 = vweird.f32 %v4191
    %v5140 = vadd.s32 %v5136, 3
    %v5141 = vand.u32 %v5140, 3
    %vm5142 = vcmp.lt.s32.totalorder %v5141, 2
    %vm5143 = vcmp.eq.s32.totalorder %v5141, 0
    %v5144 = vxor.u32 %v5138, 2147483648
    %v5145 = vsel %vm5143, %v5137, %v5144
    %vm5146 = vcmp.eq.s32.totalorder %v5141, 2
    %v5147 = vxor.u32 %v5137, 2147483648
    %v5148 = vsel %vm5146, %v5147, %v5138
    %v5149 = vsel %vm5142, %v5145, %v5148
    %v5150 = vsel %vm5139, nan, %v5149
    %v5151 = vand.u32 2147483647, %v4192
    %vm5152 = vcmp.le.f32.partialorder %v5151, 0.7853982
    %vm5153 = vcmp.lt.s32.totalorder %v4192, 0
    %v5154 = vand.u32 %v4192, 2139095040
    %v5155 = vshrl.u32 %v5154, 23
    %v5156 = vsub.s32 %v5155, 127
    %v5157 = vand.u32 2147483647, %v4192
    %v5158 = vand.u32 %v5157, 8388607
    %v5159 = vor.u32 %v5158, 8388608
    %v5160 = vsub.s32 0, %v5159
    %v5161 = vadd.s32 %v5156, 1
    %vm5162 = vcmp.gt.s32.totalorder %v5161, 0
    %v5163 = vsel %vm5162, %v5161, 0
    %v5164 = vshrl.u32 %v5163, 5
    %v5165 = vand.u32 %v5163, 31
    %v5166 = vsub.s32 32, %v5165
    %v5167 = vshrl.u32 683565275, %v5166
    %v5168 = vshll.u32 683565275, %v5165
    %v5169 = vshrl.u32 2475754826, %v5166
    %v5170 = vor.u32 %v5168, %v5169
    %v5171 = vshll.u32 2475754826, %v5165
    %v5172 = vshrl.u32 2131351028, %v5166
    %v5173 = vor.u32 %v5171, %v5172
    %v5174 = vshll.u32 2131351028, %v5165
    %v5175 = vshrl.u32 2102212464, %v5166
    %v5176 = vor.u32 %v5174, %v5175
    %v5177 = vshll.u32 2102212464, %v5165
    %v5178 = vshrl.u32 920167782, %v5166
    %v5179 = vor.u32 %v5177, %v5178
    %v5180 = vshll.u32 920167782, %v5165
    %v5181 = vshrl.u32 1326507024, %v5166
    %v5182 = vor.u32 %v5180, %v5181
    %vm5183 = vcmp.lt.s32.totalorder %v5164, 1
    %vm5184 = vcmp.lt.s32.totalorder %v5164, 2
    %vm5185 = vcmp.lt.s32.totalorder %v5164, 3
    %vm5186 = vcmp.lt.s32.totalorder %v5164, 4
    %v5187 = vsel %vm5183, %v5167, %v5170
    %v5188 = vsel %vm5186, %v5176, 2102212464
    %v5189 = vsel %vm5185, %v5173, %v5188
    %v5190 = vsel %vm5184, %v5187, %v5189
    %v5191 = vsel %vm5183, %v5170, %v5173
    %v5192 = vsel %vm5186, %v5179, 920167782
    %v5193 = vsel %vm5185, %v5176, %v5192
    %v5194 = vsel %vm5184, %v5191, %v5193
    %v5195 = vsel %vm5183, %v5173, %v5176
    %v5196 = vsel %vm5186, %v5182, 1326507024
    %v5197 = vsel %vm5185, %v5179, %v5196
    %v5198 = vsel %vm5184, %v5195, %v5197
    %v5199 = vshll.u32 %v5159, 8
    %v5200 = vmul.u32.u64.compose %v5199, %v5198
    %v5201 = vextract.low.u32 %v5200
    %v5202 = vextract.high.u32 %v5200
    %v5203 = vmul.u32.u64.compose %v5199, %v5194
    %v5204 = vextract.low.u32 %v5203
    %v5205 = vextract.high.u32 %v5203
    %v5206 = vmul.u32 %v5199, %v5190
    %v5207 = vadd.s32 %v5202, %v5204
    %vm5208 = vc.u32 %v5202, %v5204
    %v5209 = vadd.s32 %v5205, 1
    %v5210 = vsel %vm5208, %v5209, %v5205
    %v5211 = vadd.s32 %v5206, %v5210
    %v5212 = vadd.s32 %v5211, 536870912
    %v5213 = vshrl.u32 %v5212, 30
    %v5214 = vshll.u32 %v5213, 30
    %v5215 = vsub.s32 %v5211, %v5214
    %vm5216 = vcmp.lt.s32.totalorder %v5215, 0
    %v5217 = vsub.s32 0, %v5215
    %v5218 = vsel %vm5216, %v5217, %v5215
    %v5219 = vclz %v5218
    %v5220 = vsub.s32 %v5219, 2
    %vm5221 = vcmp.gt.s32.totalorder 0, %v5220
    %v5222 = vsel %vm5221, 0, %v5220
    %v5223 = vsub.s32 32, %v5222
    %v5224 = vshll.u32 %v5215, %v5222
    %v5225 = vshrl.u32 %v5207, %v5223
    %v5226 = vor.u32 %v5224, %v5225
    %v5227 = vsub.s32 4294967266, %v5222
    %v5228 = vadd.s32 %v5227, 127
    %v5229 = vshll.u32 %v5228, 23
    %v5230 = vor.u32 4788187, %v5229
    %v5231 = vand.u32 2147483647, %v5230
    %v5233 = vcvt.s32.f32 %v5226
    %v5234 = vmul.f32 %v5233, %v5231
    %v5235 = vxor.u32 %v5234, 2147483648
    %v5236 = vsel %vm5153, %v5235, %v5234
    %v5237 = vsub.s32 4, %v5213
    %v5238 = vsel %vm5153, %v5237, %v5213
    %v5239 = vsel %vm5152, %v4192, %v5236
    %v5240 = vsel %vm5152, 0, %v5238
    %v5241 = vcosq.f32.pop %v5239
    %v5242 = vsinq.f32.pop %v5239
    %vm5243 = vweird.f32 %v4192
    %v5244 = vadd.s32 %v5240, 3
    %v5245 = vand.u32 %v5244, 3
    %vm5246 = vcmp.lt.s32.totalorder %v5245, 2
    %vm5247 = vcmp.eq.s32.totalorder %v5245, 0
    %v5248 = vxor.u32 %v5242, 2147483648
    %v5249 = vsel %vm5247, %v5241, %v5248
    %vm5250 = vcmp.eq.s32.totalorder %v5245, 2
    %v5251 = vxor.u32 %v5241, 2147483648
    %v5252 = vsel %vm5250, %v5251, %v5242
    %v5253 = vsel %vm5246, %v5249, %v5252
    %v5254 = vsel %vm5243, nan, %v5253
    %v5255 = vand.u32 2147483647, %v4193
    %vm5256 = vcmp.le.f32.partialorder %v5255, 0.7853982
    %vm5257 = vcmp.lt.s32.totalorder %v4193, 0
    %v5258 = vand.u32 %v4193, 2139095040
    %v5259 = vshrl.u32 %v5258, 23
    %v5260 = vsub.s32 %v5259, 127
    %v5261 = vand.u32 2147483647, %v4193
    %v5262 = vand.u32 %v5261, 8388607
    %v5263 = vor.u32 %v5262, 8388608
    %v5264 = vsub.s32 0, %v5263
    %v5265 = vadd.s32 %v5260, 1
    %vm5266 = vcmp.gt.s32.totalorder %v5265, 0
    %v5267 = vsel %vm5266, %v5265, 0
    %v5268 = vshrl.u32 %v5267, 5
    %v5269 = vand.u32 %v5267, 31
    %v5270 = vsub.s32 32, %v5269
    %v5271 = vshrl.u32 683565275, %v5270
    %v5272 = vshll.u32 683565275, %v5269
    %v5273 = vshrl.u32 2475754826, %v5270
    %v5274 = vor.u32 %v5272, %v5273
    %v5275 = vshll.u32 2475754826, %v5269
    %v5276 = vshrl.u32 2131351028, %v5270
    %v5277 = vor.u32 %v5275, %v5276
    %v5278 = vshll.u32 2131351028, %v5269
    %v5279 = vshrl.u32 2102212464, %v5270
    %v5280 = vor.u32 %v5278, %v5279
    %v5281 = vshll.u32 2102212464, %v5269
    %v5282 = vshrl.u32 920167782, %v5270
    %v5283 = vor.u32 %v5281, %v5282
    %v5284 = vshll.u32 920167782, %v5269
    %v5285 = vshrl.u32 1326507024, %v5270
    %v5286 = vor.u32 %v5284, %v5285
    %vm5287 = vcmp.lt.s32.totalorder %v5268, 1
    %vm5288 = vcmp.lt.s32.totalorder %v5268, 2
    %vm5289 = vcmp.lt.s32.totalorder %v5268, 3
    %vm5290 = vcmp.lt.s32.totalorder %v5268, 4
    %v5291 = vsel %vm5287, %v5271, %v5274
    %v5292 = vsel %vm5290, %v5280, 2102212464
    %v5293 = vsel %vm5289, %v5277, %v5292
    %v5294 = vsel %vm5288, %v5291, %v5293
    %v5295 = vsel %vm5287, %v5274, %v5277
    %v5296 = vsel %vm5290, %v5283, 920167782
    %v5297 = vsel %vm5289, %v5280, %v5296
    %v5298 = vsel %vm5288, %v5295, %v5297
    %v5299 = vsel %vm5287, %v5277, %v5280
    %v5300 = vsel %vm5290, %v5286, 1326507024
    %v5301 = vsel %vm5289, %v5283, %v5300
    %v5302 = vsel %vm5288, %v5299, %v5301
    %v5303 = vshll.u32 %v5263, 8
    %v5304 = vmul.u32.u64.compose %v5303, %v5302
    %v5305 = vextract.low.u32 %v5304
    %v5306 = vextract.high.u32 %v5304
    %v5307 = vmul.u32.u64.compose %v5303, %v5298
    %v5308 = vextract.low.u32 %v5307
    %v5309 = vextract.high.u32 %v5307
    %v5310 = vmul.u32 %v5303, %v5294
    %v5311 = vadd.s32 %v5306, %v5308
    %vm5312 = vc.u32 %v5306, %v5308
    %v5313 = vadd.s32 %v5309, 1
    %v5314 = vsel %vm5312, %v5313, %v5309
    %v5315 = vadd.s32 %v5310, %v5314
    %v5316 = vadd.s32 %v5315, 536870912
    %v5317 = vshrl.u32 %v5316, 30
    %v5318 = vshll.u32 %v5317, 30
    %v5319 = vsub.s32 %v5315, %v5318
    %vm5320 = vcmp.lt.s32.totalorder %v5319, 0
    %v5321 = vsub.s32 0, %v5319
    %v5322 = vsel %vm5320, %v5321, %v5319
    %v5323 = vclz %v5322
    %v5324 = vsub.s32 %v5323, 2
    %vm5325 = vcmp.gt.s32.totalorder 0, %v5324
    %v5326 = vsel %vm5325, 0, %v5324
    %v5327 = vsub.s32 32, %v5326
    %v5328 = vshll.u32 %v5319, %v5326
    %v5329 = vshrl.u32 %v5311, %v5327
    %v5330 = vor.u32 %v5328, %v5329
    %v5331 = vsub.s32 4294967266, %v5326
    %v5332 = vadd.s32 %v5331, 127
    %v5333 = vshll.u32 %v5332, 23
    %v5334 = vor.u32 4788187, %v5333
    %v5335 = vand.u32 2147483647, %v5334
    %v5337 = vcvt.s32.f32 %v5330
    %v5338 = vmul.f32 %v5337, %v5335
    %v5339 = vxor.u32 %v5338, 2147483648
    %v5340 = vsel %vm5257, %v5339, %v5338
    %v5341 = vsub.s32 4, %v5317
    %v5342 = vsel %vm5257, %v5341, %v5317
    %v5343 = vsel %vm5256, %v4193, %v5340
    %v5344 = vsel %vm5256, 0, %v5342
    %v5345 = vcosq.f32.pop %v5343
    %v5346 = vsinq.f32.pop %v5343
    %vm5347 = vweird.f32 %v4193
    %v5348 = vadd.s32 %v5344, 3
    %v5349 = vand.u32 %v5348, 3
    %vm5350 = vcmp.lt.s32.totalorder %v5349, 2
    %vm5351 = vcmp.eq.s32.totalorder %v5349, 0
    %v5352 = vxor.u32 %v5346, 2147483648
    %v5353 = vsel %vm5351, %v5345, %v5352
    %vm5354 = vcmp.eq.s32.totalorder %v5349, 2
    %v5355 = vxor.u32 %v5345, 2147483648
    %v5356 = vsel %vm5354, %v5355, %v5346
    %v5357 = vsel %vm5350, %v5353, %v5356
    %v5358 = vsel %vm5347, nan, %v5357
    %v5359 = vand.u32 2147483647, %v4194
    %vm5360 = vcmp.le.f32.partialorder %v5359, 0.7853982
    %vm5361 = vcmp.lt.s32.totalorder %v4194, 0
    %v5362 = vand.u32 %v4194, 2139095040
    %v5363 = vshrl.u32 %v5362, 23
    %v5364 = vsub.s32 %v5363, 127
    %v5365 = vand.u32 2147483647, %v4194
    %v5366 = vand.u32 %v5365, 8388607
    %v5367 = vor.u32 %v5366, 8388608
    %v5368 = vsub.s32 0, %v5367
    %v5369 = vadd.s32 %v5364, 1
    %vm5370 = vcmp.gt.s32.totalorder %v5369, 0
    %v5371 = vsel %vm5370, %v5369, 0
    %v5372 = vshrl.u32 %v5371, 5
    %v5373 = vand.u32 %v5371, 31
    %v5374 = vsub.s32 32, %v5373
    %v5375 = vshrl.u32 683565275, %v5374
    %v5376 = vshll.u32 683565275, %v5373
    %v5377 = vshrl.u32 2475754826, %v5374
    %v5378 = vor.u32 %v5376, %v5377
    %v5379 = vshll.u32 2475754826, %v5373
    %v5380 = vshrl.u32 2131351028, %v5374
    %v5381 = vor.u32 %v5379, %v5380
    %v5382 = vshll.u32 2131351028, %v5373
    %v5383 = vshrl.u32 2102212464, %v5374
    %v5384 = vor.u32 %v5382, %v5383
    %v5385 = vshll.u32 2102212464, %v5373
    %v5386 = vshrl.u32 920167782, %v5374
    %v5387 = vor.u32 %v5385, %v5386
    %v5388 = vshll.u32 920167782, %v5373
    %v5389 = vshrl.u32 1326507024, %v5374
    %v5390 = vor.u32 %v5388, %v5389
    %vm5391 = vcmp.lt.s32.totalorder %v5372, 1
    %vm5392 = vcmp.lt.s32.totalorder %v5372, 2
    %vm5393 = vcmp.lt.s32.totalorder %v5372, 3
    %vm5394 = vcmp.lt.s32.totalorder %v5372, 4
    %v5395 = vsel %vm5391, %v5375, %v5378
    %v5396 = vsel %vm5394, %v5384, 2102212464
    %v5397 = vsel %vm5393, %v5381, %v5396
    %v5398 = vsel %vm5392, %v5395, %v5397
    %v5399 = vsel %vm5391, %v5378, %v5381
    %v5400 = vsel %vm5394, %v5387, 920167782
    %v5401 = vsel %vm5393, %v5384, %v5400
    %v5402 = vsel %vm5392, %v5399, %v5401
    %v5403 = vsel %vm5391, %v5381, %v5384
    %v5404 = vsel %vm5394, %v5390, 1326507024
    %v5405 = vsel %vm5393, %v5387, %v5404
    %v5406 = vsel %vm5392, %v5403, %v5405
    %v5407 = vshll.u32 %v5367, 8
    %v5408 = vmul.u32.u64.compose %v5407, %v5406
    %v5409 = vextract.low.u32 %v5408
    %v5410 = vextract.high.u32 %v5408
    %v5411 = vmul.u32.u64.compose %v5407, %v5402
    %v5412 = vextract.low.u32 %v5411
    %v5413 = vextract.high.u32 %v5411
    %v5414 = vmul.u32 %v5407, %v5398
    %v5415 = vadd.s32 %v5410, %v5412
    %vm5416 = vc.u32 %v5410, %v5412
    %v5417 = vadd.s32 %v5413, 1
    %v5418 = vsel %vm5416, %v5417, %v5413
    %v5419 = vadd.s32 %v5414, %v5418
    %v5420 = vadd.s32 %v5419, 536870912
    %v5421 = vshrl.u32 %v5420, 30
    %v5422 = vshll.u32 %v5421, 30
    %v5423 = vsub.s32 %v5419, %v5422
    %vm5424 = vcmp.lt.s32.totalorder %v5423, 0
    %v5425 = vsub.s32 0, %v5423
    %v5426 = vsel %vm5424, %v5425, %v5423
    %v5427 = vclz %v5426
    %v5428 = vsub.s32 %v5427, 2
    %vm5429 = vcmp.gt.s32.totalorder 0, %v5428
    %v5430 = vsel %vm5429, 0, %v5428
    %v5431 = vsub.s32 32, %v5430
    %v5432 = vshll.u32 %v5423, %v5430
    %v5433 = vshrl.u32 %v5415, %v5431
    %v5434 = vor.u32 %v5432, %v5433
    %v5435 = vsub.s32 4294967266, %v5430
    %v5436 = vadd.s32 %v5435, 127
    %v5437 = vshll.u32 %v5436, 23
    %v5438 = vor.u32 4788187, %v5437
    %v5439 = vand.u32 2147483647, %v5438
    %v5441 = vcvt.s32.f32 %v5434
    %v5442 = vmul.f32 %v5441, %v5439
    %v5443 = vxor.u32 %v5442, 2147483648
    %v5444 = vsel %vm5361, %v5443, %v5442
    %v5445 = vsub.s32 4, %v5421
    %v5446 = vsel %vm5361, %v5445, %v5421
    %v5447 = vsel %vm5360, %v4194, %v5444
    %v5448 = vsel %vm5360, 0, %v5446
    %v5449 = vcosq.f32.pop %v5447
    %v5450 = vsinq.f32.pop %v5447
    %vm5451 = vweird.f32 %v4194
    %v5452 = vadd.s32 %v5448, 3
    %v5453 = vand.u32 %v5452, 3
    %vm5454 = vcmp.lt.s32.totalorder %v5453, 2
    %vm5455 = vcmp.eq.s32.totalorder %v5453, 0
    %v5456 = vxor.u32 %v5450, 2147483648
    %v5457 = vsel %vm5455, %v5449, %v5456
    %vm5458 = vcmp.eq.s32.totalorder %v5453, 2
    %v5459 = vxor.u32 %v5449, 2147483648
    %v5460 = vsel %vm5458, %v5459, %v5450
    %v5461 = vsel %vm5454, %v5457, %v5460
    %v5462 = vsel %vm5451, nan, %v5461
    %v5463 = vand.u32 2147483647, %v4195
    %vm5464 = vcmp.le.f32.partialorder %v5463, 0.7853982
    %vm5465 = vcmp.lt.s32.totalorder %v4195, 0
    %v5466 = vand.u32 %v4195, 2139095040
    %v5467 = vshrl.u32 %v5466, 23
    %v5468 = vsub.s32 %v5467, 127
    %v5469 = vand.u32 2147483647, %v4195
    %v5470 = vand.u32 %v5469, 8388607
    %v5471 = vor.u32 %v5470, 8388608
    %v5472 = vsub.s32 0, %v5471
    %v5473 = vadd.s32 %v5468, 1
    %vm5474 = vcmp.gt.s32.totalorder %v5473, 0
    %v5475 = vsel %vm5474, %v5473, 0
    %v5476 = vshrl.u32 %v5475, 5
    %v5477 = vand.u32 %v5475, 31
    %v5478 = vsub.s32 32, %v5477
    %v5479 = vshrl.u32 683565275, %v5478
    %v5480 = vshll.u32 683565275, %v5477
    %v5481 = vshrl.u32 2475754826, %v5478
    %v5482 = vor.u32 %v5480, %v5481
    %v5483 = vshll.u32 2475754826, %v5477
    %v5484 = vshrl.u32 2131351028, %v5478
    %v5485 = vor.u32 %v5483, %v5484
    %v5486 = vshll.u32 2131351028, %v5477
    %v5487 = vshrl.u32 2102212464, %v5478
    %v5488 = vor.u32 %v5486, %v5487
    %v5489 = vshll.u32 2102212464, %v5477
    %v5490 = vshrl.u32 920167782, %v5478
    %v5491 = vor.u32 %v5489, %v5490
    %v5492 = vshll.u32 920167782, %v5477
    %v5493 = vshrl.u32 1326507024, %v5478
    %v5494 = vor.u32 %v5492, %v5493
    %vm5495 = vcmp.lt.s32.totalorder %v5476, 1
    %vm5496 = vcmp.lt.s32.totalorder %v5476, 2
    %vm5497 = vcmp.lt.s32.totalorder %v5476, 3
    %vm5498 = vcmp.lt.s32.totalorder %v5476, 4
    %v5499 = vsel %vm5495, %v5479, %v5482
    %v5500 = vsel %vm5498, %v5488, 2102212464
    %v5501 = vsel %vm5497, %v5485, %v5500
    %v5502 = vsel %vm5496, %v5499, %v5501
    %v5503 = vsel %vm5495, %v5482, %v5485
    %v5504 = vsel %vm5498, %v5491, 920167782
    %v5505 = vsel %vm5497, %v5488, %v5504
    %v5506 = vsel %vm5496, %v5503, %v5505
    %v5507 = vsel %vm5495, %v5485, %v5488
    %v5508 = vsel %vm5498, %v5494, 1326507024
    %v5509 = vsel %vm5497, %v5491, %v5508
    %v5510 = vsel %vm5496, %v5507, %v5509
    %v5511 = vshll.u32 %v5471, 8
    %v5512 = vmul.u32.u64.compose %v5511, %v5510
    %v5513 = vextract.low.u32 %v5512
    %v5514 = vextract.high.u32 %v5512
    %v5515 = vmul.u32.u64.compose %v5511, %v5506
    %v5516 = vextract.low.u32 %v5515
    %v5517 = vextract.high.u32 %v5515
    %v5518 = vmul.u32 %v5511, %v5502
    %v5519 = vadd.s32 %v5514, %v5516
    %vm5520 = vc.u32 %v5514, %v5516
    %v5521 = vadd.s32 %v5517, 1
    %v5522 = vsel %vm5520, %v5521, %v5517
    %v5523 = vadd.s32 %v5518, %v5522
    %v5524 = vadd.s32 %v5523, 536870912
    %v5525 = vshrl.u32 %v5524, 30
    %v5526 = vshll.u32 %v5525, 30
    %v5527 = vsub.s32 %v5523, %v5526
    %vm5528 = vcmp.lt.s32.totalorder %v5527, 0
    %v5529 = vsub.s32 0, %v5527
    %v5530 = vsel %vm5528, %v5529, %v5527
    %v5531 = vclz %v5530
    %v5532 = vsub.s32 %v5531, 2
    %vm5533 = vcmp.gt.s32.totalorder 0, %v5532
    %v5534 = vsel %vm5533, 0, %v5532
    %v5535 = vsub.s32 32, %v5534
    %v5536 = vshll.u32 %v5527, %v5534
    %v5537 = vshrl.u32 %v5519, %v5535
    %v5538 = vor.u32 %v5536, %v5537
    %v5539 = vsub.s32 4294967266, %v5534
    %v5540 = vadd.s32 %v5539, 127
    %v5541 = vshll.u32 %v5540, 23
    %v5542 = vor.u32 4788187, %v5541
    %v5543 = vand.u32 2147483647, %v5542
    %v5545 = vcvt.s32.f32 %v5538
    %v5546 = vmul.f32 %v5545, %v5543
    %v5547 = vxor.u32 %v5546, 2147483648
    %v5548 = vsel %vm5465, %v5547, %v5546
    %v5549 = vsub.s32 4, %v5525
    %v5550 = vsel %vm5465, %v5549, %v5525
    %v5551 = vsel %vm5464, %v4195, %v5548
    %v5552 = vsel %vm5464, 0, %v5550
    %v5553 = vcosq.f32.pop %v5551
    %v5554 = vsinq.f32.pop %v5551
    %vm5555 = vweird.f32 %v4195
    %v5556 = vadd.s32 %v5552, 3
    %v5557 = vand.u32 %v5556, 3
    %vm5558 = vcmp.lt.s32.totalorder %v5557, 2
    %vm5559 = vcmp.eq.s32.totalorder %v5557, 0
    %v5560 = vxor.u32 %v5554, 2147483648
    %v5561 = vsel %vm5559, %v5553, %v5560
    %vm5562 = vcmp.eq.s32.totalorder %v5557, 2
    %v5563 = vxor.u32 %v5553, 2147483648
    %v5564 = vsel %vm5562, %v5563, %v5554
    %v5565 = vsel %vm5558, %v5561, %v5564
    %v5566 = vsel %vm5555, nan, %v5565
    %v5567 = vand.u32 2147483647, %v4196
    %vm5568 = vcmp.le.f32.partialorder %v5567, 0.7853982
    %vm5569 = vcmp.lt.s32.totalorder %v4196, 0
    %v5570 = vand.u32 %v4196, 2139095040
    %v5571 = vshrl.u32 %v5570, 23
    %v5572 = vsub.s32 %v5571, 127
    %v5573 = vand.u32 2147483647, %v4196
    %v5574 = vand.u32 %v5573, 8388607
    %v5575 = vor.u32 %v5574, 8388608
    %v5576 = vsub.s32 0, %v5575
    %v5577 = vadd.s32 %v5572, 1
    %vm5578 = vcmp.gt.s32.totalorder %v5577, 0
    %v5579 = vsel %vm5578, %v5577, 0
    %v5580 = vshrl.u32 %v5579, 5
    %v5581 = vand.u32 %v5579, 31
    %v5582 = vsub.s32 32, %v5581
    %v5583 = vshrl.u32 683565275, %v5582
    %v5584 = vshll.u32 683565275, %v5581
    %v5585 = vshrl.u32 2475754826, %v5582
    %v5586 = vor.u32 %v5584, %v5585
    %v5587 = vshll.u32 2475754826, %v5581
    %v5588 = vshrl.u32 2131351028, %v5582
    %v5589 = vor.u32 %v5587, %v5588
    %v5590 = vshll.u32 2131351028, %v5581
    %v5591 = vshrl.u32 2102212464, %v5582
    %v5592 = vor.u32 %v5590, %v5591
    %v5593 = vshll.u32 2102212464, %v5581
    %v5594 = vshrl.u32 920167782, %v5582
    %v5595 = vor.u32 %v5593, %v5594
    %v5596 = vshll.u32 920167782, %v5581
    %v5597 = vshrl.u32 1326507024, %v5582
    %v5598 = vor.u32 %v5596, %v5597
    %vm5599 = vcmp.lt.s32.totalorder %v5580, 1
    %vm5600 = vcmp.lt.s32.totalorder %v5580, 2
    %vm5601 = vcmp.lt.s32.totalorder %v5580, 3
    %vm5602 = vcmp.lt.s32.totalorder %v5580, 4
    %v5603 = vsel %vm5599, %v5583, %v5586
    %v5604 = vsel %vm5602, %v5592, 2102212464
    %v5605 = vsel %vm5601, %v5589, %v5604
    %v5606 = vsel %vm5600, %v5603, %v5605
    %v5607 = vsel %vm5599, %v5586, %v5589
    %v5608 = vsel %vm5602, %v5595, 920167782
    %v5609 = vsel %vm5601, %v5592, %v5608
    %v5610 = vsel %vm5600, %v5607, %v5609
    %v5611 = vsel %vm5599, %v5589, %v5592
    %v5612 = vsel %vm5602, %v5598, 1326507024
    %v5613 = vsel %vm5601, %v5595, %v5612
    %v5614 = vsel %vm5600, %v5611, %v5613
    %v5615 = vshll.u32 %v5575, 8
    %v5616 = vmul.u32.u64.compose %v5615, %v5614
    %v5617 = vextract.low.u32 %v5616
    %v5618 = vextract.high.u32 %v5616
    %v5619 = vmul.u32.u64.compose %v5615, %v5610
    %v5620 = vextract.low.u32 %v5619
    %v5621 = vextract.high.u32 %v5619
    %v5622 = vmul.u32 %v5615, %v5606
    %v5623 = vadd.s32 %v5618, %v5620
    %vm5624 = vc.u32 %v5618, %v5620
    %v5625 = vadd.s32 %v5621, 1
    %v5626 = vsel %vm5624, %v5625, %v5621
    %v5627 = vadd.s32 %v5622, %v5626
    %v5628 = vadd.s32 %v5627, 536870912
    %v5629 = vshrl.u32 %v5628, 30
    %v5630 = vshll.u32 %v5629, 30
    %v5631 = vsub.s32 %v5627, %v5630
    %vm5632 = vcmp.lt.s32.totalorder %v5631, 0
    %v5633 = vsub.s32 0, %v5631
    %v5634 = vsel %vm5632, %v5633, %v5631
    %v5635 = vclz %v5634
    %v5636 = vsub.s32 %v5635, 2
    %vm5637 = vcmp.gt.s32.totalorder 0, %v5636
    %v5638 = vsel %vm5637, 0, %v5636
    %v5639 = vsub.s32 32, %v5638
    %v5640 = vshll.u32 %v5631, %v5638
    %v5641 = vshrl.u32 %v5623, %v5639
    %v5642 = vor.u32 %v5640, %v5641
    %v5643 = vsub.s32 4294967266, %v5638
    %v5644 = vadd.s32 %v5643, 127
    %v5645 = vshll.u32 %v5644, 23
    %v5646 = vor.u32 4788187, %v5645
    %v5647 = vand.u32 2147483647, %v5646
    %v5649 = vcvt.s32.f32 %v5642
    %v5650 = vmul.f32 %v5649, %v5647
    %v5651 = vxor.u32 %v5650, 2147483648
    %v5652 = vsel %vm5569, %v5651, %v5650
    %v5653 = vsub.s32 4, %v5629
    %v5654 = vsel %vm5569, %v5653, %v5629
    %v5655 = vsel %vm5568, %v4196, %v5652
    %v5656 = vsel %vm5568, 0, %v5654
    %v5657 = vcosq.f32.pop %v5655
    %v5658 = vsinq.f32.pop %v5655
    %vm5659 = vweird.f32 %v4196
    %v5660 = vadd.s32 %v5656, 3
    %v5661 = vand.u32 %v5660, 3
    %vm5662 = vcmp.lt.s32.totalorder %v5661, 2
    %vm5663 = vcmp.eq.s32.totalorder %v5661, 0
    %v5664 = vxor.u32 %v5658, 2147483648
    %v5665 = vsel %vm5663, %v5657, %v5664
    %vm5666 = vcmp.eq.s32.totalorder %v5661, 2
    %v5667 = vxor.u32 %v5657, 2147483648
    %v5668 = vsel %vm5666, %v5667, %v5658
    %v5669 = vsel %vm5662, %v5665, %v5668
    %v5670 = vsel %vm5659, nan, %v5669
    %v5671 = vand.u32 2147483647, %v4197
    %vm5672 = vcmp.le.f32.partialorder %v5671, 0.7853982
    %vm5673 = vcmp.lt.s32.totalorder %v4197, 0
    %v5674 = vand.u32 %v4197, 2139095040
    %v5675 = vshrl.u32 %v5674, 23
    %v5676 = vsub.s32 %v5675, 127
    %v5677 = vand.u32 2147483647, %v4197
    %v5678 = vand.u32 %v5677, 8388607
    %v5679 = vor.u32 %v5678, 8388608
    %v5680 = vsub.s32 0, %v5679
    %v5681 = vadd.s32 %v5676, 1
    %vm5682 = vcmp.gt.s32.totalorder %v5681, 0
    %v5683 = vsel %vm5682, %v5681, 0
    %v5684 = vshrl.u32 %v5683, 5
    %v5685 = vand.u32 %v5683, 31
    %v5686 = vsub.s32 32, %v5685
    %v5687 = vshrl.u32 683565275, %v5686
    %v5688 = vshll.u32 683565275, %v5685
    %v5689 = vshrl.u32 2475754826, %v5686
    %v5690 = vor.u32 %v5688, %v5689
    %v5691 = vshll.u32 2475754826, %v5685
    %v5692 = vshrl.u32 2131351028, %v5686
    %v5693 = vor.u32 %v5691, %v5692
    %v5694 = vshll.u32 2131351028, %v5685
    %v5695 = vshrl.u32 2102212464, %v5686
    %v5696 = vor.u32 %v5694, %v5695
    %v5697 = vshll.u32 2102212464, %v5685
    %v5698 = vshrl.u32 920167782, %v5686
    %v5699 = vor.u32 %v5697, %v5698
    %v5700 = vshll.u32 920167782, %v5685
    %v5701 = vshrl.u32 1326507024, %v5686
    %v5702 = vor.u32 %v5700, %v5701
    %vm5703 = vcmp.lt.s32.totalorder %v5684, 1
    %vm5704 = vcmp.lt.s32.totalorder %v5684, 2
    %vm5705 = vcmp.lt.s32.totalorder %v5684, 3
    %vm5706 = vcmp.lt.s32.totalorder %v5684, 4
    %v5707 = vsel %vm5703, %v5687, %v5690
    %v5708 = vsel %vm5706, %v5696, 2102212464
    %v5709 = vsel %vm5705, %v5693, %v5708
    %v5710 = vsel %vm5704, %v5707, %v5709
    %v5711 = vsel %vm5703, %v5690, %v5693
    %v5712 = vsel %vm5706, %v5699, 920167782
    %v5713 = vsel %vm5705, %v5696, %v5712
    %v5714 = vsel %vm5704, %v5711, %v5713
    %v5715 = vsel %vm5703, %v5693, %v5696
    %v5716 = vsel %vm5706, %v5702, 1326507024
    %v5717 = vsel %vm5705, %v5699, %v5716
    %v5718 = vsel %vm5704, %v5715, %v5717
    %v5719 = vshll.u32 %v5679, 8
    %v5720 = vmul.u32.u64.compose %v5719, %v5718
    %v5721 = vextract.low.u32 %v5720
    %v5722 = vextract.high.u32 %v5720
    %v5723 = vmul.u32.u64.compose %v5719, %v5714
    %v5724 = vextract.low.u32 %v5723
    %v5725 = vextract.high.u32 %v5723
    %v5726 = vmul.u32 %v5719, %v5710
    %v5727 = vadd.s32 %v5722, %v5724
    %vm5728 = vc.u32 %v5722, %v5724
    %v5729 = vadd.s32 %v5725, 1
    %v5730 = vsel %vm5728, %v5729, %v5725
    %v5731 = vadd.s32 %v5726, %v5730
    %v5732 = vadd.s32 %v5731, 536870912
    %v5733 = vshrl.u32 %v5732, 30
    %v5734 = vshll.u32 %v5733, 30
    %v5735 = vsub.s32 %v5731, %v5734
    %vm5736 = vcmp.lt.s32.totalorder %v5735, 0
    %v5737 = vsub.s32 0, %v5735
    %v5738 = vsel %vm5736, %v5737, %v5735
    %v5739 = vclz %v5738
    %v5740 = vsub.s32 %v5739, 2
    %vm5741 = vcmp.gt.s32.totalorder 0, %v5740
    %v5742 = vsel %vm5741, 0, %v5740
    %v5743 = vsub.s32 32, %v5742
    %v5744 = vshll.u32 %v5735, %v5742
    %v5745 = vshrl.u32 %v5727, %v5743
    %v5746 = vor.u32 %v5744, %v5745
    %v5747 = vsub.s32 4294967266, %v5742
    %v5748 = vadd.s32 %v5747, 127
    %v5749 = vshll.u32 %v5748, 23
    %v5750 = vor.u32 4788187, %v5749
    %v5751 = vand.u32 2147483647, %v5750
    %v5753 = vcvt.s32.f32 %v5746
    %v5754 = vmul.f32 %v5753, %v5751
    %v5755 = vxor.u32 %v5754, 2147483648
    %v5756 = vsel %vm5673, %v5755, %v5754
    %v5757 = vsub.s32 4, %v5733
    %v5758 = vsel %vm5673, %v5757, %v5733
    %v5759 = vsel %vm5672, %v4197, %v5756
    %v5760 = vsel %vm5672, 0, %v5758
    %v5761 = vcosq.f32.pop %v5759
    %v5762 = vsinq.f32.pop %v5759
    %vm5763 = vweird.f32 %v4197
    %v5764 = vadd.s32 %v5760, 3
    %v5765 = vand.u32 %v5764, 3
    %vm5766 = vcmp.lt.s32.totalorder %v5765, 2
    %vm5767 = vcmp.eq.s32.totalorder %v5765, 0
    %v5768 = vxor.u32 %v5762, 2147483648
    %v5769 = vsel %vm5767, %v5761, %v5768
    %vm5770 = vcmp.eq.s32.totalorder %v5765, 2
    %v5771 = vxor.u32 %v5761, 2147483648
    %v5772 = vsel %vm5770, %v5771, %v5762
    %v5773 = vsel %vm5766, %v5769, %v5772
    %v5774 = vsel %vm5763, nan, %v5773
    %v5775 = vand.u32 2147483647, %v4198
    %vm5776 = vcmp.le.f32.partialorder %v5775, 0.7853982
    %vm5777 = vcmp.lt.s32.totalorder %v4198, 0
    %v5778 = vand.u32 %v4198, 2139095040
    %v5779 = vshrl.u32 %v5778, 23
    %v5780 = vsub.s32 %v5779, 127
    %v5781 = vand.u32 2147483647, %v4198
    %v5782 = vand.u32 %v5781, 8388607
    %v5783 = vor.u32 %v5782, 8388608
    %v5784 = vsub.s32 0, %v5783
    %v5785 = vadd.s32 %v5780, 1
    %vm5786 = vcmp.gt.s32.totalorder %v5785, 0
    %v5787 = vsel %vm5786, %v5785, 0
    %v5788 = vshrl.u32 %v5787, 5
    %v5789 = vand.u32 %v5787, 31
    %v5790 = vsub.s32 32, %v5789
    %v5791 = vshrl.u32 683565275, %v5790
    %v5792 = vshll.u32 683565275, %v5789
    %v5793 = vshrl.u32 2475754826, %v5790
    %v5794 = vor.u32 %v5792, %v5793
    %v5795 = vshll.u32 2475754826, %v5789
    %v5796 = vshrl.u32 2131351028, %v5790
    %v5797 = vor.u32 %v5795, %v5796
    %v5798 = vshll.u32 2131351028, %v5789
    %v5799 = vshrl.u32 2102212464, %v5790
    %v5800 = vor.u32 %v5798, %v5799
    %v5801 = vshll.u32 2102212464, %v5789
    %v5802 = vshrl.u32 920167782, %v5790
    %v5803 = vor.u32 %v5801, %v5802
    %v5804 = vshll.u32 920167782, %v5789
    %v5805 = vshrl.u32 1326507024, %v5790
    %v5806 = vor.u32 %v5804, %v5805
    %vm5807 = vcmp.lt.s32.totalorder %v5788, 1
    %vm5808 = vcmp.lt.s32.totalorder %v5788, 2
    %vm5809 = vcmp.lt.s32.totalorder %v5788, 3
    %vm5810 = vcmp.lt.s32.totalorder %v5788, 4
    %v5811 = vsel %vm5807, %v5791, %v5794
    %v5812 = vsel %vm5810, %v5800, 2102212464
    %v5813 = vsel %vm5809, %v5797, %v5812
    %v5814 = vsel %vm5808, %v5811, %v5813
    %v5815 = vsel %vm5807, %v5794, %v5797
    %v5816 = vsel %vm5810, %v5803, 920167782
    %v5817 = vsel %vm5809, %v5800, %v5816
    %v5818 = vsel %vm5808, %v5815, %v5817
    %v5819 = vsel %vm5807, %v5797, %v5800
    %v5820 = vsel %vm5810, %v5806, 1326507024
    %v5821 = vsel %vm5809, %v5803, %v5820
    %v5822 = vsel %vm5808, %v5819, %v5821
    %v5823 = vshll.u32 %v5783, 8
    %v5824 = vmul.u32.u64.compose %v5823, %v5822
    %v5825 = vextract.low.u32 %v5824
    %v5826 = vextract.high.u32 %v5824
    %v5827 = vmul.u32.u64.compose %v5823, %v5818
    %v5828 = vextract.low.u32 %v5827
    %v5829 = vextract.high.u32 %v5827
    %v5830 = vmul.u32 %v5823, %v5814
    %v5831 = vadd.s32 %v5826, %v5828
    %vm5832 = vc.u32 %v5826, %v5828
    %v5833 = vadd.s32 %v5829, 1
    %v5834 = vsel %vm5832, %v5833, %v5829
    %v5835 = vadd.s32 %v5830, %v5834
    %v5836 = vadd.s32 %v5835, 536870912
    %v5837 = vshrl.u32 %v5836, 30
    %v5838 = vshll.u32 %v5837, 30
    %v5839 = vsub.s32 %v5835, %v5838
    %vm5840 = vcmp.lt.s32.totalorder %v5839, 0
    %v5841 = vsub.s32 0, %v5839
    %v5842 = vsel %vm5840, %v5841, %v5839
    %v5843 = vclz %v5842
    %v5844 = vsub.s32 %v5843, 2
    %vm5845 = vcmp.gt.s32.totalorder 0, %v5844
    %v5846 = vsel %vm5845, 0, %v5844
    %v5847 = vsub.s32 32, %v5846
    %v5848 = vshll.u32 %v5839, %v5846
    %v5849 = vshrl.u32 %v5831, %v5847
    %v5850 = vor.u32 %v5848, %v5849
    %v5851 = vsub.s32 4294967266, %v5846
    %v5852 = vadd.s32 %v5851, 127
    %v5853 = vshll.u32 %v5852, 23
    %v5854 = vor.u32 4788187, %v5853
    %v5855 = vand.u32 2147483647, %v5854
    %v5857 = vcvt.s32.f32 %v5850
    %v5858 = vmul.f32 %v5857, %v5855
    %v5859 = vxor.u32 %v5858, 2147483648
    %v5860 = vsel %vm5777, %v5859, %v5858
    %v5861 = vsub.s32 4, %v5837
    %v5862 = vsel %vm5777, %v5861, %v5837
    %v5863 = vsel %vm5776, %v4198, %v5860
    %v5864 = vsel %vm5776, 0, %v5862
    %v5865 = vcosq.f32.pop %v5863
    %v5866 = vsinq.f32.pop %v5863
    %vm5867 = vweird.f32 %v4198
    %v5868 = vadd.s32 %v5864, 3
    %v5869 = vand.u32 %v5868, 3
    %vm5870 = vcmp.lt.s32.totalorder %v5869, 2
    %vm5871 = vcmp.eq.s32.totalorder %v5869, 0
    %v5872 = vxor.u32 %v5866, 2147483648
    %v5873 = vsel %vm5871, %v5865, %v5872
    %vm5874 = vcmp.eq.s32.totalorder %v5869, 2
    %v5875 = vxor.u32 %v5865, 2147483648
    %v5876 = vsel %vm5874, %v5875, %v5866
    %v5877 = vsel %vm5870, %v5873, %v5876
    %v5878 = vsel %vm5867, nan, %v5877
    %v5879 = vand.u32 2147483647, %v4199
    %vm5880 = vcmp.le.f32.partialorder %v5879, 0.7853982
    %vm5881 = vcmp.lt.s32.totalorder %v4199, 0
    %v5882 = vand.u32 %v4199, 2139095040
    %v5883 = vshrl.u32 %v5882, 23
    %v5884 = vsub.s32 %v5883, 127
    %v5885 = vand.u32 2147483647, %v4199
    %v5886 = vand.u32 %v5885, 8388607
    %v5887 = vor.u32 %v5886, 8388608
    %v5888 = vsub.s32 0, %v5887
    %v5889 = vadd.s32 %v5884, 1
    %vm5890 = vcmp.gt.s32.totalorder %v5889, 0
    %v5891 = vsel %vm5890, %v5889, 0
    %v5892 = vshrl.u32 %v5891, 5
    %v5893 = vand.u32 %v5891, 31
    %v5894 = vsub.s32 32, %v5893
    %v5895 = vshrl.u32 683565275, %v5894
    %v5896 = vshll.u32 683565275, %v5893
    %v5897 = vshrl.u32 2475754826, %v5894
    %v5898 = vor.u32 %v5896, %v5897
    %v5899 = vshll.u32 2475754826, %v5893
    %v5900 = vshrl.u32 2131351028, %v5894
    %v5901 = vor.u32 %v5899, %v5900
    %v5902 = vshll.u32 2131351028, %v5893
    %v5903 = vshrl.u32 2102212464, %v5894
    %v5904 = vor.u32 %v5902, %v5903
    %v5905 = vshll.u32 2102212464, %v5893
    %v5906 = vshrl.u32 920167782, %v5894
    %v5907 = vor.u32 %v5905, %v5906
    %v5908 = vshll.u32 920167782, %v5893
    %v5909 = vshrl.u32 1326507024, %v5894
    %v5910 = vor.u32 %v5908, %v5909
    %vm5911 = vcmp.lt.s32.totalorder %v5892, 1
    %vm5912 = vcmp.lt.s32.totalorder %v5892, 2
    %vm5913 = vcmp.lt.s32.totalorder %v5892, 3
    %vm5914 = vcmp.lt.s32.totalorder %v5892, 4
    %v5915 = vsel %vm5911, %v5895, %v5898
    %v5916 = vsel %vm5914, %v5904, 2102212464
    %v5917 = vsel %vm5913, %v5901, %v5916
    %v5918 = vsel %vm5912, %v5915, %v5917
    %v5919 = vsel %vm5911, %v5898, %v5901
    %v5920 = vsel %vm5914, %v5907, 920167782
    %v5921 = vsel %vm5913, %v5904, %v5920
    %v5922 = vsel %vm5912, %v5919, %v5921
    %v5923 = vsel %vm5911, %v5901, %v5904
    %v5924 = vsel %vm5914, %v5910, 1326507024
    %v5925 = vsel %vm5913, %v5907, %v5924
    %v5926 = vsel %vm5912, %v5923, %v5925
    %v5927 = vshll.u32 %v5887, 8
    %v5928 = vmul.u32.u64.compose %v5927, %v5926
    %v5929 = vextract.low.u32 %v5928
    %v5930 = vextract.high.u32 %v5928
    %v5931 = vmul.u32.u64.compose %v5927, %v5922
    %v5932 = vextract.low.u32 %v5931
    %v5933 = vextract.high.u32 %v5931
    %v5934 = vmul.u32 %v5927, %v5918
    %v5935 = vadd.s32 %v5930, %v5932
    %vm5936 = vc.u32 %v5930, %v5932
    %v5937 = vadd.s32 %v5933, 1
    %v5938 = vsel %vm5936, %v5937, %v5933
    %v5939 = vadd.s32 %v5934, %v5938
    %v5940 = vadd.s32 %v5939, 536870912
    %v5941 = vshrl.u32 %v5940, 30
    %v5942 = vshll.u32 %v5941, 30
    %v5943 = vsub.s32 %v5939, %v5942
    %vm5944 = vcmp.lt.s32.totalorder %v5943, 0
    %v5945 = vsub.s32 0, %v5943
    %v5946 = vsel %vm5944, %v5945, %v5943
    %v5947 = vclz %v5946
    %v5948 = vsub.s32 %v5947, 2
    %vm5949 = vcmp.gt.s32.totalorder 0, %v5948
    %v5950 = vsel %vm5949, 0, %v5948
    %v5951 = vsub.s32 32, %v5950
    %v5952 = vshll.u32 %v5943, %v5950
    %v5953 = vshrl.u32 %v5935, %v5951
    %v5954 = vor.u32 %v5952, %v5953
    %v5955 = vsub.s32 4294967266, %v5950
    %v5956 = vadd.s32 %v5955, 127
    %v5957 = vshll.u32 %v5956, 23
    %v5958 = vor.u32 4788187, %v5957
    %v5959 = vand.u32 2147483647, %v5958
    %v5961 = vcvt.s32.f32 %v5954
    %v5962 = vmul.f32 %v5961, %v5959
    %v5963 = vxor.u32 %v5962, 2147483648
    %v5964 = vsel %vm5881, %v5963, %v5962
    %v5965 = vsub.s32 4, %v5941
    %v5966 = vsel %vm5881, %v5965, %v5941
    %v5967 = vsel %vm5880, %v4199, %v5964
    %v5968 = vsel %vm5880, 0, %v5966
    %v5969 = vcosq.f32.pop %v5967
    %v5970 = vsinq.f32.pop %v5967
    %vm5971 = vweird.f32 %v4199
    %v5972 = vadd.s32 %v5968, 3
    %v5973 = vand.u32 %v5972, 3
    %vm5974 = vcmp.lt.s32.totalorder %v5973, 2
    %vm5975 = vcmp.eq.s32.totalorder %v5973, 0
    %v5976 = vxor.u32 %v5970, 2147483648
    %v5977 = vsel %vm5975, %v5969, %v5976
    %vm5978 = vcmp.eq.s32.totalorder %v5973, 2
    %v5979 = vxor.u32 %v5969, 2147483648
    %v5980 = vsel %vm5978, %v5979, %v5970
    %v5981 = vsel %vm5974, %v5977, %v5980
    %v5982 = vsel %vm5971, nan, %v5981
    %v5983 = vand.u32 2147483647, %v4200
    %vm5984 = vcmp.le.f32.partialorder %v5983, 0.7853982
    %vm5985 = vcmp.lt.s32.totalorder %v4200, 0
    %v5986 = vand.u32 %v4200, 2139095040
    %v5987 = vshrl.u32 %v5986, 23
    %v5988 = vsub.s32 %v5987, 127
    %v5989 = vand.u32 2147483647, %v4200
    %v5990 = vand.u32 %v5989, 8388607
    %v5991 = vor.u32 %v5990, 8388608
    %v5992 = vsub.s32 0, %v5991
    %v5993 = vadd.s32 %v5988, 1
    %vm5994 = vcmp.gt.s32.totalorder %v5993, 0
    %v5995 = vsel %vm5994, %v5993, 0
    %v5996 = vshrl.u32 %v5995, 5
    %v5997 = vand.u32 %v5995, 31
    %v5998 = vsub.s32 32, %v5997
    %v5999 = vshrl.u32 683565275, %v5998
    %v6000 = vshll.u32 683565275, %v5997
    %v6001 = vshrl.u32 2475754826, %v5998
    %v6002 = vor.u32 %v6000, %v6001
    %v6003 = vshll.u32 2475754826, %v5997
    %v6004 = vshrl.u32 2131351028, %v5998
    %v6005 = vor.u32 %v6003, %v6004
    %v6006 = vshll.u32 2131351028, %v5997
    %v6007 = vshrl.u32 2102212464, %v5998
    %v6008 = vor.u32 %v6006, %v6007
    %v6009 = vshll.u32 2102212464, %v5997
    %v6010 = vshrl.u32 920167782, %v5998
    %v6011 = vor.u32 %v6009, %v6010
    %v6012 = vshll.u32 920167782, %v5997
    %v6013 = vshrl.u32 1326507024, %v5998
    %v6014 = vor.u32 %v6012, %v6013
    %vm6015 = vcmp.lt.s32.totalorder %v5996, 1
    %vm6016 = vcmp.lt.s32.totalorder %v5996, 2
    %vm6017 = vcmp.lt.s32.totalorder %v5996, 3
    %vm6018 = vcmp.lt.s32.totalorder %v5996, 4
    %v6019 = vsel %vm6015, %v5999, %v6002
    %v6020 = vsel %vm6018, %v6008, 2102212464
    %v6021 = vsel %vm6017, %v6005, %v6020
    %v6022 = vsel %vm6016, %v6019, %v6021
    %v6023 = vsel %vm6015, %v6002, %v6005
    %v6024 = vsel %vm6018, %v6011, 920167782
    %v6025 = vsel %vm6017, %v6008, %v6024
    %v6026 = vsel %vm6016, %v6023, %v6025
    %v6027 = vsel %vm6015, %v6005, %v6008
    %v6028 = vsel %vm6018, %v6014, 1326507024
    %v6029 = vsel %vm6017, %v6011, %v6028
    %v6030 = vsel %vm6016, %v6027, %v6029
    %v6031 = vshll.u32 %v5991, 8
    %v6032 = vmul.u32.u64.compose %v6031, %v6030
    %v6033 = vextract.low.u32 %v6032
    %v6034 = vextract.high.u32 %v6032
    %v6035 = vmul.u32.u64.compose %v6031, %v6026
    %v6036 = vextract.low.u32 %v6035
    %v6037 = vextract.high.u32 %v6035
    %v6038 = vmul.u32 %v6031, %v6022
    %v6039 = vadd.s32 %v6034, %v6036
    %vm6040 = vc.u32 %v6034, %v6036
    %v6041 = vadd.s32 %v6037, 1
    %v6042 = vsel %vm6040, %v6041, %v6037
    %v6043 = vadd.s32 %v6038, %v6042
    %v6044 = vadd.s32 %v6043, 536870912
    %v6045 = vshrl.u32 %v6044, 30
    %v6046 = vshll.u32 %v6045, 30
    %v6047 = vsub.s32 %v6043, %v6046
    %vm6048 = vcmp.lt.s32.totalorder %v6047, 0
    %v6049 = vsub.s32 0, %v6047
    %v6050 = vsel %vm6048, %v6049, %v6047
    %v6051 = vclz %v6050
    %v6052 = vsub.s32 %v6051, 2
    %vm6053 = vcmp.gt.s32.totalorder 0, %v6052
    %v6054 = vsel %vm6053, 0, %v6052
    %v6055 = vsub.s32 32, %v6054
    %v6056 = vshll.u32 %v6047, %v6054
    %v6057 = vshrl.u32 %v6039, %v6055
    %v6058 = vor.u32 %v6056, %v6057
    %v6059 = vsub.s32 4294967266, %v6054
    %v6060 = vadd.s32 %v6059, 127
    %v6061 = vshll.u32 %v6060, 23
    %v6062 = vor.u32 4788187, %v6061
    %v6063 = vand.u32 2147483647, %v6062
    %v6065 = vcvt.s32.f32 %v6058
    %v6066 = vmul.f32 %v6065, %v6063
    %v6067 = vxor.u32 %v6066, 2147483648
    %v6068 = vsel %vm5985, %v6067, %v6066
    %v6069 = vsub.s32 4, %v6045
    %v6070 = vsel %vm5985, %v6069, %v6045
    %v6071 = vsel %vm5984, %v4200, %v6068
    %v6072 = vsel %vm5984, 0, %v6070
    %v6073 = vcosq.f32.pop %v6071
    %v6074 = vsinq.f32.pop %v6071
    %vm6075 = vweird.f32 %v4200
    %v6076 = vadd.s32 %v6072, 3
    %v6077 = vand.u32 %v6076, 3
    %vm6078 = vcmp.lt.s32.totalorder %v6077, 2
    %vm6079 = vcmp.eq.s32.totalorder %v6077, 0
    %v6080 = vxor.u32 %v6074, 2147483648
    %v6081 = vsel %vm6079, %v6073, %v6080
    %vm6082 = vcmp.eq.s32.totalorder %v6077, 2
    %v6083 = vxor.u32 %v6073, 2147483648
    %v6084 = vsel %vm6082, %v6083, %v6074
    %v6085 = vsel %vm6078, %v6081, %v6084
    %v6086 = vsel %vm6075, nan, %v6085
    %v6087 = vand.u32 2147483647, %v4201
    %vm6088 = vcmp.le.f32.partialorder %v6087, 0.7853982
    %vm6089 = vcmp.lt.s32.totalorder %v4201, 0
    %v6090 = vand.u32 %v4201, 2139095040
    %v6091 = vshrl.u32 %v6090, 23
    %v6092 = vsub.s32 %v6091, 127
    %v6093 = vand.u32 2147483647, %v4201
    %v6094 = vand.u32 %v6093, 8388607
    %v6095 = vor.u32 %v6094, 8388608
    %v6096 = vsub.s32 0, %v6095
    %v6097 = vadd.s32 %v6092, 1
    %vm6098 = vcmp.gt.s32.totalorder %v6097, 0
    %v6099 = vsel %vm6098, %v6097, 0
    %v6100 = vshrl.u32 %v6099, 5
    %v6101 = vand.u32 %v6099, 31
    %v6102 = vsub.s32 32, %v6101
    %v6103 = vshrl.u32 683565275, %v6102
    %v6104 = vshll.u32 683565275, %v6101
    %v6105 = vshrl.u32 2475754826, %v6102
    %v6106 = vor.u32 %v6104, %v6105
    %v6107 = vshll.u32 2475754826, %v6101
    %v6108 = vshrl.u32 2131351028, %v6102
    %v6109 = vor.u32 %v6107, %v6108
    %v6110 = vshll.u32 2131351028, %v6101
    %v6111 = vshrl.u32 2102212464, %v6102
    %v6112 = vor.u32 %v6110, %v6111
    %v6113 = vshll.u32 2102212464, %v6101
    %v6114 = vshrl.u32 920167782, %v6102
    %v6115 = vor.u32 %v6113, %v6114
    %v6116 = vshll.u32 920167782, %v6101
    %v6117 = vshrl.u32 1326507024, %v6102
    %v6118 = vor.u32 %v6116, %v6117
    %vm6119 = vcmp.lt.s32.totalorder %v6100, 1
    %vm6120 = vcmp.lt.s32.totalorder %v6100, 2
    %vm6121 = vcmp.lt.s32.totalorder %v6100, 3
    %vm6122 = vcmp.lt.s32.totalorder %v6100, 4
    %v6123 = vsel %vm6119, %v6103, %v6106
    %v6124 = vsel %vm6122, %v6112, 2102212464
    %v6125 = vsel %vm6121, %v6109, %v6124
    %v6126 = vsel %vm6120, %v6123, %v6125
    %v6127 = vsel %vm6119, %v6106, %v6109
    %v6128 = vsel %vm6122, %v6115, 920167782
    %v6129 = vsel %vm6121, %v6112, %v6128
    %v6130 = vsel %vm6120, %v6127, %v6129
    %v6131 = vsel %vm6119, %v6109, %v6112
    %v6132 = vsel %vm6122, %v6118, 1326507024
    %v6133 = vsel %vm6121, %v6115, %v6132
    %v6134 = vsel %vm6120, %v6131, %v6133
    %v6135 = vshll.u32 %v6095, 8
    %v6136 = vmul.u32.u64.compose %v6135, %v6134
    %v6137 = vextract.low.u32 %v6136
    %v6138 = vextract.high.u32 %v6136
    %v6139 = vmul.u32.u64.compose %v6135, %v6130
    %v6140 = vextract.low.u32 %v6139
    %v6141 = vextract.high.u32 %v6139
    %v6142 = vmul.u32 %v6135, %v6126
    %v6143 = vadd.s32 %v6138, %v6140
    %vm6144 = vc.u32 %v6138, %v6140
    %v6145 = vadd.s32 %v6141, 1
    %v6146 = vsel %vm6144, %v6145, %v6141
    %v6147 = vadd.s32 %v6142, %v6146
    %v6148 = vadd.s32 %v6147, 536870912
    %v6149 = vshrl.u32 %v6148, 30
    %v6150 = vshll.u32 %v6149, 30
    %v6151 = vsub.s32 %v6147, %v6150
    %vm6152 = vcmp.lt.s32.totalorder %v6151, 0
    %v6153 = vsub.s32 0, %v6151
    %v6154 = vsel %vm6152, %v6153, %v6151
    %v6155 = vclz %v6154
    %v6156 = vsub.s32 %v6155, 2
    %vm6157 = vcmp.gt.s32.totalorder 0, %v6156
    %v6158 = vsel %vm6157, 0, %v6156
    %v6159 = vsub.s32 32, %v6158
    %v6160 = vshll.u32 %v6151, %v6158
    %v6161 = vshrl.u32 %v6143, %v6159
    %v6162 = vor.u32 %v6160, %v6161
    %v6163 = vsub.s32 4294967266, %v6158
    %v6164 = vadd.s32 %v6163, 127
    %v6165 = vshll.u32 %v6164, 23
    %v6166 = vor.u32 4788187, %v6165
    %v6167 = vand.u32 2147483647, %v6166
    %v6169 = vcvt.s32.f32 %v6162
    %v6170 = vmul.f32 %v6169, %v6167
    %v6171 = vxor.u32 %v6170, 2147483648
    %v6172 = vsel %vm6089, %v6171, %v6170
    %v6173 = vsub.s32 4, %v6149
    %v6174 = vsel %vm6089, %v6173, %v6149
    %v6175 = vsel %vm6088, %v4201, %v6172
    %v6176 = vsel %vm6088, 0, %v6174
    %v6177 = vcosq.f32.pop %v6175
    %v6178 = vsinq.f32.pop %v6175
    %vm6179 = vweird.f32 %v4201
    %v6180 = vadd.s32 %v6176, 3
    %v6181 = vand.u32 %v6180, 3
    %vm6182 = vcmp.lt.s32.totalorder %v6181, 2
    %vm6183 = vcmp.eq.s32.totalorder %v6181, 0
    %v6184 = vxor.u32 %v6178, 2147483648
    %v6185 = vsel %vm6183, %v6177, %v6184
    %vm6186 = vcmp.eq.s32.totalorder %v6181, 2
    %v6187 = vxor.u32 %v6177, 2147483648
    %v6188 = vsel %vm6186, %v6187, %v6178
    %v6189 = vsel %vm6182, %v6185, %v6188
    %v6190 = vsel %vm6179, nan, %v6189
    %v6191 = vand.u32 2147483647, %v4202
    %vm6192 = vcmp.le.f32.partialorder %v6191, 0.7853982
    %vm6193 = vcmp.lt.s32.totalorder %v4202, 0
    %v6194 = vand.u32 %v4202, 2139095040
    %v6195 = vshrl.u32 %v6194, 23
    %v6196 = vsub.s32 %v6195, 127
    %v6197 = vand.u32 2147483647, %v4202
    %v6198 = vand.u32 %v6197, 8388607
    %v6199 = vor.u32 %v6198, 8388608
    %v6200 = vsub.s32 0, %v6199
    %v6201 = vadd.s32 %v6196, 1
    %vm6202 = vcmp.gt.s32.totalorder %v6201, 0
    %v6203 = vsel %vm6202, %v6201, 0
    %v6204 = vshrl.u32 %v6203, 5
    %v6205 = vand.u32 %v6203, 31
    %v6206 = vsub.s32 32, %v6205
    %v6207 = vshrl.u32 683565275, %v6206
    %v6208 = vshll.u32 683565275, %v6205
    %v6209 = vshrl.u32 2475754826, %v6206
    %v6210 = vor.u32 %v6208, %v6209
    %v6211 = vshll.u32 2475754826, %v6205
    %v6212 = vshrl.u32 2131351028, %v6206
    %v6213 = vor.u32 %v6211, %v6212
    %v6214 = vshll.u32 2131351028, %v6205
    %v6215 = vshrl.u32 2102212464, %v6206
    %v6216 = vor.u32 %v6214, %v6215
    %v6217 = vshll.u32 2102212464, %v6205
    %v6218 = vshrl.u32 920167782, %v6206
    %v6219 = vor.u32 %v6217, %v6218
    %v6220 = vshll.u32 920167782, %v6205
    %v6221 = vshrl.u32 1326507024, %v6206
    %v6222 = vor.u32 %v6220, %v6221
    %vm6223 = vcmp.lt.s32.totalorder %v6204, 1
    %vm6224 = vcmp.lt.s32.totalorder %v6204, 2
    %vm6225 = vcmp.lt.s32.totalorder %v6204, 3
    %vm6226 = vcmp.lt.s32.totalorder %v6204, 4
    %v6227 = vsel %vm6223, %v6207, %v6210
    %v6228 = vsel %vm6226, %v6216, 2102212464
    %v6229 = vsel %vm6225, %v6213, %v6228
    %v6230 = vsel %vm6224, %v6227, %v6229
    %v6231 = vsel %vm6223, %v6210, %v6213
    %v6232 = vsel %vm6226, %v6219, 920167782
    %v6233 = vsel %vm6225, %v6216, %v6232
    %v6234 = vsel %vm6224, %v6231, %v6233
    %v6235 = vsel %vm6223, %v6213, %v6216
    %v6236 = vsel %vm6226, %v6222, 1326507024
    %v6237 = vsel %vm6225, %v6219, %v6236
    %v6238 = vsel %vm6224, %v6235, %v6237
    %v6239 = vshll.u32 %v6199, 8
    %v6240 = vmul.u32.u64.compose %v6239, %v6238
    %v6241 = vextract.low.u32 %v6240
    %v6242 = vextract.high.u32 %v6240
    %v6243 = vmul.u32.u64.compose %v6239, %v6234
    %v6244 = vextract.low.u32 %v6243
    %v6245 = vextract.high.u32 %v6243
    %v6246 = vmul.u32 %v6239, %v6230
    %v6247 = vadd.s32 %v6242, %v6244
    %vm6248 = vc.u32 %v6242, %v6244
    %v6249 = vadd.s32 %v6245, 1
    %v6250 = vsel %vm6248, %v6249, %v6245
    %v6251 = vadd.s32 %v6246, %v6250
    %v6252 = vadd.s32 %v6251, 536870912
    %v6253 = vshrl.u32 %v6252, 30
    %v6254 = vshll.u32 %v6253, 30
    %v6255 = vsub.s32 %v6251, %v6254
    %vm6256 = vcmp.lt.s32.totalorder %v6255, 0
    %v6257 = vsub.s32 0, %v6255
    %v6258 = vsel %vm6256, %v6257, %v6255
    %v6259 = vclz %v6258
    %v6260 = vsub.s32 %v6259, 2
    %vm6261 = vcmp.gt.s32.totalorder 0, %v6260
    %v6262 = vsel %vm6261, 0, %v6260
    %v6263 = vsub.s32 32, %v6262
    %v6264 = vshll.u32 %v6255, %v6262
    %v6265 = vshrl.u32 %v6247, %v6263
    %v6266 = vor.u32 %v6264, %v6265
    %v6267 = vsub.s32 4294967266, %v6262
    %v6268 = vadd.s32 %v6267, 127
    %v6269 = vshll.u32 %v6268, 23
    %v6270 = vor.u32 4788187, %v6269
    %v6271 = vand.u32 2147483647, %v6270
    %v6273 = vcvt.s32.f32 %v6266
    %v6274 = vmul.f32 %v6273, %v6271
    %v6275 = vxor.u32 %v6274, 2147483648
    %v6276 = vsel %vm6193, %v6275, %v6274
    %v6277 = vsub.s32 4, %v6253
    %v6278 = vsel %vm6193, %v6277, %v6253
    %v6279 = vsel %vm6192, %v4202, %v6276
    %v6280 = vsel %vm6192, 0, %v6278
    %v6281 = vcosq.f32.pop %v6279
    %v6282 = vsinq.f32.pop %v6279
    %vm6283 = vweird.f32 %v4202
    %v6284 = vadd.s32 %v6280, 3
    %v6285 = vand.u32 %v6284, 3
    %vm6286 = vcmp.lt.s32.totalorder %v6285, 2
    %vm6287 = vcmp.eq.s32.totalorder %v6285, 0
    %v6288 = vxor.u32 %v6282, 2147483648
    %v6289 = vsel %vm6287, %v6281, %v6288
    %vm6290 = vcmp.eq.s32.totalorder %v6285, 2
    %v6291 = vxor.u32 %v6281, 2147483648
    %v6292 = vsel %vm6290, %v6291, %v6282
    %v6293 = vsel %vm6286, %v6289, %v6292
    %v6294 = vsel %vm6283, nan, %v6293
    %v6295 = vand.u32 2147483647, %v4203
    %vm6296 = vcmp.le.f32.partialorder %v6295, 0.7853982
    %vm6297 = vcmp.lt.s32.totalorder %v4203, 0
    %v6298 = vand.u32 %v4203, 2139095040
    %v6299 = vshrl.u32 %v6298, 23
    %v6300 = vsub.s32 %v6299, 127
    %v6301 = vand.u32 2147483647, %v4203
    %v6302 = vand.u32 %v6301, 8388607
    %v6303 = vor.u32 %v6302, 8388608
    %v6304 = vsub.s32 0, %v6303
    %v6305 = vadd.s32 %v6300, 1
    %vm6306 = vcmp.gt.s32.totalorder %v6305, 0
    %v6307 = vsel %vm6306, %v6305, 0
    %v6308 = vshrl.u32 %v6307, 5
    %v6309 = vand.u32 %v6307, 31
    %v6310 = vsub.s32 32, %v6309
    %v6311 = vshrl.u32 683565275, %v6310
    %v6312 = vshll.u32 683565275, %v6309
    %v6313 = vshrl.u32 2475754826, %v6310
    %v6314 = vor.u32 %v6312, %v6313
    %v6315 = vshll.u32 2475754826, %v6309
    %v6316 = vshrl.u32 2131351028, %v6310
    %v6317 = vor.u32 %v6315, %v6316
    %v6318 = vshll.u32 2131351028, %v6309
    %v6319 = vshrl.u32 2102212464, %v6310
    %v6320 = vor.u32 %v6318, %v6319
    %v6321 = vshll.u32 2102212464, %v6309
    %v6322 = vshrl.u32 920167782, %v6310
    %v6323 = vor.u32 %v6321, %v6322
    %v6324 = vshll.u32 920167782, %v6309
    %v6325 = vshrl.u32 1326507024, %v6310
    %v6326 = vor.u32 %v6324, %v6325
    %vm6327 = vcmp.lt.s32.totalorder %v6308, 1
    %vm6328 = vcmp.lt.s32.totalorder %v6308, 2
    %vm6329 = vcmp.lt.s32.totalorder %v6308, 3
    %vm6330 = vcmp.lt.s32.totalorder %v6308, 4
    %v6331 = vsel %vm6327, %v6311, %v6314
    %v6332 = vsel %vm6330, %v6320, 2102212464
    %v6333 = vsel %vm6329, %v6317, %v6332
    %v6334 = vsel %vm6328, %v6331, %v6333
    %v6335 = vsel %vm6327, %v6314, %v6317
    %v6336 = vsel %vm6330, %v6323, 920167782
    %v6337 = vsel %vm6329, %v6320, %v6336
    %v6338 = vsel %vm6328, %v6335, %v6337
    %v6339 = vsel %vm6327, %v6317, %v6320
    %v6340 = vsel %vm6330, %v6326, 1326507024
    %v6341 = vsel %vm6329, %v6323, %v6340
    %v6342 = vsel %vm6328, %v6339, %v6341
    %v6343 = vshll.u32 %v6303, 8
    %v6344 = vmul.u32.u64.compose %v6343, %v6342
    %v6345 = vextract.low.u32 %v6344
    %v6346 = vextract.high.u32 %v6344
    %v6347 = vmul.u32.u64.compose %v6343, %v6338
    %v6348 = vextract.low.u32 %v6347
    %v6349 = vextract.high.u32 %v6347
    %v6350 = vmul.u32 %v6343, %v6334
    %v6351 = vadd.s32 %v6346, %v6348
    %vm6352 = vc.u32 %v6346, %v6348
    %v6353 = vadd.s32 %v6349, 1
    %v6354 = vsel %vm6352, %v6353, %v6349
    %v6355 = vadd.s32 %v6350, %v6354
    %v6356 = vadd.s32 %v6355, 536870912
    %v6357 = vshrl.u32 %v6356, 30
    %v6358 = vshll.u32 %v6357, 30
    %v6359 = vsub.s32 %v6355, %v6358
    %vm6360 = vcmp.lt.s32.totalorder %v6359, 0
    %v6361 = vsub.s32 0, %v6359
    %v6362 = vsel %vm6360, %v6361, %v6359
    %v6363 = vclz %v6362
    %v6364 = vsub.s32 %v6363, 2
    %vm6365 = vcmp.gt.s32.totalorder 0, %v6364
    %v6366 = vsel %vm6365, 0, %v6364
    %v6367 = vsub.s32 32, %v6366
    %v6368 = vshll.u32 %v6359, %v6366
    %v6369 = vshrl.u32 %v6351, %v6367
    %v6370 = vor.u32 %v6368, %v6369
    %v6371 = vsub.s32 4294967266, %v6366
    %v6372 = vadd.s32 %v6371, 127
    %v6373 = vshll.u32 %v6372, 23
    %v6374 = vor.u32 4788187, %v6373
    %v6375 = vand.u32 2147483647, %v6374
    %v6377 = vcvt.s32.f32 %v6370
    %v6378 = vmul.f32 %v6377, %v6375
    %v6379 = vxor.u32 %v6378, 2147483648
    %v6380 = vsel %vm6297, %v6379, %v6378
    %v6381 = vsub.s32 4, %v6357
    %v6382 = vsel %vm6297, %v6381, %v6357
    %v6383 = vsel %vm6296, %v4203, %v6380
    %v6384 = vsel %vm6296, 0, %v6382
    %v6385 = vcosq.f32.pop %v6383
    %v6386 = vsinq.f32.pop %v6383
    %vm6387 = vweird.f32 %v4203
    %v6388 = vadd.s32 %v6384, 3
    %v6389 = vand.u32 %v6388, 3
    %vm6390 = vcmp.lt.s32.totalorder %v6389, 2
    %vm6391 = vcmp.eq.s32.totalorder %v6389, 0
    %v6392 = vxor.u32 %v6386, 2147483648
    %v6393 = vsel %vm6391, %v6385, %v6392
    %vm6394 = vcmp.eq.s32.totalorder %v6389, 2
    %v6395 = vxor.u32 %v6385, 2147483648
    %v6396 = vsel %vm6394, %v6395, %v6386
    %v6397 = vsel %vm6390, %v6393, %v6396
    %v6398 = vsel %vm6387, nan, %v6397
    %v6399 = vand.u32 2147483647, %v4204
    %vm6400 = vcmp.le.f32.partialorder %v6399, 0.7853982
    %vm6401 = vcmp.lt.s32.totalorder %v4204, 0
    %v6402 = vand.u32 %v4204, 2139095040
    %v6403 = vshrl.u32 %v6402, 23
    %v6404 = vsub.s32 %v6403, 127
    %v6405 = vand.u32 2147483647, %v4204
    %v6406 = vand.u32 %v6405, 8388607
    %v6407 = vor.u32 %v6406, 8388608
    %v6408 = vsub.s32 0, %v6407
    %v6409 = vadd.s32 %v6404, 1
    %vm6410 = vcmp.gt.s32.totalorder %v6409, 0
    %v6411 = vsel %vm6410, %v6409, 0
    %v6412 = vshrl.u32 %v6411, 5
    %v6413 = vand.u32 %v6411, 31
    %v6414 = vsub.s32 32, %v6413
    %v6415 = vshrl.u32 683565275, %v6414
    %v6416 = vshll.u32 683565275, %v6413
    %v6417 = vshrl.u32 2475754826, %v6414
    %v6418 = vor.u32 %v6416, %v6417
    %v6419 = vshll.u32 2475754826, %v6413
    %v6420 = vshrl.u32 2131351028, %v6414
    %v6421 = vor.u32 %v6419, %v6420
    %v6422 = vshll.u32 2131351028, %v6413
    %v6423 = vshrl.u32 2102212464, %v6414
    %v6424 = vor.u32 %v6422, %v6423
    %v6425 = vshll.u32 2102212464, %v6413
    %v6426 = vshrl.u32 920167782, %v6414
    %v6427 = vor.u32 %v6425, %v6426
    %v6428 = vshll.u32 920167782, %v6413
    %v6429 = vshrl.u32 1326507024, %v6414
    %v6430 = vor.u32 %v6428, %v6429
    %vm6431 = vcmp.lt.s32.totalorder %v6412, 1
    %vm6432 = vcmp.lt.s32.totalorder %v6412, 2
    %vm6433 = vcmp.lt.s32.totalorder %v6412, 3
    %vm6434 = vcmp.lt.s32.totalorder %v6412, 4
    %v6435 = vsel %vm6431, %v6415, %v6418
    %v6436 = vsel %vm6434, %v6424, 2102212464
    %v6437 = vsel %vm6433, %v6421, %v6436
    %v6438 = vsel %vm6432, %v6435, %v6437
    %v6439 = vsel %vm6431, %v6418, %v6421
    %v6440 = vsel %vm6434, %v6427, 920167782
    %v6441 = vsel %vm6433, %v6424, %v6440
    %v6442 = vsel %vm6432, %v6439, %v6441
    %v6443 = vsel %vm6431, %v6421, %v6424
    %v6444 = vsel %vm6434, %v6430, 1326507024
    %v6445 = vsel %vm6433, %v6427, %v6444
    %v6446 = vsel %vm6432, %v6443, %v6445
    %v6447 = vshll.u32 %v6407, 8
    %v6448 = vmul.u32.u64.compose %v6447, %v6446
    %v6449 = vextract.low.u32 %v6448
    %v6450 = vextract.high.u32 %v6448
    %v6451 = vmul.u32.u64.compose %v6447, %v6442
    %v6452 = vextract.low.u32 %v6451
    %v6453 = vextract.high.u32 %v6451
    %v6454 = vmul.u32 %v6447, %v6438
    %v6455 = vadd.s32 %v6450, %v6452
    %vm6456 = vc.u32 %v6450, %v6452
    %v6457 = vadd.s32 %v6453, 1
    %v6458 = vsel %vm6456, %v6457, %v6453
    %v6459 = vadd.s32 %v6454, %v6458
    %v6460 = vadd.s32 %v6459, 536870912
    %v6461 = vshrl.u32 %v6460, 30
    %v6462 = vshll.u32 %v6461, 30
    %v6463 = vsub.s32 %v6459, %v6462
    %vm6464 = vcmp.lt.s32.totalorder %v6463, 0
    %v6465 = vsub.s32 0, %v6463
    %v6466 = vsel %vm6464, %v6465, %v6463
    %v6467 = vclz %v6466
    %v6468 = vsub.s32 %v6467, 2
    %vm6469 = vcmp.gt.s32.totalorder 0, %v6468
    %v6470 = vsel %vm6469, 0, %v6468
    %v6471 = vsub.s32 32, %v6470
    %v6472 = vshll.u32 %v6463, %v6470
    %v6473 = vshrl.u32 %v6455, %v6471
    %v6474 = vor.u32 %v6472, %v6473
    %v6475 = vsub.s32 4294967266, %v6470
    %v6476 = vadd.s32 %v6475, 127
    %v6477 = vshll.u32 %v6476, 23
    %v6478 = vor.u32 4788187, %v6477
    %v6479 = vand.u32 2147483647, %v6478
    %v6481 = vcvt.s32.f32 %v6474
    %v6482 = vmul.f32 %v6481, %v6479
    %v6483 = vxor.u32 %v6482, 2147483648
    %v6484 = vsel %vm6401, %v6483, %v6482
    %v6485 = vsub.s32 4, %v6461
    %v6486 = vsel %vm6401, %v6485, %v6461
    %v6487 = vsel %vm6400, %v4204, %v6484
    %v6488 = vsel %vm6400, 0, %v6486
    %v6489 = vcosq.f32.pop %v6487
    %v6490 = vsinq.f32.pop %v6487
    %vm6491 = vweird.f32 %v4204
    %v6492 = vadd.s32 %v6488, 3
    %v6493 = vand.u32 %v6492, 3
    %vm6494 = vcmp.lt.s32.totalorder %v6493, 2
    %vm6495 = vcmp.eq.s32.totalorder %v6493, 0
    %v6496 = vxor.u32 %v6490, 2147483648
    %v6497 = vsel %vm6495, %v6489, %v6496
    %vm6498 = vcmp.eq.s32.totalorder %v6493, 2
    %v6499 = vxor.u32 %v6489, 2147483648
    %v6500 = vsel %vm6498, %v6499, %v6490
    %v6501 = vsel %vm6494, %v6497, %v6500
    %v6502 = vsel %vm6491, nan, %v6501
    %v6503 = vand.u32 2147483647, %v4205
    %vm6504 = vcmp.le.f32.partialorder %v6503, 0.7853982
    %vm6505 = vcmp.lt.s32.totalorder %v4205, 0
    %v6506 = vand.u32 %v4205, 2139095040
    %v6507 = vshrl.u32 %v6506, 23
    %v6508 = vsub.s32 %v6507, 127
    %v6509 = vand.u32 2147483647, %v4205
    %v6510 = vand.u32 %v6509, 8388607
    %v6511 = vor.u32 %v6510, 8388608
    %v6512 = vsub.s32 0, %v6511
    %v6513 = vadd.s32 %v6508, 1
    %vm6514 = vcmp.gt.s32.totalorder %v6513, 0
    %v6515 = vsel %vm6514, %v6513, 0
    %v6516 = vshrl.u32 %v6515, 5
    %v6517 = vand.u32 %v6515, 31
    %v6518 = vsub.s32 32, %v6517
    %v6519 = vshrl.u32 683565275, %v6518
    %v6520 = vshll.u32 683565275, %v6517
    %v6521 = vshrl.u32 2475754826, %v6518
    %v6522 = vor.u32 %v6520, %v6521
    %v6523 = vshll.u32 2475754826, %v6517
    %v6524 = vshrl.u32 2131351028, %v6518
    %v6525 = vor.u32 %v6523, %v6524
    %v6526 = vshll.u32 2131351028, %v6517
    %v6527 = vshrl.u32 2102212464, %v6518
    %v6528 = vor.u32 %v6526, %v6527
    %v6529 = vshll.u32 2102212464, %v6517
    %v6530 = vshrl.u32 920167782, %v6518
    %v6531 = vor.u32 %v6529, %v6530
    %v6532 = vshll.u32 920167782, %v6517
    %v6533 = vshrl.u32 1326507024, %v6518
    %v6534 = vor.u32 %v6532, %v6533
    %vm6535 = vcmp.lt.s32.totalorder %v6516, 1
    %vm6536 = vcmp.lt.s32.totalorder %v6516, 2
    %vm6537 = vcmp.lt.s32.totalorder %v6516, 3
    %vm6538 = vcmp.lt.s32.totalorder %v6516, 4
    %v6539 = vsel %vm6535, %v6519, %v6522
    %v6540 = vsel %vm6538, %v6528, 2102212464
    %v6541 = vsel %vm6537, %v6525, %v6540
    %v6542 = vsel %vm6536, %v6539, %v6541
    %v6543 = vsel %vm6535, %v6522, %v6525
    %v6544 = vsel %vm6538, %v6531, 920167782
    %v6545 = vsel %vm6537, %v6528, %v6544
    %v6546 = vsel %vm6536, %v6543, %v6545
    %v6547 = vsel %vm6535, %v6525, %v6528
    %v6548 = vsel %vm6538, %v6534, 1326507024
    %v6549 = vsel %vm6537, %v6531, %v6548
    %v6550 = vsel %vm6536, %v6547, %v6549
    %v6551 = vshll.u32 %v6511, 8
    %v6552 = vmul.u32.u64.compose %v6551, %v6550
    %v6553 = vextract.low.u32 %v6552
    %v6554 = vextract.high.u32 %v6552
    %v6555 = vmul.u32.u64.compose %v6551, %v6546
    %v6556 = vextract.low.u32 %v6555
    %v6557 = vextract.high.u32 %v6555
    %v6558 = vmul.u32 %v6551, %v6542
    %v6559 = vadd.s32 %v6554, %v6556
    %vm6560 = vc.u32 %v6554, %v6556
    %v6561 = vadd.s32 %v6557, 1
    %v6562 = vsel %vm6560, %v6561, %v6557
    %v6563 = vadd.s32 %v6558, %v6562
    %v6564 = vadd.s32 %v6563, 536870912
    %v6565 = vshrl.u32 %v6564, 30
    %v6566 = vshll.u32 %v6565, 30
    %v6567 = vsub.s32 %v6563, %v6566
    %vm6568 = vcmp.lt.s32.totalorder %v6567, 0
    %v6569 = vsub.s32 0, %v6567
    %v6570 = vsel %vm6568, %v6569, %v6567
    %v6571 = vclz %v6570
    %v6572 = vsub.s32 %v6571, 2
    %vm6573 = vcmp.gt.s32.totalorder 0, %v6572
    %v6574 = vsel %vm6573, 0, %v6572
    %v6575 = vsub.s32 32, %v6574
    %v6576 = vshll.u32 %v6567, %v6574
    %v6577 = vshrl.u32 %v6559, %v6575
    %v6578 = vor.u32 %v6576, %v6577
    %v6579 = vsub.s32 4294967266, %v6574
    %v6580 = vadd.s32 %v6579, 127
    %v6581 = vshll.u32 %v6580, 23
    %v6582 = vor.u32 4788187, %v6581
    %v6583 = vand.u32 2147483647, %v6582
    %v6585 = vcvt.s32.f32 %v6578
    %v6586 = vmul.f32 %v6585, %v6583
    %v6587 = vxor.u32 %v6586, 2147483648
    %v6588 = vsel %vm6505, %v6587, %v6586
    %v6589 = vsub.s32 4, %v6565
    %v6590 = vsel %vm6505, %v6589, %v6565
    %v6591 = vsel %vm6504, %v4205, %v6588
    %v6592 = vsel %vm6504, 0, %v6590
    %v6593 = vcosq.f32.pop %v6591
    %v6594 = vsinq.f32.pop %v6591
    %vm6595 = vweird.f32 %v4205
    %v6596 = vadd.s32 %v6592, 3
    %v6597 = vand.u32 %v6596, 3
    %vm6598 = vcmp.lt.s32.totalorder %v6597, 2
    %vm6599 = vcmp.eq.s32.totalorder %v6597, 0
    %v6600 = vxor.u32 %v6594, 2147483648
    %v6601 = vsel %vm6599, %v6593, %v6600
    %vm6602 = vcmp.eq.s32.totalorder %v6597, 2
    %v6603 = vxor.u32 %v6593, 2147483648
    %v6604 = vsel %vm6602, %v6603, %v6594
    %v6605 = vsel %vm6598, %v6601, %v6604
    %v6606 = vsel %vm6595, nan, %v6605
    %v6607 = vand.u32 2147483647, %v4206
    %vm6608 = vcmp.le.f32.partialorder %v6607, 0.7853982
    %vm6609 = vcmp.lt.s32.totalorder %v4206, 0
    %v6610 = vand.u32 %v4206, 2139095040
    %v6611 = vshrl.u32 %v6610, 23
    %v6612 = vsub.s32 %v6611, 127
    %v6613 = vand.u32 2147483647, %v4206
    %v6614 = vand.u32 %v6613, 8388607
    %v6615 = vor.u32 %v6614, 8388608
    %v6616 = vsub.s32 0, %v6615
    %v6617 = vadd.s32 %v6612, 1
    %vm6618 = vcmp.gt.s32.totalorder %v6617, 0
    %v6619 = vsel %vm6618, %v6617, 0
    %v6620 = vshrl.u32 %v6619, 5
    %v6621 = vand.u32 %v6619, 31
    %v6622 = vsub.s32 32, %v6621
    %v6623 = vshrl.u32 683565275, %v6622
    %v6624 = vshll.u32 683565275, %v6621
    %v6625 = vshrl.u32 2475754826, %v6622
    %v6626 = vor.u32 %v6624, %v6625
    %v6627 = vshll.u32 2475754826, %v6621
    %v6628 = vshrl.u32 2131351028, %v6622
    %v6629 = vor.u32 %v6627, %v6628
    %v6630 = vshll.u32 2131351028, %v6621
    %v6631 = vshrl.u32 2102212464, %v6622
    %v6632 = vor.u32 %v6630, %v6631
    %v6633 = vshll.u32 2102212464, %v6621
    %v6634 = vshrl.u32 920167782, %v6622
    %v6635 = vor.u32 %v6633, %v6634
    %v6636 = vshll.u32 920167782, %v6621
    %v6637 = vshrl.u32 1326507024, %v6622
    %v6638 = vor.u32 %v6636, %v6637
    %vm6639 = vcmp.lt.s32.totalorder %v6620, 1
    %vm6640 = vcmp.lt.s32.totalorder %v6620, 2
    %vm6641 = vcmp.lt.s32.totalorder %v6620, 3
    %vm6642 = vcmp.lt.s32.totalorder %v6620, 4
    %v6643 = vsel %vm6639, %v6623, %v6626
    %v6644 = vsel %vm6642, %v6632, 2102212464
    %v6645 = vsel %vm6641, %v6629, %v6644
    %v6646 = vsel %vm6640, %v6643, %v6645
    %v6647 = vsel %vm6639, %v6626, %v6629
    %v6648 = vsel %vm6642, %v6635, 920167782
    %v6649 = vsel %vm6641, %v6632, %v6648
    %v6650 = vsel %vm6640, %v6647, %v6649
    %v6651 = vsel %vm6639, %v6629, %v6632
    %v6652 = vsel %vm6642, %v6638, 1326507024
    %v6653 = vsel %vm6641, %v6635, %v6652
    %v6654 = vsel %vm6640, %v6651, %v6653
    %v6655 = vshll.u32 %v6615, 8
    %v6656 = vmul.u32.u64.compose %v6655, %v6654
    %v6657 = vextract.low.u32 %v6656
    %v6658 = vextract.high.u32 %v6656
    %v6659 = vmul.u32.u64.compose %v6655, %v6650
    %v6660 = vextract.low.u32 %v6659
    %v6661 = vextract.high.u32 %v6659
    %v6662 = vmul.u32 %v6655, %v6646
    %v6663 = vadd.s32 %v6658, %v6660
    %vm6664 = vc.u32 %v6658, %v6660
    %v6665 = vadd.s32 %v6661, 1
    %v6666 = vsel %vm6664, %v6665, %v6661
    %v6667 = vadd.s32 %v6662, %v6666
    %v6668 = vadd.s32 %v6667, 536870912
    %v6669 = vshrl.u32 %v6668, 30
    %v6670 = vshll.u32 %v6669, 30
    %v6671 = vsub.s32 %v6667, %v6670
    %vm6672 = vcmp.lt.s32.totalorder %v6671, 0
    %v6673 = vsub.s32 0, %v6671
    %v6674 = vsel %vm6672, %v6673, %v6671
    %v6675 = vclz %v6674
    %v6676 = vsub.s32 %v6675, 2
    %vm6677 = vcmp.gt.s32.totalorder 0, %v6676
    %v6678 = vsel %vm6677, 0, %v6676
    %v6679 = vsub.s32 32, %v6678
    %v6680 = vshll.u32 %v6671, %v6678
    %v6681 = vshrl.u32 %v6663, %v6679
    %v6682 = vor.u32 %v6680, %v6681
    %v6683 = vsub.s32 4294967266, %v6678
    %v6684 = vadd.s32 %v6683, 127
    %v6685 = vshll.u32 %v6684, 23
    %v6686 = vor.u32 4788187, %v6685
    %v6687 = vand.u32 2147483647, %v6686
    %v6689 = vcvt.s32.f32 %v6682
    %v6690 = vmul.f32 %v6689, %v6687
    %v6691 = vxor.u32 %v6690, 2147483648
    %v6692 = vsel %vm6609, %v6691, %v6690
    %v6693 = vsub.s32 4, %v6669
    %v6694 = vsel %vm6609, %v6693, %v6669
    %v6695 = vsel %vm6608, %v4206, %v6692
    %v6696 = vsel %vm6608, 0, %v6694
    %v6697 = vcosq.f32.pop %v6695
    %v6698 = vsinq.f32.pop %v6695
    %vm6699 = vweird.f32 %v4206
    %v6700 = vadd.s32 %v6696, 3
    %v6701 = vand.u32 %v6700, 3
    %vm6702 = vcmp.lt.s32.totalorder %v6701, 2
    %vm6703 = vcmp.eq.s32.totalorder %v6701, 0
    %v6704 = vxor.u32 %v6698, 2147483648
    %v6705 = vsel %vm6703, %v6697, %v6704
    %vm6706 = vcmp.eq.s32.totalorder %v6701, 2
    %v6707 = vxor.u32 %v6697, 2147483648
    %v6708 = vsel %vm6706, %v6707, %v6698
    %v6709 = vsel %vm6702, %v6705, %v6708
    %v6710 = vsel %vm6699, nan, %v6709
    %v6711 = vand.u32 2147483647, %v4207
    %vm6712 = vcmp.le.f32.partialorder %v6711, 0.7853982
    %vm6713 = vcmp.lt.s32.totalorder %v4207, 0
    %v6714 = vand.u32 %v4207, 2139095040
    %v6715 = vshrl.u32 %v6714, 23
    %v6716 = vsub.s32 %v6715, 127
    %v6717 = vand.u32 2147483647, %v4207
    %v6718 = vand.u32 %v6717, 8388607
    %v6719 = vor.u32 %v6718, 8388608
    %v6720 = vsub.s32 0, %v6719
    %v6721 = vadd.s32 %v6716, 1
    %vm6722 = vcmp.gt.s32.totalorder %v6721, 0
    %v6723 = vsel %vm6722, %v6721, 0
    %v6724 = vshrl.u32 %v6723, 5
    %v6725 = vand.u32 %v6723, 31
    %v6726 = vsub.s32 32, %v6725
    %v6727 = vshrl.u32 683565275, %v6726
    %v6728 = vshll.u32 683565275, %v6725
    %v6729 = vshrl.u32 2475754826, %v6726
    %v6730 = vor.u32 %v6728, %v6729
    %v6731 = vshll.u32 2475754826, %v6725
    %v6732 = vshrl.u32 2131351028, %v6726
    %v6733 = vor.u32 %v6731, %v6732
    %v6734 = vshll.u32 2131351028, %v6725
    %v6735 = vshrl.u32 2102212464, %v6726
    %v6736 = vor.u32 %v6734, %v6735
    %v6737 = vshll.u32 2102212464, %v6725
    %v6738 = vshrl.u32 920167782, %v6726
    %v6739 = vor.u32 %v6737, %v6738
    %v6740 = vshll.u32 920167782, %v6725
    %v6741 = vshrl.u32 1326507024, %v6726
    %v6742 = vor.u32 %v6740, %v6741
    %vm6743 = vcmp.lt.s32.totalorder %v6724, 1
    %vm6744 = vcmp.lt.s32.totalorder %v6724, 2
    %vm6745 = vcmp.lt.s32.totalorder %v6724, 3
    %vm6746 = vcmp.lt.s32.totalorder %v6724, 4
    %v6747 = vsel %vm6743, %v6727, %v6730
    %v6748 = vsel %vm6746, %v6736, 2102212464
    %v6749 = vsel %vm6745, %v6733, %v6748
    %v6750 = vsel %vm6744, %v6747, %v6749
    %v6751 = vsel %vm6743, %v6730, %v6733
    %v6752 = vsel %vm6746, %v6739, 920167782
    %v6753 = vsel %vm6745, %v6736, %v6752
    %v6754 = vsel %vm6744, %v6751, %v6753
    %v6755 = vsel %vm6743, %v6733, %v6736
    %v6756 = vsel %vm6746, %v6742, 1326507024
    %v6757 = vsel %vm6745, %v6739, %v6756
    %v6758 = vsel %vm6744, %v6755, %v6757
    %v6759 = vshll.u32 %v6719, 8
    %v6760 = vmul.u32.u64.compose %v6759, %v6758
    %v6761 = vextract.low.u32 %v6760
    %v6762 = vextract.high.u32 %v6760
    %v6763 = vmul.u32.u64.compose %v6759, %v6754
    %v6764 = vextract.low.u32 %v6763
    %v6765 = vextract.high.u32 %v6763
    %v6766 = vmul.u32 %v6759, %v6750
    %v6767 = vadd.s32 %v6762, %v6764
    %vm6768 = vc.u32 %v6762, %v6764
    %v6769 = vadd.s32 %v6765, 1
    %v6770 = vsel %vm6768, %v6769, %v6765
    %v6771 = vadd.s32 %v6766, %v6770
    %v6772 = vadd.s32 %v6771, 536870912
    %v6773 = vshrl.u32 %v6772, 30
    %v6774 = vshll.u32 %v6773, 30
    %v6775 = vsub.s32 %v6771, %v6774
    %vm6776 = vcmp.lt.s32.totalorder %v6775, 0
    %v6777 = vsub.s32 0, %v6775
    %v6778 = vsel %vm6776, %v6777, %v6775
    %v6779 = vclz %v6778
    %v6780 = vsub.s32 %v6779, 2
    %vm6781 = vcmp.gt.s32.totalorder 0, %v6780
    %v6782 = vsel %vm6781, 0, %v6780
    %v6783 = vsub.s32 32, %v6782
    %v6784 = vshll.u32 %v6775, %v6782
    %v6785 = vshrl.u32 %v6767, %v6783
    %v6786 = vor.u32 %v6784, %v6785
    %v6787 = vsub.s32 4294967266, %v6782
    %v6788 = vadd.s32 %v6787, 127
    %v6789 = vshll.u32 %v6788, 23
    %v6790 = vor.u32 4788187, %v6789
    %v6791 = vand.u32 2147483647, %v6790
    %v6793 = vcvt.s32.f32 %v6786
    %v6794 = vmul.f32 %v6793, %v6791
    %v6795 = vxor.u32 %v6794, 2147483648
    %v6796 = vsel %vm6713, %v6795, %v6794
    %v6797 = vsub.s32 4, %v6773
    %v6798 = vsel %vm6713, %v6797, %v6773
    %v6799 = vsel %vm6712, %v4207, %v6796
    %v6800 = vsel %vm6712, 0, %v6798
    %v6801 = vcosq.f32.pop %v6799
    %v6802 = vsinq.f32.pop %v6799
    %vm6803 = vweird.f32 %v4207
    %v6804 = vadd.s32 %v6800, 3
    %v6805 = vand.u32 %v6804, 3
    %vm6806 = vcmp.lt.s32.totalorder %v6805, 2
    %vm6807 = vcmp.eq.s32.totalorder %v6805, 0
    %v6808 = vxor.u32 %v6802, 2147483648
    %v6809 = vsel %vm6807, %v6801, %v6808
    %vm6810 = vcmp.eq.s32.totalorder %v6805, 2
    %v6811 = vxor.u32 %v6801, 2147483648
    %v6812 = vsel %vm6810, %v6811, %v6802
    %v6813 = vsel %vm6806, %v6809, %v6812
    %v6814 = vsel %vm6803, nan, %v6813
    %v6815 = vand.u32 2147483647, %v4208
    %vm6816 = vcmp.le.f32.partialorder %v6815, 0.7853982
    %vm6817 = vcmp.lt.s32.totalorder %v4208, 0
    %v6818 = vand.u32 %v4208, 2139095040
    %v6819 = vshrl.u32 %v6818, 23
    %v6820 = vsub.s32 %v6819, 127
    %v6821 = vand.u32 2147483647, %v4208
    %v6822 = vand.u32 %v6821, 8388607
    %v6823 = vor.u32 %v6822, 8388608
    %v6824 = vsub.s32 0, %v6823
    %v6825 = vadd.s32 %v6820, 1
    %vm6826 = vcmp.gt.s32.totalorder %v6825, 0
    %v6827 = vsel %vm6826, %v6825, 0
    %v6828 = vshrl.u32 %v6827, 5
    %v6829 = vand.u32 %v6827, 31
    %v6830 = vsub.s32 32, %v6829
    %v6831 = vshrl.u32 683565275, %v6830
    %v6832 = vshll.u32 683565275, %v6829
    %v6833 = vshrl.u32 2475754826, %v6830
    %v6834 = vor.u32 %v6832, %v6833
    %v6835 = vshll.u32 2475754826, %v6829
    %v6836 = vshrl.u32 2131351028, %v6830
    %v6837 = vor.u32 %v6835, %v6836
    %v6838 = vshll.u32 2131351028, %v6829
    %v6839 = vshrl.u32 2102212464, %v6830
    %v6840 = vor.u32 %v6838, %v6839
    %v6841 = vshll.u32 2102212464, %v6829
    %v6842 = vshrl.u32 920167782, %v6830
    %v6843 = vor.u32 %v6841, %v6842
    %v6844 = vshll.u32 920167782, %v6829
    %v6845 = vshrl.u32 1326507024, %v6830
    %v6846 = vor.u32 %v6844, %v6845
    %vm6847 = vcmp.lt.s32.totalorder %v6828, 1
    %vm6848 = vcmp.lt.s32.totalorder %v6828, 2
    %vm6849 = vcmp.lt.s32.totalorder %v6828, 3
    %vm6850 = vcmp.lt.s32.totalorder %v6828, 4
    %v6851 = vsel %vm6847, %v6831, %v6834
    %v6852 = vsel %vm6850, %v6840, 2102212464
    %v6853 = vsel %vm6849, %v6837, %v6852
    %v6854 = vsel %vm6848, %v6851, %v6853
    %v6855 = vsel %vm6847, %v6834, %v6837
    %v6856 = vsel %vm6850, %v6843, 920167782
    %v6857 = vsel %vm6849, %v6840, %v6856
    %v6858 = vsel %vm6848, %v6855, %v6857
    %v6859 = vsel %vm6847, %v6837, %v6840
    %v6860 = vsel %vm6850, %v6846, 1326507024
    %v6861 = vsel %vm6849, %v6843, %v6860
    %v6862 = vsel %vm6848, %v6859, %v6861
    %v6863 = vshll.u32 %v6823, 8
    %v6864 = vmul.u32.u64.compose %v6863, %v6862
    %v6865 = vextract.low.u32 %v6864
    %v6866 = vextract.high.u32 %v6864
    %v6867 = vmul.u32.u64.compose %v6863, %v6858
    %v6868 = vextract.low.u32 %v6867
    %v6869 = vextract.high.u32 %v6867
    %v6870 = vmul.u32 %v6863, %v6854
    %v6871 = vadd.s32 %v6866, %v6868
    %vm6872 = vc.u32 %v6866, %v6868
    %v6873 = vadd.s32 %v6869, 1
    %v6874 = vsel %vm6872, %v6873, %v6869
    %v6875 = vadd.s32 %v6870, %v6874
    %v6876 = vadd.s32 %v6875, 536870912
    %v6877 = vshrl.u32 %v6876, 30
    %v6878 = vshll.u32 %v6877, 30
    %v6879 = vsub.s32 %v6875, %v6878
    %vm6880 = vcmp.lt.s32.totalorder %v6879, 0
    %v6881 = vsub.s32 0, %v6879
    %v6882 = vsel %vm6880, %v6881, %v6879
    %v6883 = vclz %v6882
    %v6884 = vsub.s32 %v6883, 2
    %vm6885 = vcmp.gt.s32.totalorder 0, %v6884
    %v6886 = vsel %vm6885, 0, %v6884
    %v6887 = vsub.s32 32, %v6886
    %v6888 = vshll.u32 %v6879, %v6886
    %v6889 = vshrl.u32 %v6871, %v6887
    %v6890 = vor.u32 %v6888, %v6889
    %v6891 = vsub.s32 4294967266, %v6886
    %v6892 = vadd.s32 %v6891, 127
    %v6893 = vshll.u32 %v6892, 23
    %v6894 = vor.u32 4788187, %v6893
    %v6895 = vand.u32 2147483647, %v6894
    %v6897 = vcvt.s32.f32 %v6890
    %v6898 = vmul.f32 %v6897, %v6895
    %v6899 = vxor.u32 %v6898, 2147483648
    %v6900 = vsel %vm6817, %v6899, %v6898
    %v6901 = vsub.s32 4, %v6877
    %v6902 = vsel %vm6817, %v6901, %v6877
    %v6903 = vsel %vm6816, %v4208, %v6900
    %v6904 = vsel %vm6816, 0, %v6902
    %v6905 = vcosq.f32.pop %v6903
    %v6906 = vsinq.f32.pop %v6903
    %vm6907 = vweird.f32 %v4208
    %v6908 = vadd.s32 %v6904, 3
    %v6909 = vand.u32 %v6908, 3
    %vm6910 = vcmp.lt.s32.totalorder %v6909, 2
    %vm6911 = vcmp.eq.s32.totalorder %v6909, 0
    %v6912 = vxor.u32 %v6906, 2147483648
    %v6913 = vsel %vm6911, %v6905, %v6912
    %vm6914 = vcmp.eq.s32.totalorder %v6909, 2
    %v6915 = vxor.u32 %v6905, 2147483648
    %v6916 = vsel %vm6914, %v6915, %v6906
    %v6917 = vsel %vm6910, %v6913, %v6916
    %v6918 = vsel %vm6907, nan, %v6917
    %v6919 = vand.u32 2147483647, %v4209
    %vm6920 = vcmp.le.f32.partialorder %v6919, 0.7853982
    %vm6921 = vcmp.lt.s32.totalorder %v4209, 0
    %v6922 = vand.u32 %v4209, 2139095040
    %v6923 = vshrl.u32 %v6922, 23
    %v6924 = vsub.s32 %v6923, 127
    %v6925 = vand.u32 2147483647, %v4209
    %v6926 = vand.u32 %v6925, 8388607
    %v6927 = vor.u32 %v6926, 8388608
    %v6928 = vsub.s32 0, %v6927
    %v6929 = vadd.s32 %v6924, 1
    %vm6930 = vcmp.gt.s32.totalorder %v6929, 0
    %v6931 = vsel %vm6930, %v6929, 0
    %v6932 = vshrl.u32 %v6931, 5
    %v6933 = vand.u32 %v6931, 31
    %v6934 = vsub.s32 32, %v6933
    %v6935 = vshrl.u32 683565275, %v6934
    %v6936 = vshll.u32 683565275, %v6933
    %v6937 = vshrl.u32 2475754826, %v6934
    %v6938 = vor.u32 %v6936, %v6937
    %v6939 = vshll.u32 2475754826, %v6933
    %v6940 = vshrl.u32 2131351028, %v6934
    %v6941 = vor.u32 %v6939, %v6940
    %v6942 = vshll.u32 2131351028, %v6933
    %v6943 = vshrl.u32 2102212464, %v6934
    %v6944 = vor.u32 %v6942, %v6943
    %v6945 = vshll.u32 2102212464, %v6933
    %v6946 = vshrl.u32 920167782, %v6934
    %v6947 = vor.u32 %v6945, %v6946
    %v6948 = vshll.u32 920167782, %v6933
    %v6949 = vshrl.u32 1326507024, %v6934
    %v6950 = vor.u32 %v6948, %v6949
    %vm6951 = vcmp.lt.s32.totalorder %v6932, 1
    %vm6952 = vcmp.lt.s32.totalorder %v6932, 2
    %vm6953 = vcmp.lt.s32.totalorder %v6932, 3
    %vm6954 = vcmp.lt.s32.totalorder %v6932, 4
    %v6955 = vsel %vm6951, %v6935, %v6938
    %v6956 = vsel %vm6954, %v6944, 2102212464
    %v6957 = vsel %vm6953, %v6941, %v6956
    %v6958 = vsel %vm6952, %v6955, %v6957
    %v6959 = vsel %vm6951, %v6938, %v6941
    %v6960 = vsel %vm6954, %v6947, 920167782
    %v6961 = vsel %vm6953, %v6944, %v6960
    %v6962 = vsel %vm6952, %v6959, %v6961
    %v6963 = vsel %vm6951, %v6941, %v6944
    %v6964 = vsel %vm6954, %v6950, 1326507024
    %v6965 = vsel %vm6953, %v6947, %v6964
    %v6966 = vsel %vm6952, %v6963, %v6965
    %v6967 = vshll.u32 %v6927, 8
    %v6968 = vmul.u32.u64.compose %v6967, %v6966
    %v6969 = vextract.low.u32 %v6968
    %v6970 = vextract.high.u32 %v6968
    %v6971 = vmul.u32.u64.compose %v6967, %v6962
    %v6972 = vextract.low.u32 %v6971
    %v6973 = vextract.high.u32 %v6971
    %v6974 = vmul.u32 %v6967, %v6958
    %v6975 = vadd.s32 %v6970, %v6972
    %vm6976 = vc.u32 %v6970, %v6972
    %v6977 = vadd.s32 %v6973, 1
    %v6978 = vsel %vm6976, %v6977, %v6973
    %v6979 = vadd.s32 %v6974, %v6978
    %v6980 = vadd.s32 %v6979, 536870912
    %v6981 = vshrl.u32 %v6980, 30
    %v6982 = vshll.u32 %v6981, 30
    %v6983 = vsub.s32 %v6979, %v6982
    %vm6984 = vcmp.lt.s32.totalorder %v6983, 0
    %v6985 = vsub.s32 0, %v6983
    %v6986 = vsel %vm6984, %v6985, %v6983
    %v6987 = vclz %v6986
    %v6988 = vsub.s32 %v6987, 2
    %vm6989 = vcmp.gt.s32.totalorder 0, %v6988
    %v6990 = vsel %vm6989, 0, %v6988
    %v6991 = vsub.s32 32, %v6990
    %v6992 = vshll.u32 %v6983, %v6990
    %v6993 = vshrl.u32 %v6975, %v6991
    %v6994 = vor.u32 %v6992, %v6993
    %v6995 = vsub.s32 4294967266, %v6990
    %v6996 = vadd.s32 %v6995, 127
    %v6997 = vshll.u32 %v6996, 23
    %v6998 = vor.u32 4788187, %v6997
    %v6999 = vand.u32 2147483647, %v6998
    %v7001 = vcvt.s32.f32 %v6994
    %v7002 = vmul.f32 %v7001, %v6999
    %v7003 = vxor.u32 %v7002, 2147483648
    %v7004 = vsel %vm6921, %v7003, %v7002
    %v7005 = vsub.s32 4, %v6981
    %v7006 = vsel %vm6921, %v7005, %v6981
    %v7007 = vsel %vm6920, %v4209, %v7004
    %v7008 = vsel %vm6920, 0, %v7006
    %v7009 = vcosq.f32.pop %v7007
    %v7010 = vsinq.f32.pop %v7007
    %vm7011 = vweird.f32 %v4209
    %v7012 = vadd.s32 %v7008, 3
    %v7013 = vand.u32 %v7012, 3
    %vm7014 = vcmp.lt.s32.totalorder %v7013, 2
    %vm7015 = vcmp.eq.s32.totalorder %v7013, 0
    %v7016 = vxor.u32 %v7010, 2147483648
    %v7017 = vsel %vm7015, %v7009, %v7016
    %vm7018 = vcmp.eq.s32.totalorder %v7013, 2
    %v7019 = vxor.u32 %v7009, 2147483648
    %v7020 = vsel %vm7018, %v7019, %v7010
    %v7021 = vsel %vm7014, %v7017, %v7020
    %v7022 = vsel %vm7011, nan, %v7021
    %v7023 = vand.u32 2147483647, %v4210
    %vm7024 = vcmp.le.f32.partialorder %v7023, 0.7853982
    %vm7025 = vcmp.lt.s32.totalorder %v4210, 0
    %v7026 = vand.u32 %v4210, 2139095040
    %v7027 = vshrl.u32 %v7026, 23
    %v7028 = vsub.s32 %v7027, 127
    %v7029 = vand.u32 2147483647, %v4210
    %v7030 = vand.u32 %v7029, 8388607
    %v7031 = vor.u32 %v7030, 8388608
    %v7032 = vsub.s32 0, %v7031
    %v7033 = vadd.s32 %v7028, 1
    %vm7034 = vcmp.gt.s32.totalorder %v7033, 0
    %v7035 = vsel %vm7034, %v7033, 0
    %v7036 = vshrl.u32 %v7035, 5
    %v7037 = vand.u32 %v7035, 31
    %v7038 = vsub.s32 32, %v7037
    %v7039 = vshrl.u32 683565275, %v7038
    %v7040 = vshll.u32 683565275, %v7037
    %v7041 = vshrl.u32 2475754826, %v7038
    %v7042 = vor.u32 %v7040, %v7041
    %v7043 = vshll.u32 2475754826, %v7037
    %v7044 = vshrl.u32 2131351028, %v7038
    %v7045 = vor.u32 %v7043, %v7044
    %v7046 = vshll.u32 2131351028, %v7037
    %v7047 = vshrl.u32 2102212464, %v7038
    %v7048 = vor.u32 %v7046, %v7047
    %v7049 = vshll.u32 2102212464, %v7037
    %v7050 = vshrl.u32 920167782, %v7038
    %v7051 = vor.u32 %v7049, %v7050
    %v7052 = vshll.u32 920167782, %v7037
    %v7053 = vshrl.u32 1326507024, %v7038
    %v7054 = vor.u32 %v7052, %v7053
    %vm7055 = vcmp.lt.s32.totalorder %v7036, 1
    %vm7056 = vcmp.lt.s32.totalorder %v7036, 2
    %vm7057 = vcmp.lt.s32.totalorder %v7036, 3
    %vm7058 = vcmp.lt.s32.totalorder %v7036, 4
    %v7059 = vsel %vm7055, %v7039, %v7042
    %v7060 = vsel %vm7058, %v7048, 2102212464
    %v7061 = vsel %vm7057, %v7045, %v7060
    %v7062 = vsel %vm7056, %v7059, %v7061
    %v7063 = vsel %vm7055, %v7042, %v7045
    %v7064 = vsel %vm7058, %v7051, 920167782
    %v7065 = vsel %vm7057, %v7048, %v7064
    %v7066 = vsel %vm7056, %v7063, %v7065
    %v7067 = vsel %vm7055, %v7045, %v7048
    %v7068 = vsel %vm7058, %v7054, 1326507024
    %v7069 = vsel %vm7057, %v7051, %v7068
    %v7070 = vsel %vm7056, %v7067, %v7069
    %v7071 = vshll.u32 %v7031, 8
    %v7072 = vmul.u32.u64.compose %v7071, %v7070
    %v7073 = vextract.low.u32 %v7072
    %v7074 = vextract.high.u32 %v7072
    %v7075 = vmul.u32.u64.compose %v7071, %v7066
    %v7076 = vextract.low.u32 %v7075
    %v7077 = vextract.high.u32 %v7075
    %v7078 = vmul.u32 %v7071, %v7062
    %v7079 = vadd.s32 %v7074, %v7076
    %vm7080 = vc.u32 %v7074, %v7076
    %v7081 = vadd.s32 %v7077, 1
    %v7082 = vsel %vm7080, %v7081, %v7077
    %v7083 = vadd.s32 %v7078, %v7082
    %v7084 = vadd.s32 %v7083, 536870912
    %v7085 = vshrl.u32 %v7084, 30
    %v7086 = vshll.u32 %v7085, 30
    %v7087 = vsub.s32 %v7083, %v7086
    %vm7088 = vcmp.lt.s32.totalorder %v7087, 0
    %v7089 = vsub.s32 0, %v7087
    %v7090 = vsel %vm7088, %v7089, %v7087
    %v7091 = vclz %v7090
    %v7092 = vsub.s32 %v7091, 2
    %vm7093 = vcmp.gt.s32.totalorder 0, %v7092
    %v7094 = vsel %vm7093, 0, %v7092
    %v7095 = vsub.s32 32, %v7094
    %v7096 = vshll.u32 %v7087, %v7094
    %v7097 = vshrl.u32 %v7079, %v7095
    %v7098 = vor.u32 %v7096, %v7097
    %v7099 = vsub.s32 4294967266, %v7094
    %v7100 = vadd.s32 %v7099, 127
    %v7101 = vshll.u32 %v7100, 23
    %v7102 = vor.u32 4788187, %v7101
    %v7103 = vand.u32 2147483647, %v7102
    %v7105 = vcvt.s32.f32 %v7098
    %v7106 = vmul.f32 %v7105, %v7103
    %v7107 = vxor.u32 %v7106, 2147483648
    %v7108 = vsel %vm7025, %v7107, %v7106
    %v7109 = vsub.s32 4, %v7085
    %v7110 = vsel %vm7025, %v7109, %v7085
    %v7111 = vsel %vm7024, %v4210, %v7108
    %v7112 = vsel %vm7024, 0, %v7110
    %v7113 = vcosq.f32.pop %v7111
    %v7114 = vsinq.f32.pop %v7111
    %vm7115 = vweird.f32 %v4210
    %v7116 = vadd.s32 %v7112, 3
    %v7117 = vand.u32 %v7116, 3
    %vm7118 = vcmp.lt.s32.totalorder %v7117, 2
    %vm7119 = vcmp.eq.s32.totalorder %v7117, 0
    %v7120 = vxor.u32 %v7114, 2147483648
    %v7121 = vsel %vm7119, %v7113, %v7120
    %vm7122 = vcmp.eq.s32.totalorder %v7117, 2
    %v7123 = vxor.u32 %v7113, 2147483648
    %v7124 = vsel %vm7122, %v7123, %v7114
    %v7125 = vsel %vm7118, %v7121, %v7124
    %v7126 = vsel %vm7115, nan, %v7125
    %v7127 = vand.u32 2147483647, %v4211
    %vm7128 = vcmp.le.f32.partialorder %v7127, 0.7853982
    %vm7129 = vcmp.lt.s32.totalorder %v4211, 0
    %v7130 = vand.u32 %v4211, 2139095040
    %v7131 = vshrl.u32 %v7130, 23
    %v7132 = vsub.s32 %v7131, 127
    %v7133 = vand.u32 2147483647, %v4211
    %v7134 = vand.u32 %v7133, 8388607
    %v7135 = vor.u32 %v7134, 8388608
    %v7136 = vsub.s32 0, %v7135
    %v7137 = vadd.s32 %v7132, 1
    %vm7138 = vcmp.gt.s32.totalorder %v7137, 0
    %v7139 = vsel %vm7138, %v7137, 0
    %v7140 = vshrl.u32 %v7139, 5
    %v7141 = vand.u32 %v7139, 31
    %v7142 = vsub.s32 32, %v7141
    %v7143 = vshrl.u32 683565275, %v7142
    %v7144 = vshll.u32 683565275, %v7141
    %v7145 = vshrl.u32 2475754826, %v7142
    %v7146 = vor.u32 %v7144, %v7145
    %v7147 = vshll.u32 2475754826, %v7141
    %v7148 = vshrl.u32 2131351028, %v7142
    %v7149 = vor.u32 %v7147, %v7148
    %v7150 = vshll.u32 2131351028, %v7141
    %v7151 = vshrl.u32 2102212464, %v7142
    %v7152 = vor.u32 %v7150, %v7151
    %v7153 = vshll.u32 2102212464, %v7141
    %v7154 = vshrl.u32 920167782, %v7142
    %v7155 = vor.u32 %v7153, %v7154
    %v7156 = vshll.u32 920167782, %v7141
    %v7157 = vshrl.u32 1326507024, %v7142
    %v7158 = vor.u32 %v7156, %v7157
    %vm7159 = vcmp.lt.s32.totalorder %v7140, 1
    %vm7160 = vcmp.lt.s32.totalorder %v7140, 2
    %vm7161 = vcmp.lt.s32.totalorder %v7140, 3
    %vm7162 = vcmp.lt.s32.totalorder %v7140, 4
    %v7163 = vsel %vm7159, %v7143, %v7146
    %v7164 = vsel %vm7162, %v7152, 2102212464
    %v7165 = vsel %vm7161, %v7149, %v7164
    %v7166 = vsel %vm7160, %v7163, %v7165
    %v7167 = vsel %vm7159, %v7146, %v7149
    %v7168 = vsel %vm7162, %v7155, 920167782
    %v7169 = vsel %vm7161, %v7152, %v7168
    %v7170 = vsel %vm7160, %v7167, %v7169
    %v7171 = vsel %vm7159, %v7149, %v7152
    %v7172 = vsel %vm7162, %v7158, 1326507024
    %v7173 = vsel %vm7161, %v7155, %v7172
    %v7174 = vsel %vm7160, %v7171, %v7173
    %v7175 = vshll.u32 %v7135, 8
    %v7176 = vmul.u32.u64.compose %v7175, %v7174
    %v7177 = vextract.low.u32 %v7176
    %v7178 = vextract.high.u32 %v7176
    %v7179 = vmul.u32.u64.compose %v7175, %v7170
    %v7180 = vextract.low.u32 %v7179
    %v7181 = vextract.high.u32 %v7179
    %v7182 = vmul.u32 %v7175, %v7166
    %v7183 = vadd.s32 %v7178, %v7180
    %vm7184 = vc.u32 %v7178, %v7180
    %v7185 = vadd.s32 %v7181, 1
    %v7186 = vsel %vm7184, %v7185, %v7181
    %v7187 = vadd.s32 %v7182, %v7186
    %v7188 = vadd.s32 %v7187, 536870912
    %v7189 = vshrl.u32 %v7188, 30
    %v7190 = vshll.u32 %v7189, 30
    %v7191 = vsub.s32 %v7187, %v7190
    %vm7192 = vcmp.lt.s32.totalorder %v7191, 0
    %v7193 = vsub.s32 0, %v7191
    %v7194 = vsel %vm7192, %v7193, %v7191
    %v7195 = vclz %v7194
    %v7196 = vsub.s32 %v7195, 2
    %vm7197 = vcmp.gt.s32.totalorder 0, %v7196
    %v7198 = vsel %vm7197, 0, %v7196
    %v7199 = vsub.s32 32, %v7198
    %v7200 = vshll.u32 %v7191, %v7198
    %v7201 = vshrl.u32 %v7183, %v7199
    %v7202 = vor.u32 %v7200, %v7201
    %v7203 = vsub.s32 4294967266, %v7198
    %v7204 = vadd.s32 %v7203, 127
    %v7205 = vshll.u32 %v7204, 23
    %v7206 = vor.u32 4788187, %v7205
    %v7207 = vand.u32 2147483647, %v7206
    %v7209 = vcvt.s32.f32 %v7202
    %v7210 = vmul.f32 %v7209, %v7207
    %v7211 = vxor.u32 %v7210, 2147483648
    %v7212 = vsel %vm7129, %v7211, %v7210
    %v7213 = vsub.s32 4, %v7189
    %v7214 = vsel %vm7129, %v7213, %v7189
    %v7215 = vsel %vm7128, %v4211, %v7212
    %v7216 = vsel %vm7128, 0, %v7214
    %v7217 = vcosq.f32.pop %v7215
    %v7218 = vsinq.f32.pop %v7215
    %vm7219 = vweird.f32 %v4211
    %v7220 = vadd.s32 %v7216, 3
    %v7221 = vand.u32 %v7220, 3
    %vm7222 = vcmp.lt.s32.totalorder %v7221, 2
    %vm7223 = vcmp.eq.s32.totalorder %v7221, 0
    %v7224 = vxor.u32 %v7218, 2147483648
    %v7225 = vsel %vm7223, %v7217, %v7224
    %vm7226 = vcmp.eq.s32.totalorder %v7221, 2
    %v7227 = vxor.u32 %v7217, 2147483648
    %v7228 = vsel %vm7226, %v7227, %v7218
    %v7229 = vsel %vm7222, %v7225, %v7228
    %v7230 = vsel %vm7219, nan, %v7229
    %v7231 = vand.u32 2147483647, %v4212
    %vm7232 = vcmp.le.f32.partialorder %v7231, 0.7853982
    %vm7233 = vcmp.lt.s32.totalorder %v4212, 0
    %v7234 = vand.u32 %v4212, 2139095040
    %v7235 = vshrl.u32 %v7234, 23
    %v7236 = vsub.s32 %v7235, 127
    %v7237 = vand.u32 2147483647, %v4212
    %v7238 = vand.u32 %v7237, 8388607
    %v7239 = vor.u32 %v7238, 8388608
    %v7240 = vsub.s32 0, %v7239
    %v7241 = vadd.s32 %v7236, 1
    %vm7242 = vcmp.gt.s32.totalorder %v7241, 0
    %v7243 = vsel %vm7242, %v7241, 0
    %v7244 = vshrl.u32 %v7243, 5
    %v7245 = vand.u32 %v7243, 31
    %v7246 = vsub.s32 32, %v7245
    %v7247 = vshrl.u32 683565275, %v7246
    %v7248 = vshll.u32 683565275, %v7245
    %v7249 = vshrl.u32 2475754826, %v7246
    %v7250 = vor.u32 %v7248, %v7249
    %v7251 = vshll.u32 2475754826, %v7245
    %v7252 = vshrl.u32 2131351028, %v7246
    %v7253 = vor.u32 %v7251, %v7252
    %v7254 = vshll.u32 2131351028, %v7245
    %v7255 = vshrl.u32 2102212464, %v7246
    %v7256 = vor.u32 %v7254, %v7255
    %v7257 = vshll.u32 2102212464, %v7245
    %v7258 = vshrl.u32 920167782, %v7246
    %v7259 = vor.u32 %v7257, %v7258
    %v7260 = vshll.u32 920167782, %v7245
    %v7261 = vshrl.u32 1326507024, %v7246
    %v7262 = vor.u32 %v7260, %v7261
    %vm7263 = vcmp.lt.s32.totalorder %v7244, 1
    %vm7264 = vcmp.lt.s32.totalorder %v7244, 2
    %vm7265 = vcmp.lt.s32.totalorder %v7244, 3
    %vm7266 = vcmp.lt.s32.totalorder %v7244, 4
    %v7267 = vsel %vm7263, %v7247, %v7250
    %v7268 = vsel %vm7266, %v7256, 2102212464
    %v7269 = vsel %vm7265, %v7253, %v7268
    %v7270 = vsel %vm7264, %v7267, %v7269
    %v7271 = vsel %vm7263, %v7250, %v7253
    %v7272 = vsel %vm7266, %v7259, 920167782
    %v7273 = vsel %vm7265, %v7256, %v7272
    %v7274 = vsel %vm7264, %v7271, %v7273
    %v7275 = vsel %vm7263, %v7253, %v7256
    %v7276 = vsel %vm7266, %v7262, 1326507024
    %v7277 = vsel %vm7265, %v7259, %v7276
    %v7278 = vsel %vm7264, %v7275, %v7277
    %v7279 = vshll.u32 %v7239, 8
    %v7280 = vmul.u32.u64.compose %v7279, %v7278
    %v7281 = vextract.low.u32 %v7280
    %v7282 = vextract.high.u32 %v7280
    %v7283 = vmul.u32.u64.compose %v7279, %v7274
    %v7284 = vextract.low.u32 %v7283
    %v7285 = vextract.high.u32 %v7283
    %v7286 = vmul.u32 %v7279, %v7270
    %v7287 = vadd.s32 %v7282, %v7284
    %vm7288 = vc.u32 %v7282, %v7284
    %v7289 = vadd.s32 %v7285, 1
    %v7290 = vsel %vm7288, %v7289, %v7285
    %v7291 = vadd.s32 %v7286, %v7290
    %v7292 = vadd.s32 %v7291, 536870912
    %v7293 = vshrl.u32 %v7292, 30
    %v7294 = vshll.u32 %v7293, 30
    %v7295 = vsub.s32 %v7291, %v7294
    %vm7296 = vcmp.lt.s32.totalorder %v7295, 0
    %v7297 = vsub.s32 0, %v7295
    %v7298 = vsel %vm7296, %v7297, %v7295
    %v7299 = vclz %v7298
    %v7300 = vsub.s32 %v7299, 2
    %vm7301 = vcmp.gt.s32.totalorder 0, %v7300
    %v7302 = vsel %vm7301, 0, %v7300
    %v7303 = vsub.s32 32, %v7302
    %v7304 = vshll.u32 %v7295, %v7302
    %v7305 = vshrl.u32 %v7287, %v7303
    %v7306 = vor.u32 %v7304, %v7305
    %v7307 = vsub.s32 4294967266, %v7302
    %v7308 = vadd.s32 %v7307, 127
    %v7309 = vshll.u32 %v7308, 23
    %v7310 = vor.u32 4788187, %v7309
    %v7311 = vand.u32 2147483647, %v7310
    %v7313 = vcvt.s32.f32 %v7306
    %v7314 = vmul.f32 %v7313, %v7311
    %v7315 = vxor.u32 %v7314, 2147483648
    %v7316 = vsel %vm7233, %v7315, %v7314
    %v7317 = vsub.s32 4, %v7293
    %v7318 = vsel %vm7233, %v7317, %v7293
    %v7319 = vsel %vm7232, %v4212, %v7316
    %v7320 = vsel %vm7232, 0, %v7318
    %v7321 = vcosq.f32.pop %v7319
    %v7322 = vsinq.f32.pop %v7319
    %vm7323 = vweird.f32 %v4212
    %v7324 = vadd.s32 %v7320, 3
    %v7325 = vand.u32 %v7324, 3
    %vm7326 = vcmp.lt.s32.totalorder %v7325, 2
    %vm7327 = vcmp.eq.s32.totalorder %v7325, 0
    %v7328 = vxor.u32 %v7322, 2147483648
    %v7329 = vsel %vm7327, %v7321, %v7328
    %vm7330 = vcmp.eq.s32.totalorder %v7325, 2
    %v7331 = vxor.u32 %v7321, 2147483648
    %v7332 = vsel %vm7330, %v7331, %v7322
    %v7333 = vsel %vm7326, %v7329, %v7332
    %v7334 = vsel %vm7323, nan, %v7333
    %v7335 = vand.u32 2147483647, %v4213
    %vm7336 = vcmp.le.f32.partialorder %v7335, 0.7853982
    %vm7337 = vcmp.lt.s32.totalorder %v4213, 0
    %v7338 = vand.u32 %v4213, 2139095040
    %v7339 = vshrl.u32 %v7338, 23
    %v7340 = vsub.s32 %v7339, 127
    %v7341 = vand.u32 2147483647, %v4213
    %v7342 = vand.u32 %v7341, 8388607
    %v7343 = vor.u32 %v7342, 8388608
    %v7344 = vsub.s32 0, %v7343
    %v7345 = vadd.s32 %v7340, 1
    %vm7346 = vcmp.gt.s32.totalorder %v7345, 0
    %v7347 = vsel %vm7346, %v7345, 0
    %v7348 = vshrl.u32 %v7347, 5
    %v7349 = vand.u32 %v7347, 31
    %v7350 = vsub.s32 32, %v7349
    %v7351 = vshrl.u32 683565275, %v7350
    %v7352 = vshll.u32 683565275, %v7349
    %v7353 = vshrl.u32 2475754826, %v7350
    %v7354 = vor.u32 %v7352, %v7353
    %v7355 = vshll.u32 2475754826, %v7349
    %v7356 = vshrl.u32 2131351028, %v7350
    %v7357 = vor.u32 %v7355, %v7356
    %v7358 = vshll.u32 2131351028, %v7349
    %v7359 = vshrl.u32 2102212464, %v7350
    %v7360 = vor.u32 %v7358, %v7359
    %v7361 = vshll.u32 2102212464, %v7349
    %v7362 = vshrl.u32 920167782, %v7350
    %v7363 = vor.u32 %v7361, %v7362
    %v7364 = vshll.u32 920167782, %v7349
    %v7365 = vshrl.u32 1326507024, %v7350
    %v7366 = vor.u32 %v7364, %v7365
    %vm7367 = vcmp.lt.s32.totalorder %v7348, 1
    %vm7368 = vcmp.lt.s32.totalorder %v7348, 2
    %vm7369 = vcmp.lt.s32.totalorder %v7348, 3
    %vm7370 = vcmp.lt.s32.totalorder %v7348, 4
    %v7371 = vsel %vm7367, %v7351, %v7354
    %v7372 = vsel %vm7370, %v7360, 2102212464
    %v7373 = vsel %vm7369, %v7357, %v7372
    %v7374 = vsel %vm7368, %v7371, %v7373
    %v7375 = vsel %vm7367, %v7354, %v7357
    %v7376 = vsel %vm7370, %v7363, 920167782
    %v7377 = vsel %vm7369, %v7360, %v7376
    %v7378 = vsel %vm7368, %v7375, %v7377
    %v7379 = vsel %vm7367, %v7357, %v7360
    %v7380 = vsel %vm7370, %v7366, 1326507024
    %v7381 = vsel %vm7369, %v7363, %v7380
    %v7382 = vsel %vm7368, %v7379, %v7381
    %v7383 = vshll.u32 %v7343, 8
    %v7384 = vmul.u32.u64.compose %v7383, %v7382
    %v7385 = vextract.low.u32 %v7384
    %v7386 = vextract.high.u32 %v7384
    %v7387 = vmul.u32.u64.compose %v7383, %v7378
    %v7388 = vextract.low.u32 %v7387
    %v7389 = vextract.high.u32 %v7387
    %v7390 = vmul.u32 %v7383, %v7374
    %v7391 = vadd.s32 %v7386, %v7388
    %vm7392 = vc.u32 %v7386, %v7388
    %v7393 = vadd.s32 %v7389, 1
    %v7394 = vsel %vm7392, %v7393, %v7389
    %v7395 = vadd.s32 %v7390, %v7394
    %v7396 = vadd.s32 %v7395, 536870912
    %v7397 = vshrl.u32 %v7396, 30
    %v7398 = vshll.u32 %v7397, 30
    %v7399 = vsub.s32 %v7395, %v7398
    %vm7400 = vcmp.lt.s32.totalorder %v7399, 0
    %v7401 = vsub.s32 0, %v7399
    %v7402 = vsel %vm7400, %v7401, %v7399
    %v7403 = vclz %v7402
    %v7404 = vsub.s32 %v7403, 2
    %vm7405 = vcmp.gt.s32.totalorder 0, %v7404
    %v7406 = vsel %vm7405, 0, %v7404
    %v7407 = vsub.s32 32, %v7406
    %v7408 = vshll.u32 %v7399, %v7406
    %v7409 = vshrl.u32 %v7391, %v7407
    %v7410 = vor.u32 %v7408, %v7409
    %v7411 = vsub.s32 4294967266, %v7406
    %v7412 = vadd.s32 %v7411, 127
    %v7413 = vshll.u32 %v7412, 23
    %v7414 = vor.u32 4788187, %v7413
    %v7415 = vand.u32 2147483647, %v7414
    %v7417 = vcvt.s32.f32 %v7410
    %v7418 = vmul.f32 %v7417, %v7415
    %v7419 = vxor.u32 %v7418, 2147483648
    %v7420 = vsel %vm7337, %v7419, %v7418
    %v7421 = vsub.s32 4, %v7397
    %v7422 = vsel %vm7337, %v7421, %v7397
    %v7423 = vsel %vm7336, %v4213, %v7420
    %v7424 = vsel %vm7336, 0, %v7422
    %v7425 = vcosq.f32.pop %v7423
    %v7426 = vsinq.f32.pop %v7423
    %vm7427 = vweird.f32 %v4213
    %v7428 = vadd.s32 %v7424, 3
    %v7429 = vand.u32 %v7428, 3
    %vm7430 = vcmp.lt.s32.totalorder %v7429, 2
    %vm7431 = vcmp.eq.s32.totalorder %v7429, 0
    %v7432 = vxor.u32 %v7426, 2147483648
    %v7433 = vsel %vm7431, %v7425, %v7432
    %vm7434 = vcmp.eq.s32.totalorder %v7429, 2
    %v7435 = vxor.u32 %v7425, 2147483648
    %v7436 = vsel %vm7434, %v7435, %v7426
    %v7437 = vsel %vm7430, %v7433, %v7436
    %v7438 = vsel %vm7427, nan, %v7437
    %v7439 = vand.u32 2147483647, %v4214
    %vm7440 = vcmp.le.f32.partialorder %v7439, 0.7853982
    %vm7441 = vcmp.lt.s32.totalorder %v4214, 0
    %v7442 = vand.u32 %v4214, 2139095040
    %v7443 = vshrl.u32 %v7442, 23
    %v7444 = vsub.s32 %v7443, 127
    %v7445 = vand.u32 2147483647, %v4214
    %v7446 = vand.u32 %v7445, 8388607
    %v7447 = vor.u32 %v7446, 8388608
    %v7448 = vsub.s32 0, %v7447
    %v7449 = vadd.s32 %v7444, 1
    %vm7450 = vcmp.gt.s32.totalorder %v7449, 0
    %v7451 = vsel %vm7450, %v7449, 0
    %v7452 = vshrl.u32 %v7451, 5
    %v7453 = vand.u32 %v7451, 31
    %v7454 = vsub.s32 32, %v7453
    %v7455 = vshrl.u32 683565275, %v7454
    %v7456 = vshll.u32 683565275, %v7453
    %v7457 = vshrl.u32 2475754826, %v7454
    %v7458 = vor.u32 %v7456, %v7457
    %v7459 = vshll.u32 2475754826, %v7453
    %v7460 = vshrl.u32 2131351028, %v7454
    %v7461 = vor.u32 %v7459, %v7460
    %v7462 = vshll.u32 2131351028, %v7453
    %v7463 = vshrl.u32 2102212464, %v7454
    %v7464 = vor.u32 %v7462, %v7463
    %v7465 = vshll.u32 2102212464, %v7453
    %v7466 = vshrl.u32 920167782, %v7454
    %v7467 = vor.u32 %v7465, %v7466
    %v7468 = vshll.u32 920167782, %v7453
    %v7469 = vshrl.u32 1326507024, %v7454
    %v7470 = vor.u32 %v7468, %v7469
    %vm7471 = vcmp.lt.s32.totalorder %v7452, 1
    %vm7472 = vcmp.lt.s32.totalorder %v7452, 2
    %vm7473 = vcmp.lt.s32.totalorder %v7452, 3
    %vm7474 = vcmp.lt.s32.totalorder %v7452, 4
    %v7475 = vsel %vm7471, %v7455, %v7458
    %v7476 = vsel %vm7474, %v7464, 2102212464
    %v7477 = vsel %vm7473, %v7461, %v7476
    %v7478 = vsel %vm7472, %v7475, %v7477
    %v7479 = vsel %vm7471, %v7458, %v7461
    %v7480 = vsel %vm7474, %v7467, 920167782
    %v7481 = vsel %vm7473, %v7464, %v7480
    %v7482 = vsel %vm7472, %v7479, %v7481
    %v7483 = vsel %vm7471, %v7461, %v7464
    %v7484 = vsel %vm7474, %v7470, 1326507024
    %v7485 = vsel %vm7473, %v7467, %v7484
    %v7486 = vsel %vm7472, %v7483, %v7485
    %v7487 = vshll.u32 %v7447, 8
    %v7488 = vmul.u32.u64.compose %v7487, %v7486
    %v7489 = vextract.low.u32 %v7488
    %v7490 = vextract.high.u32 %v7488
    %v7491 = vmul.u32.u64.compose %v7487, %v7482
    %v7492 = vextract.low.u32 %v7491
    %v7493 = vextract.high.u32 %v7491
    %v7494 = vmul.u32 %v7487, %v7478
    %v7495 = vadd.s32 %v7490, %v7492
    %vm7496 = vc.u32 %v7490, %v7492
    %v7497 = vadd.s32 %v7493, 1
    %v7498 = vsel %vm7496, %v7497, %v7493
    %v7499 = vadd.s32 %v7494, %v7498
    %v7500 = vadd.s32 %v7499, 536870912
    %v7501 = vshrl.u32 %v7500, 30
    %v7502 = vshll.u32 %v7501, 30
    %v7503 = vsub.s32 %v7499, %v7502
    %vm7504 = vcmp.lt.s32.totalorder %v7503, 0
    %v7505 = vsub.s32 0, %v7503
    %v7506 = vsel %vm7504, %v7505, %v7503
    %v7507 = vclz %v7506
    %v7508 = vsub.s32 %v7507, 2
    %vm7509 = vcmp.gt.s32.totalorder 0, %v7508
    %v7510 = vsel %vm7509, 0, %v7508
    %v7511 = vsub.s32 32, %v7510
    %v7512 = vshll.u32 %v7503, %v7510
    %v7513 = vshrl.u32 %v7495, %v7511
    %v7514 = vor.u32 %v7512, %v7513
    %v7515 = vsub.s32 4294967266, %v7510
    %v7516 = vadd.s32 %v7515, 127
    %v7517 = vshll.u32 %v7516, 23
    %v7518 = vor.u32 4788187, %v7517
    %v7519 = vand.u32 2147483647, %v7518
    %v7521 = vcvt.s32.f32 %v7514
    %v7522 = vmul.f32 %v7521, %v7519
    %v7523 = vxor.u32 %v7522, 2147483648
    %v7524 = vsel %vm7441, %v7523, %v7522
    %v7525 = vsub.s32 4, %v7501
    %v7526 = vsel %vm7441, %v7525, %v7501
    %v7527 = vsel %vm7440, %v4214, %v7524
    %v7528 = vsel %vm7440, 0, %v7526
    %v7529 = vcosq.f32.pop %v7527
    %v7530 = vsinq.f32.pop %v7527
    %vm7531 = vweird.f32 %v4214
    %v7532 = vadd.s32 %v7528, 3
    %v7533 = vand.u32 %v7532, 3
    %vm7534 = vcmp.lt.s32.totalorder %v7533, 2
    %vm7535 = vcmp.eq.s32.totalorder %v7533, 0
    %v7536 = vxor.u32 %v7530, 2147483648
    %v7537 = vsel %vm7535, %v7529, %v7536
    %vm7538 = vcmp.eq.s32.totalorder %v7533, 2
    %v7539 = vxor.u32 %v7529, 2147483648
    %v7540 = vsel %vm7538, %v7539, %v7530
    %v7541 = vsel %vm7534, %v7537, %v7540
    %v7542 = vsel %vm7531, nan, %v7541
    %7543 = vst [vmem:[#allocation7 + $0x80] sm:$0xff] %v4318
    %7544 = vst [vmem:[#allocation7 + $0x88] sm:$0xff] %v4422
    %7545 = vst [vmem:[#allocation7 + $0x90] sm:$0xff] %v4526
    %7546 = vst [vmem:[#allocation7 + $0x98] sm:$0xff] %v4630
    %7547 = vst [vmem:[#allocation7 + $0xa0] sm:$0xff] %v4734
    %7548 = vst [vmem:[#allocation7 + $0xa8] sm:$0xff] %v4838
    %7549 = vst [vmem:[#allocation7 + $0xb0] sm:$0xff] %v4942
    %7550 = vst [vmem:[#allocation7 + $0xb8] sm:$0xff] %v5046
    %7551 = vst [vmem:[#allocation7 + $0xc0] sm:$0xff] %v5150
    %7552 = vst [vmem:[#allocation7 + $0xc8] sm:$0xff] %v5254
    %7553 = vst [vmem:[#allocation7 + $0xd0] sm:$0xff] %v5358
    %7554 = vst [vmem:[#allocation7 + $0xd8] sm:$0xff] %v5462
    %7555 = vst [vmem:[#allocation7 + $0xe0] sm:$0xff] %v5566
    %7556 = vst [vmem:[#allocation7 + $0xe8] sm:$0xff] %v5670
    %7557 = vst [vmem:[#allocation7 + $0xf0] sm:$0xff] %v5774
    %7558 = vst [vmem:[#allocation7 + $0xf8] sm:$0xff] %v5878
    %7559 = vst [vmem:[#allocation7 + $0x180] sm:$0xff] %v5982
    %7560 = vst [vmem:[#allocation7 + $0x188] sm:$0xff] %v6086
    %7561 = vst [vmem:[#allocation7 + $0x190] sm:$0xff] %v6190
    %7562 = vst [vmem:[#allocation7 + $0x198] sm:$0xff] %v6294
    %7563 = vst [vmem:[#allocation7 + $0x1a0] sm:$0xff] %v6398
    %7564 = vst [vmem:[#allocation7 + $0x1a8] sm:$0xff] %v6502
    %7565 = vst [vmem:[#allocation7 + $0x1b0] sm:$0xff] %v6606
    %7566 = vst [vmem:[#allocation7 + $0x1b8] sm:$0xff] %v6710
    %7567 = vst [vmem:[#allocation7 + $0x1c0] sm:$0xff] %v6814
    %7568 = vst [vmem:[#allocation7 + $0x1c8] sm:$0xff] %v6918
    %7569 = vst [vmem:[#allocation7 + $0x1d0] sm:$0xff] %v7022
    %7570 = vst [vmem:[#allocation7 + $0x1d8] sm:$0xff] %v7126
    %7571 = vst [vmem:[#allocation7 + $0x1e0] sm:$0xff] %v7230
    %7572 = vst [vmem:[#allocation7 + $0x1e8] sm:$0xff] %v7334
    %7573 = vst [vmem:[#allocation7 + $0x1f0] sm:$0xff] %v7438
    %7574 = vst [vmem:[#allocation7 + $0x1f8] sm:$0xff] %v7542
    // Predicated region
    $region30: #{tpu_custom_call.1} parent=1 // pred_check
      _
    $region31: #{tpu_custom_call.1} parent=1 // pred_check_branch
      %7576 = sbr.rel (0) target = $region33
    $region32: #{tpu_custom_call.1} parent=1 // pred_region
      %s7578 = ssub.s32 8192, 8192
      %7579 = vsyncadd [#allocation4], %s7578
      %s7580 = sshll.u32 [#allocation7], 4
      %s7581 = int_to_ptr.vmem [resolvable:$true] %s7580
      %7586 = dma.vmem_to_hbm [thread:$0]  %s7581, 8192, %s5, [#allocation4], 256, 256, 16
    $region33: #{tpu_custom_call.1} parent=1 // pred_fallthru
      _
    // Predicated region
    $region34: #{tpu_custom_call.1} parent=1 // pred_check
      _
    $region35: #{tpu_custom_call.1} parent=1 // pred_check_branch
      %7588 = sbr.rel (0) target = $region37
    $region36: #{tpu_custom_call.1} parent=1 // pred_region
      %7589 = dma.done [#allocation4], 8192
    $region37: #{tpu_custom_call.1} parent=1 // pred_fallthru
      _
    %7590 = vsyncpa [#allocation3], 1
    %7591 = vsyncpa [#allocation6], 1
    %7592 = vsyncpa [#allocation4], 1

</llo_original>
